<compile_context>
chip_gen: v5e
topology: v5e:2x2
jax: 0.10.0
libtpu: 0.0.40
codegen_flags: <defaults>
</compile_context>

<pallas_src>
import numpy as np
import jax
import jax.numpy as jnp
from jax.experimental import pallas as pl
from jax.experimental.pallas import tpu as pltpu

K_SIZE = 13                  # TripletAttention kernel_size=13
PAD = (K_SIZE - 1) // 2      # conv padding = 6
LANE = 128                   # one 128-lane group per pooled channel per branch
N_GROUPS = 6                 # 3 branches x {max, mean}
GEM_EPS = 1e-6
ARC_S = 30.0                 # ArcMargin s=30.0, m=0.0
VMEM_LIMIT = 64 * 1024 * 1024


def _round_up(v, m):
    return (v + m - 1) // m * m


def _divisor_at_most(n, cap):
    for t in range(min(n, cap), 0, -1):
        if n % t == 0:
            return t
    return 1


# ----------------------------------------------------------------------------
# Wrapper-side weight preparation: three 13x13 convs -> ONE banded matmul weight
# ----------------------------------------------------------------------------
def make_combined_band(w_s, w_h, w_wt, height, width):
    """Combined banded conv weights for the three SpatialGate branches.

    Pad-slab lane layout (contraction dim, 128 lanes per pooled channel):
      lanes [  0,256): spatial branch {max, mean over C}  maps (H, W)
      lanes [256,512): H-branch       {max, mean over H}  maps (C, W)
      lanes [512,768): W-branch(T)    {max, mean over W}  maps (C, H)
    Output columns (block structured): [0,W) spatial, [W,2W) H-branch,
    [2W,2W+H) W-branch.  The kw (lane) padding is absorbed into the band
    columns so the pooled maps are stored starting at lane 0 of their group.
    sum_kh slab[row+kh, :] @ band[kh]  ==  the three conv2d outputs.
    """
    assert width <= LANE and height <= LANE, "spatial extent too large for one lane group"
    ncols = 2 * width + height
    band = np.zeros((K_SIZE, N_GROUPS * LANE, ncols), np.float32)
    branches = (
        (np.asarray(w_s, np.float32), width, 0, 0),           # spatial
        (np.asarray(w_h, np.float32), width, width, 2 * LANE),  # H-branch
        (np.asarray(w_wt, np.float32), height, 2 * width, 4 * LANE),  # W-branch (transposed)
    )
    for w, s2, col0, lane0 in branches:
        qs = np.arange(s2)
        for c in range(2):                       # 0 = max map, 1 = mean map (torch order)
            for kh in range(K_SIZE):
                for kw in range(K_SIZE):
                    src = qs + kw - PAD
                    ok = (src >= 0) & (src < s2)
                    band[kh, lane0 + c * LANE + src[ok], col0 + qs[ok]] = w[c, kh, kw]
    return jnp.asarray(band)


# ----------------------------------------------------------------------------
# Kernel 1: fused TripletAttention (3 SpatialGates) + 1/3 average + GeM(p=4)
# ----------------------------------------------------------------------------
def fused_attention_gem(x, band, bias_cols):
    """x: (B, C, H, W) f32 -> GeM-pooled features (B, 1, C) f32."""
    B, C, H, W = x.shape
    ncols = band.shape[2]
    TB = _divisor_at_most(B, 8)                        # batch elements per grid step
    RB = _round_up(max(H, C) + 2 * PAD, 8)             # slab rows per batch element
    R = TB * RB                                        # total slab rows
    M = (TB - 1) * RB + max(H, C)                      # conv-output rows actually used
    inv_c, inv_h, inv_w = 1.0 / C, 1.0 / H, 1.0 / W

    def kernel(x_ref, band_ref, bias_ref, out_ref, pad_ref):
        # ChannelPool of each branch for all TB batch elements (torch order: max, mean)
        mx_s = jnp.max(x_ref[...], axis=1)             # (TB, H, W) spatial branch
        mn_s = jnp.sum(x_ref[...], axis=1) * inv_c
        mx_h = jnp.max(x_ref[...], axis=2)             # (TB, C, W) H-branch
        mn_h = jnp.sum(x_ref[...], axis=2) * inv_h
        mx_w = jnp.max(x_ref[...], axis=3)             # (TB, C, H) W-branch (transposed)
        mn_w = jnp.sum(x_ref[...], axis=3) * inv_w

        # Zero the slab (see header: NaN-safety of stale VMEM + multi-core grids),
        # then write only the pooled-map interiors (lane-group starts are 128-aligned).
        pad_ref[...] = jnp.zeros(pad_ref.shape, pad_ref.dtype)
        for bb in range(TB):
            r0 = bb * RB + PAD
            pad_ref[r0:r0 + H, 0:W] = mx_s[bb]
            pad_ref[r0:r0 + H, LANE:LANE + W] = mn_s[bb]
            pad_ref[r0:r0 + C, 2 * LANE:2 * LANE + W] = mx_h[bb]
            pad_ref[r0:r0 + C, 3 * LANE:3 * LANE + W] = mn_h[bb]
            pad_ref[r0:r0 + C, 4 * LANE:4 * LANE + H] = mx_w[bb]
            pad_ref[r0:r0 + C, 5 * LANE:5 * LANE + H] = mn_w[bb]

        # All three 13x13 convs for all TB batch elements: 13 MXU dots with a
        # 768-wide (128-aligned) contraction; one row-shifted LHS slice per kh.
        acc = jnp.zeros((M, ncols), jnp.float32)
        for kh in range(K_SIZE):
            acc = acc + jnp.dot(pad_ref[kh:kh + M, :], band_ref[kh],
                                preferred_element_type=jnp.float32)
        gates = jax.nn.sigmoid(acc + bias_ref[...])    # (M, 2W+H)

        for bb in range(TB):
            r0 = bb * RB
            scale_s = gates[r0:r0 + H, 0:W]                   # (H, W)
            scale_h = gates[r0:r0 + C, W:2 * W]               # (C, W)
            scale_w = gates[r0:r0 + C, 2 * W:2 * W + H]       # (C, H)
            # 1/3 * (x*scale_s + x*scale_h + x*scale_w) == x * mean-of-scales
            comb = (scale_s[None, :, :] + scale_h[:, None, :]
                    + scale_w[:, :, None]) * (1.0 / 3.0)      # (C, H, W)
            attn = x_ref[bb] * comb
            # GeM pooling, p = 4: clamp -> ^4 -> spatial mean -> ^(1/4)
            g = jnp.maximum(attn, GEM_EPS)
            g2 = g * g
            g4 = g2 * g2
            s = jnp.sum(jnp.sum(g4, axis=2), axis=1) * (1.0 / (H * W))   # (C,)
            out_ref[bb, 0] = jnp.sqrt(jnp.sqrt(s))

    return pl.pallas_call(
        kernel,
        out_shape=jax.ShapeDtypeStruct((B, 1, C), jnp.float32),
        grid=(B // TB,),
        in_specs=[
            pl.BlockSpec((TB, C, H, W), lambda b: (b, 0, 0, 0)),
            pl.BlockSpec(band.shape, lambda b: (0, 0, 0)),       # resident weights
            pl.BlockSpec(bias_cols.shape, lambda b: (0, 0)),
        ],
        out_specs=pl.BlockSpec((TB, 1, C), lambda b: (b, 0, 0)),
        scratch_shapes=[pltpu.VMEM((R, N_GROUPS * LANE), jnp.float32)],
        compiler_params=pltpu.CompilerParams(
            dimension_semantics=("parallel",),
            vmem_limit_bytes=VMEM_LIMIT),
    )(x, band, bias_cols)


# ----------------------------------------------------------------------------
# Kernel 2: fc + BN1d (folded) + class-tiled [head | head2 | s*ArcMargin] matmul
# ----------------------------------------------------------------------------
def heads(pooled, fc_wt, fc_b, bn_s, bn_b, w_cls, b_cls, npad, cls_t):
    """pooled: (B, C).  Returns feat (B, 512) and combined logits (B, NCLS)."""
    B, C = pooled.shape
    F = fc_wt.shape[1]
    NCLS = w_cls.shape[1]
    if B <= 128:
        TB = B
    else:
        TB = B
        for t in range(128, 7, -8):              # multiple-of-8 divisor <= 128
            if B % t == 0:
                TB = t
                break
    grid = (B // TB, NCLS // cls_t)
    n_head_tiles = npad // cls_t                 # class tiles using raw feature + bias

    def kernel(p_ref, fcw_ref, fcb_ref, bns_ref, bnb_ref, w_ref, b_ref,
               feat_ref, logits_ref, feat_bf, fn_bf):
        j = pl.program_id(1)

        @pl.when(j == 0)
        def _():
            # fc + BN1d (inference stats, folded) + ArcFace feature normalisation,
            # computed once per batch tile and cached for every class tile.
            z = jnp.dot(p_ref[...].astype(jnp.bfloat16), fcw_ref[...],
                        preferred_element_type=jnp.float32) + fcb_ref[...]
            feat = z * bns_ref[...] + bnb_ref[...]                     # (TB, 512)
            feat_ref[...] = feat
            feat_bf[...] = feat.astype(jnp.bfloat16)
            ss = jnp.sum(feat * feat, axis=-1, keepdims=True)
            fn = feat * jax.lax.rsqrt(jnp.maximum(ss, 1e-24))          # F.normalize, eps=1e-12
            fn_bf[...] = fn.astype(jnp.bfloat16)

        # Class tiles [0, npad) are head/head2 columns (raw feature + bias);
        # tiles [npad, NCLS) are ArcMargin(m=0) columns (normalised feature,
        # s and row-normalisation folded into w_cls in make_params).
        is_arc = j >= n_head_tiles
        lhs = jnp.where(is_arc, fn_bf[...], feat_bf[...])
        logits_ref[...] = jnp.dot(lhs, w_ref[...],
                                  preferred_element_type=jnp.float32) + b_ref[...]

    return pl.pallas_call(
        kernel,
        out_shape=(
            jax.ShapeDtypeStruct((B, F), jnp.float32),       # feature
            jax.ShapeDtypeStruct((B, NCLS), jnp.float32),    # [u_id | species | pad | arc | pad]
        ),
        grid=grid,
        in_specs=[
            pl.BlockSpec((TB, C), lambda i, j: (i, 0)),
            pl.BlockSpec(fc_wt.shape, lambda i, j: (0, 0)),
            pl.BlockSpec(fc_b.shape, lambda i, j: (0, 0)),
            pl.BlockSpec(bn_s.shape, lambda i, j: (0, 0)),
            pl.BlockSpec(bn_b.shape, lambda i, j: (0, 0)),
            pl.BlockSpec((F, cls_t), lambda i, j: (0, j)),
            pl.BlockSpec((1, cls_t), lambda i, j: (0, j)),
        ],
        out_specs=(
            pl.BlockSpec((TB, F), lambda i, j: (i, 0)),
            pl.BlockSpec((TB, cls_t), lambda i, j: (i, j)),
        ),
        scratch_shapes=[
            pltpu.VMEM((TB, F), jnp.bfloat16),   # cached feat (bf16 MXU operand)
            pltpu.VMEM((TB, F), jnp.bfloat16),   # cached normalised feat
        ],
        compiler_params=pltpu.CompilerParams(
            dimension_semantics=("parallel", "arbitrary"),
            vmem_limit_bytes=VMEM_LIMIT),
    )(pooled, fc_wt, fc_b, bn_s, bn_b, w_cls, b_cls)


# ----------------------------------------------------------------------------
# Full forward
# ----------------------------------------------------------------------------
def block_attention_forward(x, label, params):
    del label  # ArcMargin with m=0.0 is independent of the label
    B, C, H, W = x.shape

    # backbone == identity (see TODO at top)
    pooled = fused_attention_gem(
        x, params["band"], params["gate_bias"]).reshape(B, C)

    feat, logits = heads(
        pooled, params["fc_wt"], params["fc_b"], params["bn_s"], params["bn_b"],
        params["w_cls"], params["b_cls"], params["npad"], params["cls_t"])

    n_id, n_sp, npad = params["n_id"], params["n_sp"], params["npad"]
    return {
        "arcface": logits[:, npad:npad + n_id],
        "species": logits[:, n_id:n_id + n_sp],
        "u_id": logits[:, :n_id],
        "feature": feat,
        "not_new": None,          # has_used=False in the reference
    }


# ----------------------------------------------------------------------------
# Deterministic parameter construction
# ----------------------------------------------------------------------------
def make_params(key, n_features, height, width, fc_dim, n_id, n_sp):
    ks = jax.random.split(key, 7)

    # SpatialGate conv (1, 2, 13, 13), bias=False; BN2d (eval defaults:
    # gamma=1, beta=0, rm=0, rv=1, eps=1e-5) folds to a pure scale on the weights.
    bn2_scale = (1.0 + 1e-5) ** -0.5

    def gate_w(k):
        return np.asarray(jax.random.normal(k, (2, K_SIZE, K_SIZE),
                                            jnp.float32)) * 0.05 * bn2_scale

    w_h = gate_w(ks[0])     # TripletAttention.ChannelGateH  -> conv over (C, W)
    w_w = gate_w(ks[1])     # TripletAttention.ChannelGateW  -> conv over (H, C)
    w_s = gate_w(ks[2])     # TripletAttention.SpatialGate   -> conv over (H, W)
    # W-branch is computed on the transposed (C, H) map -> transpose its kernel.
    band = make_combined_band(w_s, w_h, np.transpose(w_w, (0, 2, 1)), height, width)
    # conv bias=False and BN beta/running_mean are 0 -> zero per-column bias.
    gate_bias = jnp.zeros((1, band.shape[2]), jnp.float32)

    fc_w = jax.random.normal(ks[3], (fc_dim, n_features), jnp.float32) * 0.05
    fc_b = jnp.zeros((fc_dim,), jnp.float32)
    # BatchNorm1d, inference semantics with default stats: pure scale.
    bn_scale = jnp.full((fc_dim,), (1.0 + 1e-5) ** -0.5, jnp.float32)
    bn_shift = jnp.zeros((fc_dim,), jnp.float32)

    h_w = np.asarray(jax.random.normal(ks[4], (n_id, fc_dim), jnp.float32)) * 0.05
    h_b = np.zeros((n_id,), np.float32)
    h2_w = np.asarray(jax.random.normal(ks[5], (n_sp, fc_dim), jnp.float32)) * 0.05
    h2_b = np.zeros((n_sp,), np.float32)
    arc_w = np.asarray(jax.random.normal(ks[6], (n_id, fc_dim), jnp.float32)) * 0.05

    # One combined, class-tiled weight: [head | head2 | pad] ++ [s * normalised arc | pad].
    # cls_t is a 128-multiple tile that divides both padded segments (<= 1024).
    cls_t = min(1024, _round_up(n_id + n_sp, LANE))
    npad = _round_up(n_id + n_sp, cls_t)
    narc = _round_up(n_id, cls_t)
    w_cls = np.zeros((fc_dim, npad + narc), np.float32)
    b_cls = np.zeros((1, npad + narc), np.float32)
    w_cls[:, :n_id] = h_w.T
    w_cls[:, n_id:n_id + n_sp] = h2_w.T
    b_cls[0, :n_id] = h_b
    b_cls[0, n_id:n_id + n_sp] = h2_b
    arc_n = arc_w / np.maximum(np.linalg.norm(arc_w, axis=1, keepdims=True), 1e-12)
    w_cls[:, npad:npad + n_id] = (ARC_S * arc_n).T

    return {
        "band": band, "gate_bias": gate_bias,
        "fc_wt": jnp.asarray(fc_w).T.astype(jnp.bfloat16),
        "fc_b": fc_b.reshape(1, -1),
        "bn_s": bn_scale.reshape(1, -1), "bn_b": bn_shift.reshape(1, -1),
        "w_cls": jnp.asarray(w_cls, jnp.bfloat16),
        "b_cls": jnp.asarray(b_cls),
        "n_id": n_id, "n_sp": n_sp, "npad": npad, "cls_t": cls_t,
    }


if __name__ == "__main__":
    B, C, H, W = 2, 16, 16, 16          # n_features = 16
    fc_dim = 512
    num_class_id, num_class = 10, 7

    key = jax.random.PRNGKey(0)
    kx, kp = jax.random.split(key)
    x = jax.random.normal(kx, (B, C, H, W), jnp.float32)
    label = jnp.array([1, 3], jnp.int32)
    params = make_params(kp, C, H, W, fc_dim, num_class_id, num_class)

    fwd = jax.jit(lambda x_, l_: block_attention_forward(x_, l_, params))
    out = fwd(x, label)
    jax.block_until_ready(out)

    assert out["feature"].shape == (B, fc_dim)
    assert out["arcface"].shape == (B, num_class_id)
    assert out["u_id"].shape == (B, num_class_id)
    assert out["species"].shape == (B, num_class)
    assert bool(np.isfinite(np.asarray(out["feature"])).all())
    assert bool(np.isfinite(np.asarray(out["arcface"])).all())
    print("KERNEL_OK")
</pallas_src>

<mosaic_0001>
module attributes {stable_mosaic.version = 11 : i64} {
  func.func @kernel(%arg0: i32, %arg1: memref<2x16x16x16xf32, #tpu.memory_space<vmem>>, %arg2: memref<13x768x48xf32, #tpu.memory_space<vmem>>, %arg3: memref<1x48xf32, #tpu.memory_space<vmem>>, %arg4: memref<2x1x16xf32, #tpu.memory_space<vmem>>, %arg5: memref<64x768xf32, #tpu.memory_space<vmem>>) attributes {dimension_semantics = [#tpu.dimension_semantics<parallel>], iteration_bounds = array<i64: 1>, scalar_prefetch = 0 : i64, scratch_operands = 1 : i64, tpu.core_type = #tpu.core_type<tc>, window_params = [{transform_indices = @transform_0, window_bounds = array<i64: 2, 16, 16, 16>}, {pipeline_mode = #tpu.pipeline_mode<synchronous>, transform_indices = @transform_1, window_bounds = array<i64: 13, 768, 48>}, {pipeline_mode = #tpu.pipeline_mode<synchronous>, transform_indices = @transform_2, window_bounds = array<i64: 1, 48>}, {transform_indices = @transform_3, window_bounds = array<i64: 2, 1, 16>}]} {
    %c0 = arith.constant 0 : index
    %c0_0 = arith.constant 0 : index
    %c0_1 = arith.constant 0 : index
    %c0_2 = arith.constant 0 : index
    %0 = vector.load %arg1[%c0, %c0_0, %c0_1, %c0_2] : memref<2x16x16x16xf32, #tpu.memory_space<vmem>>, vector<2x16x16x16xf32>
    %cst = arith.constant dense<0xFF800000> : vector<2x16x16xf32>
    %1 = vector.multi_reduction <maximumf>, %0, %cst [1] : vector<2x16x16x16xf32> to vector<2x16x16xf32>
    %c0_3 = arith.constant 0 : index
    %c0_4 = arith.constant 0 : index
    %c0_5 = arith.constant 0 : index
    %c0_6 = arith.constant 0 : index
    %2 = vector.load %arg1[%c0_3, %c0_4, %c0_5, %c0_6] : memref<2x16x16x16xf32, #tpu.memory_space<vmem>>, vector<2x16x16x16xf32>
    %cst_7 = arith.constant dense<0.000000e+00> : vector<2x16x16xf32>
    %3 = vector.multi_reduction <add>, %2, %cst_7 [1] : vector<2x16x16x16xf32> to vector<2x16x16xf32>
    %cst_8 = arith.constant 6.250000e-02 : f32
    %4 = vector.broadcast %cst_8 : f32 to vector<2x16x16xf32>
    %5 = arith.mulf %3, %4 : vector<2x16x16xf32>
    %c0_9 = arith.constant 0 : index
    %c0_10 = arith.constant 0 : index
    %c0_11 = arith.constant 0 : index
    %c0_12 = arith.constant 0 : index
    %6 = vector.load %arg1[%c0_9, %c0_10, %c0_11, %c0_12] : memref<2x16x16x16xf32, #tpu.memory_space<vmem>>, vector<2x16x16x16xf32>
    %cst_13 = arith.constant dense<0xFF800000> : vector<2x16x16xf32>
    %7 = vector.multi_reduction <maximumf>, %6, %cst_13 [2] : vector<2x16x16x16xf32> to vector<2x16x16xf32>
    %c0_14 = arith.constant 0 : index
    %c0_15 = arith.constant 0 : index
    %c0_16 = arith.constant 0 : index
    %c0_17 = arith.constant 0 : index
    %8 = vector.load %arg1[%c0_14, %c0_15, %c0_16, %c0_17] : memref<2x16x16x16xf32, #tpu.memory_space<vmem>>, vector<2x16x16x16xf32>
    %cst_18 = arith.constant dense<0.000000e+00> : vector<2x16x16xf32>
    %9 = vector.multi_reduction <add>, %8, %cst_18 [2] : vector<2x16x16x16xf32> to vector<2x16x16xf32>
    %cst_19 = arith.constant 6.250000e-02 : f32
    %10 = vector.broadcast %cst_19 : f32 to vector<2x16x16xf32>
    %11 = arith.mulf %9, %10 : vector<2x16x16xf32>
    %c0_20 = arith.constant 0 : index
    %c0_21 = arith.constant 0 : index
    %c0_22 = arith.constant 0 : index
    %c0_23 = arith.constant 0 : index
    %12 = vector.load %arg1[%c0_20, %c0_21, %c0_22, %c0_23] : memref<2x16x16x16xf32, #tpu.memory_space<vmem>>, vector<2x16x16x16xf32>
    %cst_24 = arith.constant dense<0xFF800000> : vector<2x16x16xf32>
    %13 = vector.multi_reduction <maximumf>, %12, %cst_24 [3] : vector<2x16x16x16xf32> to vector<2x16x16xf32>
    %c0_25 = arith.constant 0 : index
    %c0_26 = arith.constant 0 : index
    %c0_27 = arith.constant 0 : index
    %c0_28 = arith.constant 0 : index
    %14 = vector.load %arg1[%c0_25, %c0_26, %c0_27, %c0_28] : memref<2x16x16x16xf32, #tpu.memory_space<vmem>>, vector<2x16x16x16xf32>
    %cst_29 = arith.constant dense<0.000000e+00> : vector<2x16x16xf32>
    %15 = vector.multi_reduction <add>, %14, %cst_29 [3] : vector<2x16x16x16xf32> to vector<2x16x16xf32>
    %cst_30 = arith.constant 6.250000e-02 : f32
    %16 = vector.broadcast %cst_30 : f32 to vector<2x16x16xf32>
    %17 = arith.mulf %15, %16 : vector<2x16x16xf32>
    %cst_31 = arith.constant 0.000000e+00 : f32
    %18 = vector.broadcast %cst_31 : f32 to vector<64x768xf32>
    %c0_32 = arith.constant 0 : index
    %c0_33 = arith.constant 0 : index
    %19 = vector.load %arg5[%c0_32, %c0_33] : memref<64x768xf32, #tpu.memory_space<vmem>>, vector<64x768xf32>
    tpu.vector_store %arg5[%c0_32, %c0_33], %18 {strides = array<i32>} : memref<64x768xf32, #tpu.memory_space<vmem>>, vector<64x768xf32>,
    %20 = vector.extract_strided_slice %1 {offsets = [0, 0, 0], sizes = [1, 16, 16], strides = [1, 1, 1]} : vector<2x16x16xf32> to vector<1x16x16xf32>
    %21 = vector.shape_cast %20 : vector<1x16x16xf32> to vector<16x16xf32>
    %c6 = arith.constant 6 : index
    %c0_34 = arith.constant 0 : index
    %22 = vector.load %arg5[%c6, %c0_34] : memref<64x768xf32, #tpu.memory_space<vmem>>, vector<16x16xf32>
    tpu.vector_store %arg5[%c6, %c0_34], %21 {strides = array<i32>} : memref<64x768xf32, #tpu.memory_space<vmem>>, vector<16x16xf32>,
    %23 = vector.extract_strided_slice %5 {offsets = [0, 0, 0], sizes = [1, 16, 16], strides = [1, 1, 1]} : vector<2x16x16xf32> to vector<1x16x16xf32>
    %24 = vector.shape_cast %23 : vector<1x16x16xf32> to vector<16x16xf32>
    %c6_35 = arith.constant 6 : index
    %c128 = arith.constant 128 : index
    %25 = vector.load %arg5[%c6_35, %c128] : memref<64x768xf32, #tpu.memory_space<vmem>>, vector<16x16xf32>
    tpu.vector_store %arg5[%c6_35, %c128], %24 {strides = array<i32>} : memref<64x768xf32, #tpu.memory_space<vmem>>, vector<16x16xf32>,
    %26 = vector.extract_strided_slice %7 {offsets = [0, 0, 0], sizes = [1, 16, 16], strides = [1, 1, 1]} : vector<2x16x16xf32> to vector<1x16x16xf32>
    %27 = vector.shape_cast %26 : vector<1x16x16xf32> to vector<16x16xf32>
    %c6_36 = arith.constant 6 : index
    %c256 = arith.constant 256 : index
    %28 = vector.load %arg5[%c6_36, %c256] : memref<64x768xf32, #tpu.memory_space<vmem>>, vector<16x16xf32>
    tpu.vector_store %arg5[%c6_36, %c256], %27 {strides = array<i32>} : memref<64x768xf32, #tpu.memory_space<vmem>>, vector<16x16xf32>,
    %29 = vector.extract_strided_slice %11 {offsets = [0, 0, 0], sizes = [1, 16, 16], strides = [1, 1, 1]} : vector<2x16x16xf32> to vector<1x16x16xf32>
    %30 = vector.shape_cast %29 : vector<1x16x16xf32> to vector<16x16xf32>
    %c6_37 = arith.constant 6 : index
    %c384 = arith.constant 384 : index
    %31 = vector.load %arg5[%c6_37, %c384] : memref<64x768xf32, #tpu.memory_space<vmem>>, vector<16x16xf32>
    tpu.vector_store %arg5[%c6_37, %c384], %30 {strides = array<i32>} : memref<64x768xf32, #tpu.memory_space<vmem>>, vector<16x16xf32>,
    %32 = vector.extract_strided_slice %13 {offsets = [0, 0, 0], sizes = [1, 16, 16], strides = [1, 1, 1]} : vector<2x16x16xf32> to vector<1x16x16xf32>
    %33 = vector.shape_cast %32 : vector<1x16x16xf32> to vector<16x16xf32>
    %c6_38 = arith.constant 6 : index
    %c512 = arith.constant 512 : index
    %34 = vector.load %arg5[%c6_38, %c512] : memref<64x768xf32, #tpu.memory_space<vmem>>, vector<16x16xf32>
    tpu.vector_store %arg5[%c6_38, %c512], %33 {strides = array<i32>} : memref<64x768xf32, #tpu.memory_space<vmem>>, vector<16x16xf32>,
    %35 = vector.extract_strided_slice %17 {offsets = [0, 0, 0], sizes = [1, 16, 16], strides = [1, 1, 1]} : vector<2x16x16xf32> to vector<1x16x16xf32>
    %36 = vector.shape_cast %35 : vector<1x16x16xf32> to vector<16x16xf32>
    %c6_39 = arith.constant 6 : index
    %c640 = arith.constant 640 : index
    %37 = vector.load %arg5[%c6_39, %c640] : memref<64x768xf32, #tpu.memory_space<vmem>>, vector<16x16xf32>
    tpu.vector_store %arg5[%c6_39, %c640], %36 {strides = array<i32>} : memref<64x768xf32, #tpu.memory_space<vmem>>, vector<16x16xf32>,
    %38 = vector.extract_strided_slice %1 {offsets = [1, 0, 0], sizes = [1, 16, 16], strides = [1, 1, 1]} : vector<2x16x16xf32> to vector<1x16x16xf32>
    %39 = vector.shape_cast %38 : vector<1x16x16xf32> to vector<16x16xf32>
    %c38 = arith.constant 38 : index
    %c0_40 = arith.constant 0 : index
    %40 = vector.load %arg5[%c38, %c0_40] : memref<64x768xf32, #tpu.memory_space<vmem>>, vector<16x16xf32>
    tpu.vector_store %arg5[%c38, %c0_40], %39 {strides = array<i32>} : memref<64x768xf32, #tpu.memory_space<vmem>>, vector<16x16xf32>,
    %41 = vector.extract_strided_slice %5 {offsets = [1, 0, 0], sizes = [1, 16, 16], strides = [1, 1, 1]} : vector<2x16x16xf32> to vector<1x16x16xf32>
    %42 = vector.shape_cast %41 : vector<1x16x16xf32> to vector<16x16xf32>
    %c38_41 = arith.constant 38 : index
    %c128_42 = arith.constant 128 : index
    %43 = vector.load %arg5[%c38_41, %c128_42] : memref<64x768xf32, #tpu.memory_space<vmem>>, vector<16x16xf32>
    tpu.vector_store %arg5[%c38_41, %c128_42], %42 {strides = array<i32>} : memref<64x768xf32, #tpu.memory_space<vmem>>, vector<16x16xf32>,
    %44 = vector.extract_strided_slice %7 {offsets = [1, 0, 0], sizes = [1, 16, 16], strides = [1, 1, 1]} : vector<2x16x16xf32> to vector<1x16x16xf32>
    %45 = vector.shape_cast %44 : vector<1x16x16xf32> to vector<16x16xf32>
    %c38_43 = arith.constant 38 : index
    %c256_44 = arith.constant 256 : index
    %46 = vector.load %arg5[%c38_43, %c256_44] : memref<64x768xf32, #tpu.memory_space<vmem>>, vector<16x16xf32>
    tpu.vector_store %arg5[%c38_43, %c256_44], %45 {strides = array<i32>} : memref<64x768xf32, #tpu.memory_space<vmem>>, vector<16x16xf32>,
    %47 = vector.extract_strided_slice %11 {offsets = [1, 0, 0], sizes = [1, 16, 16], strides = [1, 1, 1]} : vector<2x16x16xf32> to vector<1x16x16xf32>
    %48 = vector.shape_cast %47 : vector<1x16x16xf32> to vector<16x16xf32>
    %c38_45 = arith.constant 38 : index
    %c384_46 = arith.constant 384 : index
    %49 = vector.load %arg5[%c38_45, %c384_46] : memref<64x768xf32, #tpu.memory_space<vmem>>, vector<16x16xf32>
    tpu.vector_store %arg5[%c38_45, %c384_46], %48 {strides = array<i32>} : memref<64x768xf32, #tpu.memory_space<vmem>>, vector<16x16xf32>,
    %50 = vector.extract_strided_slice %13 {offsets = [1, 0, 0], sizes = [1, 16, 16], strides = [1, 1, 1]} : vector<2x16x16xf32> to vector<1x16x16xf32>
    %51 = vector.shape_cast %50 : vector<1x16x16xf32> to vector<16x16xf32>
    %c38_47 = arith.constant 38 : index
    %c512_48 = arith.constant 512 : index
    %52 = vector.load %arg5[%c38_47, %c512_48] : memref<64x768xf32, #tpu.memory_space<vmem>>, vector<16x16xf32>
    tpu.vector_store %arg5[%c38_47, %c512_48], %51 {strides = array<i32>} : memref<64x768xf32, #tpu.memory_space<vmem>>, vector<16x16xf32>,
    %53 = vector.extract_strided_slice %17 {offsets = [1, 0, 0], sizes = [1, 16, 16], strides = [1, 1, 1]} : vector<2x16x16xf32> to vector<1x16x16xf32>
    %54 = vector.shape_cast %53 : vector<1x16x16xf32> to vector<16x16xf32>
    %c38_49 = arith.constant 38 : index
    %c640_50 = arith.constant 640 : index
    %55 = vector.load %arg5[%c38_49, %c640_50] : memref<64x768xf32, #tpu.memory_space<vmem>>, vector<16x16xf32>
    tpu.vector_store %arg5[%c38_49, %c640_50], %54 {strides = array<i32>} : memref<64x768xf32, #tpu.memory_space<vmem>>, vector<16x16xf32>,
    %cst_51 = arith.constant 0.000000e+00 : f32
    %56 = vector.broadcast %cst_51 : f32 to vector<48x48xf32>
    %c0_52 = arith.constant 0 : index
    %c0_53 = arith.constant 0 : index
    %57 = vector.load %arg5[%c0_52, %c0_53] : memref<64x768xf32, #tpu.memory_space<vmem>>, vector<48x768xf32>
    %c0_54 = arith.constant 0 : index
    %c0_55 = arith.constant 0 : index
    %c0_56 = arith.constant 0 : index
    %58 = vector.load %arg2[%c0_54, %c0_55, %c0_56] : memref<13x768x48xf32, #tpu.memory_space<vmem>>, vector<1x768x48xf32>
    %59 = vector.shape_cast %58 : vector<1x768x48xf32> to vector<768x48xf32>
    %cst_57 = arith.constant dense<0.000000e+00> : vector<48x48xf32>
    %60 = tpu.matmul %57, %59, %cst_57 {dimension_numbers = #tpu.dot_dimension_numbers<[1], [0], [0], [1], [0, 0, 1, 1], [], []>} : vector<48x768xf32>, vector<768x48xf32>, vector<48x48xf32> -> vector<48x48xf32>
    %61 = arith.addf %56, %60 : vector<48x48xf32>
    %c1 = arith.constant 1 : index
    %c0_58 = arith.constant 0 : index
    %62 = vector.load %arg5[%c1, %c0_58] : memref<64x768xf32, #tpu.memory_space<vmem>>, vector<48x768xf32>
    %c1_59 = arith.constant 1 : index
    %c0_60 = arith.constant 0 : index
    %c0_61 = arith.constant 0 : index
    %63 = vector.load %arg2[%c1_59, %c0_60, %c0_61] : memref<13x768x48xf32, #tpu.memory_space<vmem>>, vector<1x768x48xf32>
    %64 = vector.shape_cast %63 : vector<1x768x48xf32> to vector<768x48xf32>
    %cst_62 = arith.constant dense<0.000000e+00> : vector<48x48xf32>
    %65 = tpu.matmul %62, %64, %cst_62 {dimension_numbers = #tpu.dot_dimension_numbers<[1], [0], [0], [1], [0, 0, 1, 1], [], []>} : vector<48x768xf32>, vector<768x48xf32>, vector<48x48xf32> -> vector<48x48xf32>
    %66 = arith.addf %61, %65 : vector<48x48xf32>
    %c2 = arith.constant 2 : index
    %c0_63 = arith.constant 0 : index
    %67 = vector.load %arg5[%c2, %c0_63] : memref<64x768xf32, #tpu.memory_space<vmem>>, vector<48x768xf32>
    %c2_64 = arith.constant 2 : index
    %c0_65 = arith.constant 0 : index
    %c0_66 = arith.constant 0 : index
    %68 = vector.load %arg2[%c2_64, %c0_65, %c0_66] : memref<13x768x48xf32, #tpu.memory_space<vmem>>, vector<1x768x48xf32>
    %69 = vector.shape_cast %68 : vector<1x768x48xf32> to vector<768x48xf32>
    %cst_67 = arith.constant dense<0.000000e+00> : vector<48x48xf32>
    %70 = tpu.matmul %67, %69, %cst_67 {dimension_numbers = #tpu.dot_dimension_numbers<[1], [0], [0], [1], [0, 0, 1, 1], [], []>} : vector<48x768xf32>, vector<768x48xf32>, vector<48x48xf32> -> vector<48x48xf32>
    %71 = arith.addf %66, %70 : vector<48x48xf32>
    %c3 = arith.constant 3 : index
    %c0_68 = arith.constant 0 : index
    %72 = vector.load %arg5[%c3, %c0_68] : memref<64x768xf32, #tpu.memory_space<vmem>>, vector<48x768xf32>
    %c3_69 = arith.constant 3 : index
    %c0_70 = arith.constant 0 : index
    %c0_71 = arith.constant 0 : index
    %73 = vector.load %arg2[%c3_69, %c0_70, %c0_71] : memref<13x768x48xf32, #tpu.memory_space<vmem>>, vector<1x768x48xf32>
    %74 = vector.shape_cast %73 : vector<1x768x48xf32> to vector<768x48xf32>
    %cst_72 = arith.constant dense<0.000000e+00> : vector<48x48xf32>
    %75 = tpu.matmul %72, %74, %cst_72 {dimension_numbers = #tpu.dot_dimension_numbers<[1], [0], [0], [1], [0, 0, 1, 1], [], []>} : vector<48x768xf32>, vector<768x48xf32>, vector<48x48xf32> -> vector<48x48xf32>
    %76 = arith.addf %71, %75 : vector<48x48xf32>
    %c4 = arith.constant 4 : index
    %c0_73 = arith.constant 0 : index
    %77 = vector.load %arg5[%c4, %c0_73] : memref<64x768xf32, #tpu.memory_space<vmem>>, vector<48x768xf32>
    %c4_74 = arith.constant 4 : index
    %c0_75 = arith.constant 0 : index
    %c0_76 = arith.constant 0 : index
    %78 = vector.load %arg2[%c4_74, %c0_75, %c0_76] : memref<13x768x48xf32, #tpu.memory_space<vmem>>, vector<1x768x48xf32>
    %79 = vector.shape_cast %78 : vector<1x768x48xf32> to vector<768x48xf32>
    %cst_77 = arith.constant dense<0.000000e+00> : vector<48x48xf32>
    %80 = tpu.matmul %77, %79, %cst_77 {dimension_numbers = #tpu.dot_dimension_numbers<[1], [0], [0], [1], [0, 0, 1, 1], [], []>} : vector<48x768xf32>, vector<768x48xf32>, vector<48x48xf32> -> vector<48x48xf32>
    %81 = arith.addf %76, %80 : vector<48x48xf32>
    %c5 = arith.constant 5 : index
    %c0_78 = arith.constant 0 : index
    %82 = vector.load %arg5[%c5, %c0_78] : memref<64x768xf32, #tpu.memory_space<vmem>>, vector<48x768xf32>
    %c5_79 = arith.constant 5 : index
    %c0_80 = arith.constant 0 : index
    %c0_81 = arith.constant 0 : index
    %83 = vector.load %arg2[%c5_79, %c0_80, %c0_81] : memref<13x768x48xf32, #tpu.memory_space<vmem>>, vector<1x768x48xf32>
    %84 = vector.shape_cast %83 : vector<1x768x48xf32> to vector<768x48xf32>
    %cst_82 = arith.constant dense<0.000000e+00> : vector<48x48xf32>
    %85 = tpu.matmul %82, %84, %cst_82 {dimension_numbers = #tpu.dot_dimension_numbers<[1], [0], [0], [1], [0, 0, 1, 1], [], []>} : vector<48x768xf32>, vector<768x48xf32>, vector<48x48xf32> -> vector<48x48xf32>
    %86 = arith.addf %81, %85 : vector<48x48xf32>
    %c6_83 = arith.constant 6 : index
    %c0_84 = arith.constant 0 : index
    %87 = vector.load %arg5[%c6_83, %c0_84] : memref<64x768xf32, #tpu.memory_space<vmem>>, vector<48x768xf32>
    %c6_85 = arith.constant 6 : index
    %c0_86 = arith.constant 0 : index
    %c0_87 = arith.constant 0 : index
    %88 = vector.load %arg2[%c6_85, %c0_86, %c0_87] : memref<13x768x48xf32, #tpu.memory_space<vmem>>, vector<1x768x48xf32>
    %89 = vector.shape_cast %88 : vector<1x768x48xf32> to vector<768x48xf32>
    %cst_88 = arith.constant dense<0.000000e+00> : vector<48x48xf32>
    %90 = tpu.matmul %87, %89, %cst_88 {dimension_numbers = #tpu.dot_dimension_numbers<[1], [0], [0], [1], [0, 0, 1, 1], [], []>} : vector<48x768xf32>, vector<768x48xf32>, vector<48x48xf32> -> vector<48x48xf32>
    %91 = arith.addf %86, %90 : vector<48x48xf32>
    %c7 = arith.constant 7 : index
    %c0_89 = arith.constant 0 : index
    %92 = vector.load %arg5[%c7, %c0_89] : memref<64x768xf32, #tpu.memory_space<vmem>>, vector<48x768xf32>
    %c7_90 = arith.constant 7 : index
    %c0_91 = arith.constant 0 : index
    %c0_92 = arith.constant 0 : index
    %93 = vector.load %arg2[%c7_90, %c0_91, %c0_92] : memref<13x768x48xf32, #tpu.memory_space<vmem>>, vector<1x768x48xf32>
    %94 = vector.shape_cast %93 : vector<1x768x48xf32> to vector<768x48xf32>
    %cst_93 = arith.constant dense<0.000000e+00> : vector<48x48xf32>
    %95 = tpu.matmul %92, %94, %cst_93 {dimension_numbers = #tpu.dot_dimension_numbers<[1], [0], [0], [1], [0, 0, 1, 1], [], []>} : vector<48x768xf32>, vector<768x48xf32>, vector<48x48xf32> -> vector<48x48xf32>
    %96 = arith.addf %91, %95 : vector<48x48xf32>
    %c8 = arith.constant 8 : index
    %c0_94 = arith.constant 0 : index
    %97 = vector.load %arg5[%c8, %c0_94] : memref<64x768xf32, #tpu.memory_space<vmem>>, vector<48x768xf32>
    %c8_95 = arith.constant 8 : index
    %c0_96 = arith.constant 0 : index
    %c0_97 = arith.constant 0 : index
    %98 = vector.load %arg2[%c8_95, %c0_96, %c0_97] : memref<13x768x48xf32, #tpu.memory_space<vmem>>, vector<1x768x48xf32>
    %99 = vector.shape_cast %98 : vector<1x768x48xf32> to vector<768x48xf32>
    %cst_98 = arith.constant dense<0.000000e+00> : vector<48x48xf32>
    %100 = tpu.matmul %97, %99, %cst_98 {dimension_numbers = #tpu.dot_dimension_numbers<[1], [0], [0], [1], [0, 0, 1, 1], [], []>} : vector<48x768xf32>, vector<768x48xf32>, vector<48x48xf32> -> vector<48x48xf32>
    %101 = arith.addf %96, %100 : vector<48x48xf32>
    %c9 = arith.constant 9 : index
    %c0_99 = arith.constant 0 : index
    %102 = vector.load %arg5[%c9, %c0_99] : memref<64x768xf32, #tpu.memory_space<vmem>>, vector<48x768xf32>
    %c9_100 = arith.constant 9 : index
    %c0_101 = arith.constant 0 : index
    %c0_102 = arith.constant 0 : index
    %103 = vector.load %arg2[%c9_100, %c0_101, %c0_102] : memref<13x768x48xf32, #tpu.memory_space<vmem>>, vector<1x768x48xf32>
    %104 = vector.shape_cast %103 : vector<1x768x48xf32> to vector<768x48xf32>
    %cst_103 = arith.constant dense<0.000000e+00> : vector<48x48xf32>
    %105 = tpu.matmul %102, %104, %cst_103 {dimension_numbers = #tpu.dot_dimension_numbers<[1], [0], [0], [1], [0, 0, 1, 1], [], []>} : vector<48x768xf32>, vector<768x48xf32>, vector<48x48xf32> -> vector<48x48xf32>
    %106 = arith.addf %101, %105 : vector<48x48xf32>
    %c10 = arith.constant 10 : index
    %c0_104 = arith.constant 0 : index
    %107 = vector.load %arg5[%c10, %c0_104] : memref<64x768xf32, #tpu.memory_space<vmem>>, vector<48x768xf32>
    %c10_105 = arith.constant 10 : index
    %c0_106 = arith.constant 0 : index
    %c0_107 = arith.constant 0 : index
    %108 = vector.load %arg2[%c10_105, %c0_106, %c0_107] : memref<13x768x48xf32, #tpu.memory_space<vmem>>, vector<1x768x48xf32>
    %109 = vector.shape_cast %108 : vector<1x768x48xf32> to vector<768x48xf32>
    %cst_108 = arith.constant dense<0.000000e+00> : vector<48x48xf32>
    %110 = tpu.matmul %107, %109, %cst_108 {dimension_numbers = #tpu.dot_dimension_numbers<[1], [0], [0], [1], [0, 0, 1, 1], [], []>} : vector<48x768xf32>, vector<768x48xf32>, vector<48x48xf32> -> vector<48x48xf32>
    %111 = arith.addf %106, %110 : vector<48x48xf32>
    %c11 = arith.constant 11 : index
    %c0_109 = arith.constant 0 : index
    %112 = vector.load %arg5[%c11, %c0_109] : memref<64x768xf32, #tpu.memory_space<vmem>>, vector<48x768xf32>
    %c11_110 = arith.constant 11 : index
    %c0_111 = arith.constant 0 : index
    %c0_112 = arith.constant 0 : index
    %113 = vector.load %arg2[%c11_110, %c0_111, %c0_112] : memref<13x768x48xf32, #tpu.memory_space<vmem>>, vector<1x768x48xf32>
    %114 = vector.shape_cast %113 : vector<1x768x48xf32> to vector<768x48xf32>
    %cst_113 = arith.constant dense<0.000000e+00> : vector<48x48xf32>
    %115 = tpu.matmul %112, %114, %cst_113 {dimension_numbers = #tpu.dot_dimension_numbers<[1], [0], [0], [1], [0, 0, 1, 1], [], []>} : vector<48x768xf32>, vector<768x48xf32>, vector<48x48xf32> -> vector<48x48xf32>
    %116 = arith.addf %111, %115 : vector<48x48xf32>
    %c12 = arith.constant 12 : index
    %c0_114 = arith.constant 0 : index
    %117 = vector.load %arg5[%c12, %c0_114] : memref<64x768xf32, #tpu.memory_space<vmem>>, vector<48x768xf32>
    %c12_115 = arith.constant 12 : index
    %c0_116 = arith.constant 0 : index
    %c0_117 = arith.constant 0 : index
    %118 = vector.load %arg2[%c12_115, %c0_116, %c0_117] : memref<13x768x48xf32, #tpu.memory_space<vmem>>, vector<1x768x48xf32>
    %119 = vector.shape_cast %118 : vector<1x768x48xf32> to vector<768x48xf32>
    %cst_118 = arith.constant dense<0.000000e+00> : vector<48x48xf32>
    %120 = tpu.matmul %117, %119, %cst_118 {dimension_numbers = #tpu.dot_dimension_numbers<[1], [0], [0], [1], [0, 0, 1, 1], [], []>} : vector<48x768xf32>, vector<768x48xf32>, vector<48x48xf32> -> vector<48x48xf32>
    %121 = arith.addf %116, %120 : vector<48x48xf32>
    %c0_119 = arith.constant 0 : index
    %c0_120 = arith.constant 0 : index
    %122 = vector.load %arg3[%c0_119, %c0_120] : memref<1x48xf32, #tpu.memory_space<vmem>>, vector<1x48xf32>
    %123 = vector.broadcast %122 : vector<1x48xf32> to vector<48x48xf32>
    %124 = arith.addf %121, %123 : vector<48x48xf32>
    %125 = arith.negf %124 : vector<48x48xf32>
    %126 = math.exp %125 : vector<48x48xf32>
    %cst_121 = arith.constant 1.000000e+00 : f32
    %127 = vector.broadcast %cst_121 : f32 to vector<48x48xf32>
    %128 = arith.addf %127, %126 : vector<48x48xf32>
    %129 = arith.divf %127, %128 : vector<48x48xf32>
    %130 = vector.extract_strided_slice %129 {offsets = [0, 0], sizes = [16, 16], strides = [1, 1]} : vector<48x48xf32> to vector<16x16xf32>
    %131 = vector.extract_strided_slice %129 {offsets = [0, 16], sizes = [16, 16], strides = [1, 1]} : vector<48x48xf32> to vector<16x16xf32>
    %132 = vector.extract_strided_slice %129 {offsets = [0, 32], sizes = [16, 16], strides = [1, 1]} : vector<48x48xf32> to vector<16x16xf32>
    %133 = vector.shape_cast %130 : vector<16x16xf32> to vector<1x16x16xf32>
    %134 = vector.shape_cast %131 : vector<16x16xf32> to vector<16x1x16xf32>
    %135 = vector.broadcast %133 : vector<1x16x16xf32> to vector<16x16x16xf32>
    %136 = vector.broadcast %134 : vector<16x1x16xf32> to vector<16x16x16xf32>
    %137 = arith.addf %135, %136 : vector<16x16x16xf32>
    %138 = vector.shape_cast %132 : vector<16x16xf32> to vector<16x16x1xf32>
    %139 = vector.broadcast %138 : vector<16x16x1xf32> to vector<16x16x16xf32>
    %140 = arith.addf %137, %139 : vector<16x16x16xf32>
    %cst_122 = arith.constant 0.333333343 : f32
    %141 = vector.broadcast %cst_122 : f32 to vector<16x16x16xf32>
    %142 = arith.mulf %140, %141 : vector<16x16x16xf32>
    %c0_123 = arith.constant 0 : index
    %c0_124 = arith.constant 0 : index
    %c0_125 = arith.constant 0 : index
    %c0_126 = arith.constant 0 : index
    %143 = vector.load %arg1[%c0_123, %c0_124, %c0_125, %c0_126] : memref<2x16x16x16xf32, #tpu.memory_space<vmem>>, vector<1x16x16x16xf32>
    %144 = vector.shape_cast %143 : vector<1x16x16x16xf32> to vector<16x16x16xf32>
    %145 = arith.mulf %144, %142 : vector<16x16x16xf32>
    %cst_127 = arith.constant 9.99999997E-7 : f32
    %146 = vector.broadcast %cst_127 : f32 to vector<16x16x16xf32>
    %147 = arith.maximumf %145, %146 : vector<16x16x16xf32>
    %148 = arith.mulf %147, %147 : vector<16x16x16xf32>
    %149 = arith.mulf %148, %148 : vector<16x16x16xf32>
    %cst_128 = arith.constant dense<0.000000e+00> : vector<16x16xf32>
    %150 = vector.multi_reduction <add>, %149, %cst_128 [2] : vector<16x16x16xf32> to vector<16x16xf32>
    %cst_129 = arith.constant dense<0.000000e+00> : vector<16xf32>
    %151 = vector.multi_reduction <add>, %150, %cst_129 [1] : vector<16x16xf32> to vector<16xf32>
    %cst_130 = arith.constant 3.906250e-03 : f32
    %152 = vector.broadcast %cst_130 : f32 to vector<16xf32>
    %153 = arith.mulf %151, %152 : vector<16xf32>
    %154 = math.sqrt %153 : vector<16xf32>
    %155 = math.sqrt %154 : vector<16xf32>
    %c0_131 = arith.constant 0 : index
    %c0_132 = arith.constant 0 : index
    %c0_133 = arith.constant 0 : index
    %156 = vector.load %arg4[%c0_131, %c0_132, %c0_133] : memref<2x1x16xf32, #tpu.memory_space<vmem>>, vector<1x1x16xf32>
    %157 = vector.shape_cast %156 : vector<1x1x16xf32> to vector<16xf32>
    %158 = vector.shape_cast %155 : vector<16xf32> to vector<1x1x16xf32>
    tpu.vector_store %arg4[%c0_131, %c0_132, %c0_133], %158 {strides = array<i32>} : memref<2x1x16xf32, #tpu.memory_space<vmem>>, vector<1x1x16xf32>,
    %159 = vector.extract_strided_slice %129 {offsets = [32, 0], sizes = [16, 16], strides = [1, 1]} : vector<48x48xf32> to vector<16x16xf32>
    %160 = vector.extract_strided_slice %129 {offsets = [32, 16], sizes = [16, 16], strides = [1, 1]} : vector<48x48xf32> to vector<16x16xf32>
    %161 = vector.extract_strided_slice %129 {offsets = [32, 32], sizes = [16, 16], strides = [1, 1]} : vector<48x48xf32> to vector<16x16xf32>
    %162 = vector.shape_cast %159 : vector<16x16xf32> to vector<1x16x16xf32>
    %163 = vector.shape_cast %160 : vector<16x16xf32> to vector<16x1x16xf32>
    %164 = vector.broadcast %162 : vector<1x16x16xf32> to vector<16x16x16xf32>
    %165 = vector.broadcast %163 : vector<16x1x16xf32> to vector<16x16x16xf32>
    %166 = arith.addf %164, %165 : vector<16x16x16xf32>
    %167 = vector.shape_cast %161 : vector<16x16xf32> to vector<16x16x1xf32>
    %168 = vector.broadcast %167 : vector<16x16x1xf32> to vector<16x16x16xf32>
    %169 = arith.addf %166, %168 : vector<16x16x16xf32>
    %cst_134 = arith.constant 0.333333343 : f32
    %170 = vector.broadcast %cst_134 : f32 to vector<16x16x16xf32>
    %171 = arith.mulf %169, %170 : vector<16x16x16xf32>
    %c1_135 = arith.constant 1 : index
    %c0_136 = arith.constant 0 : index
    %c0_137 = arith.constant 0 : index
    %c0_138 = arith.constant 0 : index
    %172 = vector.load %arg1[%c1_135, %c0_136, %c0_137, %c0_138] : memref<2x16x16x16xf32, #tpu.memory_space<vmem>>, vector<1x16x16x16xf32>
    %173 = vector.shape_cast %172 : vector<1x16x16x16xf32> to vector<16x16x16xf32>
    %174 = arith.mulf %173, %171 : vector<16x16x16xf32>
    %cst_139 = arith.constant 9.99999997E-7 : f32
    %175 = vector.broadcast %cst_139 : f32 to vector<16x16x16xf32>
    %176 = arith.maximumf %174, %175 : vector<16x16x16xf32>
    %177 = arith.mulf %176, %176 : vector<16x16x16xf32>
    %178 = arith.mulf %177, %177 : vector<16x16x16xf32>
    %cst_140 = arith.constant dense<0.000000e+00> : vector<16x16xf32>
    %179 = vector.multi_reduction <add>, %178, %cst_140 [2] : vector<16x16x16xf32> to vector<16x16xf32>
    %cst_141 = arith.constant dense<0.000000e+00> : vector<16xf32>
    %180 = vector.multi_reduction <add>, %179, %cst_141 [1] : vector<16x16xf32> to vector<16xf32>
    %cst_142 = arith.constant 3.906250e-03 : f32
    %181 = vector.broadcast %cst_142 : f32 to vector<16xf32>
    %182 = arith.mulf %180, %181 : vector<16xf32>
    %183 = math.sqrt %182 : vector<16xf32>
    %184 = math.sqrt %183 : vector<16xf32>
    %c1_143 = arith.constant 1 : index
    %c0_144 = arith.constant 0 : index
    %c0_145 = arith.constant 0 : index
    %185 = vector.load %arg4[%c1_143, %c0_144, %c0_145] : memref<2x1x16xf32, #tpu.memory_space<vmem>>, vector<1x1x16xf32>
    %186 = vector.shape_cast %185 : vector<1x1x16xf32> to vector<16xf32>
    %187 = vector.shape_cast %184 : vector<16xf32> to vector<1x1x16xf32>
    tpu.vector_store %arg4[%c1_143, %c0_144, %c0_145], %187 {strides = array<i32>} : memref<2x1x16xf32, #tpu.memory_space<vmem>>, vector<1x1x16xf32>,
    return
  }
  func.func @transform_0(%arg0: i32) -> (i32, i32, i32, i32) {
    %c0_i32 = arith.constant 0 : i32
    %c0_i32_0 = arith.constant 0 : i32
    %c0_i32_1 = arith.constant 0 : i32
    %c0_i32_2 = arith.constant 0 : i32
    return %arg0, %c0_i32, %c0_i32_0, %c0_i32_1 : i32, i32, i32, i32
  }
  func.func @transform_1(%arg0: i32) -> (i32, i32, i32) {
    %c0_i32 = arith.constant 0 : i32
    %c0_i32_0 = arith.constant 0 : i32
    %c0_i32_1 = arith.constant 0 : i32
    %c0_i32_2 = arith.constant 0 : i32
    return %c0_i32, %c0_i32_0, %c0_i32_1 : i32, i32, i32
  }
  func.func @transform_2(%arg0: i32) -> (i32, i32) {
    %c0_i32 = arith.constant 0 : i32
    %c0_i32_0 = arith.constant 0 : i32
    %c0_i32_1 = arith.constant 0 : i32
    return %c0_i32, %c0_i32_0 : i32, i32
  }
  func.func @transform_3(%arg0: i32) -> (i32, i32, i32) {
    %c0_i32 = arith.constant 0 : i32
    %c0_i32_0 = arith.constant 0 : i32
    %c0_i32_1 = arith.constant 0 : i32
    return %arg0, %c0_i32, %c0_i32_0 : i32, i32, i32
  }
}

module attributes {stable_mosaic.version = 11 : i64} {
  func.func @kernel(%arg0: i32, %arg1: i32, %arg2: memref<2x16xf32, #tpu.memory_space<vmem>>, %arg3: memref<16x512xbf16, #tpu.memory_space<vmem>>, %arg4: memref<1x512xf32, #tpu.memory_space<vmem>>, %arg5: memref<1x512xf32, #tpu.memory_space<vmem>>, %arg6: memref<1x512xf32, #tpu.memory_space<vmem>>, %arg7: memref<512x128xbf16, #tpu.memory_space<vmem>>, %arg8: memref<1x128xf32, #tpu.memory_space<vmem>>, %arg9: memref<2x512xf32, #tpu.memory_space<vmem>>, %arg10: memref<2x128xf32, #tpu.memory_space<vmem>>, %arg11: memref<2x512xbf16, #tpu.memory_space<vmem>>, %arg12: memref<2x512xbf16, #tpu.memory_space<vmem>>) attributes {dimension_semantics = [#tpu.dimension_semantics<parallel>, #tpu.dimension_semantics<arbitrary>], iteration_bounds = array<i64: 1, 2>, scalar_prefetch = 0 : i64, scratch_operands = 2 : i64, tpu.core_type = #tpu.core_type<tc>, window_params = [{transform_indices = @transform_0, window_bounds = array<i64: 2, 16>}, {pipeline_mode = #tpu.pipeline_mode<synchronous>, transform_indices = @transform_1, window_bounds = array<i64: 16, 512>}, {pipeline_mode = #tpu.pipeline_mode<synchronous>, transform_indices = @transform_2, window_bounds = array<i64: 1, 512>}, {pipeline_mode = #tpu.pipeline_mode<synchronous>, transform_indices = @transform_3, window_bounds = array<i64: 1, 512>}, {pipeline_mode = #tpu.pipeline_mode<synchronous>, transform_indices = @transform_4, window_bounds = array<i64: 1, 512>}, {transform_indices = @transform_5, window_bounds = array<i64: 512, 128>}, {transform_indices = @transform_6, window_bounds = array<i64: 1, 128>}, {transform_indices = @transform_7, window_bounds = array<i64: 2, 512>}, {transform_indices = @transform_8, window_bounds = array<i64: 2, 128>}]} {
    %c0_i32 = arith.constant 0 : i32
    %0 = arith.cmpi eq, %arg1, %c0_i32 : i32
    %1 = arith.extui %0 : i1 to i32
    %c0_i32_0 = arith.constant 0 : i32
    %2 = arith.cmpi ne, %1, %c0_i32_0 : i32
    scf.if %2 {
      %c0_10 = arith.constant 0 : index
      %c0_11 = arith.constant 0 : index
      %13 = vector.load %arg2[%c0_10, %c0_11] : memref<2x16xf32, #tpu.memory_space<vmem>>, vector<2x16xf32>
      %14 = arith.truncf %13 : vector<2x16xf32> to vector<2x16xbf16>
      %c0_12 = arith.constant 0 : index
      %c0_13 = arith.constant 0 : index
      %15 = vector.load %arg3[%c0_12, %c0_13] : memref<16x512xbf16, #tpu.memory_space<vmem>>, vector<16x512xbf16>
      %cst_14 = arith.constant dense<0.000000e+00> : vector<2x512xf32>
      %16 = tpu.matmul %14, %15, %cst_14 {dimension_numbers = #tpu.dot_dimension_numbers<[1], [0], [0], [1], [0, 0, 1, 1], [], []>} : vector<2x16xbf16>, vector<16x512xbf16>, vector<2x512xf32> -> vector<2x512xf32>
      %c0_15 = arith.constant 0 : index
      %c0_16 = arith.constant 0 : index
      %17 = vector.load %arg4[%c0_15, %c0_16] : memref<1x512xf32, #tpu.memory_space<vmem>>, vector<1x512xf32>
      %18 = vector.broadcast %17 : vector<1x512xf32> to vector<2x512xf32>
      %19 = arith.addf %16, %18 : vector<2x512xf32>
      %c0_17 = arith.constant 0 : index
      %c0_18 = arith.constant 0 : index
      %20 = vector.load %arg5[%c0_17, %c0_18] : memref<1x512xf32, #tpu.memory_space<vmem>>, vector<1x512xf32>
      %21 = vector.broadcast %20 : vector<1x512xf32> to vector<2x512xf32>
      %22 = arith.mulf %19, %21 : vector<2x512xf32>
      %c0_19 = arith.constant 0 : index
      %c0_20 = arith.constant 0 : index
      %23 = vector.load %arg6[%c0_19, %c0_20] : memref<1x512xf32, #tpu.memory_space<vmem>>, vector<1x512xf32>
      %24 = vector.broadcast %23 : vector<1x512xf32> to vector<2x512xf32>
      %25 = arith.addf %22, %24 : vector<2x512xf32>
      %c0_21 = arith.constant 0 : index
      %c0_22 = arith.constant 0 : index
      %26 = vector.load %arg9[%c0_21, %c0_22] : memref<2x512xf32, #tpu.memory_space<vmem>>, vector<2x512xf32>
      tpu.vector_store %arg9[%c0_21, %c0_22], %25 {strides = array<i32>} : memref<2x512xf32, #tpu.memory_space<vmem>>, vector<2x512xf32>,
      %27 = arith.truncf %25 : vector<2x512xf32> to vector<2x512xbf16>
      %c0_23 = arith.constant 0 : index
      %c0_24 = arith.constant 0 : index
      %28 = vector.load %arg11[%c0_23, %c0_24] : memref<2x512xbf16, #tpu.memory_space<vmem>>, vector<2x512xbf16>
      tpu.vector_store %arg11[%c0_23, %c0_24], %27 {strides = array<i32>} : memref<2x512xbf16, #tpu.memory_space<vmem>>, vector<2x512xbf16>,
      %29 = arith.mulf %25, %25 : vector<2x512xf32>
      %cst_25 = arith.constant dense<0.000000e+00> : vector<2xf32>
      %30 = vector.multi_reduction <add>, %29, %cst_25 [1] : vector<2x512xf32> to vector<2xf32>
      %31 = vector.shape_cast %30 : vector<2xf32> to vector<2x1xf32>
      %cst_26 = arith.constant 1.000000e-24 : f32
      %32 = vector.broadcast %cst_26 : f32 to vector<2x1xf32>
      %33 = arith.maximumf %31, %32 : vector<2x1xf32>
      %34 = math.rsqrt %33 : vector<2x1xf32>
      %35 = vector.broadcast %34 : vector<2x1xf32> to vector<2x512xf32>
      %36 = arith.mulf %25, %35 : vector<2x512xf32>
      %37 = arith.truncf %36 : vector<2x512xf32> to vector<2x512xbf16>
      %c0_27 = arith.constant 0 : index
      %c0_28 = arith.constant 0 : index
      %38 = vector.load %arg12[%c0_27, %c0_28] : memref<2x512xbf16, #tpu.memory_space<vmem>>, vector<2x512xbf16>
      tpu.vector_store %arg12[%c0_27, %c0_28], %37 {strides = array<i32>} : memref<2x512xbf16, #tpu.memory_space<vmem>>, vector<2x512xbf16>,
    } else {
    }
    %c1_i32 = arith.constant 1 : i32
    %3 = arith.cmpi sge, %arg1, %c1_i32 : i32
    %c0 = arith.constant 0 : index
    %c0_1 = arith.constant 0 : index
    %4 = vector.load %arg12[%c0, %c0_1] : memref<2x512xbf16, #tpu.memory_space<vmem>>, vector<2x512xbf16>
    %c0_2 = arith.constant 0 : index
    %c0_3 = arith.constant 0 : index
    %5 = vector.load %arg11[%c0_2, %c0_3] : memref<2x512xbf16, #tpu.memory_space<vmem>>, vector<2x512xbf16>
    %6 = arith.select %3, %4, %5 : vector<2x512xbf16>
    %c0_4 = arith.constant 0 : index
    %c0_5 = arith.constant 0 : index
    %7 = vector.load %arg7[%c0_4, %c0_5] : memref<512x128xbf16, #tpu.memory_space<vmem>>, vector<512x128xbf16>
    %cst = arith.constant dense<0.000000e+00> : vector<2x128xf32>
    %8 = tpu.matmul %6, %7, %cst {dimension_numbers = #tpu.dot_dimension_numbers<[1], [0], [0], [1], [0, 0, 1, 1], [], []>} : vector<2x512xbf16>, vector<512x128xbf16>, vector<2x128xf32> -> vector<2x128xf32>
    %c0_6 = arith.constant 0 : index
    %c0_7 = arith.constant 0 : index
    %9 = vector.load %arg8[%c0_6, %c0_7] : memref<1x128xf32, #tpu.memory_space<vmem>>, vector<1x128xf32>
    %10 = vector.broadcast %9 : vector<1x128xf32> to vector<2x128xf32>
    %11 = arith.addf %8, %10 : vector<2x128xf32>
    %c0_8 = arith.constant 0 : index
    %c0_9 = arith.constant 0 : index
    %12 = vector.load %arg10[%c0_8, %c0_9] : memref<2x128xf32, #tpu.memory_space<vmem>>, vector<2x128xf32>
    tpu.vector_store %arg10[%c0_8, %c0_9], %11 {strides = array<i32>} : memref<2x128xf32, #tpu.memory_space<vmem>>, vector<2x128xf32>,
    return
  }
  func.func @transform_0(%arg0: i32, %arg1: i32) -> (i32, i32) {
    %c0_i32 = arith.constant 0 : i32
    %c0_i32_0 = arith.constant 0 : i32
    return %arg0, %c0_i32 : i32, i32
  }
  func.func @transform_1(%arg0: i32, %arg1: i32) -> (i32, i32) {
    %c0_i32 = arith.constant 0 : i32
    %c0_i32_0 = arith.constant 0 : i32
    %c0_i32_1 = arith.constant 0 : i32
    return %c0_i32, %c0_i32_0 : i32, i32
  }
  func.func @transform_2(%arg0: i32, %arg1: i32) -> (i32, i32) {
    %c0_i32 = arith.constant 0 : i32
    %c0_i32_0 = arith.constant 0 : i32
    %c0_i32_1 = arith.constant 0 : i32
    return %c0_i32, %c0_i32_0 : i32, i32
  }
  func.func @transform_3(%arg0: i32, %arg1: i32) -> (i32, i32) {
    %c0_i32 = arith.constant 0 : i32
    %c0_i32_0 = arith.constant 0 : i32
    %c0_i32_1 = arith.constant 0 : i32
    return %c0_i32, %c0_i32_0 : i32, i32
  }
  func.func @transform_4(%arg0: i32, %arg1: i32) -> (i32, i32) {
    %c0_i32 = arith.constant 0 : i32
    %c0_i32_0 = arith.constant 0 : i32
    %c0_i32_1 = arith.constant 0 : i32
    return %c0_i32, %c0_i32_0 : i32, i32
  }
  func.func @transform_5(%arg0: i32, %arg1: i32) -> (i32, i32) {
    %c0_i32 = arith.constant 0 : i32
    %c0_i32_0 = arith.constant 0 : i32
    return %c0_i32, %arg1 : i32, i32
  }
  func.func @transform_6(%arg0: i32, %arg1: i32) -> (i32, i32) {
    %c0_i32 = arith.constant 0 : i32
    %c0_i32_0 = arith.constant 0 : i32
    return %c0_i32, %arg1 : i32, i32
  }
  func.func @transform_7(%arg0: i32, %arg1: i32) -> (i32, i32) {
    %c0_i32 = arith.constant 0 : i32
    %c0_i32_0 = arith.constant 0 : i32
    return %arg0, %c0_i32 : i32, i32
  }
  func.func @transform_8(%arg0: i32, %arg1: i32) -> (i32, i32) {
    %c0_i32 = arith.constant 0 : i32
    return %arg0, %arg1 : i32, i32
  }
}

</mosaic_0001>

<llo_original>
// kernel: _lambda_.3
$region0: #{_lambda_.3}
  #allocation0 [shape = 'u32[]', space=smem, size = 0x4, offset = 0x4, fixed_abs, tag = 'smem constant byte address 0x4 - core index']
  #allocation1 [shape = 'u32[72,128]{1,0:T(1,128)}', space=vmem, size = 0x9000, scoped, tag = 'internal scratch']
  #allocation2 [shape = 'bf16[2,512]{1,0:T(2,128)(2,1)}', space=vmem, size = 0x800, scoped, tag = 'scratch operand']
  #allocation3 [shape = 'bf16[2,512]{1,0:T(2,128)(2,1)}', space=vmem, size = 0x800, scoped, tag = 'scratch operand']
  %s0 = inlined_call_operand.vmem [shape: f32[2,16], index: 0, kind: input, shape index: {}]
  %s1 = inlined_call_operand.hbm [shape: bf16[16,512], index: 1, kind: input, shape index: {}]
  %s2 = inlined_call_operand.vmem [shape: f32[1,512], index: 2, kind: input, shape index: {}, may-alias: {2,4}]
  %s3 = inlined_call_operand.vmem [shape: f32[1,512], index: 3, kind: input, shape index: {}]
  %s4 = inlined_call_operand.vmem [shape: f32[1,512], index: 4, kind: input, shape index: {}, may-alias: {2,4}]
  %s5 = inlined_call_operand.hbm [shape: bf16[512,256], index: 5, kind: input, shape index: {}]
  %s6 = inlined_call_operand.vmem [shape: f32[1,256], index: 6, kind: input, shape index: {}]
  %s7 = inlined_call_operand.hbm [shape: f32[2,512], index: 7, kind: output, shape index: {0}]
  %s8 = inlined_call_operand.vmem [shape: f32[2,256], index: 8, kind: output, shape index: {1}]
  %9 = xla_tuple %s7, %s8
  %s10 = sld [smem:[#allocation0]]
  $region81: #{_lambda_.3} parent=0
    _
  %s12 = ssub.s32 1, %s10
  %s13 = scalar_select 0, %s12, %s10
  $region1: #{_lambda_.3} parent=0
    #allocation4 [shape = 'u8[16384]{0}', space=vmem, size = 0x4000, scoped, tag = 'input window, operand 1, single buffered']
    #allocation5 [shape = 's32[2]{0}', space=sflag, size = 0x8, scoped, tag = 'scoped memory for _lambda_.3']
    #allocation6 [shape = 's32[2]{0}', space=sflag, size = 0x8, scoped, tag = 'scoped memory for _lambda_.3']
    #allocation7 [shape = 'u8[262144]{0}', space=vmem, size = 0x40000, scoped, tag = 'input window, operand 5']
    #allocation8 [shape = 's32[2]{0}', space=sflag, size = 0x8, scoped, tag = 'scoped memory for _lambda_.3']
    #allocation9 [shape = 'u8[4096]{0}', space=vmem, size = 0x1000, scoped, tag = 'output window, operand 0, single buffered']
    %14 = vsyncpa [#allocation5], 0
    %15 = vsyncpa [#allocation8], 0
    %s16 = scalar_lea.sflag [#allocation8], 1
    %17 = vsyncpa %s16, 0
    %18 = vsyncpa [#allocation6], 0
    loop: start=0, step=1, limit=4
    $region2: #{_lambda_.3} parent=1 // loop_pre_header
      _
    $region3: #{_lambda_.3} parent=1 // loop_header
      %s20 = sphi 0, %s24
      %p21 = scmp.ge.s32.totalorder %s20, 4
      %s27 = sphi 0, %s39
      %s28 = sphi 0, %s35
      %s29 = sphi 0, %s27
      %s30 = sphi 0, %s28
      %s31 = sphi 0, %s29
      %s32 = sphi 0, %s30
      %s42 = sphi 0, %s44
      %s45 = sphi 0, %s42
      %s46 = sphi 0, %s45
      %s62 = sphi 0, %s46
      %s66 = sphi 0, %s66
      %s68 = sphi 0, %s66
      %s69 = sphi 0, %s68
      %s83 = sphi 0, %s69
      %s87 = sphi 0, %s87
      %s89 = sphi 0, %s87
      %s90 = sphi 0, %s89
      %s104 = sphi 0, %s90
      %s108 = sphi 0, %s108
      %s110 = sphi 0, %s108
      %s111 = sphi 0, %s110
      %s125 = sphi 0, %s111
      %s129 = sphi 0, %s129
      %s131 = sphi 0, %s129
      %s132 = sphi 0, %s131
      %s146 = sphi 0, %s132
      %s152 = sphi 0, %s154
      %s155 = sphi 0, %s152
      %s156 = sphi 0, %s155
      %s172 = sphi 0, %s156
      %s178 = sphi 0, %s180
      %s181 = sphi 0, %s178
      %s182 = sphi 0, %s181
      %s198 = sphi 0, %s182
      %s204 = sphi 0, %s206
      %s207 = sphi 0, %s204
      %s208 = sphi 0, %s207
      %s224 = sphi 0, %s208
      %s232 = sphi 0, %s234
      %s235 = sphi 0, %s232
      %s236 = sphi 0, %s235
      %s252 = sphi 0, %s236
    $region4: #{_lambda_.3} parent=1 // loop_header_branch
      %23 = sbr.rel (%p21) target = $region8
    $region5: #{_lambda_.3} parent=1 // loop_body
      %s25 = ssub.s32 %s20, 1
      %s26 = ssub.s32 %s20, 2
      %s33 = sadd.s32 1, %s28
      %p34 = scmp.ge.s32.totalorder %s33, 2
      %s35 = scalar_select %p34, 0, %s33
      %s36 = sadd.s32 1, %s27
      %s37 = scalar_select %p34, %s36, %s27
      %p38 = scmp.ge.s32.totalorder %s37, 1
      %s39 = scalar_select %p38, 0, %s37
      %s40 = ssub.s32 %s27, %s39
      %p41 = scmp.eq.s32.totalorder %s40, 0
      %s43 = sadd.s32 %s42, 1
      %s44 = scalar_select %p41, %s42, %s43
      %p47 = pneg %p41
      %p48 = scmp.eq.s32.totalorder %s20, 1
      %p49 = por %p47, %p48
      %p50 = scmp.ne.s32.totalorder %s42, %s45
      %p51 = scmp.eq.s32.totalorder %s20, 0
      %p52 = por %p50, %p51
      %p53 = scmp.ne.s32.totalorder %s42, %s45
      %p54 = scmp.eq.s32.totalorder %s25, 1
      %p55 = por %p53, %p54
      %p56 = scmp.ne.s32.totalorder %s45, %s46
      %p57 = scmp.eq.s32.totalorder %s25, 0
      %p58 = por %p56, %p57
      %p59 = scmp.ne.s32.totalorder %s45, %s46
      %p60 = scmp.eq.s32.totalorder %s26, 1
      %p61 = por %p59, %p60
      %p63 = scmp.ne.s32.totalorder %s46, %s62
      %p64 = scmp.eq.s32.totalorder %s26, 0
      %p65 = por %p63, %p64
      %s67 = sadd.s32 %s66, 1
      %p70 = scmp.eq.s32.totalorder %s20, 1
      %p71 = scmp.ne.s32.totalorder %s66, %s68
      %p72 = scmp.eq.s32.totalorder %s20, 0
      %p73 = por %p71, %p72
      %p74 = scmp.ne.s32.totalorder %s66, %s68
      %p75 = scmp.eq.s32.totalorder %s25, 1
      %p76 = por %p74, %p75
      %p77 = scmp.ne.s32.totalorder %s68, %s69
      %p78 = scmp.eq.s32.totalorder %s25, 0
      %p79 = por %p77, %p78
      %p80 = scmp.ne.s32.totalorder %s68, %s69
      %p81 = scmp.eq.s32.totalorder %s26, 1
      %p82 = por %p80, %p81
      %p84 = scmp.ne.s32.totalorder %s69, %s83
      %p85 = scmp.eq.s32.totalorder %s26, 0
      %p86 = por %p84, %p85
      %s88 = sadd.s32 %s87, 1
      %p91 = scmp.eq.s32.totalorder %s20, 1
      %p92 = scmp.ne.s32.totalorder %s87, %s89
      %p93 = scmp.eq.s32.totalorder %s20, 0
      %p94 = por %p92, %p93
      %p95 = scmp.ne.s32.totalorder %s87, %s89
      %p96 = scmp.eq.s32.totalorder %s25, 1
      %p97 = por %p95, %p96
      %p98 = scmp.ne.s32.totalorder %s89, %s90
      %p99 = scmp.eq.s32.totalorder %s25, 0
      %p100 = por %p98, %p99
      %p101 = scmp.ne.s32.totalorder %s89, %s90
      %p102 = scmp.eq.s32.totalorder %s26, 1
      %p103 = por %p101, %p102
      %p105 = scmp.ne.s32.totalorder %s90, %s104
      %p106 = scmp.eq.s32.totalorder %s26, 0
      %p107 = por %p105, %p106
      %s109 = sadd.s32 %s108, 1
      %p112 = scmp.eq.s32.totalorder %s20, 1
      %p113 = scmp.ne.s32.totalorder %s108, %s110
      %p114 = scmp.eq.s32.totalorder %s20, 0
      %p115 = por %p113, %p114
      %p116 = scmp.ne.s32.totalorder %s108, %s110
      %p117 = scmp.eq.s32.totalorder %s25, 1
      %p118 = por %p116, %p117
      %p119 = scmp.ne.s32.totalorder %s110, %s111
      %p120 = scmp.eq.s32.totalorder %s25, 0
      %p121 = por %p119, %p120
      %p122 = scmp.ne.s32.totalorder %s110, %s111
      %p123 = scmp.eq.s32.totalorder %s26, 1
      %p124 = por %p122, %p123
      %p126 = scmp.ne.s32.totalorder %s111, %s125
      %p127 = scmp.eq.s32.totalorder %s26, 0
      %p128 = por %p126, %p127
      %s130 = sadd.s32 %s129, 1
      %p133 = scmp.eq.s32.totalorder %s20, 1
      %p134 = scmp.ne.s32.totalorder %s129, %s131
      %p135 = scmp.eq.s32.totalorder %s20, 0
      %p136 = por %p134, %p135
      %p137 = scmp.ne.s32.totalorder %s129, %s131
      %p138 = scmp.eq.s32.totalorder %s25, 1
      %p139 = por %p137, %p138
      %p140 = scmp.ne.s32.totalorder %s131, %s132
      %p141 = scmp.eq.s32.totalorder %s25, 0
      %p142 = por %p140, %p141
      %p143 = scmp.ne.s32.totalorder %s131, %s132
      %p144 = scmp.eq.s32.totalorder %s26, 1
      %p145 = por %p143, %p144
      %p147 = scmp.ne.s32.totalorder %s132, %s146
      %p148 = scmp.eq.s32.totalorder %s26, 0
      %p149 = por %p147, %p148
      %s150 = ssub.s32 %s28, %s35
      %p151 = scmp.eq.s32.totalorder %s150, 0
      %s153 = sadd.s32 %s152, 1
      %s154 = scalar_select %p151, %s152, %s153
      %p157 = pneg %p151
      %p158 = scmp.eq.s32.totalorder %s20, 1
      %p159 = por %p157, %p158
      %p160 = scmp.ne.s32.totalorder %s152, %s155
      %p161 = scmp.eq.s32.totalorder %s20, 0
      %p162 = por %p160, %p161
      %p163 = scmp.ne.s32.totalorder %s152, %s155
      %p164 = scmp.eq.s32.totalorder %s25, 1
      %p165 = por %p163, %p164
      %p166 = scmp.ne.s32.totalorder %s155, %s156
      %p167 = scmp.eq.s32.totalorder %s25, 0
      %p168 = por %p166, %p167
      %p169 = scmp.ne.s32.totalorder %s155, %s156
      %p170 = scmp.eq.s32.totalorder %s26, 1
      %p171 = por %p169, %p170
      %p173 = scmp.ne.s32.totalorder %s156, %s172
      %p174 = scmp.eq.s32.totalorder %s26, 0
      %p175 = por %p173, %p174
      %s176 = ssub.s32 %s28, %s35
      %p177 = scmp.eq.s32.totalorder %s176, 0
      %s179 = sadd.s32 %s178, 1
      %s180 = scalar_select %p177, %s178, %s179
      %p183 = pneg %p177
      %p184 = scmp.eq.s32.totalorder %s20, 1
      %p185 = por %p183, %p184
      %p186 = scmp.ne.s32.totalorder %s178, %s181
      %p187 = scmp.eq.s32.totalorder %s20, 0
      %p188 = por %p186, %p187
      %p189 = scmp.ne.s32.totalorder %s178, %s181
      %p190 = scmp.eq.s32.totalorder %s25, 1
      %p191 = por %p189, %p190
      %p192 = scmp.ne.s32.totalorder %s181, %s182
      %p193 = scmp.eq.s32.totalorder %s25, 0
      %p194 = por %p192, %p193
      %p195 = scmp.ne.s32.totalorder %s181, %s182
      %p196 = scmp.eq.s32.totalorder %s26, 1
      %p197 = por %p195, %p196
      %p199 = scmp.ne.s32.totalorder %s182, %s198
      %p200 = scmp.eq.s32.totalorder %s26, 0
      %p201 = por %p199, %p200
      %s202 = ssub.s32 %s27, %s39
      %p203 = scmp.eq.s32.totalorder %s202, 0
      %s205 = sadd.s32 %s204, 1
      %s206 = scalar_select %p203, %s204, %s205
      %p209 = pneg %p203
      %p210 = scmp.eq.s32.totalorder %s20, 1
      %p211 = por %p209, %p210
      %p212 = scmp.ne.s32.totalorder %s204, %s207
      %p213 = scmp.eq.s32.totalorder %s20, 0
      %p214 = por %p212, %p213
      %p215 = scmp.ne.s32.totalorder %s204, %s207
      %p216 = scmp.eq.s32.totalorder %s25, 1
      %p217 = por %p215, %p216
      %p218 = scmp.ne.s32.totalorder %s207, %s208
      %p219 = scmp.eq.s32.totalorder %s25, 0
      %p220 = por %p218, %p219
      %p221 = scmp.ne.s32.totalorder %s207, %s208
      %p222 = scmp.eq.s32.totalorder %s26, 1
      %p223 = por %p221, %p222
      %p225 = scmp.ne.s32.totalorder %s208, %s224
      %p226 = scmp.eq.s32.totalorder %s26, 0
      %p227 = por %p225, %p226
      %s228 = ssub.s32 %s27, %s39
      %s229 = ssub.s32 %s28, %s35
      %s230 = sor.u32 %s228, %s229
      %p231 = scmp.eq.s32.totalorder %s230, 0
      %s233 = sadd.s32 %s232, 1
      %s234 = scalar_select %p231, %s232, %s233
      %p237 = pneg %p231
      %p238 = scmp.eq.s32.totalorder %s20, 1
      %p239 = por %p237, %p238
      %p240 = scmp.ne.s32.totalorder %s232, %s235
      %p241 = scmp.eq.s32.totalorder %s20, 0
      %p242 = por %p240, %p241
      %p243 = scmp.ne.s32.totalorder %s232, %s235
      %p244 = scmp.eq.s32.totalorder %s25, 1
      %p245 = por %p243, %p244
      %p246 = scmp.ne.s32.totalorder %s235, %s236
      %p247 = scmp.eq.s32.totalorder %s25, 0
      %p248 = por %p246, %p247
      %p249 = scmp.ne.s32.totalorder %s235, %s236
      %p250 = scmp.eq.s32.totalorder %s26, 1
      %p251 = por %p249, %p250
      %p253 = scmp.ne.s32.totalorder %s236, %s252
      %p254 = scmp.eq.s32.totalorder %s26, 0
      %p255 = por %p253, %p254
      %p256 = scmp.le.s32.totalorder 1, %s20
      %p257 = scmp.lt.s32.totalorder %s20, 3
      %p258 = pnand %p256, %p257
      %p259 = pneg %p258
      // Predicated region
      $region9: #{_lambda_.3} parent=5 // pred_check
        _
      $region10: #{_lambda_.3} parent=5 // pred_check_branch
        %261 = sbr.rel (%p258) target = $region12
      $region11: #{_lambda_.3} parent=5 // pred_region
        %s262 = ssub.s32 %s20, 1
        // Predicated region
        $region13: #{_lambda_.3} parent=11 // pred_check
          %p263 = pneg %p58
        $region14: #{_lambda_.3} parent=11 // pred_check_branch
          %265 = sbr.rel (%p263) target = $region16
        $region15: #{_lambda_.3} parent=11 // pred_region
          %p266 = scmp.lt.s32.totalorder %s29, 0
          %s267 = scalar_select %p266, %s29, 0
          %s268 = smul.addr %s267, 2
          %s269 = scalar_lea.vmem %s0, %s268
        $region16: #{_lambda_.3} parent=11 // pred_fallthru
          _
        // Predicated region
        $region17: #{_lambda_.3} parent=11 // pred_check
          %p270 = pneg %p79
        $region18: #{_lambda_.3} parent=11 // pred_check_branch
          %272 = sbr.rel (%p270) target = $region20
        $region19: #{_lambda_.3} parent=11 // pred_region
          %274 = vsyncadd [#allocation5], 0
          %s275 = sshll.u32 %s1, 4
          %s276 = int_to_ptr.hbm [resolvable:$true] %s275
          %s277 = sshll.u32 [#allocation4], 4
          %s278 = int_to_ptr.vmem [resolvable:$true] %s277
          %283 = dma.hbm_to_vmem [thread:$0]  %s276, 512, %s278, [#allocation5], 256, 256, 16
        $region20: #{_lambda_.3} parent=11 // pred_fallthru
          _
        // Predicated region
        $region21: #{_lambda_.3} parent=11 // pred_check
          %p284 = pneg %p100
        $region22: #{_lambda_.3} parent=11 // pred_check_branch
          %286 = sbr.rel (%p284) target = $region24
        $region23: #{_lambda_.3} parent=11 // pred_region
          _
        $region24: #{_lambda_.3} parent=11 // pred_fallthru
          _
        // Predicated region
        $region25: #{_lambda_.3} parent=11 // pred_check
          %p287 = pneg %p121
        $region26: #{_lambda_.3} parent=11 // pred_check_branch
          %289 = sbr.rel (%p287) target = $region28
        $region27: #{_lambda_.3} parent=11 // pred_region
          _
        $region28: #{_lambda_.3} parent=11 // pred_fallthru
          _
        // Predicated region
        $region29: #{_lambda_.3} parent=11 // pred_check
          %p290 = pneg %p142
        $region30: #{_lambda_.3} parent=11 // pred_check_branch
          %292 = sbr.rel (%p290) target = $region32
        $region31: #{_lambda_.3} parent=11 // pred_region
          _
        $region32: #{_lambda_.3} parent=11 // pred_fallthru
          _
      $region12: #{_lambda_.3} parent=5 // pred_fallthru
        _
      %p293 = scmp.lt.s32.totalorder %s20, 2
      // Predicated region
      $region33: #{_lambda_.3} parent=5 // pred_check
        %p294 = pneg %p293
      $region34: #{_lambda_.3} parent=5 // pred_check_branch
        %296 = sbr.rel (%p294) target = $region36
      $region35: #{_lambda_.3} parent=5 // pred_region
        // Predicated region
        $region37: #{_lambda_.3} parent=35 // pred_check
          %p297 = pneg %p162
        $region38: #{_lambda_.3} parent=35 // pred_check_branch
          %299 = sbr.rel (%p297) target = $region40
        $region39: #{_lambda_.3} parent=35 // pred_region
          %s300 = sand.u32 %s152, 1
          %s301 = scalar_lea.sflag [#allocation8], %s300
          %s302 = sand.u32 %s152, 1
          %s303 = smul.addr %s302, 256
          %s304 = scalar_lea.vmem [#allocation7], %s303
          %306 = vsyncadd %s301, 0
          %s307 = smul.addr %s28, 4
          %s308 = scalar_lea.hbm %s5, %s307
          %s309 = sshll.u32 %s308, 4
          %s310 = int_to_ptr.hbm [resolvable:$true] %s309
          %s311 = sshll.u32 %s304, 4
          %s312 = int_to_ptr.vmem [resolvable:$true] %s311
          %317 = dma.hbm_to_vmem [thread:$0]  %s310, 4096, %s312, %s301, 128, 64, 4
        $region40: #{_lambda_.3} parent=35 // pred_fallthru
          _
        // Predicated region
        $region41: #{_lambda_.3} parent=35 // pred_check
          %p318 = pneg %p188
        $region42: #{_lambda_.3} parent=35 // pred_check_branch
          %320 = sbr.rel (%p318) target = $region44
        $region43: #{_lambda_.3} parent=35 // pred_region
          %p321 = scmp.lt.s32.totalorder %s28, 1
          %s322 = scalar_select %p321, %s28, 1
          %s323 = scalar_lea.vmem %s6, %s322
        $region44: #{_lambda_.3} parent=35 // pred_fallthru
          _
      $region36: #{_lambda_.3} parent=5 // pred_fallthru
        _
      %p324 = scmp.le.s32.totalorder 1, %s20
      %p325 = scmp.lt.s32.totalorder %s20, 3
      %p326 = pnand %p324, %p325
      %p327 = pneg %p326
      // Predicated region
      $region45: #{_lambda_.3} parent=5 // pred_check
        _
      $region46: #{_lambda_.3} parent=5 // pred_check_branch
        %329 = sbr.rel (%p326) target = $region48
      $region47: #{_lambda_.3} parent=5 // pred_region
        %s330 = ssub.s32 %s20, 1
        // Predicated region
        $region49: #{_lambda_.3} parent=47 // pred_check
          %p331 = pneg %p79
        $region50: #{_lambda_.3} parent=47 // pred_check_branch
          %333 = sbr.rel (%p331) target = $region52
        $region51: #{_lambda_.3} parent=47 // pred_region
          %335 = dma.done [#allocation5], 512
        $region52: #{_lambda_.3} parent=47 // pred_fallthru
          _
        %s336 = sand.u32 %s155, 1
        %s337 = scalar_lea.sflag [#allocation8], %s336
        %s338 = sand.u32 %s155, 1
        %s339 = smul.addr %s338, 256
        %s340 = scalar_lea.vmem [#allocation7], %s339
        // Predicated region
        $region53: #{_lambda_.3} parent=47 // pred_check
          %p341 = pneg %p168
        $region54: #{_lambda_.3} parent=47 // pred_check_branch
          %343 = sbr.rel (%p341) target = $region56
        $region55: #{_lambda_.3} parent=47 // pred_region
          %345 = dma.done %s337, 4096
        $region56: #{_lambda_.3} parent=47 // pred_fallthru
          _
        %p346 = scmp.lt.s32.totalorder %s29, 0
        %s347 = scalar_select %p346, %s29, 0
        %s348 = smul.addr %s347, 2
        %s349 = scalar_lea.vmem %s0, %s348
        %p350 = pneg %p58
        %p351 = pneg %p55
        %p352 = pneg %p79
        %p353 = pneg %p76
        %p354 = pneg %p100
        %p355 = pneg %p97
        %p356 = pneg %p121
        %p357 = pneg %p118
        %p358 = pneg %p142
        %p359 = pneg %p139
        %s360 = sand.u32 %s155, 1
        %s361 = scalar_lea.sflag [#allocation8], %s360
        %s362 = sand.u32 %s155, 1
        %s363 = smul.addr %s362, 256
        %s364 = scalar_lea.vmem [#allocation7], %s363
        %p365 = pneg %p168
        %p366 = pneg %p165
        %p367 = scmp.lt.s32.totalorder %s30, 1
        %s368 = scalar_select %p367, %s30, 1
        %s369 = scalar_lea.vmem %s6, %s368
        %p370 = pneg %p194
        %p371 = pneg %p191
        %p372 = pneg %p220
        %p373 = pneg %p217
        %p374 = pneg %p248
        %p375 = pneg %p245
        %p376 = scmp.lt.s32.totalorder %s29, 0
        %s377 = scalar_select %p376, %s29, 0
        %p378 = scmp.lt.s32.totalorder %s30, 1
        %s379 = scalar_select %p378, %s30, 1
        %s380 = smul.addr %s377, 2
        %s381 = sadd.s32 %s379, %s380
        %s382 = smul.addr %s381, 2
        %s383 = scalar_lea.vmem %s8, %s382
        %p384 = scmp.lt.s32.totalorder %s29, 0
        %s385 = scalar_select %p384, %s29, 0
        %s386 = smul.addr %s385, 2
        %s387 = scalar_lea.vmem %s0, %s386
        %p388 = scmp.lt.s32.totalorder %s30, 1
        %s389 = scalar_select %p388, %s30, 1
        %s390 = scalar_lea.vmem %s6, %s389
        %p391 = scmp.lt.s32.totalorder %s29, 0
        %s392 = scalar_select %p391, %s29, 0
        %p393 = scmp.lt.s32.totalorder %s30, 1
        %s394 = scalar_select %p393, %s30, 1
        %s395 = smul.addr %s392, 2
        %s396 = sadd.s32 %s394, %s395
        %s397 = smul.addr %s396, 2
        %s398 = scalar_lea.vmem %s8, %s397
        %p401 = scmp.eq.s32.totalorder %s30, 0
        // Predicated region
        $region57: #{_lambda_.3} parent=47 // pred_check
          %p402 = pneg %p401
        $region58: #{_lambda_.3} parent=47 // pred_check_branch
          %404 = sbr.rel (%p402) target = $region60
        $region59: #{_lambda_.3} parent=47 // pred_region
          %v405 = vld [vmem:[%s387] sm:$0x3]
          %v406 = vpack.c.bf16 %v405, %v405
          %v407 = vld [vmem:[#allocation4] sm:$0xff]
          %v408 = vld [vmem:[#allocation4 + $0x8] sm:$0xff]
          %v409 = vld [vmem:[#allocation4 + $0x10] sm:$0xff]
          %v410 = vld [vmem:[#allocation4 + $0x18] sm:$0xff]
          %v411 = vld [vmem:[%s2] sm:$0xf]
          %v413 = vperm.slane %v411, 0
          %v414 = vperm.slane %v411, 1
          %v415 = vperm.slane %v411, 2
          %v416 = vperm.slane %v411, 3
          %v425 = vunpack.c.l.b16 %v407
          %v426 = vunpack.c.h.b16 %v407
          %v427 = vunpack.c.l.b16 %v408
          %v428 = vunpack.c.h.b16 %v408
          %v429 = vunpack.c.l.b16 %v409
          %v430 = vunpack.c.h.b16 %v409
          %v431 = vunpack.c.l.b16 %v410
          %v432 = vunpack.c.h.b16 %v410
          %v433 = vpack.c.b16 %v429, %v425
          %v434 = vpack.c.b16 %v430, %v426
          %v435 = vpack.c.b16 %v431, %v427
          %v436 = vpack.c.b16 %v432, %v428
          %vm441 = vcmask 130048
          %v443 = vsel %vm441, %v406, 0
          %445 = vmatpush.bf16.msra.mxu0 0
          %446 = vmatpush.bf16.msra.mxu0 0
          %447 = vmatpush.bf16.msra.mxu0 0
          %448 = vmatpush.bf16.msra.mxu0 0
          %449 = vmatpush.bf16.msra.mxu0 0
          %450 = vmatpush.bf16.msra.mxu0 0
          %451 = vmatpush.bf16.msra.mxu0 0
          %452 = vmatpush.bf16.msra.mxu0 %v433
          %453 = vmatmul.bf16.gmra.mxu0 %v443
          %v454 = vpop.f32.mrf.mxu0
          %v455 = vadd.f32 %v413, %v454
          %v456 = vpop.f32.mrf.mxu0
          %457 = vdwg.mxu0
          %458 = vmatpush.bf16.msra.mxu0 0
          %459 = vmatpush.bf16.msra.mxu0 0
          %460 = vmatpush.bf16.msra.mxu0 0
          %461 = vmatpush.bf16.msra.mxu0 0
          %462 = vmatpush.bf16.msra.mxu0 0
          %463 = vmatpush.bf16.msra.mxu0 0
          %464 = vmatpush.bf16.msra.mxu0 0
          %465 = vmatpush.bf16.msra.mxu0 %v434
          %466 = vmatmul.bf16.gmra.mxu0 %v443
          %v467 = vpop.f32.mrf.mxu0
          %v468 = vadd.f32 %v414, %v467
          %v469 = vpop.f32.mrf.mxu0
          %470 = vdwg.mxu0
          %471 = vmatpush.bf16.msra.mxu0 0
          %472 = vmatpush.bf16.msra.mxu0 0
          %473 = vmatpush.bf16.msra.mxu0 0
          %474 = vmatpush.bf16.msra.mxu0 0
          %475 = vmatpush.bf16.msra.mxu0 0
          %476 = vmatpush.bf16.msra.mxu0 0
          %477 = vmatpush.bf16.msra.mxu0 0
          %478 = vmatpush.bf16.msra.mxu0 %v435
          %479 = vmatmul.bf16.gmra.mxu0 %v443
          %v480 = vpop.f32.mrf.mxu0
          %v481 = vadd.f32 %v415, %v480
          %v482 = vpop.f32.mrf.mxu0
          %483 = vdwg.mxu0
          %484 = vmatpush.bf16.msra.mxu0 0
          %485 = vmatpush.bf16.msra.mxu0 0
          %486 = vmatpush.bf16.msra.mxu0 0
          %487 = vmatpush.bf16.msra.mxu0 0
          %488 = vmatpush.bf16.msra.mxu0 0
          %489 = vmatpush.bf16.msra.mxu0 0
          %490 = vmatpush.bf16.msra.mxu0 0
          %491 = vmatpush.bf16.msra.mxu0 %v436
          %492 = vmatmul.bf16.gmra.mxu0 %v443
          %v493 = vpop.f32.mrf.mxu0
          %v494 = vadd.f32 %v416, %v493
          %v495 = vpop.f32.mrf.mxu0
          %496 = vdwg.mxu0
          %v497 = vld [vmem:[%s3] sm:$0xf]
          %v499 = vperm.slane %v497, 0
          %v500 = vperm.slane %v497, 1
          %v501 = vperm.slane %v497, 2
          %v502 = vperm.slane %v497, 3
          %v507 = vmul.f32 %v455, %v499
          %v508 = vmul.f32 %v468, %v500
          %v509 = vmul.f32 %v481, %v501
          %v510 = vmul.f32 %v494, %v502
          %v511 = vld [vmem:[%s4] sm:$0xf]
          %v513 = vperm.slane %v511, 0
          %v514 = vperm.slane %v511, 1
          %v515 = vperm.slane %v511, 2
          %v516 = vperm.slane %v511, 3
          %v521 = vadd.f32 %v507, %v513
          %v522 = vadd.f32 %v508, %v514
          %v523 = vadd.f32 %v509, %v515
          %v524 = vadd.f32 %v510, %v516
          %v529 = vrot.slane %v522, 6
          %v530 = vrot.slane %v523, 4
          %v531 = vrot.slane %v524, 2
          %vm532 = vcmask 1041408
          %v533 = vsel %vm532, %v521, %v529
          %vm534 = vcmask 1045508
          %v535 = vsel %vm534, %v530, %v531
          %vm536 = vcmask 1043456
          %v537 = vsel %vm536, %v533, %v535
          %539 = vst [vmem:[#allocation9] sm:$0xff] %v537
          %v540 = vpack.c.bf16 %v522, %v521
          %v541 = vpack.c.bf16 %v524, %v523
          %v544 = vrot.slane %v540, 3
          %v545 = vrot.slane %v541, 6
          %v546 = vrot.slane %v541, 1
          %vm547 = vcmask 1040384
          %v550 = vsel %vm547, %v540, %v544
          %vm551 = vcmask 1042434
          %v554 = vsel %vm551, %v545, %v546
          %v555 = vsel %vm532, %v550, %v554
          %557 = vst [vmem:[#allocation2] sm:$0xf] %v555
          %v558 = vmul.f32 %v521, %v521
          %v559 = vmul.f32 %v522, %v522
          %v560 = vmul.f32 %v523, %v523
          %v561 = vmul.f32 %v524, %v524
          %v562 = vsel %vm532, %v558, 0.0
          %v563 = vsel %vm532, %v559, 0.0
          %v564 = vadd.f32 %v562, %v563
          %v565 = vsel %vm532, %v560, 0.0
          %v566 = vadd.f32 %v564, %v565
          %v567 = vsel %vm532, %v561, 0.0
          %v568 = vadd.f32 %v566, %v567
          %569 = vadd.xlane.f32.xlu0 %v568
          %v570 = vpop.xlane.xlu0 %569
          %v571 = vmax.f32 %v570, 1e-24
          %v572 = vrsqrt.pop %v571
          %v573 = vmul.f32 %v572, %v571
          %v574 = vmul.f32 %v573, %v572
          %v575 = vmul.f32 0.5, %v574
          %v576 = vsub.f32 1.5, %v575
          %v577 = vmul.f32 %v572, %v576
          %vm578 = vweird.f32 %v571
          %vm579 = vweird.f32 %v572
          %vm580 = vmor %vm578, %vm579
          %v581 = vsel %vm580, %v572, %v577
          %v582 = vmul.f32 %v521, %v581
          %v583 = vmul.f32 %v522, %v581
          %v584 = vmul.f32 %v523, %v581
          %v585 = vmul.f32 %v524, %v581
          %v586 = vpack.c.bf16 %v583, %v582
          %v587 = vpack.c.bf16 %v585, %v584
          %v590 = vrot.slane %v586, 3
          %v591 = vrot.slane %v587, 6
          %v592 = vrot.slane %v587, 1
          %v595 = vsel %vm547, %v586, %v590
          %v598 = vsel %vm551, %v591, %v592
          %v599 = vsel %vm532, %v595, %v598
          %601 = vst [vmem:[#allocation3] sm:$0xf] %v599
        $region60: #{_lambda_.3} parent=47 // pred_fallthru
          _
        %p602 = scmp.ge.s32.totalorder %s30, 1
        %v603 = vld [vmem:[#allocation3] sm:$0xf]
        %v604 = vld [vmem:[#allocation2] sm:$0xf]
        %s605 = scalar_select %p602, 1, 0
        %v606 = vstv %s605
        %vm607 = vcmp.eq.s32.totalorder %v606, 1
        %v608 = vsel %vm607, 1, 0
        %v609 = vpack.c.b16 %v608, %v608
        %v610 = vunpack.c.l.b16 %v609
        %v611 = vunpack.c.h.b16 %v609
        %v612 = vunpack.c.l.b16 0
        %v613 = vunpack.c.h.b16 0
        %vm614 = vcmp.ne.s32.totalorder %v610, %v612
        %vm615 = vcmp.ne.s32.totalorder %v611, %v613
        %vm616 = vmpackc.low %vm615, %vm614
        %v617 = vsel %vm616, %v603, %v604
        %v618 = vld [vmem:[%s340] sm:$0xf]
        %v619 = vld [vmem:[%s340 + $0x4] sm:$0xf]
        %v620 = vld [vmem:[%s340 + $0x8] sm:$0xf]
        %v621 = vld [vmem:[%s340 + $0xc] sm:$0xf]
        %v622 = vld [vmem:[%s340 + $0x10] sm:$0xf]
        %v623 = vld [vmem:[%s340 + $0x14] sm:$0xf]
        %v624 = vld [vmem:[%s340 + $0x18] sm:$0xf]
        %v625 = vld [vmem:[%s340 + $0x1c] sm:$0xf]
        %v626 = vld [vmem:[%s340 + $0x20] sm:$0xf]
        %v627 = vld [vmem:[%s340 + $0x24] sm:$0xf]
        %v628 = vld [vmem:[%s340 + $0x28] sm:$0xf]
        %v629 = vld [vmem:[%s340 + $0x2c] sm:$0xf]
        %v630 = vld [vmem:[%s340 + $0x30] sm:$0xf]
        %v631 = vld [vmem:[%s340 + $0x34] sm:$0xf]
        %v632 = vld [vmem:[%s340 + $0x38] sm:$0xf]
        %v633 = vld [vmem:[%s340 + $0x3c] sm:$0xf]
        %v634 = vld [vmem:[%s340 + $0x40] sm:$0xf]
        %v635 = vld [vmem:[%s340 + $0x44] sm:$0xf]
        %v636 = vld [vmem:[%s340 + $0x48] sm:$0xf]
        %v637 = vld [vmem:[%s340 + $0x4c] sm:$0xf]
        %v638 = vld [vmem:[%s340 + $0x50] sm:$0xf]
        %v639 = vld [vmem:[%s340 + $0x54] sm:$0xf]
        %v640 = vld [vmem:[%s340 + $0x58] sm:$0xf]
        %v641 = vld [vmem:[%s340 + $0x5c] sm:$0xf]
        %v642 = vld [vmem:[%s340 + $0x60] sm:$0xf]
        %v643 = vld [vmem:[%s340 + $0x64] sm:$0xf]
        %v644 = vld [vmem:[%s340 + $0x68] sm:$0xf]
        %v645 = vld [vmem:[%s340 + $0x6c] sm:$0xf]
        %v646 = vld [vmem:[%s340 + $0x70] sm:$0xf]
        %v647 = vld [vmem:[%s340 + $0x74] sm:$0xf]
        %v648 = vld [vmem:[%s340 + $0x78] sm:$0xf]
        %v649 = vld [vmem:[%s340 + $0x7c] sm:$0xf]
        %v650 = vld [vmem:[%s340 + $0x80] sm:$0xf]
        %v651 = vld [vmem:[%s340 + $0x84] sm:$0xf]
        %v652 = vld [vmem:[%s340 + $0x88] sm:$0xf]
        %v653 = vld [vmem:[%s340 + $0x8c] sm:$0xf]
        %v654 = vld [vmem:[%s340 + $0x90] sm:$0xf]
        %v655 = vld [vmem:[%s340 + $0x94] sm:$0xf]
        %v656 = vld [vmem:[%s340 + $0x98] sm:$0xf]
        %v657 = vld [vmem:[%s340 + $0x9c] sm:$0xf]
        %v658 = vld [vmem:[%s340 + $0xa0] sm:$0xf]
        %v659 = vld [vmem:[%s340 + $0xa4] sm:$0xf]
        %v660 = vld [vmem:[%s340 + $0xa8] sm:$0xf]
        %v661 = vld [vmem:[%s340 + $0xac] sm:$0xf]
        %v662 = vld [vmem:[%s340 + $0xb0] sm:$0xf]
        %v663 = vld [vmem:[%s340 + $0xb4] sm:$0xf]
        %v664 = vld [vmem:[%s340 + $0xb8] sm:$0xf]
        %v665 = vld [vmem:[%s340 + $0xbc] sm:$0xf]
        %v666 = vld [vmem:[%s340 + $0xc0] sm:$0xf]
        %v667 = vld [vmem:[%s340 + $0xc4] sm:$0xf]
        %v668 = vld [vmem:[%s340 + $0xc8] sm:$0xf]
        %v669 = vld [vmem:[%s340 + $0xcc] sm:$0xf]
        %v670 = vld [vmem:[%s340 + $0xd0] sm:$0xf]
        %v671 = vld [vmem:[%s340 + $0xd4] sm:$0xf]
        %v672 = vld [vmem:[%s340 + $0xd8] sm:$0xf]
        %v673 = vld [vmem:[%s340 + $0xdc] sm:$0xf]
        %v674 = vld [vmem:[%s340 + $0xe0] sm:$0xf]
        %v675 = vld [vmem:[%s340 + $0xe4] sm:$0xf]
        %v676 = vld [vmem:[%s340 + $0xe8] sm:$0xf]
        %v677 = vld [vmem:[%s340 + $0xec] sm:$0xf]
        %v678 = vld [vmem:[%s340 + $0xf0] sm:$0xf]
        %v679 = vld [vmem:[%s340 + $0xf4] sm:$0xf]
        %v680 = vld [vmem:[%s340 + $0xf8] sm:$0xf]
        %v681 = vld [vmem:[%s340 + $0xfc] sm:$0xf]
        %v682 = vld [vmem:[%s390] sm:$0x1]
        %v684 = vperm.slane %v682, 0
        %687 = vst [vmem:[#allocation1] ss:$9 sm:$0xff] %v617
        %v688 = vld [vmem:[#allocation1] sm:$0xff]
        %v689 = vld [vmem:[#allocation1 + $0x9] sm:$0xff]
        %v690 = vld [vmem:[#allocation1 + $0x12] sm:$0xff]
        %v691 = vld [vmem:[#allocation1 + $0x1b] sm:$0xff]
        %v760 = vunpack.c.l.b16 %v618
        %v761 = vunpack.c.l.b16 %v619
        %v762 = vunpack.c.l.b16 %v620
        %v763 = vunpack.c.l.b16 %v621
        %v764 = vunpack.c.l.b16 %v622
        %v765 = vunpack.c.l.b16 %v623
        %v766 = vunpack.c.l.b16 %v624
        %v767 = vunpack.c.l.b16 %v625
        %v768 = vunpack.c.l.b16 %v626
        %v769 = vunpack.c.l.b16 %v627
        %v770 = vunpack.c.l.b16 %v628
        %v771 = vunpack.c.l.b16 %v629
        %v772 = vunpack.c.l.b16 %v630
        %v773 = vunpack.c.l.b16 %v631
        %v774 = vunpack.c.l.b16 %v632
        %v775 = vunpack.c.l.b16 %v633
        %v776 = vunpack.c.l.b16 %v634
        %v777 = vunpack.c.l.b16 %v635
        %v778 = vunpack.c.l.b16 %v636
        %v779 = vunpack.c.l.b16 %v637
        %v780 = vunpack.c.l.b16 %v638
        %v781 = vunpack.c.l.b16 %v639
        %v782 = vunpack.c.l.b16 %v640
        %v783 = vunpack.c.l.b16 %v641
        %v784 = vunpack.c.l.b16 %v642
        %v785 = vunpack.c.l.b16 %v643
        %v786 = vunpack.c.l.b16 %v644
        %v787 = vunpack.c.l.b16 %v645
        %v788 = vunpack.c.l.b16 %v646
        %v789 = vunpack.c.l.b16 %v647
        %v790 = vunpack.c.l.b16 %v648
        %v791 = vunpack.c.l.b16 %v649
        %v792 = vunpack.c.l.b16 %v650
        %v793 = vunpack.c.l.b16 %v651
        %v794 = vunpack.c.l.b16 %v652
        %v795 = vunpack.c.l.b16 %v653
        %v796 = vunpack.c.l.b16 %v654
        %v797 = vunpack.c.l.b16 %v655
        %v798 = vunpack.c.l.b16 %v656
        %v799 = vunpack.c.l.b16 %v657
        %v800 = vunpack.c.l.b16 %v658
        %v801 = vunpack.c.l.b16 %v659
        %v802 = vunpack.c.l.b16 %v660
        %v803 = vunpack.c.l.b16 %v661
        %v804 = vunpack.c.l.b16 %v662
        %v805 = vunpack.c.l.b16 %v663
        %v806 = vunpack.c.l.b16 %v664
        %v807 = vunpack.c.l.b16 %v665
        %v808 = vunpack.c.l.b16 %v666
        %v809 = vunpack.c.l.b16 %v667
        %v810 = vunpack.c.l.b16 %v668
        %v811 = vunpack.c.l.b16 %v669
        %v812 = vunpack.c.l.b16 %v670
        %v813 = vunpack.c.l.b16 %v671
        %v814 = vunpack.c.l.b16 %v672
        %v815 = vunpack.c.l.b16 %v673
        %v816 = vunpack.c.l.b16 %v674
        %v817 = vunpack.c.l.b16 %v675
        %v818 = vunpack.c.l.b16 %v676
        %v819 = vunpack.c.l.b16 %v677
        %v820 = vunpack.c.l.b16 %v678
        %v821 = vunpack.c.l.b16 %v679
        %v822 = vunpack.c.l.b16 %v680
        %v823 = vunpack.c.l.b16 %v681
        %v824 = vpack.c.b16 %v761, %v760
        %v825 = vpack.c.b16 %v763, %v762
        %v826 = vpack.c.b16 %v765, %v764
        %v827 = vpack.c.b16 %v767, %v766
        %v828 = vpack.c.b16 %v769, %v768
        %v829 = vpack.c.b16 %v771, %v770
        %v830 = vpack.c.b16 %v773, %v772
        %v831 = vpack.c.b16 %v775, %v774
        %v832 = vpack.c.b16 %v777, %v776
        %v833 = vpack.c.b16 %v779, %v778
        %v834 = vpack.c.b16 %v781, %v780
        %v835 = vpack.c.b16 %v783, %v782
        %v836 = vpack.c.b16 %v785, %v784
        %v837 = vpack.c.b16 %v787, %v786
        %v838 = vpack.c.b16 %v789, %v788
        %v839 = vpack.c.b16 %v791, %v790
        %v840 = vpack.c.b16 %v793, %v792
        %v841 = vpack.c.b16 %v795, %v794
        %v842 = vpack.c.b16 %v797, %v796
        %v843 = vpack.c.b16 %v799, %v798
        %v844 = vpack.c.b16 %v801, %v800
        %v845 = vpack.c.b16 %v803, %v802
        %v846 = vpack.c.b16 %v805, %v804
        %v847 = vpack.c.b16 %v807, %v806
        %v848 = vpack.c.b16 %v809, %v808
        %v849 = vpack.c.b16 %v811, %v810
        %v850 = vpack.c.b16 %v813, %v812
        %v851 = vpack.c.b16 %v815, %v814
        %v852 = vpack.c.b16 %v817, %v816
        %v853 = vpack.c.b16 %v819, %v818
        %v854 = vpack.c.b16 %v821, %v820
        %v855 = vpack.c.b16 %v823, %v822
        %888 = vmatpush.bf16.msra.mxu0 %v831
        %889 = vmatpush.bf16.msra.mxu0 %v830
        %890 = vmatpush.bf16.msra.mxu0 %v829
        %891 = vmatpush.bf16.msra.mxu0 %v828
        %892 = vmatpush.bf16.msra.mxu0 %v827
        %893 = vmatpush.bf16.msra.mxu0 %v826
        %894 = vmatpush.bf16.msra.mxu0 %v825
        %895 = vmatpush.bf16.msra.mxu0 %v824
        %896 = vmatmul.bf16.gmra.mxu0 %v688
        %v897 = vpop.f32.mrf.mxu0
        %v898 = vadd.f32 %v684, %v897
        %v899 = vpop.f32.mrf.mxu0
        %900 = vdwg.mxu0
        %901 = vmatpush.bf16.msra.mxu0 %v839
        %902 = vmatpush.bf16.msra.mxu0 %v838
        %903 = vmatpush.bf16.msra.mxu0 %v837
        %904 = vmatpush.bf16.msra.mxu0 %v836
        %905 = vmatpush.bf16.msra.mxu0 %v835
        %906 = vmatpush.bf16.msra.mxu0 %v834
        %907 = vmatpush.bf16.msra.mxu0 %v833
        %908 = vmatpush.bf16.msra.mxu0 %v832
        %909 = vmatmul.bf16.gmra.mxu0 %v689
        %v910 = vpop.f32.mrf.mxu0
        %v911 = vadd.f32 %v898, %v910
        %v912 = vpop.f32.mrf.mxu0
        %913 = vdwg.mxu0
        %914 = vmatpush.bf16.msra.mxu0 %v847
        %915 = vmatpush.bf16.msra.mxu0 %v846
        %916 = vmatpush.bf16.msra.mxu0 %v845
        %917 = vmatpush.bf16.msra.mxu0 %v844
        %918 = vmatpush.bf16.msra.mxu0 %v843
        %919 = vmatpush.bf16.msra.mxu0 %v842
        %920 = vmatpush.bf16.msra.mxu0 %v841
        %921 = vmatpush.bf16.msra.mxu0 %v840
        %922 = vmatmul.bf16.gmra.mxu0 %v690
        %v923 = vpop.f32.mrf.mxu0
        %v924 = vadd.f32 %v911, %v923
        %v925 = vpop.f32.mrf.mxu0
        %926 = vdwg.mxu0
        %927 = vmatpush.bf16.msra.mxu0 %v855
        %928 = vmatpush.bf16.msra.mxu0 %v854
        %929 = vmatpush.bf16.msra.mxu0 %v853
        %930 = vmatpush.bf16.msra.mxu0 %v852
        %931 = vmatpush.bf16.msra.mxu0 %v851
        %932 = vmatpush.bf16.msra.mxu0 %v850
        %933 = vmatpush.bf16.msra.mxu0 %v849
        %934 = vmatpush.bf16.msra.mxu0 %v848
        %935 = vmatmul.bf16.gmra.mxu0 %v691
        %v936 = vpop.f32.mrf.mxu0
        %v937 = vadd.f32 %v924, %v936
        %v938 = vpop.f32.mrf.mxu0
        %939 = vdwg.mxu0
        %940 = vst [vmem:[%s398] sm:$0x3] %v937
        %p941 = scmp.lt.s32.totalorder %s29, 0
        %s942 = scalar_select %p941, %s29, 0
        %p943 = scmp.lt.s32.totalorder %s30, 1
        %s944 = scalar_select %p943, %s30, 1
        %s945 = smul.addr %s942, 2
        %s946 = sadd.s32 %s944, %s945
        %s947 = smul.addr %s946, 2
        %s948 = scalar_lea.vmem %s8, %s947
        // Predicated region
        $region61: #{_lambda_.3} parent=47 // pred_check
          %p949 = pneg %p217
        $region62: #{_lambda_.3} parent=47 // pred_check_branch
          %951 = sbr.rel (%p949) target = $region64
        $region63: #{_lambda_.3} parent=47 // pred_region
          %953 = vsyncadd [#allocation6], 0
          %s954 = smul.addr %s29, 4
          %s955 = smul.addr %s954, 2
          %s956 = scalar_lea.hbm %s7, %s955
          %s958 = sshll.u32 [#allocation9], 4
          %s959 = int_to_ptr.vmem [resolvable:$true] %s958
          %s960 = sshll.u32 %s956, 4
          %s961 = int_to_ptr.hbm [resolvable:$true] %s960
          %963 = dma.vmem_to_hbm [thread:$0]  %s959, 128, %s961, [#allocation6]
        $region64: #{_lambda_.3} parent=47 // pred_fallthru
          _
        // Predicated region
        $region65: #{_lambda_.3} parent=47 // pred_check
          %p964 = pneg %p245
        $region66: #{_lambda_.3} parent=47 // pred_check_branch
          %966 = sbr.rel (%p964) target = $region68
        $region67: #{_lambda_.3} parent=47 // pred_region
          _
        $region68: #{_lambda_.3} parent=47 // pred_fallthru
          _
        // Predicated region
        $region69: #{_lambda_.3} parent=47 // pred_check
          %p967 = pneg %p217
        $region70: #{_lambda_.3} parent=47 // pred_check_branch
          %969 = sbr.rel (%p967) target = $region72
        $region71: #{_lambda_.3} parent=47 // pred_region
          %971 = dma.done [#allocation6], 128
        $region72: #{_lambda_.3} parent=47 // pred_fallthru
          _
      $region48: #{_lambda_.3} parent=5 // pred_fallthru
        _
      %p972 = scmp.le.s32.totalorder 2, %s20
      // Predicated region
      $region73: #{_lambda_.3} parent=5 // pred_check
        %p973 = pneg %p972
      $region74: #{_lambda_.3} parent=5 // pred_check_branch
        %975 = sbr.rel (%p973) target = $region76
      $region75: #{_lambda_.3} parent=5 // pred_region
        %s976 = ssub.s32 %s20, 2
        // Predicated region
        $region77: #{_lambda_.3} parent=75 // pred_check
          %p977 = pneg %p251
        $region78: #{_lambda_.3} parent=75 // pred_check_branch
          %979 = sbr.rel (%p977) target = $region80
        $region79: #{_lambda_.3} parent=75 // pred_region
          %p980 = scmp.lt.s32.totalorder %s31, 0
          %s981 = scalar_select %p980, %s31, 0
          %p982 = scmp.lt.s32.totalorder %s32, 1
          %s983 = scalar_select %p982, %s32, 1
          %s984 = smul.addr %s981, 2
          %s985 = sadd.s32 %s983, %s984
          %s986 = smul.addr %s985, 2
          %s987 = scalar_lea.vmem %s8, %s986
        $region80: #{_lambda_.3} parent=75 // pred_fallthru
          _
      $region76: #{_lambda_.3} parent=5 // pred_fallthru
        _
    $region6: #{_lambda_.3} parent=1 // loop_footer
      %s24 = sadd.s32 1, %s20
    $region7: #{_lambda_.3} parent=1 // loop_footer_branch
      %19 = sbr.rel target = $region3
    $region8: #{_lambda_.3} parent=1 // loop_exit
      _
    %988 = vsyncpa [#allocation5], 1
    %s989 = scalar_lea.sflag [#allocation5], 1
    %990 = vsyncpa %s989, 1
    %991 = vsyncpa [#allocation8], 1
    %s992 = scalar_lea.sflag [#allocation8], 1
    %993 = vsyncpa %s992, 1
    %994 = vsyncpa [#allocation6], 1
    %s995 = scalar_lea.sflag [#allocation6], 1
    %996 = vsyncpa %s995, 1

// kernel: _lambda_.2
$region0: #{_lambda_.2}
  #allocation0 [shape = 'u32[]', space=smem, size = 0x4, offset = 0x4, fixed_abs, tag = 'smem constant byte address 0x4 - core index']
  #allocation1 [shape = 'u32[72,128]{1,0:T(1,128)}', space=vmem, size = 0x9000, scoped, tag = 'internal scratch']
  #allocation2 [shape = 'f32[64,768]{1,0:T(8,128)}', space=vmem, size = 0x30000, scoped, tag = 'scratch operand']
  %s0 = inlined_call_operand.hbm [shape: f32[2,16,16,16], index: 0, kind: input, shape index: {}]
  %s1 = inlined_call_operand.hbm [shape: f32[13,768,48], index: 1, kind: input, shape index: {}]
  %s2 = inlined_call_operand.vmem [shape: f32[1,48], index: 2, kind: input, shape index: {}]
  %s3 = inlined_call_operand.vmem [shape: f32[2,1,16], index: 3, kind: output, shape index: {}]
  %s4 = sld [smem:[#allocation0]]
  $region30: #{_lambda_.2} parent=0
    _
  %s6 = ssub.s32 1, %s4
  %s7 = scalar_select 0, %s6, %s4
  $region1: #{_lambda_.2} parent=0
    #allocation3 [shape = 'u8[262144]{0}', space=vmem, size = 0x40000, scoped, tag = 'input window, operand 0, single buffered']
    #allocation4 [shape = 's32[1]{0}', space=sflag, size = 0x4, scoped, tag = 'scoped memory for _lambda_.2']
    #allocation5 [shape = 'u8[5111808]{0}', space=vmem, size = 0x4e0000, scoped, tag = 'input window, operand 1, single buffered']
    #allocation6 [shape = 's32[1]{0}', space=sflag, size = 0x4, scoped, tag = 'scoped memory for _lambda_.2']
    %8 = vsyncpa [#allocation4], 0
    %9 = vsyncpa [#allocation6], 0
    // Predicated region
    $region2: #{_lambda_.2} parent=1 // pred_check
      _
    $region3: #{_lambda_.2} parent=1 // pred_check_branch
      %11 = sbr.rel (0) target = $region5
    $region4: #{_lambda_.2} parent=1 // pred_region
      %13 = vsyncadd [#allocation4], 0
      %s14 = sshll.u32 %s0, 4
      %s15 = int_to_ptr.hbm [resolvable:$true] %s14
      %s16 = sshll.u32 [#allocation3], 4
      %s17 = int_to_ptr.vmem [resolvable:$true] %s16
      %22 = dma.hbm_to_vmem [thread:$0]  %s15, 8192, %s17, [#allocation4], 128, 128, 8
    $region5: #{_lambda_.2} parent=1 // pred_fallthru
      _
    // Predicated region
    $region6: #{_lambda_.2} parent=1 // pred_check
      _
    $region7: #{_lambda_.2} parent=1 // pred_check_branch
      %24 = sbr.rel (0) target = $region9
    $region8: #{_lambda_.2} parent=1 // pred_region
      %26 = vsyncadd [#allocation6], 0
      %s27 = sshll.u32 %s1, 4
      %s28 = int_to_ptr.hbm [resolvable:$true] %s27
      %s29 = sshll.u32 [#allocation5], 4
      %s30 = int_to_ptr.vmem [resolvable:$true] %s29
      %35 = dma.hbm_to_vmem [thread:$0]  %s28, 159744, %s30, [#allocation6], 128, 128, 8
    $region9: #{_lambda_.2} parent=1 // pred_fallthru
      _
    // Predicated region
    $region10: #{_lambda_.2} parent=1 // pred_check
      _
    $region11: #{_lambda_.2} parent=1 // pred_check_branch
      %37 = sbr.rel (0) target = $region13
    $region12: #{_lambda_.2} parent=1 // pred_region
      _
    $region13: #{_lambda_.2} parent=1 // pred_fallthru
      _
    // Predicated region
    $region14: #{_lambda_.2} parent=1 // pred_check
      _
    $region15: #{_lambda_.2} parent=1 // pred_check_branch
      %39 = sbr.rel (0) target = $region17
    $region16: #{_lambda_.2} parent=1 // pred_region
      %41 = dma.done [#allocation4], 8192
    $region17: #{_lambda_.2} parent=1 // pred_fallthru
      _
    // Predicated region
    $region18: #{_lambda_.2} parent=1 // pred_check
      _
    $region19: #{_lambda_.2} parent=1 // pred_check_branch
      %43 = sbr.rel (0) target = $region21
    $region20: #{_lambda_.2} parent=1 // pred_region
      %45 = dma.done [#allocation6], 159744
    $region21: #{_lambda_.2} parent=1 // pred_fallthru
      _
    %v46 = vld [vmem:[#allocation3] sm:$0xff]
    %v47 = vld [vmem:[#allocation3 + $0x8] sm:$0xff]
    %v48 = vld [vmem:[#allocation3 + $0x10] sm:$0xff]
    %v49 = vld [vmem:[#allocation3 + $0x18] sm:$0xff]
    %v50 = vld [vmem:[#allocation3 + $0x20] sm:$0xff]
    %v51 = vld [vmem:[#allocation3 + $0x28] sm:$0xff]
    %v52 = vld [vmem:[#allocation3 + $0x30] sm:$0xff]
    %v53 = vld [vmem:[#allocation3 + $0x38] sm:$0xff]
    %v54 = vld [vmem:[#allocation3 + $0x40] sm:$0xff]
    %v55 = vld [vmem:[#allocation3 + $0x48] sm:$0xff]
    %v56 = vld [vmem:[#allocation3 + $0x50] sm:$0xff]
    %v57 = vld [vmem:[#allocation3 + $0x58] sm:$0xff]
    %v58 = vld [vmem:[#allocation3 + $0x60] sm:$0xff]
    %v59 = vld [vmem:[#allocation3 + $0x68] sm:$0xff]
    %v60 = vld [vmem:[#allocation3 + $0x70] sm:$0xff]
    %v61 = vld [vmem:[#allocation3 + $0x78] sm:$0xff]
    %v62 = vld [vmem:[#allocation3 + $0x80] sm:$0xff]
    %v63 = vld [vmem:[#allocation3 + $0x88] sm:$0xff]
    %v64 = vld [vmem:[#allocation3 + $0x90] sm:$0xff]
    %v65 = vld [vmem:[#allocation3 + $0x98] sm:$0xff]
    %v66 = vld [vmem:[#allocation3 + $0xa0] sm:$0xff]
    %v67 = vld [vmem:[#allocation3 + $0xa8] sm:$0xff]
    %v68 = vld [vmem:[#allocation3 + $0xb0] sm:$0xff]
    %v69 = vld [vmem:[#allocation3 + $0xb8] sm:$0xff]
    %v70 = vld [vmem:[#allocation3 + $0xc0] sm:$0xff]
    %v71 = vld [vmem:[#allocation3 + $0xc8] sm:$0xff]
    %v72 = vld [vmem:[#allocation3 + $0xd0] sm:$0xff]
    %v73 = vld [vmem:[#allocation3 + $0xd8] sm:$0xff]
    %v74 = vld [vmem:[#allocation3 + $0xe0] sm:$0xff]
    %v75 = vld [vmem:[#allocation3 + $0xe8] sm:$0xff]
    %v76 = vld [vmem:[#allocation3 + $0xf0] sm:$0xff]
    %v77 = vld [vmem:[#allocation3 + $0xf8] sm:$0xff]
    %v78 = vld [vmem:[#allocation3 + $0x100] sm:$0xff]
    %v79 = vld [vmem:[#allocation3 + $0x108] sm:$0xff]
    %v80 = vld [vmem:[#allocation3 + $0x110] sm:$0xff]
    %v81 = vld [vmem:[#allocation3 + $0x118] sm:$0xff]
    %v82 = vld [vmem:[#allocation3 + $0x120] sm:$0xff]
    %v83 = vld [vmem:[#allocation3 + $0x128] sm:$0xff]
    %v84 = vld [vmem:[#allocation3 + $0x130] sm:$0xff]
    %v85 = vld [vmem:[#allocation3 + $0x138] sm:$0xff]
    %v86 = vld [vmem:[#allocation3 + $0x140] sm:$0xff]
    %v87 = vld [vmem:[#allocation3 + $0x148] sm:$0xff]
    %v88 = vld [vmem:[#allocation3 + $0x150] sm:$0xff]
    %v89 = vld [vmem:[#allocation3 + $0x158] sm:$0xff]
    %v90 = vld [vmem:[#allocation3 + $0x160] sm:$0xff]
    %v91 = vld [vmem:[#allocation3 + $0x168] sm:$0xff]
    %v92 = vld [vmem:[#allocation3 + $0x170] sm:$0xff]
    %v93 = vld [vmem:[#allocation3 + $0x178] sm:$0xff]
    %v94 = vld [vmem:[#allocation3 + $0x180] sm:$0xff]
    %v95 = vld [vmem:[#allocation3 + $0x188] sm:$0xff]
    %v96 = vld [vmem:[#allocation3 + $0x190] sm:$0xff]
    %v97 = vld [vmem:[#allocation3 + $0x198] sm:$0xff]
    %v98 = vld [vmem:[#allocation3 + $0x1a0] sm:$0xff]
    %v99 = vld [vmem:[#allocation3 + $0x1a8] sm:$0xff]
    %v100 = vld [vmem:[#allocation3 + $0x1b0] sm:$0xff]
    %v101 = vld [vmem:[#allocation3 + $0x1b8] sm:$0xff]
    %v102 = vld [vmem:[#allocation3 + $0x1c0] sm:$0xff]
    %v103 = vld [vmem:[#allocation3 + $0x1c8] sm:$0xff]
    %v104 = vld [vmem:[#allocation3 + $0x1d0] sm:$0xff]
    %v105 = vld [vmem:[#allocation3 + $0x1d8] sm:$0xff]
    %v106 = vld [vmem:[#allocation3 + $0x1e0] sm:$0xff]
    %v107 = vld [vmem:[#allocation3 + $0x1e8] sm:$0xff]
    %v108 = vld [vmem:[#allocation3 + $0x1f0] sm:$0xff]
    %v109 = vld [vmem:[#allocation3 + $0x1f8] sm:$0xff]
    %vm110 = vcmask 130048
    %v111 = vsel %vm110, %v46, -inf
    %v112 = vsel %vm110, %v48, -inf
    %v113 = vmax.f32 %v111, %v112
    %v114 = vsel %vm110, %v50, -inf
    %v115 = vmax.f32 %v113, %v114
    %v116 = vsel %vm110, %v52, -inf
    %v117 = vmax.f32 %v115, %v116
    %v118 = vsel %vm110, %v54, -inf
    %v119 = vmax.f32 %v117, %v118
    %v120 = vsel %vm110, %v56, -inf
    %v121 = vmax.f32 %v119, %v120
    %v122 = vsel %vm110, %v58, -inf
    %v123 = vmax.f32 %v121, %v122
    %v124 = vsel %vm110, %v60, -inf
    %v125 = vmax.f32 %v123, %v124
    %v126 = vsel %vm110, %v62, -inf
    %v127 = vmax.f32 %v125, %v126
    %v128 = vsel %vm110, %v64, -inf
    %v129 = vmax.f32 %v127, %v128
    %v130 = vsel %vm110, %v66, -inf
    %v131 = vmax.f32 %v129, %v130
    %v132 = vsel %vm110, %v68, -inf
    %v133 = vmax.f32 %v131, %v132
    %v134 = vsel %vm110, %v70, -inf
    %v135 = vmax.f32 %v133, %v134
    %v136 = vsel %vm110, %v72, -inf
    %v137 = vmax.f32 %v135, %v136
    %v138 = vsel %vm110, %v74, -inf
    %v139 = vmax.f32 %v137, %v138
    %v140 = vsel %vm110, %v76, -inf
    %v141 = vmax.f32 %v139, %v140
    %v142 = vsel %vm110, %v47, -inf
    %v143 = vsel %vm110, %v49, -inf
    %v144 = vmax.f32 %v142, %v143
    %v145 = vsel %vm110, %v51, -inf
    %v146 = vmax.f32 %v144, %v145
    %v147 = vsel %vm110, %v53, -inf
    %v148 = vmax.f32 %v146, %v147
    %v149 = vsel %vm110, %v55, -inf
    %v150 = vmax.f32 %v148, %v149
    %v151 = vsel %vm110, %v57, -inf
    %v152 = vmax.f32 %v150, %v151
    %v153 = vsel %vm110, %v59, -inf
    %v154 = vmax.f32 %v152, %v153
    %v155 = vsel %vm110, %v61, -inf
    %v156 = vmax.f32 %v154, %v155
    %v157 = vsel %vm110, %v63, -inf
    %v158 = vmax.f32 %v156, %v157
    %v159 = vsel %vm110, %v65, -inf
    %v160 = vmax.f32 %v158, %v159
    %v161 = vsel %vm110, %v67, -inf
    %v162 = vmax.f32 %v160, %v161
    %v163 = vsel %vm110, %v69, -inf
    %v164 = vmax.f32 %v162, %v163
    %v165 = vsel %vm110, %v71, -inf
    %v166 = vmax.f32 %v164, %v165
    %v167 = vsel %vm110, %v73, -inf
    %v168 = vmax.f32 %v166, %v167
    %v169 = vsel %vm110, %v75, -inf
    %v170 = vmax.f32 %v168, %v169
    %v171 = vsel %vm110, %v77, -inf
    %v172 = vmax.f32 %v170, %v171
    %v173 = vsel %vm110, %v78, -inf
    %v174 = vsel %vm110, %v80, -inf
    %v175 = vmax.f32 %v173, %v174
    %v176 = vsel %vm110, %v82, -inf
    %v177 = vmax.f32 %v175, %v176
    %v178 = vsel %vm110, %v84, -inf
    %v179 = vmax.f32 %v177, %v178
    %v180 = vsel %vm110, %v86, -inf
    %v181 = vmax.f32 %v179, %v180
    %v182 = vsel %vm110, %v88, -inf
    %v183 = vmax.f32 %v181, %v182
    %v184 = vsel %vm110, %v90, -inf
    %v185 = vmax.f32 %v183, %v184
    %v186 = vsel %vm110, %v92, -inf
    %v187 = vmax.f32 %v185, %v186
    %v188 = vsel %vm110, %v94, -inf
    %v189 = vmax.f32 %v187, %v188
    %v190 = vsel %vm110, %v96, -inf
    %v191 = vmax.f32 %v189, %v190
    %v192 = vsel %vm110, %v98, -inf
    %v193 = vmax.f32 %v191, %v192
    %v194 = vsel %vm110, %v100, -inf
    %v195 = vmax.f32 %v193, %v194
    %v196 = vsel %vm110, %v102, -inf
    %v197 = vmax.f32 %v195, %v196
    %v198 = vsel %vm110, %v104, -inf
    %v199 = vmax.f32 %v197, %v198
    %v200 = vsel %vm110, %v106, -inf
    %v201 = vmax.f32 %v199, %v200
    %v202 = vsel %vm110, %v108, -inf
    %v203 = vmax.f32 %v201, %v202
    %v204 = vsel %vm110, %v79, -inf
    %v205 = vsel %vm110, %v81, -inf
    %v206 = vmax.f32 %v204, %v205
    %v207 = vsel %vm110, %v83, -inf
    %v208 = vmax.f32 %v206, %v207
    %v209 = vsel %vm110, %v85, -inf
    %v210 = vmax.f32 %v208, %v209
    %v211 = vsel %vm110, %v87, -inf
    %v212 = vmax.f32 %v210, %v211
    %v213 = vsel %vm110, %v89, -inf
    %v214 = vmax.f32 %v212, %v213
    %v215 = vsel %vm110, %v91, -inf
    %v216 = vmax.f32 %v214, %v215
    %v217 = vsel %vm110, %v93, -inf
    %v218 = vmax.f32 %v216, %v217
    %v219 = vsel %vm110, %v95, -inf
    %v220 = vmax.f32 %v218, %v219
    %v221 = vsel %vm110, %v97, -inf
    %v222 = vmax.f32 %v220, %v221
    %v223 = vsel %vm110, %v99, -inf
    %v224 = vmax.f32 %v222, %v223
    %v225 = vsel %vm110, %v101, -inf
    %v226 = vmax.f32 %v224, %v225
    %v227 = vsel %vm110, %v103, -inf
    %v228 = vmax.f32 %v226, %v227
    %v229 = vsel %vm110, %v105, -inf
    %v230 = vmax.f32 %v228, %v229
    %v231 = vsel %vm110, %v107, -inf
    %v232 = vmax.f32 %v230, %v231
    %v233 = vsel %vm110, %v109, -inf
    %v234 = vmax.f32 %v232, %v233
    %v235 = vsel %vm110, %v46, 0.0
    %v236 = vsel %vm110, %v48, 0.0
    %v237 = vadd.f32 %v235, %v236
    %v238 = vsel %vm110, %v50, 0.0
    %v239 = vadd.f32 %v237, %v238
    %v240 = vsel %vm110, %v52, 0.0
    %v241 = vadd.f32 %v239, %v240
    %v242 = vsel %vm110, %v54, 0.0
    %v243 = vadd.f32 %v241, %v242
    %v244 = vsel %vm110, %v56, 0.0
    %v245 = vadd.f32 %v243, %v244
    %v246 = vsel %vm110, %v58, 0.0
    %v247 = vadd.f32 %v245, %v246
    %v248 = vsel %vm110, %v60, 0.0
    %v249 = vadd.f32 %v247, %v248
    %v250 = vsel %vm110, %v62, 0.0
    %v251 = vadd.f32 %v249, %v250
    %v252 = vsel %vm110, %v64, 0.0
    %v253 = vadd.f32 %v251, %v252
    %v254 = vsel %vm110, %v66, 0.0
    %v255 = vadd.f32 %v253, %v254
    %v256 = vsel %vm110, %v68, 0.0
    %v257 = vadd.f32 %v255, %v256
    %v258 = vsel %vm110, %v70, 0.0
    %v259 = vadd.f32 %v257, %v258
    %v260 = vsel %vm110, %v72, 0.0
    %v261 = vadd.f32 %v259, %v260
    %v262 = vsel %vm110, %v74, 0.0
    %v263 = vadd.f32 %v261, %v262
    %v264 = vsel %vm110, %v76, 0.0
    %v265 = vadd.f32 %v263, %v264
    %v266 = vsel %vm110, %v47, 0.0
    %v267 = vsel %vm110, %v49, 0.0
    %v268 = vadd.f32 %v266, %v267
    %v269 = vsel %vm110, %v51, 0.0
    %v270 = vadd.f32 %v268, %v269
    %v271 = vsel %vm110, %v53, 0.0
    %v272 = vadd.f32 %v270, %v271
    %v273 = vsel %vm110, %v55, 0.0
    %v274 = vadd.f32 %v272, %v273
    %v275 = vsel %vm110, %v57, 0.0
    %v276 = vadd.f32 %v274, %v275
    %v277 = vsel %vm110, %v59, 0.0
    %v278 = vadd.f32 %v276, %v277
    %v279 = vsel %vm110, %v61, 0.0
    %v280 = vadd.f32 %v278, %v279
    %v281 = vsel %vm110, %v63, 0.0
    %v282 = vadd.f32 %v280, %v281
    %v283 = vsel %vm110, %v65, 0.0
    %v284 = vadd.f32 %v282, %v283
    %v285 = vsel %vm110, %v67, 0.0
    %v286 = vadd.f32 %v284, %v285
    %v287 = vsel %vm110, %v69, 0.0
    %v288 = vadd.f32 %v286, %v287
    %v289 = vsel %vm110, %v71, 0.0
    %v290 = vadd.f32 %v288, %v289
    %v291 = vsel %vm110, %v73, 0.0
    %v292 = vadd.f32 %v290, %v291
    %v293 = vsel %vm110, %v75, 0.0
    %v294 = vadd.f32 %v292, %v293
    %v295 = vsel %vm110, %v77, 0.0
    %v296 = vadd.f32 %v294, %v295
    %v297 = vsel %vm110, %v78, 0.0
    %v298 = vsel %vm110, %v80, 0.0
    %v299 = vadd.f32 %v297, %v298
    %v300 = vsel %vm110, %v82, 0.0
    %v301 = vadd.f32 %v299, %v300
    %v302 = vsel %vm110, %v84, 0.0
    %v303 = vadd.f32 %v301, %v302
    %v304 = vsel %vm110, %v86, 0.0
    %v305 = vadd.f32 %v303, %v304
    %v306 = vsel %vm110, %v88, 0.0
    %v307 = vadd.f32 %v305, %v306
    %v308 = vsel %vm110, %v90, 0.0
    %v309 = vadd.f32 %v307, %v308
    %v310 = vsel %vm110, %v92, 0.0
    %v311 = vadd.f32 %v309, %v310
    %v312 = vsel %vm110, %v94, 0.0
    %v313 = vadd.f32 %v311, %v312
    %v314 = vsel %vm110, %v96, 0.0
    %v315 = vadd.f32 %v313, %v314
    %v316 = vsel %vm110, %v98, 0.0
    %v317 = vadd.f32 %v315, %v316
    %v318 = vsel %vm110, %v100, 0.0
    %v319 = vadd.f32 %v317, %v318
    %v320 = vsel %vm110, %v102, 0.0
    %v321 = vadd.f32 %v319, %v320
    %v322 = vsel %vm110, %v104, 0.0
    %v323 = vadd.f32 %v321, %v322
    %v324 = vsel %vm110, %v106, 0.0
    %v325 = vadd.f32 %v323, %v324
    %v326 = vsel %vm110, %v108, 0.0
    %v327 = vadd.f32 %v325, %v326
    %v328 = vsel %vm110, %v79, 0.0
    %v329 = vsel %vm110, %v81, 0.0
    %v330 = vadd.f32 %v328, %v329
    %v331 = vsel %vm110, %v83, 0.0
    %v332 = vadd.f32 %v330, %v331
    %v333 = vsel %vm110, %v85, 0.0
    %v334 = vadd.f32 %v332, %v333
    %v335 = vsel %vm110, %v87, 0.0
    %v336 = vadd.f32 %v334, %v335
    %v337 = vsel %vm110, %v89, 0.0
    %v338 = vadd.f32 %v336, %v337
    %v339 = vsel %vm110, %v91, 0.0
    %v340 = vadd.f32 %v338, %v339
    %v341 = vsel %vm110, %v93, 0.0
    %v342 = vadd.f32 %v340, %v341
    %v343 = vsel %vm110, %v95, 0.0
    %v344 = vadd.f32 %v342, %v343
    %v345 = vsel %vm110, %v97, 0.0
    %v346 = vadd.f32 %v344, %v345
    %v347 = vsel %vm110, %v99, 0.0
    %v348 = vadd.f32 %v346, %v347
    %v349 = vsel %vm110, %v101, 0.0
    %v350 = vadd.f32 %v348, %v349
    %v351 = vsel %vm110, %v103, 0.0
    %v352 = vadd.f32 %v350, %v351
    %v353 = vsel %vm110, %v105, 0.0
    %v354 = vadd.f32 %v352, %v353
    %v355 = vsel %vm110, %v107, 0.0
    %v356 = vadd.f32 %v354, %v355
    %v357 = vsel %vm110, %v109, 0.0
    %v358 = vadd.f32 %v356, %v357
    %v359 = vmul.f32 %v265, 0.0625
    %v360 = vmul.f32 %v296, 0.0625
    %v361 = vmul.f32 %v327, 0.0625
    %v362 = vmul.f32 %v358, 0.0625
    %v363 = vmax.f32 %v111, %v142
    %v364 = vrot.slane %v363, 4
    %v365 = vmax.f32 %v363, %v364
    %v366 = vrot.slane %v365, 2
    %v367 = vmax.f32 %v365, %v366
    %v368 = vrot.slane %v367, 1
    %v369 = vmax.f32 %v367, %v368
    %v370 = vmax.f32 %v112, %v143
    %v371 = vrot.slane %v370, 4
    %v372 = vmax.f32 %v370, %v371
    %v373 = vrot.slane %v372, 2
    %v374 = vmax.f32 %v372, %v373
    %v375 = vrot.slane %v374, 1
    %v376 = vmax.f32 %v374, %v375
    %v377 = vmax.f32 %v114, %v145
    %v378 = vrot.slane %v377, 4
    %v379 = vmax.f32 %v377, %v378
    %v380 = vrot.slane %v379, 2
    %v381 = vmax.f32 %v379, %v380
    %v382 = vrot.slane %v381, 1
    %v383 = vmax.f32 %v381, %v382
    %v384 = vmax.f32 %v116, %v147
    %v385 = vrot.slane %v384, 4
    %v386 = vmax.f32 %v384, %v385
    %v387 = vrot.slane %v386, 2
    %v388 = vmax.f32 %v386, %v387
    %v389 = vrot.slane %v388, 1
    %v390 = vmax.f32 %v388, %v389
    %v391 = vmax.f32 %v118, %v149
    %v392 = vrot.slane %v391, 4
    %v393 = vmax.f32 %v391, %v392
    %v394 = vrot.slane %v393, 2
    %v395 = vmax.f32 %v393, %v394
    %v396 = vrot.slane %v395, 1
    %v397 = vmax.f32 %v395, %v396
    %v398 = vmax.f32 %v120, %v151
    %v399 = vrot.slane %v398, 4
    %v400 = vmax.f32 %v398, %v399
    %v401 = vrot.slane %v400, 2
    %v402 = vmax.f32 %v400, %v401
    %v403 = vrot.slane %v402, 1
    %v404 = vmax.f32 %v402, %v403
    %v405 = vmax.f32 %v122, %v153
    %v406 = vrot.slane %v405, 4
    %v407 = vmax.f32 %v405, %v406
    %v408 = vrot.slane %v407, 2
    %v409 = vmax.f32 %v407, %v408
    %v410 = vrot.slane %v409, 1
    %v411 = vmax.f32 %v409, %v410
    %v412 = vmax.f32 %v124, %v155
    %v413 = vrot.slane %v412, 4
    %v414 = vmax.f32 %v412, %v413
    %v415 = vrot.slane %v414, 2
    %v416 = vmax.f32 %v414, %v415
    %v417 = vrot.slane %v416, 1
    %v418 = vmax.f32 %v416, %v417
    %v419 = vmax.f32 %v126, %v157
    %v420 = vrot.slane %v419, 4
    %v421 = vmax.f32 %v419, %v420
    %v422 = vrot.slane %v421, 2
    %v423 = vmax.f32 %v421, %v422
    %v424 = vrot.slane %v423, 1
    %v425 = vmax.f32 %v423, %v424
    %v426 = vmax.f32 %v128, %v159
    %v427 = vrot.slane %v426, 4
    %v428 = vmax.f32 %v426, %v427
    %v429 = vrot.slane %v428, 2
    %v430 = vmax.f32 %v428, %v429
    %v431 = vrot.slane %v430, 1
    %v432 = vmax.f32 %v430, %v431
    %v433 = vmax.f32 %v130, %v161
    %v434 = vrot.slane %v433, 4
    %v435 = vmax.f32 %v433, %v434
    %v436 = vrot.slane %v435, 2
    %v437 = vmax.f32 %v435, %v436
    %v438 = vrot.slane %v437, 1
    %v439 = vmax.f32 %v437, %v438
    %v440 = vmax.f32 %v132, %v163
    %v441 = vrot.slane %v440, 4
    %v442 = vmax.f32 %v440, %v441
    %v443 = vrot.slane %v442, 2
    %v444 = vmax.f32 %v442, %v443
    %v445 = vrot.slane %v444, 1
    %v446 = vmax.f32 %v444, %v445
    %v447 = vmax.f32 %v134, %v165
    %v448 = vrot.slane %v447, 4
    %v449 = vmax.f32 %v447, %v448
    %v450 = vrot.slane %v449, 2
    %v451 = vmax.f32 %v449, %v450
    %v452 = vrot.slane %v451, 1
    %v453 = vmax.f32 %v451, %v452
    %v454 = vmax.f32 %v136, %v167
    %v455 = vrot.slane %v454, 4
    %v456 = vmax.f32 %v454, %v455
    %v457 = vrot.slane %v456, 2
    %v458 = vmax.f32 %v456, %v457
    %v459 = vrot.slane %v458, 1
    %v460 = vmax.f32 %v458, %v459
    %v461 = vmax.f32 %v138, %v169
    %v462 = vrot.slane %v461, 4
    %v463 = vmax.f32 %v461, %v462
    %v464 = vrot.slane %v463, 2
    %v465 = vmax.f32 %v463, %v464
    %v466 = vrot.slane %v465, 1
    %v467 = vmax.f32 %v465, %v466
    %v468 = vmax.f32 %v140, %v171
    %v469 = vrot.slane %v468, 4
    %v470 = vmax.f32 %v468, %v469
    %v471 = vrot.slane %v470, 2
    %v472 = vmax.f32 %v470, %v471
    %v473 = vrot.slane %v472, 1
    %v474 = vmax.f32 %v472, %v473
    %v475 = vmax.f32 %v173, %v204
    %v476 = vrot.slane %v475, 4
    %v477 = vmax.f32 %v475, %v476
    %v478 = vrot.slane %v477, 2
    %v479 = vmax.f32 %v477, %v478
    %v480 = vrot.slane %v479, 1
    %v481 = vmax.f32 %v479, %v480
    %v482 = vmax.f32 %v174, %v205
    %v483 = vrot.slane %v482, 4
    %v484 = vmax.f32 %v482, %v483
    %v485 = vrot.slane %v484, 2
    %v486 = vmax.f32 %v484, %v485
    %v487 = vrot.slane %v486, 1
    %v488 = vmax.f32 %v486, %v487
    %v489 = vmax.f32 %v176, %v207
    %v490 = vrot.slane %v489, 4
    %v491 = vmax.f32 %v489, %v490
    %v492 = vrot.slane %v491, 2
    %v493 = vmax.f32 %v491, %v492
    %v494 = vrot.slane %v493, 1
    %v495 = vmax.f32 %v493, %v494
    %v496 = vmax.f32 %v178, %v209
    %v497 = vrot.slane %v496, 4
    %v498 = vmax.f32 %v496, %v497
    %v499 = vrot.slane %v498, 2
    %v500 = vmax.f32 %v498, %v499
    %v501 = vrot.slane %v500, 1
    %v502 = vmax.f32 %v500, %v501
    %v503 = vmax.f32 %v180, %v211
    %v504 = vrot.slane %v503, 4
    %v505 = vmax.f32 %v503, %v504
    %v506 = vrot.slane %v505, 2
    %v507 = vmax.f32 %v505, %v506
    %v508 = vrot.slane %v507, 1
    %v509 = vmax.f32 %v507, %v508
    %v510 = vmax.f32 %v182, %v213
    %v511 = vrot.slane %v510, 4
    %v512 = vmax.f32 %v510, %v511
    %v513 = vrot.slane %v512, 2
    %v514 = vmax.f32 %v512, %v513
    %v515 = vrot.slane %v514, 1
    %v516 = vmax.f32 %v514, %v515
    %v517 = vmax.f32 %v184, %v215
    %v518 = vrot.slane %v517, 4
    %v519 = vmax.f32 %v517, %v518
    %v520 = vrot.slane %v519, 2
    %v521 = vmax.f32 %v519, %v520
    %v522 = vrot.slane %v521, 1
    %v523 = vmax.f32 %v521, %v522
    %v524 = vmax.f32 %v186, %v217
    %v525 = vrot.slane %v524, 4
    %v526 = vmax.f32 %v524, %v525
    %v527 = vrot.slane %v526, 2
    %v528 = vmax.f32 %v526, %v527
    %v529 = vrot.slane %v528, 1
    %v530 = vmax.f32 %v528, %v529
    %v531 = vmax.f32 %v188, %v219
    %v532 = vrot.slane %v531, 4
    %v533 = vmax.f32 %v531, %v532
    %v534 = vrot.slane %v533, 2
    %v535 = vmax.f32 %v533, %v534
    %v536 = vrot.slane %v535, 1
    %v537 = vmax.f32 %v535, %v536
    %v538 = vmax.f32 %v190, %v221
    %v539 = vrot.slane %v538, 4
    %v540 = vmax.f32 %v538, %v539
    %v541 = vrot.slane %v540, 2
    %v542 = vmax.f32 %v540, %v541
    %v543 = vrot.slane %v542, 1
    %v544 = vmax.f32 %v542, %v543
    %v545 = vmax.f32 %v192, %v223
    %v546 = vrot.slane %v545, 4
    %v547 = vmax.f32 %v545, %v546
    %v548 = vrot.slane %v547, 2
    %v549 = vmax.f32 %v547, %v548
    %v550 = vrot.slane %v549, 1
    %v551 = vmax.f32 %v549, %v550
    %v552 = vmax.f32 %v194, %v225
    %v553 = vrot.slane %v552, 4
    %v554 = vmax.f32 %v552, %v553
    %v555 = vrot.slane %v554, 2
    %v556 = vmax.f32 %v554, %v555
    %v557 = vrot.slane %v556, 1
    %v558 = vmax.f32 %v556, %v557
    %v559 = vmax.f32 %v196, %v227
    %v560 = vrot.slane %v559, 4
    %v561 = vmax.f32 %v559, %v560
    %v562 = vrot.slane %v561, 2
    %v563 = vmax.f32 %v561, %v562
    %v564 = vrot.slane %v563, 1
    %v565 = vmax.f32 %v563, %v564
    %v566 = vmax.f32 %v198, %v229
    %v567 = vrot.slane %v566, 4
    %v568 = vmax.f32 %v566, %v567
    %v569 = vrot.slane %v568, 2
    %v570 = vmax.f32 %v568, %v569
    %v571 = vrot.slane %v570, 1
    %v572 = vmax.f32 %v570, %v571
    %v573 = vmax.f32 %v200, %v231
    %v574 = vrot.slane %v573, 4
    %v575 = vmax.f32 %v573, %v574
    %v576 = vrot.slane %v575, 2
    %v577 = vmax.f32 %v575, %v576
    %v578 = vrot.slane %v577, 1
    %v579 = vmax.f32 %v577, %v578
    %v580 = vmax.f32 %v202, %v233
    %v581 = vrot.slane %v580, 4
    %v582 = vmax.f32 %v580, %v581
    %v583 = vrot.slane %v582, 2
    %v584 = vmax.f32 %v582, %v583
    %v585 = vrot.slane %v584, 1
    %v586 = vmax.f32 %v584, %v585
    %v587 = vadd.f32 %v235, %v266
    %v588 = vrot.slane %v587, 4
    %v589 = vadd.f32 %v587, %v588
    %v590 = vrot.slane %v589, 2
    %v591 = vadd.f32 %v589, %v590
    %v592 = vrot.slane %v591, 1
    %v593 = vadd.f32 %v591, %v592
    %v594 = vadd.f32 %v236, %v267
    %v595 = vrot.slane %v594, 4
    %v596 = vadd.f32 %v594, %v595
    %v597 = vrot.slane %v596, 2
    %v598 = vadd.f32 %v596, %v597
    %v599 = vrot.slane %v598, 1
    %v600 = vadd.f32 %v598, %v599
    %v601 = vadd.f32 %v238, %v269
    %v602 = vrot.slane %v601, 4
    %v603 = vadd.f32 %v601, %v602
    %v604 = vrot.slane %v603, 2
    %v605 = vadd.f32 %v603, %v604
    %v606 = vrot.slane %v605, 1
    %v607 = vadd.f32 %v605, %v606
    %v608 = vadd.f32 %v240, %v271
    %v609 = vrot.slane %v608, 4
    %v610 = vadd.f32 %v608, %v609
    %v611 = vrot.slane %v610, 2
    %v612 = vadd.f32 %v610, %v611
    %v613 = vrot.slane %v612, 1
    %v614 = vadd.f32 %v612, %v613
    %v615 = vadd.f32 %v242, %v273
    %v616 = vrot.slane %v615, 4
    %v617 = vadd.f32 %v615, %v616
    %v618 = vrot.slane %v617, 2
    %v619 = vadd.f32 %v617, %v618
    %v620 = vrot.slane %v619, 1
    %v621 = vadd.f32 %v619, %v620
    %v622 = vadd.f32 %v244, %v275
    %v623 = vrot.slane %v622, 4
    %v624 = vadd.f32 %v622, %v623
    %v625 = vrot.slane %v624, 2
    %v626 = vadd.f32 %v624, %v625
    %v627 = vrot.slane %v626, 1
    %v628 = vadd.f32 %v626, %v627
    %v629 = vadd.f32 %v246, %v277
    %v630 = vrot.slane %v629, 4
    %v631 = vadd.f32 %v629, %v630
    %v632 = vrot.slane %v631, 2
    %v633 = vadd.f32 %v631, %v632
    %v634 = vrot.slane %v633, 1
    %v635 = vadd.f32 %v633, %v634
    %v636 = vadd.f32 %v248, %v279
    %v637 = vrot.slane %v636, 4
    %v638 = vadd.f32 %v636, %v637
    %v639 = vrot.slane %v638, 2
    %v640 = vadd.f32 %v638, %v639
    %v641 = vrot.slane %v640, 1
    %v642 = vadd.f32 %v640, %v641
    %v643 = vadd.f32 %v250, %v281
    %v644 = vrot.slane %v643, 4
    %v645 = vadd.f32 %v643, %v644
    %v646 = vrot.slane %v645, 2
    %v647 = vadd.f32 %v645, %v646
    %v648 = vrot.slane %v647, 1
    %v649 = vadd.f32 %v647, %v648
    %v650 = vadd.f32 %v252, %v283
    %v651 = vrot.slane %v650, 4
    %v652 = vadd.f32 %v650, %v651
    %v653 = vrot.slane %v652, 2
    %v654 = vadd.f32 %v652, %v653
    %v655 = vrot.slane %v654, 1
    %v656 = vadd.f32 %v654, %v655
    %v657 = vadd.f32 %v254, %v285
    %v658 = vrot.slane %v657, 4
    %v659 = vadd.f32 %v657, %v658
    %v660 = vrot.slane %v659, 2
    %v661 = vadd.f32 %v659, %v660
    %v662 = vrot.slane %v661, 1
    %v663 = vadd.f32 %v661, %v662
    %v664 = vadd.f32 %v256, %v287
    %v665 = vrot.slane %v664, 4
    %v666 = vadd.f32 %v664, %v665
    %v667 = vrot.slane %v666, 2
    %v668 = vadd.f32 %v666, %v667
    %v669 = vrot.slane %v668, 1
    %v670 = vadd.f32 %v668, %v669
    %v671 = vadd.f32 %v258, %v289
    %v672 = vrot.slane %v671, 4
    %v673 = vadd.f32 %v671, %v672
    %v674 = vrot.slane %v673, 2
    %v675 = vadd.f32 %v673, %v674
    %v676 = vrot.slane %v675, 1
    %v677 = vadd.f32 %v675, %v676
    %v678 = vadd.f32 %v260, %v291
    %v679 = vrot.slane %v678, 4
    %v680 = vadd.f32 %v678, %v679
    %v681 = vrot.slane %v680, 2
    %v682 = vadd.f32 %v680, %v681
    %v683 = vrot.slane %v682, 1
    %v684 = vadd.f32 %v682, %v683
    %v685 = vadd.f32 %v262, %v293
    %v686 = vrot.slane %v685, 4
    %v687 = vadd.f32 %v685, %v686
    %v688 = vrot.slane %v687, 2
    %v689 = vadd.f32 %v687, %v688
    %v690 = vrot.slane %v689, 1
    %v691 = vadd.f32 %v689, %v690
    %v692 = vadd.f32 %v264, %v295
    %v693 = vrot.slane %v692, 4
    %v694 = vadd.f32 %v692, %v693
    %v695 = vrot.slane %v694, 2
    %v696 = vadd.f32 %v694, %v695
    %v697 = vrot.slane %v696, 1
    %v698 = vadd.f32 %v696, %v697
    %v699 = vadd.f32 %v297, %v328
    %v700 = vrot.slane %v699, 4
    %v701 = vadd.f32 %v699, %v700
    %v702 = vrot.slane %v701, 2
    %v703 = vadd.f32 %v701, %v702
    %v704 = vrot.slane %v703, 1
    %v705 = vadd.f32 %v703, %v704
    %v706 = vadd.f32 %v298, %v329
    %v707 = vrot.slane %v706, 4
    %v708 = vadd.f32 %v706, %v707
    %v709 = vrot.slane %v708, 2
    %v710 = vadd.f32 %v708, %v709
    %v711 = vrot.slane %v710, 1
    %v712 = vadd.f32 %v710, %v711
    %v713 = vadd.f32 %v300, %v331
    %v714 = vrot.slane %v713, 4
    %v715 = vadd.f32 %v713, %v714
    %v716 = vrot.slane %v715, 2
    %v717 = vadd.f32 %v715, %v716
    %v718 = vrot.slane %v717, 1
    %v719 = vadd.f32 %v717, %v718
    %v720 = vadd.f32 %v302, %v333
    %v721 = vrot.slane %v720, 4
    %v722 = vadd.f32 %v720, %v721
    %v723 = vrot.slane %v722, 2
    %v724 = vadd.f32 %v722, %v723
    %v725 = vrot.slane %v724, 1
    %v726 = vadd.f32 %v724, %v725
    %v727 = vadd.f32 %v304, %v335
    %v728 = vrot.slane %v727, 4
    %v729 = vadd.f32 %v727, %v728
    %v730 = vrot.slane %v729, 2
    %v731 = vadd.f32 %v729, %v730
    %v732 = vrot.slane %v731, 1
    %v733 = vadd.f32 %v731, %v732
    %v734 = vadd.f32 %v306, %v337
    %v735 = vrot.slane %v734, 4
    %v736 = vadd.f32 %v734, %v735
    %v737 = vrot.slane %v736, 2
    %v738 = vadd.f32 %v736, %v737
    %v739 = vrot.slane %v738, 1
    %v740 = vadd.f32 %v738, %v739
    %v741 = vadd.f32 %v308, %v339
    %v742 = vrot.slane %v741, 4
    %v743 = vadd.f32 %v741, %v742
    %v744 = vrot.slane %v743, 2
    %v745 = vadd.f32 %v743, %v744
    %v746 = vrot.slane %v745, 1
    %v747 = vadd.f32 %v745, %v746
    %v748 = vadd.f32 %v310, %v341
    %v749 = vrot.slane %v748, 4
    %v750 = vadd.f32 %v748, %v749
    %v751 = vrot.slane %v750, 2
    %v752 = vadd.f32 %v750, %v751
    %v753 = vrot.slane %v752, 1
    %v754 = vadd.f32 %v752, %v753
    %v755 = vadd.f32 %v312, %v343
    %v756 = vrot.slane %v755, 4
    %v757 = vadd.f32 %v755, %v756
    %v758 = vrot.slane %v757, 2
    %v759 = vadd.f32 %v757, %v758
    %v760 = vrot.slane %v759, 1
    %v761 = vadd.f32 %v759, %v760
    %v762 = vadd.f32 %v314, %v345
    %v763 = vrot.slane %v762, 4
    %v764 = vadd.f32 %v762, %v763
    %v765 = vrot.slane %v764, 2
    %v766 = vadd.f32 %v764, %v765
    %v767 = vrot.slane %v766, 1
    %v768 = vadd.f32 %v766, %v767
    %v769 = vadd.f32 %v316, %v347
    %v770 = vrot.slane %v769, 4
    %v771 = vadd.f32 %v769, %v770
    %v772 = vrot.slane %v771, 2
    %v773 = vadd.f32 %v771, %v772
    %v774 = vrot.slane %v773, 1
    %v775 = vadd.f32 %v773, %v774
    %v776 = vadd.f32 %v318, %v349
    %v777 = vrot.slane %v776, 4
    %v778 = vadd.f32 %v776, %v777
    %v779 = vrot.slane %v778, 2
    %v780 = vadd.f32 %v778, %v779
    %v781 = vrot.slane %v780, 1
    %v782 = vadd.f32 %v780, %v781
    %v783 = vadd.f32 %v320, %v351
    %v784 = vrot.slane %v783, 4
    %v785 = vadd.f32 %v783, %v784
    %v786 = vrot.slane %v785, 2
    %v787 = vadd.f32 %v785, %v786
    %v788 = vrot.slane %v787, 1
    %v789 = vadd.f32 %v787, %v788
    %v790 = vadd.f32 %v322, %v353
    %v791 = vrot.slane %v790, 4
    %v792 = vadd.f32 %v790, %v791
    %v793 = vrot.slane %v792, 2
    %v794 = vadd.f32 %v792, %v793
    %v795 = vrot.slane %v794, 1
    %v796 = vadd.f32 %v794, %v795
    %v797 = vadd.f32 %v324, %v355
    %v798 = vrot.slane %v797, 4
    %v799 = vadd.f32 %v797, %v798
    %v800 = vrot.slane %v799, 2
    %v801 = vadd.f32 %v799, %v800
    %v802 = vrot.slane %v801, 1
    %v803 = vadd.f32 %v801, %v802
    %v804 = vadd.f32 %v326, %v357
    %v805 = vrot.slane %v804, 4
    %v806 = vadd.f32 %v804, %v805
    %v807 = vrot.slane %v806, 2
    %v808 = vadd.f32 %v806, %v807
    %v809 = vrot.slane %v808, 1
    %v810 = vadd.f32 %v808, %v809
    %v811 = vmul.f32 %v593, 0.0625
    %v812 = vmul.f32 %v600, 0.0625
    %v813 = vmul.f32 %v607, 0.0625
    %v814 = vmul.f32 %v614, 0.0625
    %v815 = vmul.f32 %v621, 0.0625
    %v816 = vmul.f32 %v628, 0.0625
    %v817 = vmul.f32 %v635, 0.0625
    %v818 = vmul.f32 %v642, 0.0625
    %v819 = vmul.f32 %v649, 0.0625
    %v820 = vmul.f32 %v656, 0.0625
    %v821 = vmul.f32 %v663, 0.0625
    %v822 = vmul.f32 %v670, 0.0625
    %v823 = vmul.f32 %v677, 0.0625
    %v824 = vmul.f32 %v684, 0.0625
    %v825 = vmul.f32 %v691, 0.0625
    %v826 = vmul.f32 %v698, 0.0625
    %v827 = vmul.f32 %v705, 0.0625
    %v828 = vmul.f32 %v712, 0.0625
    %v829 = vmul.f32 %v719, 0.0625
    %v830 = vmul.f32 %v726, 0.0625
    %v831 = vmul.f32 %v733, 0.0625
    %v832 = vmul.f32 %v740, 0.0625
    %v833 = vmul.f32 %v747, 0.0625
    %v834 = vmul.f32 %v754, 0.0625
    %v835 = vmul.f32 %v761, 0.0625
    %v836 = vmul.f32 %v768, 0.0625
    %v837 = vmul.f32 %v775, 0.0625
    %v838 = vmul.f32 %v782, 0.0625
    %v839 = vmul.f32 %v789, 0.0625
    %v840 = vmul.f32 %v796, 0.0625
    %v841 = vmul.f32 %v803, 0.0625
    %v842 = vmul.f32 %v810, 0.0625
    %843 = vmax.xlane.f32.xlu0 %v111
    %v844 = vpop.xlane.xlu0 %843
    %845 = vmax.xlane.f32.xlu0 %v142
    %v846 = vpop.xlane.xlu0 %845
    %847 = vmax.xlane.f32.xlu0 %v112
    %v848 = vpop.xlane.xlu0 %847
    %849 = vmax.xlane.f32.xlu0 %v143
    %v850 = vpop.xlane.xlu0 %849
    %851 = vmax.xlane.f32.xlu0 %v114
    %v852 = vpop.xlane.xlu0 %851
    %853 = vmax.xlane.f32.xlu0 %v145
    %v854 = vpop.xlane.xlu0 %853
    %855 = vmax.xlane.f32.xlu0 %v116
    %v856 = vpop.xlane.xlu0 %855
    %857 = vmax.xlane.f32.xlu0 %v147
    %v858 = vpop.xlane.xlu0 %857
    %859 = vmax.xlane.f32.xlu0 %v118
    %v860 = vpop.xlane.xlu0 %859
    %861 = vmax.xlane.f32.xlu0 %v149
    %v862 = vpop.xlane.xlu0 %861
    %863 = vmax.xlane.f32.xlu0 %v120
    %v864 = vpop.xlane.xlu0 %863
    %865 = vmax.xlane.f32.xlu0 %v151
    %v866 = vpop.xlane.xlu0 %865
    %867 = vmax.xlane.f32.xlu0 %v122
    %v868 = vpop.xlane.xlu0 %867
    %869 = vmax.xlane.f32.xlu0 %v153
    %v870 = vpop.xlane.xlu0 %869
    %871 = vmax.xlane.f32.xlu0 %v124
    %v872 = vpop.xlane.xlu0 %871
    %873 = vmax.xlane.f32.xlu0 %v155
    %v874 = vpop.xlane.xlu0 %873
    %875 = vmax.xlane.f32.xlu0 %v126
    %v876 = vpop.xlane.xlu0 %875
    %877 = vmax.xlane.f32.xlu0 %v157
    %v878 = vpop.xlane.xlu0 %877
    %879 = vmax.xlane.f32.xlu0 %v128
    %v880 = vpop.xlane.xlu0 %879
    %881 = vmax.xlane.f32.xlu0 %v159
    %v882 = vpop.xlane.xlu0 %881
    %883 = vmax.xlane.f32.xlu0 %v130
    %v884 = vpop.xlane.xlu0 %883
    %885 = vmax.xlane.f32.xlu0 %v161
    %v886 = vpop.xlane.xlu0 %885
    %887 = vmax.xlane.f32.xlu0 %v132
    %v888 = vpop.xlane.xlu0 %887
    %889 = vmax.xlane.f32.xlu0 %v163
    %v890 = vpop.xlane.xlu0 %889
    %891 = vmax.xlane.f32.xlu0 %v134
    %v892 = vpop.xlane.xlu0 %891
    %893 = vmax.xlane.f32.xlu0 %v165
    %v894 = vpop.xlane.xlu0 %893
    %895 = vmax.xlane.f32.xlu0 %v136
    %v896 = vpop.xlane.xlu0 %895
    %897 = vmax.xlane.f32.xlu0 %v167
    %v898 = vpop.xlane.xlu0 %897
    %899 = vmax.xlane.f32.xlu0 %v138
    %v900 = vpop.xlane.xlu0 %899
    %901 = vmax.xlane.f32.xlu0 %v169
    %v902 = vpop.xlane.xlu0 %901
    %903 = vmax.xlane.f32.xlu0 %v140
    %v904 = vpop.xlane.xlu0 %903
    %905 = vmax.xlane.f32.xlu0 %v171
    %v906 = vpop.xlane.xlu0 %905
    %907 = vmax.xlane.f32.xlu0 %v173
    %v908 = vpop.xlane.xlu0 %907
    %909 = vmax.xlane.f32.xlu0 %v204
    %v910 = vpop.xlane.xlu0 %909
    %911 = vmax.xlane.f32.xlu0 %v174
    %v912 = vpop.xlane.xlu0 %911
    %913 = vmax.xlane.f32.xlu0 %v205
    %v914 = vpop.xlane.xlu0 %913
    %915 = vmax.xlane.f32.xlu0 %v176
    %v916 = vpop.xlane.xlu0 %915
    %917 = vmax.xlane.f32.xlu0 %v207
    %v918 = vpop.xlane.xlu0 %917
    %919 = vmax.xlane.f32.xlu0 %v178
    %v920 = vpop.xlane.xlu0 %919
    %921 = vmax.xlane.f32.xlu0 %v209
    %v922 = vpop.xlane.xlu0 %921
    %923 = vmax.xlane.f32.xlu0 %v180
    %v924 = vpop.xlane.xlu0 %923
    %925 = vmax.xlane.f32.xlu0 %v211
    %v926 = vpop.xlane.xlu0 %925
    %927 = vmax.xlane.f32.xlu0 %v182
    %v928 = vpop.xlane.xlu0 %927
    %929 = vmax.xlane.f32.xlu0 %v213
    %v930 = vpop.xlane.xlu0 %929
    %931 = vmax.xlane.f32.xlu0 %v184
    %v932 = vpop.xlane.xlu0 %931
    %933 = vmax.xlane.f32.xlu0 %v215
    %v934 = vpop.xlane.xlu0 %933
    %935 = vmax.xlane.f32.xlu0 %v186
    %v936 = vpop.xlane.xlu0 %935
    %937 = vmax.xlane.f32.xlu0 %v217
    %v938 = vpop.xlane.xlu0 %937
    %939 = vmax.xlane.f32.xlu0 %v188
    %v940 = vpop.xlane.xlu0 %939
    %941 = vmax.xlane.f32.xlu0 %v219
    %v942 = vpop.xlane.xlu0 %941
    %943 = vmax.xlane.f32.xlu0 %v190
    %v944 = vpop.xlane.xlu0 %943
    %945 = vmax.xlane.f32.xlu0 %v221
    %v946 = vpop.xlane.xlu0 %945
    %947 = vmax.xlane.f32.xlu0 %v192
    %v948 = vpop.xlane.xlu0 %947
    %949 = vmax.xlane.f32.xlu0 %v223
    %v950 = vpop.xlane.xlu0 %949
    %951 = vmax.xlane.f32.xlu0 %v194
    %v952 = vpop.xlane.xlu0 %951
    %953 = vmax.xlane.f32.xlu0 %v225
    %v954 = vpop.xlane.xlu0 %953
    %955 = vmax.xlane.f32.xlu0 %v196
    %v956 = vpop.xlane.xlu0 %955
    %957 = vmax.xlane.f32.xlu0 %v227
    %v958 = vpop.xlane.xlu0 %957
    %959 = vmax.xlane.f32.xlu0 %v198
    %v960 = vpop.xlane.xlu0 %959
    %961 = vmax.xlane.f32.xlu0 %v229
    %v962 = vpop.xlane.xlu0 %961
    %963 = vmax.xlane.f32.xlu0 %v200
    %v964 = vpop.xlane.xlu0 %963
    %965 = vmax.xlane.f32.xlu0 %v231
    %v966 = vpop.xlane.xlu0 %965
    %967 = vmax.xlane.f32.xlu0 %v202
    %v968 = vpop.xlane.xlu0 %967
    %969 = vmax.xlane.f32.xlu0 %v233
    %v970 = vpop.xlane.xlu0 %969
    %971 = vadd.xlane.f32.xlu0 %v235
    %v972 = vpop.xlane.xlu0 %971
    %973 = vadd.xlane.f32.xlu0 %v266
    %v974 = vpop.xlane.xlu0 %973
    %975 = vadd.xlane.f32.xlu0 %v236
    %v976 = vpop.xlane.xlu0 %975
    %977 = vadd.xlane.f32.xlu0 %v267
    %v978 = vpop.xlane.xlu0 %977
    %979 = vadd.xlane.f32.xlu0 %v238
    %v980 = vpop.xlane.xlu0 %979
    %981 = vadd.xlane.f32.xlu0 %v269
    %v982 = vpop.xlane.xlu0 %981
    %983 = vadd.xlane.f32.xlu0 %v240
    %v984 = vpop.xlane.xlu0 %983
    %985 = vadd.xlane.f32.xlu0 %v271
    %v986 = vpop.xlane.xlu0 %985
    %987 = vadd.xlane.f32.xlu0 %v242
    %v988 = vpop.xlane.xlu0 %987
    %989 = vadd.xlane.f32.xlu0 %v273
    %v990 = vpop.xlane.xlu0 %989
    %991 = vadd.xlane.f32.xlu0 %v244
    %v992 = vpop.xlane.xlu0 %991
    %993 = vadd.xlane.f32.xlu0 %v275
    %v994 = vpop.xlane.xlu0 %993
    %995 = vadd.xlane.f32.xlu0 %v246
    %v996 = vpop.xlane.xlu0 %995
    %997 = vadd.xlane.f32.xlu0 %v277
    %v998 = vpop.xlane.xlu0 %997
    %999 = vadd.xlane.f32.xlu0 %v248
    %v1000 = vpop.xlane.xlu0 %999
    %1001 = vadd.xlane.f32.xlu0 %v279
    %v1002 = vpop.xlane.xlu0 %1001
    %1003 = vadd.xlane.f32.xlu0 %v250
    %v1004 = vpop.xlane.xlu0 %1003
    %1005 = vadd.xlane.f32.xlu0 %v281
    %v1006 = vpop.xlane.xlu0 %1005
    %1007 = vadd.xlane.f32.xlu0 %v252
    %v1008 = vpop.xlane.xlu0 %1007
    %1009 = vadd.xlane.f32.xlu0 %v283
    %v1010 = vpop.xlane.xlu0 %1009
    %1011 = vadd.xlane.f32.xlu0 %v254
    %v1012 = vpop.xlane.xlu0 %1011
    %1013 = vadd.xlane.f32.xlu0 %v285
    %v1014 = vpop.xlane.xlu0 %1013
    %1015 = vadd.xlane.f32.xlu0 %v256
    %v1016 = vpop.xlane.xlu0 %1015
    %1017 = vadd.xlane.f32.xlu0 %v287
    %v1018 = vpop.xlane.xlu0 %1017
    %1019 = vadd.xlane.f32.xlu0 %v258
    %v1020 = vpop.xlane.xlu0 %1019
    %1021 = vadd.xlane.f32.xlu0 %v289
    %v1022 = vpop.xlane.xlu0 %1021
    %1023 = vadd.xlane.f32.xlu0 %v260
    %v1024 = vpop.xlane.xlu0 %1023
    %1025 = vadd.xlane.f32.xlu0 %v291
    %v1026 = vpop.xlane.xlu0 %1025
    %1027 = vadd.xlane.f32.xlu0 %v262
    %v1028 = vpop.xlane.xlu0 %1027
    %1029 = vadd.xlane.f32.xlu0 %v293
    %v1030 = vpop.xlane.xlu0 %1029
    %1031 = vadd.xlane.f32.xlu0 %v264
    %v1032 = vpop.xlane.xlu0 %1031
    %1033 = vadd.xlane.f32.xlu0 %v295
    %v1034 = vpop.xlane.xlu0 %1033
    %1035 = vadd.xlane.f32.xlu0 %v297
    %v1036 = vpop.xlane.xlu0 %1035
    %1037 = vadd.xlane.f32.xlu0 %v328
    %v1038 = vpop.xlane.xlu0 %1037
    %1039 = vadd.xlane.f32.xlu0 %v298
    %v1040 = vpop.xlane.xlu0 %1039
    %1041 = vadd.xlane.f32.xlu0 %v329
    %v1042 = vpop.xlane.xlu0 %1041
    %1043 = vadd.xlane.f32.xlu0 %v300
    %v1044 = vpop.xlane.xlu0 %1043
    %1045 = vadd.xlane.f32.xlu0 %v331
    %v1046 = vpop.xlane.xlu0 %1045
    %1047 = vadd.xlane.f32.xlu0 %v302
    %v1048 = vpop.xlane.xlu0 %1047
    %1049 = vadd.xlane.f32.xlu0 %v333
    %v1050 = vpop.xlane.xlu0 %1049
    %1051 = vadd.xlane.f32.xlu0 %v304
    %v1052 = vpop.xlane.xlu0 %1051
    %1053 = vadd.xlane.f32.xlu0 %v335
    %v1054 = vpop.xlane.xlu0 %1053
    %1055 = vadd.xlane.f32.xlu0 %v306
    %v1056 = vpop.xlane.xlu0 %1055
    %1057 = vadd.xlane.f32.xlu0 %v337
    %v1058 = vpop.xlane.xlu0 %1057
    %1059 = vadd.xlane.f32.xlu0 %v308
    %v1060 = vpop.xlane.xlu0 %1059
    %1061 = vadd.xlane.f32.xlu0 %v339
    %v1062 = vpop.xlane.xlu0 %1061
    %1063 = vadd.xlane.f32.xlu0 %v310
    %v1064 = vpop.xlane.xlu0 %1063
    %1065 = vadd.xlane.f32.xlu0 %v341
    %v1066 = vpop.xlane.xlu0 %1065
    %1067 = vadd.xlane.f32.xlu0 %v312
    %v1068 = vpop.xlane.xlu0 %1067
    %1069 = vadd.xlane.f32.xlu0 %v343
    %v1070 = vpop.xlane.xlu0 %1069
    %1071 = vadd.xlane.f32.xlu0 %v314
    %v1072 = vpop.xlane.xlu0 %1071
    %1073 = vadd.xlane.f32.xlu0 %v345
    %v1074 = vpop.xlane.xlu0 %1073
    %1075 = vadd.xlane.f32.xlu0 %v316
    %v1076 = vpop.xlane.xlu0 %1075
    %1077 = vadd.xlane.f32.xlu0 %v347
    %v1078 = vpop.xlane.xlu0 %1077
    %1079 = vadd.xlane.f32.xlu0 %v318
    %v1080 = vpop.xlane.xlu0 %1079
    %1081 = vadd.xlane.f32.xlu0 %v349
    %v1082 = vpop.xlane.xlu0 %1081
    %1083 = vadd.xlane.f32.xlu0 %v320
    %v1084 = vpop.xlane.xlu0 %1083
    %1085 = vadd.xlane.f32.xlu0 %v351
    %v1086 = vpop.xlane.xlu0 %1085
    %1087 = vadd.xlane.f32.xlu0 %v322
    %v1088 = vpop.xlane.xlu0 %1087
    %1089 = vadd.xlane.f32.xlu0 %v353
    %v1090 = vpop.xlane.xlu0 %1089
    %1091 = vadd.xlane.f32.xlu0 %v324
    %v1092 = vpop.xlane.xlu0 %1091
    %1093 = vadd.xlane.f32.xlu0 %v355
    %v1094 = vpop.xlane.xlu0 %1093
    %1095 = vadd.xlane.f32.xlu0 %v326
    %v1096 = vpop.xlane.xlu0 %1095
    %1097 = vadd.xlane.f32.xlu0 %v357
    %v1098 = vpop.xlane.xlu0 %1097
    %v1099 = vmul.f32 %v972, 0.0625
    %v1100 = vmul.f32 %v974, 0.0625
    %v1101 = vmul.f32 %v976, 0.0625
    %v1102 = vmul.f32 %v978, 0.0625
    %v1103 = vmul.f32 %v980, 0.0625
    %v1104 = vmul.f32 %v982, 0.0625
    %v1105 = vmul.f32 %v984, 0.0625
    %v1106 = vmul.f32 %v986, 0.0625
    %v1107 = vmul.f32 %v988, 0.0625
    %v1108 = vmul.f32 %v990, 0.0625
    %v1109 = vmul.f32 %v992, 0.0625
    %v1110 = vmul.f32 %v994, 0.0625
    %v1111 = vmul.f32 %v996, 0.0625
    %v1112 = vmul.f32 %v998, 0.0625
    %v1113 = vmul.f32 %v1000, 0.0625
    %v1114 = vmul.f32 %v1002, 0.0625
    %v1115 = vmul.f32 %v1004, 0.0625
    %v1116 = vmul.f32 %v1006, 0.0625
    %v1117 = vmul.f32 %v1008, 0.0625
    %v1118 = vmul.f32 %v1010, 0.0625
    %v1119 = vmul.f32 %v1012, 0.0625
    %v1120 = vmul.f32 %v1014, 0.0625
    %v1121 = vmul.f32 %v1016, 0.0625
    %v1122 = vmul.f32 %v1018, 0.0625
    %v1123 = vmul.f32 %v1020, 0.0625
    %v1124 = vmul.f32 %v1022, 0.0625
    %v1125 = vmul.f32 %v1024, 0.0625
    %v1126 = vmul.f32 %v1026, 0.0625
    %v1127 = vmul.f32 %v1028, 0.0625
    %v1128 = vmul.f32 %v1030, 0.0625
    %v1129 = vmul.f32 %v1032, 0.0625
    %v1130 = vmul.f32 %v1034, 0.0625
    %v1131 = vmul.f32 %v1036, 0.0625
    %v1132 = vmul.f32 %v1038, 0.0625
    %v1133 = vmul.f32 %v1040, 0.0625
    %v1134 = vmul.f32 %v1042, 0.0625
    %v1135 = vmul.f32 %v1044, 0.0625
    %v1136 = vmul.f32 %v1046, 0.0625
    %v1137 = vmul.f32 %v1048, 0.0625
    %v1138 = vmul.f32 %v1050, 0.0625
    %v1139 = vmul.f32 %v1052, 0.0625
    %v1140 = vmul.f32 %v1054, 0.0625
    %v1141 = vmul.f32 %v1056, 0.0625
    %v1142 = vmul.f32 %v1058, 0.0625
    %v1143 = vmul.f32 %v1060, 0.0625
    %v1144 = vmul.f32 %v1062, 0.0625
    %v1145 = vmul.f32 %v1064, 0.0625
    %v1146 = vmul.f32 %v1066, 0.0625
    %v1147 = vmul.f32 %v1068, 0.0625
    %v1148 = vmul.f32 %v1070, 0.0625
    %v1149 = vmul.f32 %v1072, 0.0625
    %v1150 = vmul.f32 %v1074, 0.0625
    %v1151 = vmul.f32 %v1076, 0.0625
    %v1152 = vmul.f32 %v1078, 0.0625
    %v1153 = vmul.f32 %v1080, 0.0625
    %v1154 = vmul.f32 %v1082, 0.0625
    %v1155 = vmul.f32 %v1084, 0.0625
    %v1156 = vmul.f32 %v1086, 0.0625
    %v1157 = vmul.f32 %v1088, 0.0625
    %v1158 = vmul.f32 %v1090, 0.0625
    %v1159 = vmul.f32 %v1092, 0.0625
    %v1160 = vmul.f32 %v1094, 0.0625
    %v1161 = vmul.f32 %v1096, 0.0625
    %v1162 = vmul.f32 %v1098, 0.0625
    %1163 = vst [vmem:[#allocation2] sm:$0xff] 0.0
    %1164 = vst [vmem:[#allocation2 + $0x8] sm:$0xff] 0.0
    %1165 = vst [vmem:[#allocation2 + $0x10] sm:$0xff] 0.0
    %1166 = vst [vmem:[#allocation2 + $0x18] sm:$0xff] 0.0
    %1167 = vst [vmem:[#allocation2 + $0x20] sm:$0xff] 0.0
    %1168 = vst [vmem:[#allocation2 + $0x28] sm:$0xff] 0.0
    %1169 = vst [vmem:[#allocation2 + $0x30] sm:$0xff] 0.0
    %1170 = vst [vmem:[#allocation2 + $0x38] sm:$0xff] 0.0
    %1171 = vst [vmem:[#allocation2 + $0x40] sm:$0xff] 0.0
    %1172 = vst [vmem:[#allocation2 + $0x48] sm:$0xff] 0.0
    %1173 = vst [vmem:[#allocation2 + $0x50] sm:$0xff] 0.0
    %1174 = vst [vmem:[#allocation2 + $0x58] sm:$0xff] 0.0
    %1175 = vst [vmem:[#allocation2 + $0x60] sm:$0xff] 0.0
    %1176 = vst [vmem:[#allocation2 + $0x68] sm:$0xff] 0.0
    %1177 = vst [vmem:[#allocation2 + $0x70] sm:$0xff] 0.0
    %1178 = vst [vmem:[#allocation2 + $0x78] sm:$0xff] 0.0
    %1179 = vst [vmem:[#allocation2 + $0x80] sm:$0xff] 0.0
    %1180 = vst [vmem:[#allocation2 + $0x88] sm:$0xff] 0.0
    %1181 = vst [vmem:[#allocation2 + $0x90] sm:$0xff] 0.0
    %1182 = vst [vmem:[#allocation2 + $0x98] sm:$0xff] 0.0
    %1183 = vst [vmem:[#allocation2 + $0xa0] sm:$0xff] 0.0
    %1184 = vst [vmem:[#allocation2 + $0xa8] sm:$0xff] 0.0
    %1185 = vst [vmem:[#allocation2 + $0xb0] sm:$0xff] 0.0
    %1186 = vst [vmem:[#allocation2 + $0xb8] sm:$0xff] 0.0
    %1187 = vst [vmem:[#allocation2 + $0xc0] sm:$0xff] 0.0
    %1188 = vst [vmem:[#allocation2 + $0xc8] sm:$0xff] 0.0
    %1189 = vst [vmem:[#allocation2 + $0xd0] sm:$0xff] 0.0
    %1190 = vst [vmem:[#allocation2 + $0xd8] sm:$0xff] 0.0
    %1191 = vst [vmem:[#allocation2 + $0xe0] sm:$0xff] 0.0
    %1192 = vst [vmem:[#allocation2 + $0xe8] sm:$0xff] 0.0
    %1193 = vst [vmem:[#allocation2 + $0xf0] sm:$0xff] 0.0
    %1194 = vst [vmem:[#allocation2 + $0xf8] sm:$0xff] 0.0
    %1195 = vst [vmem:[#allocation2 + $0x100] sm:$0xff] 0.0
    %1196 = vst [vmem:[#allocation2 + $0x108] sm:$0xff] 0.0
    %1197 = vst [vmem:[#allocation2 + $0x110] sm:$0xff] 0.0
    %1198 = vst [vmem:[#allocation2 + $0x118] sm:$0xff] 0.0
    %1199 = vst [vmem:[#allocation2 + $0x120] sm:$0xff] 0.0
    %1200 = vst [vmem:[#allocation2 + $0x128] sm:$0xff] 0.0
    %1201 = vst [vmem:[#allocation2 + $0x130] sm:$0xff] 0.0
    %1202 = vst [vmem:[#allocation2 + $0x138] sm:$0xff] 0.0
    %1203 = vst [vmem:[#allocation2 + $0x140] sm:$0xff] 0.0
    %1204 = vst [vmem:[#allocation2 + $0x148] sm:$0xff] 0.0
    %1205 = vst [vmem:[#allocation2 + $0x150] sm:$0xff] 0.0
    %1206 = vst [vmem:[#allocation2 + $0x158] sm:$0xff] 0.0
    %1207 = vst [vmem:[#allocation2 + $0x160] sm:$0xff] 0.0
    %1208 = vst [vmem:[#allocation2 + $0x168] sm:$0xff] 0.0
    %1209 = vst [vmem:[#allocation2 + $0x170] sm:$0xff] 0.0
    %1210 = vst [vmem:[#allocation2 + $0x178] sm:$0xff] 0.0
    %vm1213 = vcmask 1045504
    %v1214 = vrot.slane %v141, 2
    %v1215 = vrot.slane %v172, 2
    %v1216 = vsel %vm1213, %v1214, %v1215
    %vm1220 = vcmask 130054
    %1221 = vst.msk [vmem:[#allocation2] sm:$0xc0] %vm1220, %v1214
    %1222 = vst.msk [vmem:[#allocation2 + $0x30] sm:$0xff] %vm110, %v1216
    %vm1223 = vcmask 128000
    %1224 = vst.msk [vmem:[#allocation2 + $0x60] sm:$0x3f] %vm1223, %v1215
    %v1227 = vrot.slane %v359, 2
    %v1228 = vrot.slane %v360, 2
    %v1229 = vsel %vm1213, %v1227, %v1228
    %1233 = vst.msk [vmem:[#allocation2 + $0x8] sm:$0xc0] %vm1220, %v1227
    %1234 = vst.msk [vmem:[#allocation2 + $0x38] sm:$0xff] %vm110, %v1229
    %1235 = vst.msk [vmem:[#allocation2 + $0x68] sm:$0x3f] %vm1223, %v1228
    %vm1252 = vcmask 1047559
    %v1253 = vsel %vm1252, %v376, %v369
    %vm1254 = vcmask 1041409
    %v1255 = vsel %vm1254, %v390, %v383
    %vm1256 = vcmask 1042434
    %v1257 = vsel %vm1256, %v397, %v1255
    %vm1258 = vcmask 1043459
    %v1259 = vsel %vm1258, %v404, %v1257
    %vm1260 = vcmask 1044484
    %v1261 = vsel %vm1260, %v411, %v1259
    %vm1262 = vcmask 1045509
    %v1263 = vsel %vm1262, %v418, %v1261
    %vm1264 = vcmask 1046534
    %v1265 = vsel %vm1264, %v425, %v1263
    %v1266 = vsel %vm1252, %v432, %v1265
    %v1267 = vsel %vm1254, %v446, %v439
    %v1268 = vsel %vm1256, %v453, %v1267
    %v1269 = vsel %vm1258, %v460, %v1268
    %v1270 = vsel %vm1260, %v467, %v1269
    %v1271 = vsel %vm1262, %v474, %v1270
    %1275 = vst.msk [vmem:[#allocation2 + $0x10] sm:$0xc0] %vm1220, %v1253
    %1276 = vst.msk [vmem:[#allocation2 + $0x40] sm:$0xff] %vm110, %v1266
    %1277 = vst.msk [vmem:[#allocation2 + $0x70] sm:$0x3f] %vm1223, %v1271
    %v1294 = vsel %vm1252, %v812, %v811
    %v1295 = vsel %vm1254, %v814, %v813
    %v1296 = vsel %vm1256, %v815, %v1295
    %v1297 = vsel %vm1258, %v816, %v1296
    %v1298 = vsel %vm1260, %v817, %v1297
    %v1299 = vsel %vm1262, %v818, %v1298
    %v1300 = vsel %vm1264, %v819, %v1299
    %v1301 = vsel %vm1252, %v820, %v1300
    %v1302 = vsel %vm1254, %v822, %v821
    %v1303 = vsel %vm1256, %v823, %v1302
    %v1304 = vsel %vm1258, %v824, %v1303
    %v1305 = vsel %vm1260, %v825, %v1304
    %v1306 = vsel %vm1262, %v826, %v1305
    %1310 = vst.msk [vmem:[#allocation2 + $0x18] sm:$0xc0] %vm1220, %v1294
    %1311 = vst.msk [vmem:[#allocation2 + $0x48] sm:$0xff] %vm110, %v1301
    %1312 = vst.msk [vmem:[#allocation2 + $0x78] sm:$0x3f] %vm1223, %v1306
    %v1345 = vlaneseq
    %v1346 = vand.u32 %v1345, 127
    %v1347 = vperm.slane %v844, %v1346
    %v1348 = vadd.s32 %v1346, 4294967288
    %v1349 = vperm.slane %v846, %v1348
    %vm1350 = vcmask 130112
    %v1351 = vsel %vm1350, %v1349, %v1347
    %v1352 = vperm.slane %v848, %v1346
    %v1353 = vperm.slane %v850, %v1348
    %v1354 = vsel %vm1350, %v1353, %v1352
    %v1355 = vperm.slane %v852, %v1346
    %v1356 = vperm.slane %v854, %v1348
    %v1357 = vsel %vm1350, %v1356, %v1355
    %v1358 = vperm.slane %v856, %v1346
    %v1359 = vperm.slane %v858, %v1348
    %v1360 = vsel %vm1350, %v1359, %v1358
    %v1361 = vperm.slane %v860, %v1346
    %v1362 = vperm.slane %v862, %v1348
    %v1363 = vsel %vm1350, %v1362, %v1361
    %v1364 = vperm.slane %v864, %v1346
    %v1365 = vperm.slane %v866, %v1348
    %v1366 = vsel %vm1350, %v1365, %v1364
    %v1367 = vperm.slane %v868, %v1346
    %v1368 = vperm.slane %v870, %v1348
    %v1369 = vsel %vm1350, %v1368, %v1367
    %v1370 = vperm.slane %v872, %v1346
    %v1371 = vperm.slane %v874, %v1348
    %v1372 = vsel %vm1350, %v1371, %v1370
    %v1373 = vperm.slane %v876, %v1346
    %v1374 = vperm.slane %v878, %v1348
    %v1375 = vsel %vm1350, %v1374, %v1373
    %v1376 = vperm.slane %v880, %v1346
    %v1377 = vperm.slane %v882, %v1348
    %v1378 = vsel %vm1350, %v1377, %v1376
    %v1379 = vperm.slane %v884, %v1346
    %v1380 = vperm.slane %v886, %v1348
    %v1381 = vsel %vm1350, %v1380, %v1379
    %v1382 = vperm.slane %v888, %v1346
    %v1383 = vperm.slane %v890, %v1348
    %v1384 = vsel %vm1350, %v1383, %v1382
    %v1385 = vperm.slane %v892, %v1346
    %v1386 = vperm.slane %v894, %v1348
    %v1387 = vsel %vm1350, %v1386, %v1385
    %v1388 = vperm.slane %v896, %v1346
    %v1389 = vperm.slane %v898, %v1348
    %v1390 = vsel %vm1350, %v1389, %v1388
    %v1391 = vperm.slane %v900, %v1346
    %v1392 = vperm.slane %v902, %v1348
    %v1393 = vsel %vm1350, %v1392, %v1391
    %v1394 = vperm.slane %v904, %v1346
    %v1395 = vperm.slane %v906, %v1348
    %v1396 = vsel %vm1350, %v1395, %v1394
    %v1397 = vsel %vm1252, %v1354, %v1351
    %v1398 = vsel %vm1254, %v1360, %v1357
    %v1399 = vsel %vm1256, %v1363, %v1398
    %v1400 = vsel %vm1258, %v1366, %v1399
    %v1401 = vsel %vm1260, %v1369, %v1400
    %v1402 = vsel %vm1262, %v1372, %v1401
    %v1403 = vsel %vm1264, %v1375, %v1402
    %v1404 = vsel %vm1252, %v1378, %v1403
    %v1405 = vsel %vm1254, %v1384, %v1381
    %v1406 = vsel %vm1256, %v1387, %v1405
    %v1407 = vsel %vm1258, %v1390, %v1406
    %v1408 = vsel %vm1260, %v1393, %v1407
    %v1409 = vsel %vm1262, %v1396, %v1408
    %1413 = vst.msk [vmem:[#allocation2 + $0x20] sm:$0xc0] %vm1220, %v1397
    %1414 = vst.msk [vmem:[#allocation2 + $0x50] sm:$0xff] %vm110, %v1404
    %1415 = vst.msk [vmem:[#allocation2 + $0x80] sm:$0x3f] %vm1223, %v1409
    %v1448 = vperm.slane %v1099, %v1346
    %v1449 = vperm.slane %v1100, %v1348
    %v1450 = vsel %vm1350, %v1449, %v1448
    %v1451 = vperm.slane %v1101, %v1346
    %v1452 = vperm.slane %v1102, %v1348
    %v1453 = vsel %vm1350, %v1452, %v1451
    %v1454 = vperm.slane %v1103, %v1346
    %v1455 = vperm.slane %v1104, %v1348
    %v1456 = vsel %vm1350, %v1455, %v1454
    %v1457 = vperm.slane %v1105, %v1346
    %v1458 = vperm.slane %v1106, %v1348
    %v1459 = vsel %vm1350, %v1458, %v1457
    %v1460 = vperm.slane %v1107, %v1346
    %v1461 = vperm.slane %v1108, %v1348
    %v1462 = vsel %vm1350, %v1461, %v1460
    %v1463 = vperm.slane %v1109, %v1346
    %v1464 = vperm.slane %v1110, %v1348
    %v1465 = vsel %vm1350, %v1464, %v1463
    %v1466 = vperm.slane %v1111, %v1346
    %v1467 = vperm.slane %v1112, %v1348
    %v1468 = vsel %vm1350, %v1467, %v1466
    %v1469 = vperm.slane %v1113, %v1346
    %v1470 = vperm.slane %v1114, %v1348
    %v1471 = vsel %vm1350, %v1470, %v1469
    %v1472 = vperm.slane %v1115, %v1346
    %v1473 = vperm.slane %v1116, %v1348
    %v1474 = vsel %vm1350, %v1473, %v1472
    %v1475 = vperm.slane %v1117, %v1346
    %v1476 = vperm.slane %v1118, %v1348
    %v1477 = vsel %vm1350, %v1476, %v1475
    %v1478 = vperm.slane %v1119, %v1346
    %v1479 = vperm.slane %v1120, %v1348
    %v1480 = vsel %vm1350, %v1479, %v1478
    %v1481 = vperm.slane %v1121, %v1346
    %v1482 = vperm.slane %v1122, %v1348
    %v1483 = vsel %vm1350, %v1482, %v1481
    %v1484 = vperm.slane %v1123, %v1346
    %v1485 = vperm.slane %v1124, %v1348
    %v1486 = vsel %vm1350, %v1485, %v1484
    %v1487 = vperm.slane %v1125, %v1346
    %v1488 = vperm.slane %v1126, %v1348
    %v1489 = vsel %vm1350, %v1488, %v1487
    %v1490 = vperm.slane %v1127, %v1346
    %v1491 = vperm.slane %v1128, %v1348
    %v1492 = vsel %vm1350, %v1491, %v1490
    %v1493 = vperm.slane %v1129, %v1346
    %v1494 = vperm.slane %v1130, %v1348
    %v1495 = vsel %vm1350, %v1494, %v1493
    %v1496 = vsel %vm1252, %v1453, %v1450
    %v1497 = vsel %vm1254, %v1459, %v1456
    %v1498 = vsel %vm1256, %v1462, %v1497
    %v1499 = vsel %vm1258, %v1465, %v1498
    %v1500 = vsel %vm1260, %v1468, %v1499
    %v1501 = vsel %vm1262, %v1471, %v1500
    %v1502 = vsel %vm1264, %v1474, %v1501
    %v1503 = vsel %vm1252, %v1477, %v1502
    %v1504 = vsel %vm1254, %v1483, %v1480
    %v1505 = vsel %vm1256, %v1486, %v1504
    %v1506 = vsel %vm1258, %v1489, %v1505
    %v1507 = vsel %vm1260, %v1492, %v1506
    %v1508 = vsel %vm1262, %v1495, %v1507
    %1512 = vst.msk [vmem:[#allocation2 + $0x28] sm:$0xc0] %vm1220, %v1496
    %1513 = vst.msk [vmem:[#allocation2 + $0x58] sm:$0xff] %vm110, %v1503
    %1514 = vst.msk [vmem:[#allocation2 + $0x88] sm:$0x3f] %vm1223, %v1508
    %v1517 = vrot.slane %v203, 2
    %v1518 = vrot.slane %v234, 2
    %v1519 = vsel %vm1213, %v1517, %v1518
    %1523 = vst.msk [vmem:[#allocation2 + $0xc0] sm:$0xc0] %vm1220, %v1517
    %1524 = vst.msk [vmem:[#allocation2 + $0xf0] sm:$0xff] %vm110, %v1519
    %1525 = vst.msk [vmem:[#allocation2 + $0x120] sm:$0x3f] %vm1223, %v1518
    %v1528 = vrot.slane %v361, 2
    %v1529 = vrot.slane %v362, 2
    %v1530 = vsel %vm1213, %v1528, %v1529
    %1534 = vst.msk [vmem:[#allocation2 + $0xc8] sm:$0xc0] %vm1220, %v1528
    %1535 = vst.msk [vmem:[#allocation2 + $0xf8] sm:$0xff] %vm110, %v1530
    %1536 = vst.msk [vmem:[#allocation2 + $0x128] sm:$0x3f] %vm1223, %v1529
    %v1553 = vsel %vm1252, %v488, %v481
    %v1554 = vsel %vm1254, %v502, %v495
    %v1555 = vsel %vm1256, %v509, %v1554
    %v1556 = vsel %vm1258, %v516, %v1555
    %v1557 = vsel %vm1260, %v523, %v1556
    %v1558 = vsel %vm1262, %v530, %v1557
    %v1559 = vsel %vm1264, %v537, %v1558
    %v1560 = vsel %vm1252, %v544, %v1559
    %v1561 = vsel %vm1254, %v558, %v551
    %v1562 = vsel %vm1256, %v565, %v1561
    %v1563 = vsel %vm1258, %v572, %v1562
    %v1564 = vsel %vm1260, %v579, %v1563
    %v1565 = vsel %vm1262, %v586, %v1564
    %1569 = vst.msk [vmem:[#allocation2 + $0xd0] sm:$0xc0] %vm1220, %v1553
    %1570 = vst.msk [vmem:[#allocation2 + $0x100] sm:$0xff] %vm110, %v1560
    %1571 = vst.msk [vmem:[#allocation2 + $0x130] sm:$0x3f] %vm1223, %v1565
    %v1588 = vsel %vm1252, %v828, %v827
    %v1589 = vsel %vm1254, %v830, %v829
    %v1590 = vsel %vm1256, %v831, %v1589
    %v1591 = vsel %vm1258, %v832, %v1590
    %v1592 = vsel %vm1260, %v833, %v1591
    %v1593 = vsel %vm1262, %v834, %v1592
    %v1594 = vsel %vm1264, %v835, %v1593
    %v1595 = vsel %vm1252, %v836, %v1594
    %v1596 = vsel %vm1254, %v838, %v837
    %v1597 = vsel %vm1256, %v839, %v1596
    %v1598 = vsel %vm1258, %v840, %v1597
    %v1599 = vsel %vm1260, %v841, %v1598
    %v1600 = vsel %vm1262, %v842, %v1599
    %1604 = vst.msk [vmem:[#allocation2 + $0xd8] sm:$0xc0] %vm1220, %v1588
    %1605 = vst.msk [vmem:[#allocation2 + $0x108] sm:$0xff] %vm110, %v1595
    %1606 = vst.msk [vmem:[#allocation2 + $0x138] sm:$0x3f] %vm1223, %v1600
    %v1639 = vperm.slane %v908, %v1346
    %v1640 = vperm.slane %v910, %v1348
    %v1641 = vsel %vm1350, %v1640, %v1639
    %v1642 = vperm.slane %v912, %v1346
    %v1643 = vperm.slane %v914, %v1348
    %v1644 = vsel %vm1350, %v1643, %v1642
    %v1645 = vperm.slane %v916, %v1346
    %v1646 = vperm.slane %v918, %v1348
    %v1647 = vsel %vm1350, %v1646, %v1645
    %v1648 = vperm.slane %v920, %v1346
    %v1649 = vperm.slane %v922, %v1348
    %v1650 = vsel %vm1350, %v1649, %v1648
    %v1651 = vperm.slane %v924, %v1346
    %v1652 = vperm.slane %v926, %v1348
    %v1653 = vsel %vm1350, %v1652, %v1651
    %v1654 = vperm.slane %v928, %v1346
    %v1655 = vperm.slane %v930, %v1348
    %v1656 = vsel %vm1350, %v1655, %v1654
    %v1657 = vperm.slane %v932, %v1346
    %v1658 = vperm.slane %v934, %v1348
    %v1659 = vsel %vm1350, %v1658, %v1657
    %v1660 = vperm.slane %v936, %v1346
    %v1661 = vperm.slane %v938, %v1348
    %v1662 = vsel %vm1350, %v1661, %v1660
    %v1663 = vperm.slane %v940, %v1346
    %v1664 = vperm.slane %v942, %v1348
    %v1665 = vsel %vm1350, %v1664, %v1663
    %v1666 = vperm.slane %v944, %v1346
    %v1667 = vperm.slane %v946, %v1348
    %v1668 = vsel %vm1350, %v1667, %v1666
    %v1669 = vperm.slane %v948, %v1346
    %v1670 = vperm.slane %v950, %v1348
    %v1671 = vsel %vm1350, %v1670, %v1669
    %v1672 = vperm.slane %v952, %v1346
    %v1673 = vperm.slane %v954, %v1348
    %v1674 = vsel %vm1350, %v1673, %v1672
    %v1675 = vperm.slane %v956, %v1346
    %v1676 = vperm.slane %v958, %v1348
    %v1677 = vsel %vm1350, %v1676, %v1675
    %v1678 = vperm.slane %v960, %v1346
    %v1679 = vperm.slane %v962, %v1348
    %v1680 = vsel %vm1350, %v1679, %v1678
    %v1681 = vperm.slane %v964, %v1346
    %v1682 = vperm.slane %v966, %v1348
    %v1683 = vsel %vm1350, %v1682, %v1681
    %v1684 = vperm.slane %v968, %v1346
    %v1685 = vperm.slane %v970, %v1348
    %v1686 = vsel %vm1350, %v1685, %v1684
    %v1687 = vsel %vm1252, %v1644, %v1641
    %v1688 = vsel %vm1254, %v1650, %v1647
    %v1689 = vsel %vm1256, %v1653, %v1688
    %v1690 = vsel %vm1258, %v1656, %v1689
    %v1691 = vsel %vm1260, %v1659, %v1690
    %v1692 = vsel %vm1262, %v1662, %v1691
    %v1693 = vsel %vm1264, %v1665, %v1692
    %v1694 = vsel %vm1252, %v1668, %v1693
    %v1695 = vsel %vm1254, %v1674, %v1671
    %v1696 = vsel %vm1256, %v1677, %v1695
    %v1697 = vsel %vm1258, %v1680, %v1696
    %v1698 = vsel %vm1260, %v1683, %v1697
    %v1699 = vsel %vm1262, %v1686, %v1698
    %1703 = vst.msk [vmem:[#allocation2 + $0xe0] sm:$0xc0] %vm1220, %v1687
    %1704 = vst.msk [vmem:[#allocation2 + $0x110] sm:$0xff] %vm110, %v1694
    %1705 = vst.msk [vmem:[#allocation2 + $0x140] sm:$0x3f] %vm1223, %v1699
    %v1738 = vperm.slane %v1131, %v1346
    %v1739 = vperm.slane %v1132, %v1348
    %v1740 = vsel %vm1350, %v1739, %v1738
    %v1741 = vperm.slane %v1133, %v1346
    %v1742 = vperm.slane %v1134, %v1348
    %v1743 = vsel %vm1350, %v1742, %v1741
    %v1744 = vperm.slane %v1135, %v1346
    %v1745 = vperm.slane %v1136, %v1348
    %v1746 = vsel %vm1350, %v1745, %v1744
    %v1747 = vperm.slane %v1137, %v1346
    %v1748 = vperm.slane %v1138, %v1348
    %v1749 = vsel %vm1350, %v1748, %v1747
    %v1750 = vperm.slane %v1139, %v1346
    %v1751 = vperm.slane %v1140, %v1348
    %v1752 = vsel %vm1350, %v1751, %v1750
    %v1753 = vperm.slane %v1141, %v1346
    %v1754 = vperm.slane %v1142, %v1348
    %v1755 = vsel %vm1350, %v1754, %v1753
    %v1756 = vperm.slane %v1143, %v1346
    %v1757 = vperm.slane %v1144, %v1348
    %v1758 = vsel %vm1350, %v1757, %v1756
    %v1759 = vperm.slane %v1145, %v1346
    %v1760 = vperm.slane %v1146, %v1348
    %v1761 = vsel %vm1350, %v1760, %v1759
    %v1762 = vperm.slane %v1147, %v1346
    %v1763 = vperm.slane %v1148, %v1348
    %v1764 = vsel %vm1350, %v1763, %v1762
    %v1765 = vperm.slane %v1149, %v1346
    %v1766 = vperm.slane %v1150, %v1348
    %v1767 = vsel %vm1350, %v1766, %v1765
    %v1768 = vperm.slane %v1151, %v1346
    %v1769 = vperm.slane %v1152, %v1348
    %v1770 = vsel %vm1350, %v1769, %v1768
    %v1771 = vperm.slane %v1153, %v1346
    %v1772 = vperm.slane %v1154, %v1348
    %v1773 = vsel %vm1350, %v1772, %v1771
    %v1774 = vperm.slane %v1155, %v1346
    %v1775 = vperm.slane %v1156, %v1348
    %v1776 = vsel %vm1350, %v1775, %v1774
    %v1777 = vperm.slane %v1157, %v1346
    %v1778 = vperm.slane %v1158, %v1348
    %v1779 = vsel %vm1350, %v1778, %v1777
    %v1780 = vperm.slane %v1159, %v1346
    %v1781 = vperm.slane %v1160, %v1348
    %v1782 = vsel %vm1350, %v1781, %v1780
    %v1783 = vperm.slane %v1161, %v1346
    %v1784 = vperm.slane %v1162, %v1348
    %v1785 = vsel %vm1350, %v1784, %v1783
    %v1786 = vsel %vm1252, %v1743, %v1740
    %v1787 = vsel %vm1254, %v1749, %v1746
    %v1788 = vsel %vm1256, %v1752, %v1787
    %v1789 = vsel %vm1258, %v1755, %v1788
    %v1790 = vsel %vm1260, %v1758, %v1789
    %v1791 = vsel %vm1262, %v1761, %v1790
    %v1792 = vsel %vm1264, %v1764, %v1791
    %v1793 = vsel %vm1252, %v1767, %v1792
    %v1794 = vsel %vm1254, %v1773, %v1770
    %v1795 = vsel %vm1256, %v1776, %v1794
    %v1796 = vsel %vm1258, %v1779, %v1795
    %v1797 = vsel %vm1260, %v1782, %v1796
    %v1798 = vsel %vm1262, %v1785, %v1797
    %1802 = vst.msk [vmem:[#allocation2 + $0xe8] sm:$0xc0] %vm1220, %v1786
    %1803 = vst.msk [vmem:[#allocation2 + $0x118] sm:$0xff] %vm110, %v1793
    %1804 = vst.msk [vmem:[#allocation2 + $0x148] sm:$0x3f] %vm1223, %v1798
    %v1805 = vld [vmem:[#allocation2] sm:$0xff]
    %v1806 = vld [vmem:[#allocation2 + $0x8] sm:$0xff]
    %v1807 = vld [vmem:[#allocation2 + $0x10] sm:$0xff]
    %v1808 = vld [vmem:[#allocation2 + $0x18] sm:$0xff]
    %v1809 = vld [vmem:[#allocation2 + $0x20] sm:$0xff]
    %v1810 = vld [vmem:[#allocation2 + $0x28] sm:$0xff]
    %v1811 = vld [vmem:[#allocation2 + $0x30] sm:$0xff]
    %v1812 = vld [vmem:[#allocation2 + $0x38] sm:$0xff]
    %v1813 = vld [vmem:[#allocation2 + $0x40] sm:$0xff]
    %v1814 = vld [vmem:[#allocation2 + $0x48] sm:$0xff]
    %v1815 = vld [vmem:[#allocation2 + $0x50] sm:$0xff]
    %v1816 = vld [vmem:[#allocation2 + $0x58] sm:$0xff]
    %v1817 = vld [vmem:[#allocation2 + $0x60] sm:$0xff]
    %v1818 = vld [vmem:[#allocation2 + $0x68] sm:$0xff]
    %v1819 = vld [vmem:[#allocation2 + $0x70] sm:$0xff]
    %v1820 = vld [vmem:[#allocation2 + $0x78] sm:$0xff]
    %v1821 = vld [vmem:[#allocation2 + $0x80] sm:$0xff]
    %v1822 = vld [vmem:[#allocation2 + $0x88] sm:$0xff]
    %v1823 = vld [vmem:[#allocation2 + $0x90] sm:$0xff]
    %v1824 = vld [vmem:[#allocation2 + $0x98] sm:$0xff]
    %v1825 = vld [vmem:[#allocation2 + $0xa0] sm:$0xff]
    %v1826 = vld [vmem:[#allocation2 + $0xa8] sm:$0xff]
    %v1827 = vld [vmem:[#allocation2 + $0xb0] sm:$0xff]
    %v1828 = vld [vmem:[#allocation2 + $0xb8] sm:$0xff]
    %v1829 = vld [vmem:[#allocation2 + $0xc0] sm:$0xff]
    %v1830 = vld [vmem:[#allocation2 + $0xc8] sm:$0xff]
    %v1831 = vld [vmem:[#allocation2 + $0xd0] sm:$0xff]
    %v1832 = vld [vmem:[#allocation2 + $0xd8] sm:$0xff]
    %v1833 = vld [vmem:[#allocation2 + $0xe0] sm:$0xff]
    %v1834 = vld [vmem:[#allocation2 + $0xe8] sm:$0xff]
    %v1835 = vld [vmem:[#allocation2 + $0xf0] sm:$0xff]
    %v1836 = vld [vmem:[#allocation2 + $0xf8] sm:$0xff]
    %v1837 = vld [vmem:[#allocation2 + $0x100] sm:$0xff]
    %v1838 = vld [vmem:[#allocation2 + $0x108] sm:$0xff]
    %v1839 = vld [vmem:[#allocation2 + $0x110] sm:$0xff]
    %v1840 = vld [vmem:[#allocation2 + $0x118] sm:$0xff]
    %v1841 = vld [vmem:[#allocation5] sm:$0xff]
    %v1842 = vld [vmem:[#allocation5 + $0x8] sm:$0xff]
    %v1843 = vld [vmem:[#allocation5 + $0x10] sm:$0xff]
    %v1844 = vld [vmem:[#allocation5 + $0x18] sm:$0xff]
    %v1845 = vld [vmem:[#allocation5 + $0x20] sm:$0xff]
    %v1846 = vld [vmem:[#allocation5 + $0x28] sm:$0xff]
    %v1847 = vld [vmem:[#allocation5 + $0x30] sm:$0xff]
    %v1848 = vld [vmem:[#allocation5 + $0x38] sm:$0xff]
    %v1849 = vld [vmem:[#allocation5 + $0x40] sm:$0xff]
    %v1850 = vld [vmem:[#allocation5 + $0x48] sm:$0xff]
    %v1851 = vld [vmem:[#allocation5 + $0x50] sm:$0xff]
    %v1852 = vld [vmem:[#allocation5 + $0x58] sm:$0xff]
    %v1853 = vld [vmem:[#allocation5 + $0x60] sm:$0xff]
    %v1854 = vld [vmem:[#allocation5 + $0x68] sm:$0xff]
    %v1855 = vld [vmem:[#allocation5 + $0x70] sm:$0xff]
    %v1856 = vld [vmem:[#allocation5 + $0x78] sm:$0xff]
    %v1857 = vld [vmem:[#allocation5 + $0x80] sm:$0xff]
    %v1858 = vld [vmem:[#allocation5 + $0x88] sm:$0xff]
    %v1859 = vld [vmem:[#allocation5 + $0x90] sm:$0xff]
    %v1860 = vld [vmem:[#allocation5 + $0x98] sm:$0xff]
    %v1861 = vld [vmem:[#allocation5 + $0xa0] sm:$0xff]
    %v1862 = vld [vmem:[#allocation5 + $0xa8] sm:$0xff]
    %v1863 = vld [vmem:[#allocation5 + $0xb0] sm:$0xff]
    %v1864 = vld [vmem:[#allocation5 + $0xb8] sm:$0xff]
    %v1865 = vld [vmem:[#allocation5 + $0xc0] sm:$0xff]
    %v1866 = vld [vmem:[#allocation5 + $0xc8] sm:$0xff]
    %v1867 = vld [vmem:[#allocation5 + $0xd0] sm:$0xff]
    %v1868 = vld [vmem:[#allocation5 + $0xd8] sm:$0xff]
    %v1869 = vld [vmem:[#allocation5 + $0xe0] sm:$0xff]
    %v1870 = vld [vmem:[#allocation5 + $0xe8] sm:$0xff]
    %v1871 = vld [vmem:[#allocation5 + $0xf0] sm:$0xff]
    %v1872 = vld [vmem:[#allocation5 + $0xf8] sm:$0xff]
    %v1873 = vld [vmem:[#allocation5 + $0x100] sm:$0xff]
    %v1874 = vld [vmem:[#allocation5 + $0x108] sm:$0xff]
    %v1875 = vld [vmem:[#allocation5 + $0x110] sm:$0xff]
    %v1876 = vld [vmem:[#allocation5 + $0x118] sm:$0xff]
    %v1877 = vld [vmem:[#allocation5 + $0x120] sm:$0xff]
    %v1878 = vld [vmem:[#allocation5 + $0x128] sm:$0xff]
    %v1879 = vld [vmem:[#allocation5 + $0x130] sm:$0xff]
    %v1880 = vld [vmem:[#allocation5 + $0x138] sm:$0xff]
    %v1881 = vld [vmem:[#allocation5 + $0x140] sm:$0xff]
    %v1882 = vld [vmem:[#allocation5 + $0x148] sm:$0xff]
    %v1883 = vld [vmem:[#allocation5 + $0x150] sm:$0xff]
    %v1884 = vld [vmem:[#allocation5 + $0x158] sm:$0xff]
    %v1885 = vld [vmem:[#allocation5 + $0x160] sm:$0xff]
    %v1886 = vld [vmem:[#allocation5 + $0x168] sm:$0xff]
    %v1887 = vld [vmem:[#allocation5 + $0x170] sm:$0xff]
    %v1888 = vld [vmem:[#allocation5 + $0x178] sm:$0xff]
    %v1889 = vld [vmem:[#allocation5 + $0x180] sm:$0xff]
    %v1890 = vld [vmem:[#allocation5 + $0x188] sm:$0xff]
    %v1891 = vld [vmem:[#allocation5 + $0x190] sm:$0xff]
    %v1892 = vld [vmem:[#allocation5 + $0x198] sm:$0xff]
    %v1893 = vld [vmem:[#allocation5 + $0x1a0] sm:$0xff]
    %v1894 = vld [vmem:[#allocation5 + $0x1a8] sm:$0xff]
    %v1895 = vld [vmem:[#allocation5 + $0x1b0] sm:$0xff]
    %v1896 = vld [vmem:[#allocation5 + $0x1b8] sm:$0xff]
    %v1897 = vld [vmem:[#allocation5 + $0x1c0] sm:$0xff]
    %v1898 = vld [vmem:[#allocation5 + $0x1c8] sm:$0xff]
    %v1899 = vld [vmem:[#allocation5 + $0x1d0] sm:$0xff]
    %v1900 = vld [vmem:[#allocation5 + $0x1d8] sm:$0xff]
    %v1901 = vld [vmem:[#allocation5 + $0x1e0] sm:$0xff]
    %v1902 = vld [vmem:[#allocation5 + $0x1e8] sm:$0xff]
    %v1903 = vld [vmem:[#allocation5 + $0x1f0] sm:$0xff]
    %v1904 = vld [vmem:[#allocation5 + $0x1f8] sm:$0xff]
    %v1905 = vld [vmem:[#allocation5 + $0x200] sm:$0xff]
    %v1906 = vld [vmem:[#allocation5 + $0x208] sm:$0xff]
    %v1907 = vld [vmem:[#allocation5 + $0x210] sm:$0xff]
    %v1908 = vld [vmem:[#allocation5 + $0x218] sm:$0xff]
    %v1909 = vld [vmem:[#allocation5 + $0x220] sm:$0xff]
    %v1910 = vld [vmem:[#allocation5 + $0x228] sm:$0xff]
    %v1911 = vld [vmem:[#allocation5 + $0x230] sm:$0xff]
    %v1912 = vld [vmem:[#allocation5 + $0x238] sm:$0xff]
    %v1913 = vld [vmem:[#allocation5 + $0x240] sm:$0xff]
    %v1914 = vld [vmem:[#allocation5 + $0x248] sm:$0xff]
    %v1915 = vld [vmem:[#allocation5 + $0x250] sm:$0xff]
    %v1916 = vld [vmem:[#allocation5 + $0x258] sm:$0xff]
    %v1917 = vld [vmem:[#allocation5 + $0x260] sm:$0xff]
    %v1918 = vld [vmem:[#allocation5 + $0x268] sm:$0xff]
    %v1919 = vld [vmem:[#allocation5 + $0x270] sm:$0xff]
    %v1920 = vld [vmem:[#allocation5 + $0x278] sm:$0xff]
    %v1921 = vld [vmem:[#allocation5 + $0x280] sm:$0xff]
    %v1922 = vld [vmem:[#allocation5 + $0x288] sm:$0xff]
    %v1923 = vld [vmem:[#allocation5 + $0x290] sm:$0xff]
    %v1924 = vld [vmem:[#allocation5 + $0x298] sm:$0xff]
    %v1925 = vld [vmem:[#allocation5 + $0x2a0] sm:$0xff]
    %v1926 = vld [vmem:[#allocation5 + $0x2a8] sm:$0xff]
    %v1927 = vld [vmem:[#allocation5 + $0x2b0] sm:$0xff]
    %v1928 = vld [vmem:[#allocation5 + $0x2b8] sm:$0xff]
    %v1929 = vld [vmem:[#allocation5 + $0x2c0] sm:$0xff]
    %v1930 = vld [vmem:[#allocation5 + $0x2c8] sm:$0xff]
    %v1931 = vld [vmem:[#allocation5 + $0x2d0] sm:$0xff]
    %v1932 = vld [vmem:[#allocation5 + $0x2d8] sm:$0xff]
    %v1933 = vld [vmem:[#allocation5 + $0x2e0] sm:$0xff]
    %v1934 = vld [vmem:[#allocation5 + $0x2e8] sm:$0xff]
    %v1935 = vld [vmem:[#allocation5 + $0x2f0] sm:$0xff]
    %v1936 = vld [vmem:[#allocation5 + $0x2f8] sm:$0xff]
    %v1937 = vld [vmem:[#allocation2] sm:$0xfe]
    %v1938 = vld [vmem:[#allocation2 + $0x8] sm:$0xfe]
    %v1939 = vld [vmem:[#allocation2 + $0x10] sm:$0xfe]
    %v1940 = vld [vmem:[#allocation2 + $0x18] sm:$0xfe]
    %v1941 = vld [vmem:[#allocation2 + $0x20] sm:$0xfe]
    %v1942 = vld [vmem:[#allocation2 + $0x28] sm:$0xfe]
    %v1943 = vld [vmem:[#allocation2 + $0x120] sm:$0x1]
    %v1944 = vld [vmem:[#allocation2 + $0x128] sm:$0x1]
    %v1945 = vld [vmem:[#allocation2 + $0x130] sm:$0x1]
    %v1946 = vld [vmem:[#allocation2 + $0x138] sm:$0x1]
    %v1947 = vld [vmem:[#allocation2 + $0x140] sm:$0x1]
    %v1948 = vld [vmem:[#allocation2 + $0x148] sm:$0x1]
    %s1949 = scalar_lea.vmem [#allocation5], 768
    %v1950 = vld [vmem:[%s1949] sm:$0xff]
    %v1951 = vld [vmem:[%s1949 + $0x8] sm:$0xff]
    %v1952 = vld [vmem:[%s1949 + $0x10] sm:$0xff]
    %v1953 = vld [vmem:[%s1949 + $0x18] sm:$0xff]
    %v1954 = vld [vmem:[%s1949 + $0x20] sm:$0xff]
    %v1955 = vld [vmem:[%s1949 + $0x28] sm:$0xff]
    %v1956 = vld [vmem:[%s1949 + $0x30] sm:$0xff]
    %v1957 = vld [vmem:[%s1949 + $0x38] sm:$0xff]
    %v1958 = vld [vmem:[%s1949 + $0x40] sm:$0xff]
    %v1959 = vld [vmem:[%s1949 + $0x48] sm:$0xff]
    %v1960 = vld [vmem:[%s1949 + $0x50] sm:$0xff]
    %v1961 = vld [vmem:[%s1949 + $0x58] sm:$0xff]
    %v1962 = vld [vmem:[%s1949 + $0x60] sm:$0xff]
    %v1963 = vld [vmem:[%s1949 + $0x68] sm:$0xff]
    %v1964 = vld [vmem:[%s1949 + $0x70] sm:$0xff]
    %v1965 = vld [vmem:[%s1949 + $0x78] sm:$0xff]
    %v1966 = vld [vmem:[%s1949 + $0x80] sm:$0xff]
    %v1967 = vld [vmem:[%s1949 + $0x88] sm:$0xff]
    %v1968 = vld [vmem:[%s1949 + $0x90] sm:$0xff]
    %v1969 = vld [vmem:[%s1949 + $0x98] sm:$0xff]
    %v1970 = vld [vmem:[%s1949 + $0xa0] sm:$0xff]
    %v1971 = vld [vmem:[%s1949 + $0xa8] sm:$0xff]
    %v1972 = vld [vmem:[%s1949 + $0xb0] sm:$0xff]
    %v1973 = vld [vmem:[%s1949 + $0xb8] sm:$0xff]
    %v1974 = vld [vmem:[%s1949 + $0xc0] sm:$0xff]
    %v1975 = vld [vmem:[%s1949 + $0xc8] sm:$0xff]
    %v1976 = vld [vmem:[%s1949 + $0xd0] sm:$0xff]
    %v1977 = vld [vmem:[%s1949 + $0xd8] sm:$0xff]
    %v1978 = vld [vmem:[%s1949 + $0xe0] sm:$0xff]
    %v1979 = vld [vmem:[%s1949 + $0xe8] sm:$0xff]
    %v1980 = vld [vmem:[%s1949 + $0xf0] sm:$0xff]
    %v1981 = vld [vmem:[%s1949 + $0xf8] sm:$0xff]
    %v1982 = vld [vmem:[%s1949 + $0x100] sm:$0xff]
    %v1983 = vld [vmem:[%s1949 + $0x108] sm:$0xff]
    %v1984 = vld [vmem:[%s1949 + $0x110] sm:$0xff]
    %v1985 = vld [vmem:[%s1949 + $0x118] sm:$0xff]
    %v1986 = vld [vmem:[%s1949 + $0x120] sm:$0xff]
    %v1987 = vld [vmem:[%s1949 + $0x128] sm:$0xff]
    %v1988 = vld [vmem:[%s1949 + $0x130] sm:$0xff]
    %v1989 = vld [vmem:[%s1949 + $0x138] sm:$0xff]
    %v1990 = vld [vmem:[%s1949 + $0x140] sm:$0xff]
    %v1991 = vld [vmem:[%s1949 + $0x148] sm:$0xff]
    %v1992 = vld [vmem:[%s1949 + $0x150] sm:$0xff]
    %v1993 = vld [vmem:[%s1949 + $0x158] sm:$0xff]
    %v1994 = vld [vmem:[%s1949 + $0x160] sm:$0xff]
    %v1995 = vld [vmem:[%s1949 + $0x168] sm:$0xff]
    %v1996 = vld [vmem:[%s1949 + $0x170] sm:$0xff]
    %v1997 = vld [vmem:[%s1949 + $0x178] sm:$0xff]
    %v1998 = vld [vmem:[%s1949 + $0x180] sm:$0xff]
    %v1999 = vld [vmem:[%s1949 + $0x188] sm:$0xff]
    %v2000 = vld [vmem:[%s1949 + $0x190] sm:$0xff]
    %v2001 = vld [vmem:[%s1949 + $0x198] sm:$0xff]
    %v2002 = vld [vmem:[%s1949 + $0x1a0] sm:$0xff]
    %v2003 = vld [vmem:[%s1949 + $0x1a8] sm:$0xff]
    %v2004 = vld [vmem:[%s1949 + $0x1b0] sm:$0xff]
    %v2005 = vld [vmem:[%s1949 + $0x1b8] sm:$0xff]
    %v2006 = vld [vmem:[%s1949 + $0x1c0] sm:$0xff]
    %v2007 = vld [vmem:[%s1949 + $0x1c8] sm:$0xff]
    %v2008 = vld [vmem:[%s1949 + $0x1d0] sm:$0xff]
    %v2009 = vld [vmem:[%s1949 + $0x1d8] sm:$0xff]
    %v2010 = vld [vmem:[%s1949 + $0x1e0] sm:$0xff]
    %v2011 = vld [vmem:[%s1949 + $0x1e8] sm:$0xff]
    %v2012 = vld [vmem:[%s1949 + $0x1f0] sm:$0xff]
    %v2013 = vld [vmem:[%s1949 + $0x1f8] sm:$0xff]
    %v2014 = vld [vmem:[%s1949 + $0x200] sm:$0xff]
    %v2015 = vld [vmem:[%s1949 + $0x208] sm:$0xff]
    %v2016 = vld [vmem:[%s1949 + $0x210] sm:$0xff]
    %v2017 = vld [vmem:[%s1949 + $0x218] sm:$0xff]
    %v2018 = vld [vmem:[%s1949 + $0x220] sm:$0xff]
    %v2019 = vld [vmem:[%s1949 + $0x228] sm:$0xff]
    %v2020 = vld [vmem:[%s1949 + $0x230] sm:$0xff]
    %v2021 = vld [vmem:[%s1949 + $0x238] sm:$0xff]
    %v2022 = vld [vmem:[%s1949 + $0x240] sm:$0xff]
    %v2023 = vld [vmem:[%s1949 + $0x248] sm:$0xff]
    %v2024 = vld [vmem:[%s1949 + $0x250] sm:$0xff]
    %v2025 = vld [vmem:[%s1949 + $0x258] sm:$0xff]
    %v2026 = vld [vmem:[%s1949 + $0x260] sm:$0xff]
    %v2027 = vld [vmem:[%s1949 + $0x268] sm:$0xff]
    %v2028 = vld [vmem:[%s1949 + $0x270] sm:$0xff]
    %v2029 = vld [vmem:[%s1949 + $0x278] sm:$0xff]
    %v2030 = vld [vmem:[%s1949 + $0x280] sm:$0xff]
    %v2031 = vld [vmem:[%s1949 + $0x288] sm:$0xff]
    %v2032 = vld [vmem:[%s1949 + $0x290] sm:$0xff]
    %v2033 = vld [vmem:[%s1949 + $0x298] sm:$0xff]
    %v2034 = vld [vmem:[%s1949 + $0x2a0] sm:$0xff]
    %v2035 = vld [vmem:[%s1949 + $0x2a8] sm:$0xff]
    %v2036 = vld [vmem:[%s1949 + $0x2b0] sm:$0xff]
    %v2037 = vld [vmem:[%s1949 + $0x2b8] sm:$0xff]
    %v2038 = vld [vmem:[%s1949 + $0x2c0] sm:$0xff]
    %v2039 = vld [vmem:[%s1949 + $0x2c8] sm:$0xff]
    %v2040 = vld [vmem:[%s1949 + $0x2d0] sm:$0xff]
    %v2041 = vld [vmem:[%s1949 + $0x2d8] sm:$0xff]
    %v2042 = vld [vmem:[%s1949 + $0x2e0] sm:$0xff]
    %v2043 = vld [vmem:[%s1949 + $0x2e8] sm:$0xff]
    %v2044 = vld [vmem:[%s1949 + $0x2f0] sm:$0xff]
    %v2045 = vld [vmem:[%s1949 + $0x2f8] sm:$0xff]
    %vm2088 = vcmask 1046528
    %v2089 = vrot.slane %v1937, 1
    %v2090 = vrot.slane %v1811, 1
    %v2091 = vsel %vm2088, %v2089, %v2090
    %v2092 = vrot.slane %v1938, 1
    %v2093 = vrot.slane %v1812, 1
    %v2094 = vsel %vm2088, %v2092, %v2093
    %v2095 = vrot.slane %v1939, 1
    %v2096 = vrot.slane %v1813, 1
    %v2097 = vsel %vm2088, %v2095, %v2096
    %v2098 = vrot.slane %v1940, 1
    %v2099 = vrot.slane %v1814, 1
    %v2100 = vsel %vm2088, %v2098, %v2099
    %v2101 = vrot.slane %v1941, 1
    %v2102 = vrot.slane %v1815, 1
    %v2103 = vsel %vm2088, %v2101, %v2102
    %v2104 = vrot.slane %v1942, 1
    %v2105 = vrot.slane %v1816, 1
    %v2106 = vsel %vm2088, %v2104, %v2105
    %v2107 = vrot.slane %v1817, 1
    %v2108 = vsel %vm2088, %v2090, %v2107
    %v2109 = vrot.slane %v1818, 1
    %v2110 = vsel %vm2088, %v2093, %v2109
    %v2111 = vrot.slane %v1819, 1
    %v2112 = vsel %vm2088, %v2096, %v2111
    %v2113 = vrot.slane %v1820, 1
    %v2114 = vsel %vm2088, %v2099, %v2113
    %v2115 = vrot.slane %v1821, 1
    %v2116 = vsel %vm2088, %v2102, %v2115
    %v2117 = vrot.slane %v1822, 1
    %v2118 = vsel %vm2088, %v2105, %v2117
    %v2119 = vrot.slane %v1823, 1
    %v2120 = vsel %vm2088, %v2107, %v2119
    %v2121 = vrot.slane %v1824, 1
    %v2122 = vsel %vm2088, %v2109, %v2121
    %v2123 = vrot.slane %v1825, 1
    %v2124 = vsel %vm2088, %v2111, %v2123
    %v2125 = vrot.slane %v1826, 1
    %v2126 = vsel %vm2088, %v2113, %v2125
    %v2127 = vrot.slane %v1827, 1
    %v2128 = vsel %vm2088, %v2115, %v2127
    %v2129 = vrot.slane %v1828, 1
    %v2130 = vsel %vm2088, %v2117, %v2129
    %v2131 = vrot.slane %v1829, 1
    %v2132 = vsel %vm2088, %v2119, %v2131
    %v2133 = vrot.slane %v1830, 1
    %v2134 = vsel %vm2088, %v2121, %v2133
    %v2135 = vrot.slane %v1831, 1
    %v2136 = vsel %vm2088, %v2123, %v2135
    %v2137 = vrot.slane %v1832, 1
    %v2138 = vsel %vm2088, %v2125, %v2137
    %v2139 = vrot.slane %v1833, 1
    %v2140 = vsel %vm2088, %v2127, %v2139
    %v2141 = vrot.slane %v1834, 1
    %v2142 = vsel %vm2088, %v2129, %v2141
    %v2143 = vrot.slane %v1835, 1
    %v2144 = vsel %vm2088, %v2131, %v2143
    %v2145 = vrot.slane %v1836, 1
    %v2146 = vsel %vm2088, %v2133, %v2145
    %v2147 = vrot.slane %v1837, 1
    %v2148 = vsel %vm2088, %v2135, %v2147
    %v2149 = vrot.slane %v1838, 1
    %v2150 = vsel %vm2088, %v2137, %v2149
    %v2151 = vrot.slane %v1839, 1
    %v2152 = vsel %vm2088, %v2139, %v2151
    %v2153 = vrot.slane %v1840, 1
    %v2154 = vsel %vm2088, %v2141, %v2153
    %v2155 = vrot.slane %v1943, 1
    %v2156 = vsel %vm2088, %v2143, %v2155
    %v2157 = vrot.slane %v1944, 1
    %v2158 = vsel %vm2088, %v2145, %v2157
    %v2159 = vrot.slane %v1945, 1
    %v2160 = vsel %vm2088, %v2147, %v2159
    %v2161 = vrot.slane %v1946, 1
    %v2162 = vsel %vm2088, %v2149, %v2161
    %v2163 = vrot.slane %v1947, 1
    %v2164 = vsel %vm2088, %v2151, %v2163
    %v2165 = vrot.slane %v1948, 1
    %v2166 = vsel %vm2088, %v2153, %v2165
    %2203 = vmatpush.msra.mxu0 %v1965
    %2204 = vmatpush.msra.mxu0 %v1964
    %2205 = vmatpush.msra.mxu0 %v1963
    %2206 = vmatpush.msra.mxu0 %v1962
    %2207 = vmatpush.msra.mxu0 %v1961
    %2208 = vmatpush.msra.mxu0 %v1960
    %2209 = vmatpush.msra.mxu0 %v1959
    %2210 = vmatpush.msra.mxu0 %v1958
    %2211 = vmatpush.msra.mxu0 %v1957
    %2212 = vmatpush.msra.mxu0 %v1956
    %2213 = vmatpush.msra.mxu0 %v1955
    %2214 = vmatpush.msra.mxu0 %v1954
    %2215 = vmatpush.msra.mxu0 %v1953
    %2216 = vmatpush.msra.mxu0 %v1952
    %2217 = vmatpush.msra.mxu0 %v1951
    %2218 = vmatpush.msra.mxu0 %v1950
    %2219 = vmatmul.f32.gmra.mxu0 %v2091
    %v2220 = vpop.f32.mrf.mxu0
    %v2221 = vadd.f32 0.0, %v2220
    %2222 = vmatmul.f32.gmra.mxu0 %v2108
    %v2223 = vpop.f32.mrf.mxu0
    %v2224 = vadd.f32 0.0, %v2223
    %2225 = vmatmul.f32.gmra.mxu0 %v2120
    %v2226 = vpop.f32.mrf.mxu0
    %2227 = vmatmul.f32.gmra.mxu0 %v2132
    %v2228 = vpop.f32.mrf.mxu0
    %2229 = vmatmul.f32.gmra.mxu0 %v2144
    %v2230 = vpop.f32.mrf.mxu0
    %v2231 = vadd.f32 0.0, %v2230
    %2232 = vmatmul.f32.gmra.mxu0 %v2156
    %v2233 = vpop.f32.mrf.mxu0
    %v2234 = vadd.f32 0.0, %v2233
    %2235 = vdwg.mxu0
    %2236 = vmatpush.msra.mxu0 %v1981
    %2237 = vmatpush.msra.mxu0 %v1980
    %2238 = vmatpush.msra.mxu0 %v1979
    %2239 = vmatpush.msra.mxu0 %v1978
    %2240 = vmatpush.msra.mxu0 %v1977
    %2241 = vmatpush.msra.mxu0 %v1976
    %2242 = vmatpush.msra.mxu0 %v1975
    %2243 = vmatpush.msra.mxu0 %v1974
    %2244 = vmatpush.msra.mxu0 %v1973
    %2245 = vmatpush.msra.mxu0 %v1972
    %2246 = vmatpush.msra.mxu0 %v1971
    %2247 = vmatpush.msra.mxu0 %v1970
    %2248 = vmatpush.msra.mxu0 %v1969
    %2249 = vmatpush.msra.mxu0 %v1968
    %2250 = vmatpush.msra.mxu0 %v1967
    %2251 = vmatpush.msra.mxu0 %v1966
    %2252 = vmatmul.f32.gmra.mxu0 %v2094
    %v2253 = vpop.f32.mrf.mxu0
    %v2254 = vadd.f32 %v2221, %v2253
    %2255 = vmatmul.f32.gmra.mxu0 %v2110
    %v2256 = vpop.f32.mrf.mxu0
    %v2257 = vadd.f32 %v2224, %v2256
    %2258 = vmatmul.f32.gmra.mxu0 %v2122
    %v2259 = vpop.f32.mrf.mxu0
    %2260 = vmatmul.f32.gmra.mxu0 %v2134
    %v2261 = vpop.f32.mrf.mxu0
    %2262 = vmatmul.f32.gmra.mxu0 %v2146
    %v2263 = vpop.f32.mrf.mxu0
    %v2264 = vadd.f32 %v2231, %v2263
    %2265 = vmatmul.f32.gmra.mxu0 %v2158
    %v2266 = vpop.f32.mrf.mxu0
    %v2267 = vadd.f32 %v2234, %v2266
    %2268 = vdwg.mxu0
    %2269 = vmatpush.msra.mxu0 %v1997
    %2270 = vmatpush.msra.mxu0 %v1996
    %2271 = vmatpush.msra.mxu0 %v1995
    %2272 = vmatpush.msra.mxu0 %v1994
    %2273 = vmatpush.msra.mxu0 %v1993
    %2274 = vmatpush.msra.mxu0 %v1992
    %2275 = vmatpush.msra.mxu0 %v1991
    %2276 = vmatpush.msra.mxu0 %v1990
    %2277 = vmatpush.msra.mxu0 %v1989
    %2278 = vmatpush.msra.mxu0 %v1988
    %2279 = vmatpush.msra.mxu0 %v1987
    %2280 = vmatpush.msra.mxu0 %v1986
    %2281 = vmatpush.msra.mxu0 %v1985
    %2282 = vmatpush.msra.mxu0 %v1984
    %2283 = vmatpush.msra.mxu0 %v1983
    %2284 = vmatpush.msra.mxu0 %v1982
    %2285 = vmatmul.f32.gmra.mxu0 %v2097
    %v2286 = vpop.f32.mrf.mxu0
    %v2287 = vadd.f32 %v2254, %v2286
    %2288 = vmatmul.f32.gmra.mxu0 %v2112
    %v2289 = vpop.f32.mrf.mxu0
    %v2290 = vadd.f32 %v2257, %v2289
    %2291 = vmatmul.f32.gmra.mxu0 %v2124
    %v2292 = vpop.f32.mrf.mxu0
    %2293 = vmatmul.f32.gmra.mxu0 %v2136
    %v2294 = vpop.f32.mrf.mxu0
    %2295 = vmatmul.f32.gmra.mxu0 %v2148
    %v2296 = vpop.f32.mrf.mxu0
    %v2297 = vadd.f32 %v2264, %v2296
    %2298 = vmatmul.f32.gmra.mxu0 %v2160
    %v2299 = vpop.f32.mrf.mxu0
    %v2300 = vadd.f32 %v2267, %v2299
    %2301 = vdwg.mxu0
    %2302 = vmatpush.msra.mxu0 %v2013
    %2303 = vmatpush.msra.mxu0 %v2012
    %2304 = vmatpush.msra.mxu0 %v2011
    %2305 = vmatpush.msra.mxu0 %v2010
    %2306 = vmatpush.msra.mxu0 %v2009
    %2307 = vmatpush.msra.mxu0 %v2008
    %2308 = vmatpush.msra.mxu0 %v2007
    %2309 = vmatpush.msra.mxu0 %v2006
    %2310 = vmatpush.msra.mxu0 %v2005
    %2311 = vmatpush.msra.mxu0 %v2004
    %2312 = vmatpush.msra.mxu0 %v2003
    %2313 = vmatpush.msra.mxu0 %v2002
    %2314 = vmatpush.msra.mxu0 %v2001
    %2315 = vmatpush.msra.mxu0 %v2000
    %2316 = vmatpush.msra.mxu0 %v1999
    %2317 = vmatpush.msra.mxu0 %v1998
    %2318 = vmatmul.f32.gmra.mxu0 %v2100
    %v2319 = vpop.f32.mrf.mxu0
    %v2320 = vadd.f32 %v2287, %v2319
    %2321 = vmatmul.f32.gmra.mxu0 %v2114
    %v2322 = vpop.f32.mrf.mxu0
    %v2323 = vadd.f32 %v2290, %v2322
    %2324 = vmatmul.f32.gmra.mxu0 %v2126
    %v2325 = vpop.f32.mrf.mxu0
    %2326 = vmatmul.f32.gmra.mxu0 %v2138
    %v2327 = vpop.f32.mrf.mxu0
    %2328 = vmatmul.f32.gmra.mxu0 %v2150
    %v2329 = vpop.f32.mrf.mxu0
    %v2330 = vadd.f32 %v2297, %v2329
    %2331 = vmatmul.f32.gmra.mxu0 %v2162
    %v2332 = vpop.f32.mrf.mxu0
    %v2333 = vadd.f32 %v2300, %v2332
    %2334 = vdwg.mxu0
    %2335 = vmatpush.msra.mxu0 %v2029
    %2336 = vmatpush.msra.mxu0 %v2028
    %2337 = vmatpush.msra.mxu0 %v2027
    %2338 = vmatpush.msra.mxu0 %v2026
    %2339 = vmatpush.msra.mxu0 %v2025
    %2340 = vmatpush.msra.mxu0 %v2024
    %2341 = vmatpush.msra.mxu0 %v2023
    %2342 = vmatpush.msra.mxu0 %v2022
    %2343 = vmatpush.msra.mxu0 %v2021
    %2344 = vmatpush.msra.mxu0 %v2020
    %2345 = vmatpush.msra.mxu0 %v2019
    %2346 = vmatpush.msra.mxu0 %v2018
    %2347 = vmatpush.msra.mxu0 %v2017
    %2348 = vmatpush.msra.mxu0 %v2016
    %2349 = vmatpush.msra.mxu0 %v2015
    %2350 = vmatpush.msra.mxu0 %v2014
    %2351 = vmatmul.f32.gmra.mxu0 %v2103
    %v2352 = vpop.f32.mrf.mxu0
    %v2353 = vadd.f32 %v2320, %v2352
    %2354 = vmatmul.f32.gmra.mxu0 %v2116
    %v2355 = vpop.f32.mrf.mxu0
    %v2356 = vadd.f32 %v2323, %v2355
    %2357 = vmatmul.f32.gmra.mxu0 %v2128
    %v2358 = vpop.f32.mrf.mxu0
    %2359 = vmatmul.f32.gmra.mxu0 %v2140
    %v2360 = vpop.f32.mrf.mxu0
    %2361 = vmatmul.f32.gmra.mxu0 %v2152
    %v2362 = vpop.f32.mrf.mxu0
    %v2363 = vadd.f32 %v2330, %v2362
    %2364 = vmatmul.f32.gmra.mxu0 %v2164
    %v2365 = vpop.f32.mrf.mxu0
    %v2366 = vadd.f32 %v2333, %v2365
    %2367 = vdwg.mxu0
    %2368 = vmatpush.msra.mxu0 %v2045
    %2369 = vmatpush.msra.mxu0 %v2044
    %2370 = vmatpush.msra.mxu0 %v2043
    %2371 = vmatpush.msra.mxu0 %v2042
    %2372 = vmatpush.msra.mxu0 %v2041
    %2373 = vmatpush.msra.mxu0 %v2040
    %2374 = vmatpush.msra.mxu0 %v2039
    %2375 = vmatpush.msra.mxu0 %v2038
    %2376 = vmatpush.msra.mxu0 %v2037
    %2377 = vmatpush.msra.mxu0 %v2036
    %2378 = vmatpush.msra.mxu0 %v2035
    %2379 = vmatpush.msra.mxu0 %v2034
    %2380 = vmatpush.msra.mxu0 %v2033
    %2381 = vmatpush.msra.mxu0 %v2032
    %2382 = vmatpush.msra.mxu0 %v2031
    %2383 = vmatpush.msra.mxu0 %v2030
    %2384 = vmatmul.f32.gmra.mxu0 %v2106
    %v2385 = vpop.f32.mrf.mxu0
    %v2386 = vadd.f32 %v2353, %v2385
    %2387 = vmatmul.f32.gmra.mxu0 %v2118
    %v2388 = vpop.f32.mrf.mxu0
    %v2389 = vadd.f32 %v2356, %v2388
    %2390 = vmatmul.f32.gmra.mxu0 %v2130
    %v2391 = vpop.f32.mrf.mxu0
    %2392 = vmatmul.f32.gmra.mxu0 %v2142
    %v2393 = vpop.f32.mrf.mxu0
    %2394 = vmatmul.f32.gmra.mxu0 %v2154
    %v2395 = vpop.f32.mrf.mxu0
    %v2396 = vadd.f32 %v2363, %v2395
    %2397 = vmatmul.f32.gmra.mxu0 %v2166
    %v2398 = vpop.f32.mrf.mxu0
    %v2399 = vadd.f32 %v2366, %v2398
    %2400 = vdwg.mxu0
    %2401 = vmatpush.msra.mxu0 %v1856
    %2402 = vmatpush.msra.mxu0 %v1855
    %2403 = vmatpush.msra.mxu0 %v1854
    %2404 = vmatpush.msra.mxu0 %v1853
    %2405 = vmatpush.msra.mxu0 %v1852
    %2406 = vmatpush.msra.mxu0 %v1851
    %2407 = vmatpush.msra.mxu0 %v1850
    %2408 = vmatpush.msra.mxu0 %v1849
    %2409 = vmatpush.msra.mxu0 %v1848
    %2410 = vmatpush.msra.mxu0 %v1847
    %2411 = vmatpush.msra.mxu0 %v1846
    %2412 = vmatpush.msra.mxu0 %v1845
    %2413 = vmatpush.msra.mxu0 %v1844
    %2414 = vmatpush.msra.mxu0 %v1843
    %2415 = vmatpush.msra.mxu0 %v1842
    %2416 = vmatpush.msra.mxu0 %v1841
    %2417 = vmatmul.f32.gmra.mxu0 %v1805
    %v2418 = vpop.f32.mrf.mxu0
    %v2419 = vadd.f32 %v2386, %v2418
    %2420 = vmatmul.f32.gmra.mxu0 %v1811
    %v2421 = vpop.f32.mrf.mxu0
    %v2422 = vadd.f32 %v2389, %v2421
    %2423 = vmatmul.f32.gmra.mxu0 %v1817
    %v2424 = vpop.f32.mrf.mxu0
    %2425 = vmatmul.f32.gmra.mxu0 %v1823
    %v2426 = vpop.f32.mrf.mxu0
    %2427 = vmatmul.f32.gmra.mxu0 %v1829
    %v2428 = vpop.f32.mrf.mxu0
    %v2429 = vadd.f32 %v2396, %v2428
    %2430 = vmatmul.f32.gmra.mxu0 %v1835
    %v2431 = vpop.f32.mrf.mxu0
    %v2432 = vadd.f32 %v2399, %v2431
    %2433 = vdwg.mxu0
    %2434 = vmatpush.msra.mxu0 %v1872
    %2435 = vmatpush.msra.mxu0 %v1871
    %2436 = vmatpush.msra.mxu0 %v1870
    %2437 = vmatpush.msra.mxu0 %v1869
    %2438 = vmatpush.msra.mxu0 %v1868
    %2439 = vmatpush.msra.mxu0 %v1867
    %2440 = vmatpush.msra.mxu0 %v1866
    %2441 = vmatpush.msra.mxu0 %v1865
    %2442 = vmatpush.msra.mxu0 %v1864
    %2443 = vmatpush.msra.mxu0 %v1863
    %2444 = vmatpush.msra.mxu0 %v1862
    %2445 = vmatpush.msra.mxu0 %v1861
    %2446 = vmatpush.msra.mxu0 %v1860
    %2447 = vmatpush.msra.mxu0 %v1859
    %2448 = vmatpush.msra.mxu0 %v1858
    %2449 = vmatpush.msra.mxu0 %v1857
    %2450 = vmatmul.f32.gmra.mxu0 %v1806
    %v2451 = vpop.f32.mrf.mxu0
    %v2452 = vadd.f32 %v2419, %v2451
    %2453 = vmatmul.f32.gmra.mxu0 %v1812
    %v2454 = vpop.f32.mrf.mxu0
    %v2455 = vadd.f32 %v2422, %v2454
    %2456 = vmatmul.f32.gmra.mxu0 %v1818
    %v2457 = vpop.f32.mrf.mxu0
    %2458 = vmatmul.f32.gmra.mxu0 %v1824
    %v2459 = vpop.f32.mrf.mxu0
    %2460 = vmatmul.f32.gmra.mxu0 %v1830
    %v2461 = vpop.f32.mrf.mxu0
    %v2462 = vadd.f32 %v2429, %v2461
    %2463 = vmatmul.f32.gmra.mxu0 %v1836
    %v2464 = vpop.f32.mrf.mxu0
    %v2465 = vadd.f32 %v2432, %v2464
    %2466 = vdwg.mxu0
    %2467 = vmatpush.msra.mxu0 %v1888
    %2468 = vmatpush.msra.mxu0 %v1887
    %2469 = vmatpush.msra.mxu0 %v1886
    %2470 = vmatpush.msra.mxu0 %v1885
    %2471 = vmatpush.msra.mxu0 %v1884
    %2472 = vmatpush.msra.mxu0 %v1883
    %2473 = vmatpush.msra.mxu0 %v1882
    %2474 = vmatpush.msra.mxu0 %v1881
    %2475 = vmatpush.msra.mxu0 %v1880
    %2476 = vmatpush.msra.mxu0 %v1879
    %2477 = vmatpush.msra.mxu0 %v1878
    %2478 = vmatpush.msra.mxu0 %v1877
    %2479 = vmatpush.msra.mxu0 %v1876
    %2480 = vmatpush.msra.mxu0 %v1875
    %2481 = vmatpush.msra.mxu0 %v1874
    %2482 = vmatpush.msra.mxu0 %v1873
    %2483 = vmatmul.f32.gmra.mxu0 %v1807
    %v2484 = vpop.f32.mrf.mxu0
    %v2485 = vadd.f32 %v2452, %v2484
    %2486 = vmatmul.f32.gmra.mxu0 %v1813
    %v2487 = vpop.f32.mrf.mxu0
    %v2488 = vadd.f32 %v2455, %v2487
    %2489 = vmatmul.f32.gmra.mxu0 %v1819
    %v2490 = vpop.f32.mrf.mxu0
    %2491 = vmatmul.f32.gmra.mxu0 %v1825
    %v2492 = vpop.f32.mrf.mxu0
    %2493 = vmatmul.f32.gmra.mxu0 %v1831
    %v2494 = vpop.f32.mrf.mxu0
    %v2495 = vadd.f32 %v2462, %v2494
    %2496 = vmatmul.f32.gmra.mxu0 %v1837
    %v2497 = vpop.f32.mrf.mxu0
    %v2498 = vadd.f32 %v2465, %v2497
    %2499 = vdwg.mxu0
    %2500 = vmatpush.msra.mxu0 %v1904
    %2501 = vmatpush.msra.mxu0 %v1903
    %2502 = vmatpush.msra.mxu0 %v1902
    %2503 = vmatpush.msra.mxu0 %v1901
    %2504 = vmatpush.msra.mxu0 %v1900
    %2505 = vmatpush.msra.mxu0 %v1899
    %2506 = vmatpush.msra.mxu0 %v1898
    %2507 = vmatpush.msra.mxu0 %v1897
    %2508 = vmatpush.msra.mxu0 %v1896
    %2509 = vmatpush.msra.mxu0 %v1895
    %2510 = vmatpush.msra.mxu0 %v1894
    %2511 = vmatpush.msra.mxu0 %v1893
    %2512 = vmatpush.msra.mxu0 %v1892
    %2513 = vmatpush.msra.mxu0 %v1891
    %2514 = vmatpush.msra.mxu0 %v1890
    %2515 = vmatpush.msra.mxu0 %v1889
    %2516 = vmatmul.f32.gmra.mxu0 %v1808
    %v2517 = vpop.f32.mrf.mxu0
    %v2518 = vadd.f32 %v2485, %v2517
    %2519 = vmatmul.f32.gmra.mxu0 %v1814
    %v2520 = vpop.f32.mrf.mxu0
    %v2521 = vadd.f32 %v2488, %v2520
    %2522 = vmatmul.f32.gmra.mxu0 %v1820
    %v2523 = vpop.f32.mrf.mxu0
    %2524 = vmatmul.f32.gmra.mxu0 %v1826
    %v2525 = vpop.f32.mrf.mxu0
    %2526 = vmatmul.f32.gmra.mxu0 %v1832
    %v2527 = vpop.f32.mrf.mxu0
    %v2528 = vadd.f32 %v2495, %v2527
    %2529 = vmatmul.f32.gmra.mxu0 %v1838
    %v2530 = vpop.f32.mrf.mxu0
    %v2531 = vadd.f32 %v2498, %v2530
    %2532 = vdwg.mxu0
    %2533 = vmatpush.msra.mxu0 %v1920
    %2534 = vmatpush.msra.mxu0 %v1919
    %2535 = vmatpush.msra.mxu0 %v1918
    %2536 = vmatpush.msra.mxu0 %v1917
    %2537 = vmatpush.msra.mxu0 %v1916
    %2538 = vmatpush.msra.mxu0 %v1915
    %2539 = vmatpush.msra.mxu0 %v1914
    %2540 = vmatpush.msra.mxu0 %v1913
    %2541 = vmatpush.msra.mxu0 %v1912
    %2542 = vmatpush.msra.mxu0 %v1911
    %2543 = vmatpush.msra.mxu0 %v1910
    %2544 = vmatpush.msra.mxu0 %v1909
    %2545 = vmatpush.msra.mxu0 %v1908
    %2546 = vmatpush.msra.mxu0 %v1907
    %2547 = vmatpush.msra.mxu0 %v1906
    %2548 = vmatpush.msra.mxu0 %v1905
    %2549 = vmatmul.f32.gmra.mxu0 %v1809
    %v2550 = vpop.f32.mrf.mxu0
    %v2551 = vadd.f32 %v2518, %v2550
    %2552 = vmatmul.f32.gmra.mxu0 %v1815
    %v2553 = vpop.f32.mrf.mxu0
    %v2554 = vadd.f32 %v2521, %v2553
    %2555 = vmatmul.f32.gmra.mxu0 %v1821
    %v2556 = vpop.f32.mrf.mxu0
    %2557 = vmatmul.f32.gmra.mxu0 %v1827
    %v2558 = vpop.f32.mrf.mxu0
    %2559 = vmatmul.f32.gmra.mxu0 %v1833
    %v2560 = vpop.f32.mrf.mxu0
    %v2561 = vadd.f32 %v2528, %v2560
    %2562 = vmatmul.f32.gmra.mxu0 %v1839
    %v2563 = vpop.f32.mrf.mxu0
    %v2564 = vadd.f32 %v2531, %v2563
    %2565 = vdwg.mxu0
    %2566 = vmatpush.msra.mxu0 %v1936
    %2567 = vmatpush.msra.mxu0 %v1935
    %2568 = vmatpush.msra.mxu0 %v1934
    %2569 = vmatpush.msra.mxu0 %v1933
    %2570 = vmatpush.msra.mxu0 %v1932
    %2571 = vmatpush.msra.mxu0 %v1931
    %2572 = vmatpush.msra.mxu0 %v1930
    %2573 = vmatpush.msra.mxu0 %v1929
    %2574 = vmatpush.msra.mxu0 %v1928
    %2575 = vmatpush.msra.mxu0 %v1927
    %2576 = vmatpush.msra.mxu0 %v1926
    %2577 = vmatpush.msra.mxu0 %v1925
    %2578 = vmatpush.msra.mxu0 %v1924
    %2579 = vmatpush.msra.mxu0 %v1923
    %2580 = vmatpush.msra.mxu0 %v1922
    %2581 = vmatpush.msra.mxu0 %v1921
    %2582 = vmatmul.f32.gmra.mxu0 %v1810
    %v2583 = vpop.f32.mrf.mxu0
    %v2584 = vadd.f32 %v2551, %v2583
    %2585 = vmatmul.f32.gmra.mxu0 %v1816
    %v2586 = vpop.f32.mrf.mxu0
    %v2587 = vadd.f32 %v2554, %v2586
    %2588 = vmatmul.f32.gmra.mxu0 %v1822
    %v2589 = vpop.f32.mrf.mxu0
    %2590 = vmatmul.f32.gmra.mxu0 %v1828
    %v2591 = vpop.f32.mrf.mxu0
    %2592 = vmatmul.f32.gmra.mxu0 %v1834
    %v2593 = vpop.f32.mrf.mxu0
    %v2594 = vadd.f32 %v2561, %v2593
    %2595 = vmatmul.f32.gmra.mxu0 %v1840
    %v2596 = vpop.f32.mrf.mxu0
    %v2597 = vadd.f32 %v2564, %v2596
    %2598 = vdwg.mxu0
    %v2599 = vld [vmem:[#allocation2] sm:$0xfc]
    %v2600 = vld [vmem:[#allocation2 + $0x8] sm:$0xfc]
    %v2601 = vld [vmem:[#allocation2 + $0x10] sm:$0xfc]
    %v2602 = vld [vmem:[#allocation2 + $0x18] sm:$0xfc]
    %v2603 = vld [vmem:[#allocation2 + $0x20] sm:$0xfc]
    %v2604 = vld [vmem:[#allocation2 + $0x28] sm:$0xfc]
    %v2605 = vld [vmem:[#allocation2 + $0x120] sm:$0x3]
    %v2606 = vld [vmem:[#allocation2 + $0x128] sm:$0x3]
    %v2607 = vld [vmem:[#allocation2 + $0x130] sm:$0x3]
    %v2608 = vld [vmem:[#allocation2 + $0x138] sm:$0x3]
    %v2609 = vld [vmem:[#allocation2 + $0x140] sm:$0x3]
    %v2610 = vld [vmem:[#allocation2 + $0x148] sm:$0x3]
    %s2611 = scalar_lea.vmem [#allocation5], 1536
    %v2612 = vld [vmem:[%s2611] sm:$0xff]
    %v2613 = vld [vmem:[%s2611 + $0x8] sm:$0xff]
    %v2614 = vld [vmem:[%s2611 + $0x10] sm:$0xff]
    %v2615 = vld [vmem:[%s2611 + $0x18] sm:$0xff]
    %v2616 = vld [vmem:[%s2611 + $0x20] sm:$0xff]
    %v2617 = vld [vmem:[%s2611 + $0x28] sm:$0xff]
    %v2618 = vld [vmem:[%s2611 + $0x30] sm:$0xff]
    %v2619 = vld [vmem:[%s2611 + $0x38] sm:$0xff]
    %v2620 = vld [vmem:[%s2611 + $0x40] sm:$0xff]
    %v2621 = vld [vmem:[%s2611 + $0x48] sm:$0xff]
    %v2622 = vld [vmem:[%s2611 + $0x50] sm:$0xff]
    %v2623 = vld [vmem:[%s2611 + $0x58] sm:$0xff]
    %v2624 = vld [vmem:[%s2611 + $0x60] sm:$0xff]
    %v2625 = vld [vmem:[%s2611 + $0x68] sm:$0xff]
    %v2626 = vld [vmem:[%s2611 + $0x70] sm:$0xff]
    %v2627 = vld [vmem:[%s2611 + $0x78] sm:$0xff]
    %v2628 = vld [vmem:[%s2611 + $0x80] sm:$0xff]
    %v2629 = vld [vmem:[%s2611 + $0x88] sm:$0xff]
    %v2630 = vld [vmem:[%s2611 + $0x90] sm:$0xff]
    %v2631 = vld [vmem:[%s2611 + $0x98] sm:$0xff]
    %v2632 = vld [vmem:[%s2611 + $0xa0] sm:$0xff]
    %v2633 = vld [vmem:[%s2611 + $0xa8] sm:$0xff]
    %v2634 = vld [vmem:[%s2611 + $0xb0] sm:$0xff]
    %v2635 = vld [vmem:[%s2611 + $0xb8] sm:$0xff]
    %v2636 = vld [vmem:[%s2611 + $0xc0] sm:$0xff]
    %v2637 = vld [vmem:[%s2611 + $0xc8] sm:$0xff]
    %v2638 = vld [vmem:[%s2611 + $0xd0] sm:$0xff]
    %v2639 = vld [vmem:[%s2611 + $0xd8] sm:$0xff]
    %v2640 = vld [vmem:[%s2611 + $0xe0] sm:$0xff]
    %v2641 = vld [vmem:[%s2611 + $0xe8] sm:$0xff]
    %v2642 = vld [vmem:[%s2611 + $0xf0] sm:$0xff]
    %v2643 = vld [vmem:[%s2611 + $0xf8] sm:$0xff]
    %v2644 = vld [vmem:[%s2611 + $0x100] sm:$0xff]
    %v2645 = vld [vmem:[%s2611 + $0x108] sm:$0xff]
    %v2646 = vld [vmem:[%s2611 + $0x110] sm:$0xff]
    %v2647 = vld [vmem:[%s2611 + $0x118] sm:$0xff]
    %v2648 = vld [vmem:[%s2611 + $0x120] sm:$0xff]
    %v2649 = vld [vmem:[%s2611 + $0x128] sm:$0xff]
    %v2650 = vld [vmem:[%s2611 + $0x130] sm:$0xff]
    %v2651 = vld [vmem:[%s2611 + $0x138] sm:$0xff]
    %v2652 = vld [vmem:[%s2611 + $0x140] sm:$0xff]
    %v2653 = vld [vmem:[%s2611 + $0x148] sm:$0xff]
    %v2654 = vld [vmem:[%s2611 + $0x150] sm:$0xff]
    %v2655 = vld [vmem:[%s2611 + $0x158] sm:$0xff]
    %v2656 = vld [vmem:[%s2611 + $0x160] sm:$0xff]
    %v2657 = vld [vmem:[%s2611 + $0x168] sm:$0xff]
    %v2658 = vld [vmem:[%s2611 + $0x170] sm:$0xff]
    %v2659 = vld [vmem:[%s2611 + $0x178] sm:$0xff]
    %v2660 = vld [vmem:[%s2611 + $0x180] sm:$0xff]
    %v2661 = vld [vmem:[%s2611 + $0x188] sm:$0xff]
    %v2662 = vld [vmem:[%s2611 + $0x190] sm:$0xff]
    %v2663 = vld [vmem:[%s2611 + $0x198] sm:$0xff]
    %v2664 = vld [vmem:[%s2611 + $0x1a0] sm:$0xff]
    %v2665 = vld [vmem:[%s2611 + $0x1a8] sm:$0xff]
    %v2666 = vld [vmem:[%s2611 + $0x1b0] sm:$0xff]
    %v2667 = vld [vmem:[%s2611 + $0x1b8] sm:$0xff]
    %v2668 = vld [vmem:[%s2611 + $0x1c0] sm:$0xff]
    %v2669 = vld [vmem:[%s2611 + $0x1c8] sm:$0xff]
    %v2670 = vld [vmem:[%s2611 + $0x1d0] sm:$0xff]
    %v2671 = vld [vmem:[%s2611 + $0x1d8] sm:$0xff]
    %v2672 = vld [vmem:[%s2611 + $0x1e0] sm:$0xff]
    %v2673 = vld [vmem:[%s2611 + $0x1e8] sm:$0xff]
    %v2674 = vld [vmem:[%s2611 + $0x1f0] sm:$0xff]
    %v2675 = vld [vmem:[%s2611 + $0x1f8] sm:$0xff]
    %v2676 = vld [vmem:[%s2611 + $0x200] sm:$0xff]
    %v2677 = vld [vmem:[%s2611 + $0x208] sm:$0xff]
    %v2678 = vld [vmem:[%s2611 + $0x210] sm:$0xff]
    %v2679 = vld [vmem:[%s2611 + $0x218] sm:$0xff]
    %v2680 = vld [vmem:[%s2611 + $0x220] sm:$0xff]
    %v2681 = vld [vmem:[%s2611 + $0x228] sm:$0xff]
    %v2682 = vld [vmem:[%s2611 + $0x230] sm:$0xff]
    %v2683 = vld [vmem:[%s2611 + $0x238] sm:$0xff]
    %v2684 = vld [vmem:[%s2611 + $0x240] sm:$0xff]
    %v2685 = vld [vmem:[%s2611 + $0x248] sm:$0xff]
    %v2686 = vld [vmem:[%s2611 + $0x250] sm:$0xff]
    %v2687 = vld [vmem:[%s2611 + $0x258] sm:$0xff]
    %v2688 = vld [vmem:[%s2611 + $0x260] sm:$0xff]
    %v2689 = vld [vmem:[%s2611 + $0x268] sm:$0xff]
    %v2690 = vld [vmem:[%s2611 + $0x270] sm:$0xff]
    %v2691 = vld [vmem:[%s2611 + $0x278] sm:$0xff]
    %v2692 = vld [vmem:[%s2611 + $0x280] sm:$0xff]
    %v2693 = vld [vmem:[%s2611 + $0x288] sm:$0xff]
    %v2694 = vld [vmem:[%s2611 + $0x290] sm:$0xff]
    %v2695 = vld [vmem:[%s2611 + $0x298] sm:$0xff]
    %v2696 = vld [vmem:[%s2611 + $0x2a0] sm:$0xff]
    %v2697 = vld [vmem:[%s2611 + $0x2a8] sm:$0xff]
    %v2698 = vld [vmem:[%s2611 + $0x2b0] sm:$0xff]
    %v2699 = vld [vmem:[%s2611 + $0x2b8] sm:$0xff]
    %v2700 = vld [vmem:[%s2611 + $0x2c0] sm:$0xff]
    %v2701 = vld [vmem:[%s2611 + $0x2c8] sm:$0xff]
    %v2702 = vld [vmem:[%s2611 + $0x2d0] sm:$0xff]
    %v2703 = vld [vmem:[%s2611 + $0x2d8] sm:$0xff]
    %v2704 = vld [vmem:[%s2611 + $0x2e0] sm:$0xff]
    %v2705 = vld [vmem:[%s2611 + $0x2e8] sm:$0xff]
    %v2706 = vld [vmem:[%s2611 + $0x2f0] sm:$0xff]
    %v2707 = vld [vmem:[%s2611 + $0x2f8] sm:$0xff]
    %v2720 = vrot.slane %v2599, 2
    %v2721 = vrot.slane %v1811, 2
    %v2722 = vsel %vm1213, %v2720, %v2721
    %v2723 = vrot.slane %v2600, 2
    %v2724 = vrot.slane %v1812, 2
    %v2725 = vsel %vm1213, %v2723, %v2724
    %v2726 = vrot.slane %v2601, 2
    %v2727 = vrot.slane %v1813, 2
    %v2728 = vsel %vm1213, %v2726, %v2727
    %v2729 = vrot.slane %v2602, 2
    %v2730 = vrot.slane %v1814, 2
    %v2731 = vsel %vm1213, %v2729, %v2730
    %v2732 = vrot.slane %v2603, 2
    %v2733 = vrot.slane %v1815, 2
    %v2734 = vsel %vm1213, %v2732, %v2733
    %v2735 = vrot.slane %v2604, 2
    %v2736 = vrot.slane %v1816, 2
    %v2737 = vsel %vm1213, %v2735, %v2736
    %v2738 = vrot.slane %v1817, 2
    %v2739 = vsel %vm1213, %v2721, %v2738
    %v2740 = vrot.slane %v1818, 2
    %v2741 = vsel %vm1213, %v2724, %v2740
    %v2742 = vrot.slane %v1819, 2
    %v2743 = vsel %vm1213, %v2727, %v2742
    %v2744 = vrot.slane %v1820, 2
    %v2745 = vsel %vm1213, %v2730, %v2744
    %v2746 = vrot.slane %v1821, 2
    %v2747 = vsel %vm1213, %v2733, %v2746
    %v2748 = vrot.slane %v1822, 2
    %v2749 = vsel %vm1213, %v2736, %v2748
    %v2750 = vrot.slane %v1823, 2
    %v2751 = vsel %vm1213, %v2738, %v2750
    %v2752 = vrot.slane %v1824, 2
    %v2753 = vsel %vm1213, %v2740, %v2752
    %v2754 = vrot.slane %v1825, 2
    %v2755 = vsel %vm1213, %v2742, %v2754
    %v2756 = vrot.slane %v1826, 2
    %v2757 = vsel %vm1213, %v2744, %v2756
    %v2758 = vrot.slane %v1827, 2
    %v2759 = vsel %vm1213, %v2746, %v2758
    %v2760 = vrot.slane %v1828, 2
    %v2761 = vsel %vm1213, %v2748, %v2760
    %v2762 = vrot.slane %v1829, 2
    %v2763 = vsel %vm1213, %v2750, %v2762
    %v2764 = vrot.slane %v1830, 2
    %v2765 = vsel %vm1213, %v2752, %v2764
    %v2766 = vrot.slane %v1831, 2
    %v2767 = vsel %vm1213, %v2754, %v2766
    %v2768 = vrot.slane %v1832, 2
    %v2769 = vsel %vm1213, %v2756, %v2768
    %v2770 = vrot.slane %v1833, 2
    %v2771 = vsel %vm1213, %v2758, %v2770
    %v2772 = vrot.slane %v1834, 2
    %v2773 = vsel %vm1213, %v2760, %v2772
    %v2774 = vrot.slane %v1835, 2
    %v2775 = vsel %vm1213, %v2762, %v2774
    %v2776 = vrot.slane %v1836, 2
    %v2777 = vsel %vm1213, %v2764, %v2776
    %v2778 = vrot.slane %v1837, 2
    %v2779 = vsel %vm1213, %v2766, %v2778
    %v2780 = vrot.slane %v1838, 2
    %v2781 = vsel %vm1213, %v2768, %v2780
    %v2782 = vrot.slane %v1839, 2
    %v2783 = vsel %vm1213, %v2770, %v2782
    %v2784 = vrot.slane %v1840, 2
    %v2785 = vsel %vm1213, %v2772, %v2784
    %v2786 = vrot.slane %v2605, 2
    %v2787 = vsel %vm1213, %v2774, %v2786
    %v2788 = vrot.slane %v2606, 2
    %v2789 = vsel %vm1213, %v2776, %v2788
    %v2790 = vrot.slane %v2607, 2
    %v2791 = vsel %vm1213, %v2778, %v2790
    %v2792 = vrot.slane %v2608, 2
    %v2793 = vsel %vm1213, %v2780, %v2792
    %v2794 = vrot.slane %v2609, 2
    %v2795 = vsel %vm1213, %v2782, %v2794
    %v2796 = vrot.slane %v2610, 2
    %v2797 = vsel %vm1213, %v2784, %v2796
    %2834 = vmatpush.msra.mxu0 %v2627
    %2835 = vmatpush.msra.mxu0 %v2626
    %2836 = vmatpush.msra.mxu0 %v2625
    %2837 = vmatpush.msra.mxu0 %v2624
    %2838 = vmatpush.msra.mxu0 %v2623
    %2839 = vmatpush.msra.mxu0 %v2622
    %2840 = vmatpush.msra.mxu0 %v2621
    %2841 = vmatpush.msra.mxu0 %v2620
    %2842 = vmatpush.msra.mxu0 %v2619
    %2843 = vmatpush.msra.mxu0 %v2618
    %2844 = vmatpush.msra.mxu0 %v2617
    %2845 = vmatpush.msra.mxu0 %v2616
    %2846 = vmatpush.msra.mxu0 %v2615
    %2847 = vmatpush.msra.mxu0 %v2614
    %2848 = vmatpush.msra.mxu0 %v2613
    %2849 = vmatpush.msra.mxu0 %v2612
    %2850 = vmatmul.f32.gmra.mxu0 %v2722
    %v2851 = vpop.f32.mrf.mxu0
    %v2852 = vadd.f32 0.0, %v2851
    %2853 = vmatmul.f32.gmra.mxu0 %v2739
    %v2854 = vpop.f32.mrf.mxu0
    %v2855 = vadd.f32 0.0, %v2854
    %2856 = vmatmul.f32.gmra.mxu0 %v2751
    %v2857 = vpop.f32.mrf.mxu0
    %2858 = vmatmul.f32.gmra.mxu0 %v2763
    %v2859 = vpop.f32.mrf.mxu0
    %2860 = vmatmul.f32.gmra.mxu0 %v2775
    %v2861 = vpop.f32.mrf.mxu0
    %v2862 = vadd.f32 0.0, %v2861
    %2863 = vmatmul.f32.gmra.mxu0 %v2787
    %v2864 = vpop.f32.mrf.mxu0
    %v2865 = vadd.f32 0.0, %v2864
    %2866 = vdwg.mxu0
    %2867 = vmatpush.msra.mxu0 %v2643
    %2868 = vmatpush.msra.mxu0 %v2642
    %2869 = vmatpush.msra.mxu0 %v2641
    %2870 = vmatpush.msra.mxu0 %v2640
    %2871 = vmatpush.msra.mxu0 %v2639
    %2872 = vmatpush.msra.mxu0 %v2638
    %2873 = vmatpush.msra.mxu0 %v2637
    %2874 = vmatpush.msra.mxu0 %v2636
    %2875 = vmatpush.msra.mxu0 %v2635
    %2876 = vmatpush.msra.mxu0 %v2634
    %2877 = vmatpush.msra.mxu0 %v2633
    %2878 = vmatpush.msra.mxu0 %v2632
    %2879 = vmatpush.msra.mxu0 %v2631
    %2880 = vmatpush.msra.mxu0 %v2630
    %2881 = vmatpush.msra.mxu0 %v2629
    %2882 = vmatpush.msra.mxu0 %v2628
    %2883 = vmatmul.f32.gmra.mxu0 %v2725
    %v2884 = vpop.f32.mrf.mxu0
    %v2885 = vadd.f32 %v2852, %v2884
    %2886 = vmatmul.f32.gmra.mxu0 %v2741
    %v2887 = vpop.f32.mrf.mxu0
    %v2888 = vadd.f32 %v2855, %v2887
    %2889 = vmatmul.f32.gmra.mxu0 %v2753
    %v2890 = vpop.f32.mrf.mxu0
    %2891 = vmatmul.f32.gmra.mxu0 %v2765
    %v2892 = vpop.f32.mrf.mxu0
    %2893 = vmatmul.f32.gmra.mxu0 %v2777
    %v2894 = vpop.f32.mrf.mxu0
    %v2895 = vadd.f32 %v2862, %v2894
    %2896 = vmatmul.f32.gmra.mxu0 %v2789
    %v2897 = vpop.f32.mrf.mxu0
    %v2898 = vadd.f32 %v2865, %v2897
    %2899 = vdwg.mxu0
    %2900 = vmatpush.msra.mxu0 %v2659
    %2901 = vmatpush.msra.mxu0 %v2658
    %2902 = vmatpush.msra.mxu0 %v2657
    %2903 = vmatpush.msra.mxu0 %v2656
    %2904 = vmatpush.msra.mxu0 %v2655
    %2905 = vmatpush.msra.mxu0 %v2654
    %2906 = vmatpush.msra.mxu0 %v2653
    %2907 = vmatpush.msra.mxu0 %v2652
    %2908 = vmatpush.msra.mxu0 %v2651
    %2909 = vmatpush.msra.mxu0 %v2650
    %2910 = vmatpush.msra.mxu0 %v2649
    %2911 = vmatpush.msra.mxu0 %v2648
    %2912 = vmatpush.msra.mxu0 %v2647
    %2913 = vmatpush.msra.mxu0 %v2646
    %2914 = vmatpush.msra.mxu0 %v2645
    %2915 = vmatpush.msra.mxu0 %v2644
    %2916 = vmatmul.f32.gmra.mxu0 %v2728
    %v2917 = vpop.f32.mrf.mxu0
    %v2918 = vadd.f32 %v2885, %v2917
    %2919 = vmatmul.f32.gmra.mxu0 %v2743
    %v2920 = vpop.f32.mrf.mxu0
    %v2921 = vadd.f32 %v2888, %v2920
    %2922 = vmatmul.f32.gmra.mxu0 %v2755
    %v2923 = vpop.f32.mrf.mxu0
    %2924 = vmatmul.f32.gmra.mxu0 %v2767
    %v2925 = vpop.f32.mrf.mxu0
    %2926 = vmatmul.f32.gmra.mxu0 %v2779
    %v2927 = vpop.f32.mrf.mxu0
    %v2928 = vadd.f32 %v2895, %v2927
    %2929 = vmatmul.f32.gmra.mxu0 %v2791
    %v2930 = vpop.f32.mrf.mxu0
    %v2931 = vadd.f32 %v2898, %v2930
    %2932 = vdwg.mxu0
    %2933 = vmatpush.msra.mxu0 %v2675
    %2934 = vmatpush.msra.mxu0 %v2674
    %2935 = vmatpush.msra.mxu0 %v2673
    %2936 = vmatpush.msra.mxu0 %v2672
    %2937 = vmatpush.msra.mxu0 %v2671
    %2938 = vmatpush.msra.mxu0 %v2670
    %2939 = vmatpush.msra.mxu0 %v2669
    %2940 = vmatpush.msra.mxu0 %v2668
    %2941 = vmatpush.msra.mxu0 %v2667
    %2942 = vmatpush.msra.mxu0 %v2666
    %2943 = vmatpush.msra.mxu0 %v2665
    %2944 = vmatpush.msra.mxu0 %v2664
    %2945 = vmatpush.msra.mxu0 %v2663
    %2946 = vmatpush.msra.mxu0 %v2662
    %2947 = vmatpush.msra.mxu0 %v2661
    %2948 = vmatpush.msra.mxu0 %v2660
    %2949 = vmatmul.f32.gmra.mxu0 %v2731
    %v2950 = vpop.f32.mrf.mxu0
    %v2951 = vadd.f32 %v2918, %v2950
    %2952 = vmatmul.f32.gmra.mxu0 %v2745
    %v2953 = vpop.f32.mrf.mxu0
    %v2954 = vadd.f32 %v2921, %v2953
    %2955 = vmatmul.f32.gmra.mxu0 %v2757
    %v2956 = vpop.f32.mrf.mxu0
    %2957 = vmatmul.f32.gmra.mxu0 %v2769
    %v2958 = vpop.f32.mrf.mxu0
    %2959 = vmatmul.f32.gmra.mxu0 %v2781
    %v2960 = vpop.f32.mrf.mxu0
    %v2961 = vadd.f32 %v2928, %v2960
    %2962 = vmatmul.f32.gmra.mxu0 %v2793
    %v2963 = vpop.f32.mrf.mxu0
    %v2964 = vadd.f32 %v2931, %v2963
    %2965 = vdwg.mxu0
    %2966 = vmatpush.msra.mxu0 %v2691
    %2967 = vmatpush.msra.mxu0 %v2690
    %2968 = vmatpush.msra.mxu0 %v2689
    %2969 = vmatpush.msra.mxu0 %v2688
    %2970 = vmatpush.msra.mxu0 %v2687
    %2971 = vmatpush.msra.mxu0 %v2686
    %2972 = vmatpush.msra.mxu0 %v2685
    %2973 = vmatpush.msra.mxu0 %v2684
    %2974 = vmatpush.msra.mxu0 %v2683
    %2975 = vmatpush.msra.mxu0 %v2682
    %2976 = vmatpush.msra.mxu0 %v2681
    %2977 = vmatpush.msra.mxu0 %v2680
    %2978 = vmatpush.msra.mxu0 %v2679
    %2979 = vmatpush.msra.mxu0 %v2678
    %2980 = vmatpush.msra.mxu0 %v2677
    %2981 = vmatpush.msra.mxu0 %v2676
    %2982 = vmatmul.f32.gmra.mxu0 %v2734
    %v2983 = vpop.f32.mrf.mxu0
    %v2984 = vadd.f32 %v2951, %v2983
    %2985 = vmatmul.f32.gmra.mxu0 %v2747
    %v2986 = vpop.f32.mrf.mxu0
    %v2987 = vadd.f32 %v2954, %v2986
    %2988 = vmatmul.f32.gmra.mxu0 %v2759
    %v2989 = vpop.f32.mrf.mxu0
    %2990 = vmatmul.f32.gmra.mxu0 %v2771
    %v2991 = vpop.f32.mrf.mxu0
    %2992 = vmatmul.f32.gmra.mxu0 %v2783
    %v2993 = vpop.f32.mrf.mxu0
    %v2994 = vadd.f32 %v2961, %v2993
    %2995 = vmatmul.f32.gmra.mxu0 %v2795
    %v2996 = vpop.f32.mrf.mxu0
    %v2997 = vadd.f32 %v2964, %v2996
    %2998 = vdwg.mxu0
    %2999 = vmatpush.msra.mxu0 %v2707
    %3000 = vmatpush.msra.mxu0 %v2706
    %3001 = vmatpush.msra.mxu0 %v2705
    %3002 = vmatpush.msra.mxu0 %v2704
    %3003 = vmatpush.msra.mxu0 %v2703
    %3004 = vmatpush.msra.mxu0 %v2702
    %3005 = vmatpush.msra.mxu0 %v2701
    %3006 = vmatpush.msra.mxu0 %v2700
    %3007 = vmatpush.msra.mxu0 %v2699
    %3008 = vmatpush.msra.mxu0 %v2698
    %3009 = vmatpush.msra.mxu0 %v2697
    %3010 = vmatpush.msra.mxu0 %v2696
    %3011 = vmatpush.msra.mxu0 %v2695
    %3012 = vmatpush.msra.mxu0 %v2694
    %3013 = vmatpush.msra.mxu0 %v2693
    %3014 = vmatpush.msra.mxu0 %v2692
    %3015 = vmatmul.f32.gmra.mxu0 %v2737
    %v3016 = vpop.f32.mrf.mxu0
    %v3017 = vadd.f32 %v2984, %v3016
    %3018 = vmatmul.f32.gmra.mxu0 %v2749
    %v3019 = vpop.f32.mrf.mxu0
    %v3020 = vadd.f32 %v2987, %v3019
    %3021 = vmatmul.f32.gmra.mxu0 %v2761
    %v3022 = vpop.f32.mrf.mxu0
    %3023 = vmatmul.f32.gmra.mxu0 %v2773
    %v3024 = vpop.f32.mrf.mxu0
    %3025 = vmatmul.f32.gmra.mxu0 %v2785
    %v3026 = vpop.f32.mrf.mxu0
    %v3027 = vadd.f32 %v2994, %v3026
    %3028 = vmatmul.f32.gmra.mxu0 %v2797
    %v3029 = vpop.f32.mrf.mxu0
    %v3030 = vadd.f32 %v2997, %v3029
    %3031 = vdwg.mxu0
    %v3032 = vadd.f32 %v2584, %v3017
    %v3033 = vadd.f32 %v2587, %v3020
    %v3034 = vadd.f32 %v2594, %v3027
    %v3035 = vadd.f32 %v2597, %v3030
    %v3036 = vld [vmem:[#allocation2] sm:$0xf8]
    %v3037 = vld [vmem:[#allocation2 + $0x8] sm:$0xf8]
    %v3038 = vld [vmem:[#allocation2 + $0x10] sm:$0xf8]
    %v3039 = vld [vmem:[#allocation2 + $0x18] sm:$0xf8]
    %v3040 = vld [vmem:[#allocation2 + $0x20] sm:$0xf8]
    %v3041 = vld [vmem:[#allocation2 + $0x28] sm:$0xf8]
    %v3042 = vld [vmem:[#allocation2 + $0x120] sm:$0x7]
    %v3043 = vld [vmem:[#allocation2 + $0x128] sm:$0x7]
    %v3044 = vld [vmem:[#allocation2 + $0x130] sm:$0x7]
    %v3045 = vld [vmem:[#allocation2 + $0x138] sm:$0x7]
    %v3046 = vld [vmem:[#allocation2 + $0x140] sm:$0x7]
    %v3047 = vld [vmem:[#allocation2 + $0x148] sm:$0x7]
    %s3048 = scalar_lea.vmem [#allocation5], 2304
    %v3049 = vld [vmem:[%s3048] sm:$0xff]
    %v3050 = vld [vmem:[%s3048 + $0x8] sm:$0xff]
    %v3051 = vld [vmem:[%s3048 + $0x10] sm:$0xff]
    %v3052 = vld [vmem:[%s3048 + $0x18] sm:$0xff]
    %v3053 = vld [vmem:[%s3048 + $0x20] sm:$0xff]
    %v3054 = vld [vmem:[%s3048 + $0x28] sm:$0xff]
    %v3055 = vld [vmem:[%s3048 + $0x30] sm:$0xff]
    %v3056 = vld [vmem:[%s3048 + $0x38] sm:$0xff]
    %v3057 = vld [vmem:[%s3048 + $0x40] sm:$0xff]
    %v3058 = vld [vmem:[%s3048 + $0x48] sm:$0xff]
    %v3059 = vld [vmem:[%s3048 + $0x50] sm:$0xff]
    %v3060 = vld [vmem:[%s3048 + $0x58] sm:$0xff]
    %v3061 = vld [vmem:[%s3048 + $0x60] sm:$0xff]
    %v3062 = vld [vmem:[%s3048 + $0x68] sm:$0xff]
    %v3063 = vld [vmem:[%s3048 + $0x70] sm:$0xff]
    %v3064 = vld [vmem:[%s3048 + $0x78] sm:$0xff]
    %v3065 = vld [vmem:[%s3048 + $0x80] sm:$0xff]
    %v3066 = vld [vmem:[%s3048 + $0x88] sm:$0xff]
    %v3067 = vld [vmem:[%s3048 + $0x90] sm:$0xff]
    %v3068 = vld [vmem:[%s3048 + $0x98] sm:$0xff]
    %v3069 = vld [vmem:[%s3048 + $0xa0] sm:$0xff]
    %v3070 = vld [vmem:[%s3048 + $0xa8] sm:$0xff]
    %v3071 = vld [vmem:[%s3048 + $0xb0] sm:$0xff]
    %v3072 = vld [vmem:[%s3048 + $0xb8] sm:$0xff]
    %v3073 = vld [vmem:[%s3048 + $0xc0] sm:$0xff]
    %v3074 = vld [vmem:[%s3048 + $0xc8] sm:$0xff]
    %v3075 = vld [vmem:[%s3048 + $0xd0] sm:$0xff]
    %v3076 = vld [vmem:[%s3048 + $0xd8] sm:$0xff]
    %v3077 = vld [vmem:[%s3048 + $0xe0] sm:$0xff]
    %v3078 = vld [vmem:[%s3048 + $0xe8] sm:$0xff]
    %v3079 = vld [vmem:[%s3048 + $0xf0] sm:$0xff]
    %v3080 = vld [vmem:[%s3048 + $0xf8] sm:$0xff]
    %v3081 = vld [vmem:[%s3048 + $0x100] sm:$0xff]
    %v3082 = vld [vmem:[%s3048 + $0x108] sm:$0xff]
    %v3083 = vld [vmem:[%s3048 + $0x110] sm:$0xff]
    %v3084 = vld [vmem:[%s3048 + $0x118] sm:$0xff]
    %v3085 = vld [vmem:[%s3048 + $0x120] sm:$0xff]
    %v3086 = vld [vmem:[%s3048 + $0x128] sm:$0xff]
    %v3087 = vld [vmem:[%s3048 + $0x130] sm:$0xff]
    %v3088 = vld [vmem:[%s3048 + $0x138] sm:$0xff]
    %v3089 = vld [vmem:[%s3048 + $0x140] sm:$0xff]
    %v3090 = vld [vmem:[%s3048 + $0x148] sm:$0xff]
    %v3091 = vld [vmem:[%s3048 + $0x150] sm:$0xff]
    %v3092 = vld [vmem:[%s3048 + $0x158] sm:$0xff]
    %v3093 = vld [vmem:[%s3048 + $0x160] sm:$0xff]
    %v3094 = vld [vmem:[%s3048 + $0x168] sm:$0xff]
    %v3095 = vld [vmem:[%s3048 + $0x170] sm:$0xff]
    %v3096 = vld [vmem:[%s3048 + $0x178] sm:$0xff]
    %v3097 = vld [vmem:[%s3048 + $0x180] sm:$0xff]
    %v3098 = vld [vmem:[%s3048 + $0x188] sm:$0xff]
    %v3099 = vld [vmem:[%s3048 + $0x190] sm:$0xff]
    %v3100 = vld [vmem:[%s3048 + $0x198] sm:$0xff]
    %v3101 = vld [vmem:[%s3048 + $0x1a0] sm:$0xff]
    %v3102 = vld [vmem:[%s3048 + $0x1a8] sm:$0xff]
    %v3103 = vld [vmem:[%s3048 + $0x1b0] sm:$0xff]
    %v3104 = vld [vmem:[%s3048 + $0x1b8] sm:$0xff]
    %v3105 = vld [vmem:[%s3048 + $0x1c0] sm:$0xff]
    %v3106 = vld [vmem:[%s3048 + $0x1c8] sm:$0xff]
    %v3107 = vld [vmem:[%s3048 + $0x1d0] sm:$0xff]
    %v3108 = vld [vmem:[%s3048 + $0x1d8] sm:$0xff]
    %v3109 = vld [vmem:[%s3048 + $0x1e0] sm:$0xff]
    %v3110 = vld [vmem:[%s3048 + $0x1e8] sm:$0xff]
    %v3111 = vld [vmem:[%s3048 + $0x1f0] sm:$0xff]
    %v3112 = vld [vmem:[%s3048 + $0x1f8] sm:$0xff]
    %v3113 = vld [vmem:[%s3048 + $0x200] sm:$0xff]
    %v3114 = vld [vmem:[%s3048 + $0x208] sm:$0xff]
    %v3115 = vld [vmem:[%s3048 + $0x210] sm:$0xff]
    %v3116 = vld [vmem:[%s3048 + $0x218] sm:$0xff]
    %v3117 = vld [vmem:[%s3048 + $0x220] sm:$0xff]
    %v3118 = vld [vmem:[%s3048 + $0x228] sm:$0xff]
    %v3119 = vld [vmem:[%s3048 + $0x230] sm:$0xff]
    %v3120 = vld [vmem:[%s3048 + $0x238] sm:$0xff]
    %v3121 = vld [vmem:[%s3048 + $0x240] sm:$0xff]
    %v3122 = vld [vmem:[%s3048 + $0x248] sm:$0xff]
    %v3123 = vld [vmem:[%s3048 + $0x250] sm:$0xff]
    %v3124 = vld [vmem:[%s3048 + $0x258] sm:$0xff]
    %v3125 = vld [vmem:[%s3048 + $0x260] sm:$0xff]
    %v3126 = vld [vmem:[%s3048 + $0x268] sm:$0xff]
    %v3127 = vld [vmem:[%s3048 + $0x270] sm:$0xff]
    %v3128 = vld [vmem:[%s3048 + $0x278] sm:$0xff]
    %v3129 = vld [vmem:[%s3048 + $0x280] sm:$0xff]
    %v3130 = vld [vmem:[%s3048 + $0x288] sm:$0xff]
    %v3131 = vld [vmem:[%s3048 + $0x290] sm:$0xff]
    %v3132 = vld [vmem:[%s3048 + $0x298] sm:$0xff]
    %v3133 = vld [vmem:[%s3048 + $0x2a0] sm:$0xff]
    %v3134 = vld [vmem:[%s3048 + $0x2a8] sm:$0xff]
    %v3135 = vld [vmem:[%s3048 + $0x2b0] sm:$0xff]
    %v3136 = vld [vmem:[%s3048 + $0x2b8] sm:$0xff]
    %v3137 = vld [vmem:[%s3048 + $0x2c0] sm:$0xff]
    %v3138 = vld [vmem:[%s3048 + $0x2c8] sm:$0xff]
    %v3139 = vld [vmem:[%s3048 + $0x2d0] sm:$0xff]
    %v3140 = vld [vmem:[%s3048 + $0x2d8] sm:$0xff]
    %v3141 = vld [vmem:[%s3048 + $0x2e0] sm:$0xff]
    %v3142 = vld [vmem:[%s3048 + $0x2e8] sm:$0xff]
    %v3143 = vld [vmem:[%s3048 + $0x2f0] sm:$0xff]
    %v3144 = vld [vmem:[%s3048 + $0x2f8] sm:$0xff]
    %vm3157 = vcmask 1044480
    %v3158 = vrot.slane %v3036, 3
    %v3159 = vrot.slane %v1811, 3
    %v3160 = vsel %vm3157, %v3158, %v3159
    %v3161 = vrot.slane %v3037, 3
    %v3162 = vrot.slane %v1812, 3
    %v3163 = vsel %vm3157, %v3161, %v3162
    %v3164 = vrot.slane %v3038, 3
    %v3165 = vrot.slane %v1813, 3
    %v3166 = vsel %vm3157, %v3164, %v3165
    %v3167 = vrot.slane %v3039, 3
    %v3168 = vrot.slane %v1814, 3
    %v3169 = vsel %vm3157, %v3167, %v3168
    %v3170 = vrot.slane %v3040, 3
    %v3171 = vrot.slane %v1815, 3
    %v3172 = vsel %vm3157, %v3170, %v3171
    %v3173 = vrot.slane %v3041, 3
    %v3174 = vrot.slane %v1816, 3
    %v3175 = vsel %vm3157, %v3173, %v3174
    %v3176 = vrot.slane %v1817, 3
    %v3177 = vsel %vm3157, %v3159, %v3176
    %v3178 = vrot.slane %v1818, 3
    %v3179 = vsel %vm3157, %v3162, %v3178
    %v3180 = vrot.slane %v1819, 3
    %v3181 = vsel %vm3157, %v3165, %v3180
    %v3182 = vrot.slane %v1820, 3
    %v3183 = vsel %vm3157, %v3168, %v3182
    %v3184 = vrot.slane %v1821, 3
    %v3185 = vsel %vm3157, %v3171, %v3184
    %v3186 = vrot.slane %v1822, 3
    %v3187 = vsel %vm3157, %v3174, %v3186
    %v3188 = vrot.slane %v1823, 3
    %v3189 = vsel %vm3157, %v3176, %v3188
    %v3190 = vrot.slane %v1824, 3
    %v3191 = vsel %vm3157, %v3178, %v3190
    %v3192 = vrot.slane %v1825, 3
    %v3193 = vsel %vm3157, %v3180, %v3192
    %v3194 = vrot.slane %v1826, 3
    %v3195 = vsel %vm3157, %v3182, %v3194
    %v3196 = vrot.slane %v1827, 3
    %v3197 = vsel %vm3157, %v3184, %v3196
    %v3198 = vrot.slane %v1828, 3
    %v3199 = vsel %vm3157, %v3186, %v3198
    %v3200 = vrot.slane %v1829, 3
    %v3201 = vsel %vm3157, %v3188, %v3200
    %v3202 = vrot.slane %v1830, 3
    %v3203 = vsel %vm3157, %v3190, %v3202
    %v3204 = vrot.slane %v1831, 3
    %v3205 = vsel %vm3157, %v3192, %v3204
    %v3206 = vrot.slane %v1832, 3
    %v3207 = vsel %vm3157, %v3194, %v3206
    %v3208 = vrot.slane %v1833, 3
    %v3209 = vsel %vm3157, %v3196, %v3208
    %v3210 = vrot.slane %v1834, 3
    %v3211 = vsel %vm3157, %v3198, %v3210
    %v3212 = vrot.slane %v1835, 3
    %v3213 = vsel %vm3157, %v3200, %v3212
    %v3214 = vrot.slane %v1836, 3
    %v3215 = vsel %vm3157, %v3202, %v3214
    %v3216 = vrot.slane %v1837, 3
    %v3217 = vsel %vm3157, %v3204, %v3216
    %v3218 = vrot.slane %v1838, 3
    %v3219 = vsel %vm3157, %v3206, %v3218
    %v3220 = vrot.slane %v1839, 3
    %v3221 = vsel %vm3157, %v3208, %v3220
    %v3222 = vrot.slane %v1840, 3
    %v3223 = vsel %vm3157, %v3210, %v3222
    %v3224 = vrot.slane %v3042, 3
    %v3225 = vsel %vm3157, %v3212, %v3224
    %v3226 = vrot.slane %v3043, 3
    %v3227 = vsel %vm3157, %v3214, %v3226
    %v3228 = vrot.slane %v3044, 3
    %v3229 = vsel %vm3157, %v3216, %v3228
    %v3230 = vrot.slane %v3045, 3
    %v3231 = vsel %vm3157, %v3218, %v3230
    %v3232 = vrot.slane %v3046, 3
    %v3233 = vsel %vm3157, %v3220, %v3232
    %v3234 = vrot.slane %v3047, 3
    %v3235 = vsel %vm3157, %v3222, %v3234
    %3272 = vmatpush.msra.mxu0 %v3064
    %3273 = vmatpush.msra.mxu0 %v3063
    %3274 = vmatpush.msra.mxu0 %v3062
    %3275 = vmatpush.msra.mxu0 %v3061
    %3276 = vmatpush.msra.mxu0 %v3060
    %3277 = vmatpush.msra.mxu0 %v3059
    %3278 = vmatpush.msra.mxu0 %v3058
    %3279 = vmatpush.msra.mxu0 %v3057
    %3280 = vmatpush.msra.mxu0 %v3056
    %3281 = vmatpush.msra.mxu0 %v3055
    %3282 = vmatpush.msra.mxu0 %v3054
    %3283 = vmatpush.msra.mxu0 %v3053
    %3284 = vmatpush.msra.mxu0 %v3052
    %3285 = vmatpush.msra.mxu0 %v3051
    %3286 = vmatpush.msra.mxu0 %v3050
    %3287 = vmatpush.msra.mxu0 %v3049
    %3288 = vmatmul.f32.gmra.mxu0 %v3160
    %v3289 = vpop.f32.mrf.mxu0
    %v3290 = vadd.f32 0.0, %v3289
    %3291 = vmatmul.f32.gmra.mxu0 %v3177
    %v3292 = vpop.f32.mrf.mxu0
    %v3293 = vadd.f32 0.0, %v3292
    %3294 = vmatmul.f32.gmra.mxu0 %v3189
    %v3295 = vpop.f32.mrf.mxu0
    %3296 = vmatmul.f32.gmra.mxu0 %v3201
    %v3297 = vpop.f32.mrf.mxu0
    %3298 = vmatmul.f32.gmra.mxu0 %v3213
    %v3299 = vpop.f32.mrf.mxu0
    %v3300 = vadd.f32 0.0, %v3299
    %3301 = vmatmul.f32.gmra.mxu0 %v3225
    %v3302 = vpop.f32.mrf.mxu0
    %v3303 = vadd.f32 0.0, %v3302
    %3304 = vdwg.mxu0
    %3305 = vmatpush.msra.mxu0 %v3080
    %3306 = vmatpush.msra.mxu0 %v3079
    %3307 = vmatpush.msra.mxu0 %v3078
    %3308 = vmatpush.msra.mxu0 %v3077
    %3309 = vmatpush.msra.mxu0 %v3076
    %3310 = vmatpush.msra.mxu0 %v3075
    %3311 = vmatpush.msra.mxu0 %v3074
    %3312 = vmatpush.msra.mxu0 %v3073
    %3313 = vmatpush.msra.mxu0 %v3072
    %3314 = vmatpush.msra.mxu0 %v3071
    %3315 = vmatpush.msra.mxu0 %v3070
    %3316 = vmatpush.msra.mxu0 %v3069
    %3317 = vmatpush.msra.mxu0 %v3068
    %3318 = vmatpush.msra.mxu0 %v3067
    %3319 = vmatpush.msra.mxu0 %v3066
    %3320 = vmatpush.msra.mxu0 %v3065
    %3321 = vmatmul.f32.gmra.mxu0 %v3163
    %v3322 = vpop.f32.mrf.mxu0
    %v3323 = vadd.f32 %v3290, %v3322
    %3324 = vmatmul.f32.gmra.mxu0 %v3179
    %v3325 = vpop.f32.mrf.mxu0
    %v3326 = vadd.f32 %v3293, %v3325
    %3327 = vmatmul.f32.gmra.mxu0 %v3191
    %v3328 = vpop.f32.mrf.mxu0
    %3329 = vmatmul.f32.gmra.mxu0 %v3203
    %v3330 = vpop.f32.mrf.mxu0
    %3331 = vmatmul.f32.gmra.mxu0 %v3215
    %v3332 = vpop.f32.mrf.mxu0
    %v3333 = vadd.f32 %v3300, %v3332
    %3334 = vmatmul.f32.gmra.mxu0 %v3227
    %v3335 = vpop.f32.mrf.mxu0
    %v3336 = vadd.f32 %v3303, %v3335
    %3337 = vdwg.mxu0
    %3338 = vmatpush.msra.mxu0 %v3096
    %3339 = vmatpush.msra.mxu0 %v3095
    %3340 = vmatpush.msra.mxu0 %v3094
    %3341 = vmatpush.msra.mxu0 %v3093
    %3342 = vmatpush.msra.mxu0 %v3092
    %3343 = vmatpush.msra.mxu0 %v3091
    %3344 = vmatpush.msra.mxu0 %v3090
    %3345 = vmatpush.msra.mxu0 %v3089
    %3346 = vmatpush.msra.mxu0 %v3088
    %3347 = vmatpush.msra.mxu0 %v3087
    %3348 = vmatpush.msra.mxu0 %v3086
    %3349 = vmatpush.msra.mxu0 %v3085
    %3350 = vmatpush.msra.mxu0 %v3084
    %3351 = vmatpush.msra.mxu0 %v3083
    %3352 = vmatpush.msra.mxu0 %v3082
    %3353 = vmatpush.msra.mxu0 %v3081
    %3354 = vmatmul.f32.gmra.mxu0 %v3166
    %v3355 = vpop.f32.mrf.mxu0
    %v3356 = vadd.f32 %v3323, %v3355
    %3357 = vmatmul.f32.gmra.mxu0 %v3181
    %v3358 = vpop.f32.mrf.mxu0
    %v3359 = vadd.f32 %v3326, %v3358
    %3360 = vmatmul.f32.gmra.mxu0 %v3193
    %v3361 = vpop.f32.mrf.mxu0
    %3362 = vmatmul.f32.gmra.mxu0 %v3205
    %v3363 = vpop.f32.mrf.mxu0
    %3364 = vmatmul.f32.gmra.mxu0 %v3217
    %v3365 = vpop.f32.mrf.mxu0
    %v3366 = vadd.f32 %v3333, %v3365
    %3367 = vmatmul.f32.gmra.mxu0 %v3229
    %v3368 = vpop.f32.mrf.mxu0
    %v3369 = vadd.f32 %v3336, %v3368
    %3370 = vdwg.mxu0
    %3371 = vmatpush.msra.mxu0 %v3112
    %3372 = vmatpush.msra.mxu0 %v3111
    %3373 = vmatpush.msra.mxu0 %v3110
    %3374 = vmatpush.msra.mxu0 %v3109
    %3375 = vmatpush.msra.mxu0 %v3108
    %3376 = vmatpush.msra.mxu0 %v3107
    %3377 = vmatpush.msra.mxu0 %v3106
    %3378 = vmatpush.msra.mxu0 %v3105
    %3379 = vmatpush.msra.mxu0 %v3104
    %3380 = vmatpush.msra.mxu0 %v3103
    %3381 = vmatpush.msra.mxu0 %v3102
    %3382 = vmatpush.msra.mxu0 %v3101
    %3383 = vmatpush.msra.mxu0 %v3100
    %3384 = vmatpush.msra.mxu0 %v3099
    %3385 = vmatpush.msra.mxu0 %v3098
    %3386 = vmatpush.msra.mxu0 %v3097
    %3387 = vmatmul.f32.gmra.mxu0 %v3169
    %v3388 = vpop.f32.mrf.mxu0
    %v3389 = vadd.f32 %v3356, %v3388
    %3390 = vmatmul.f32.gmra.mxu0 %v3183
    %v3391 = vpop.f32.mrf.mxu0
    %v3392 = vadd.f32 %v3359, %v3391
    %3393 = vmatmul.f32.gmra.mxu0 %v3195
    %v3394 = vpop.f32.mrf.mxu0
    %3395 = vmatmul.f32.gmra.mxu0 %v3207
    %v3396 = vpop.f32.mrf.mxu0
    %3397 = vmatmul.f32.gmra.mxu0 %v3219
    %v3398 = vpop.f32.mrf.mxu0
    %v3399 = vadd.f32 %v3366, %v3398
    %3400 = vmatmul.f32.gmra.mxu0 %v3231
    %v3401 = vpop.f32.mrf.mxu0
    %v3402 = vadd.f32 %v3369, %v3401
    %3403 = vdwg.mxu0
    %3404 = vmatpush.msra.mxu0 %v3128
    %3405 = vmatpush.msra.mxu0 %v3127
    %3406 = vmatpush.msra.mxu0 %v3126
    %3407 = vmatpush.msra.mxu0 %v3125
    %3408 = vmatpush.msra.mxu0 %v3124
    %3409 = vmatpush.msra.mxu0 %v3123
    %3410 = vmatpush.msra.mxu0 %v3122
    %3411 = vmatpush.msra.mxu0 %v3121
    %3412 = vmatpush.msra.mxu0 %v3120
    %3413 = vmatpush.msra.mxu0 %v3119
    %3414 = vmatpush.msra.mxu0 %v3118
    %3415 = vmatpush.msra.mxu0 %v3117
    %3416 = vmatpush.msra.mxu0 %v3116
    %3417 = vmatpush.msra.mxu0 %v3115
    %3418 = vmatpush.msra.mxu0 %v3114
    %3419 = vmatpush.msra.mxu0 %v3113
    %3420 = vmatmul.f32.gmra.mxu0 %v3172
    %v3421 = vpop.f32.mrf.mxu0
    %v3422 = vadd.f32 %v3389, %v3421
    %3423 = vmatmul.f32.gmra.mxu0 %v3185
    %v3424 = vpop.f32.mrf.mxu0
    %v3425 = vadd.f32 %v3392, %v3424
    %3426 = vmatmul.f32.gmra.mxu0 %v3197
    %v3427 = vpop.f32.mrf.mxu0
    %3428 = vmatmul.f32.gmra.mxu0 %v3209
    %v3429 = vpop.f32.mrf.mxu0
    %3430 = vmatmul.f32.gmra.mxu0 %v3221
    %v3431 = vpop.f32.mrf.mxu0
    %v3432 = vadd.f32 %v3399, %v3431
    %3433 = vmatmul.f32.gmra.mxu0 %v3233
    %v3434 = vpop.f32.mrf.mxu0
    %v3435 = vadd.f32 %v3402, %v3434
    %3436 = vdwg.mxu0
    %3437 = vmatpush.msra.mxu0 %v3144
    %3438 = vmatpush.msra.mxu0 %v3143
    %3439 = vmatpush.msra.mxu0 %v3142
    %3440 = vmatpush.msra.mxu0 %v3141
    %3441 = vmatpush.msra.mxu0 %v3140
    %3442 = vmatpush.msra.mxu0 %v3139
    %3443 = vmatpush.msra.mxu0 %v3138
    %3444 = vmatpush.msra.mxu0 %v3137
    %3445 = vmatpush.msra.mxu0 %v3136
    %3446 = vmatpush.msra.mxu0 %v3135
    %3447 = vmatpush.msra.mxu0 %v3134
    %3448 = vmatpush.msra.mxu0 %v3133
    %3449 = vmatpush.msra.mxu0 %v3132
    %3450 = vmatpush.msra.mxu0 %v3131
    %3451 = vmatpush.msra.mxu0 %v3130
    %3452 = vmatpush.msra.mxu0 %v3129
    %3453 = vmatmul.f32.gmra.mxu0 %v3175
    %v3454 = vpop.f32.mrf.mxu0
    %v3455 = vadd.f32 %v3422, %v3454
    %3456 = vmatmul.f32.gmra.mxu0 %v3187
    %v3457 = vpop.f32.mrf.mxu0
    %v3458 = vadd.f32 %v3425, %v3457
    %3459 = vmatmul.f32.gmra.mxu0 %v3199
    %v3460 = vpop.f32.mrf.mxu0
    %3461 = vmatmul.f32.gmra.mxu0 %v3211
    %v3462 = vpop.f32.mrf.mxu0
    %3463 = vmatmul.f32.gmra.mxu0 %v3223
    %v3464 = vpop.f32.mrf.mxu0
    %v3465 = vadd.f32 %v3432, %v3464
    %3466 = vmatmul.f32.gmra.mxu0 %v3235
    %v3467 = vpop.f32.mrf.mxu0
    %v3468 = vadd.f32 %v3435, %v3467
    %3469 = vdwg.mxu0
    %v3470 = vadd.f32 %v3032, %v3455
    %v3471 = vadd.f32 %v3033, %v3458
    %v3472 = vadd.f32 %v3034, %v3465
    %v3473 = vadd.f32 %v3035, %v3468
    %v3474 = vld [vmem:[#allocation2] sm:$0xf0]
    %v3475 = vld [vmem:[#allocation2 + $0x8] sm:$0xf0]
    %v3476 = vld [vmem:[#allocation2 + $0x10] sm:$0xf0]
    %v3477 = vld [vmem:[#allocation2 + $0x18] sm:$0xf0]
    %v3478 = vld [vmem:[#allocation2 + $0x20] sm:$0xf0]
    %v3479 = vld [vmem:[#allocation2 + $0x28] sm:$0xf0]
    %v3480 = vld [vmem:[#allocation2 + $0x120] sm:$0xf]
    %v3481 = vld [vmem:[#allocation2 + $0x128] sm:$0xf]
    %v3482 = vld [vmem:[#allocation2 + $0x130] sm:$0xf]
    %v3483 = vld [vmem:[#allocation2 + $0x138] sm:$0xf]
    %v3484 = vld [vmem:[#allocation2 + $0x140] sm:$0xf]
    %v3485 = vld [vmem:[#allocation2 + $0x148] sm:$0xf]
    %s3486 = scalar_lea.vmem [#allocation5], 3072
    %v3487 = vld [vmem:[%s3486] sm:$0xff]
    %v3488 = vld [vmem:[%s3486 + $0x8] sm:$0xff]
    %v3489 = vld [vmem:[%s3486 + $0x10] sm:$0xff]
    %v3490 = vld [vmem:[%s3486 + $0x18] sm:$0xff]
    %v3491 = vld [vmem:[%s3486 + $0x20] sm:$0xff]
    %v3492 = vld [vmem:[%s3486 + $0x28] sm:$0xff]
    %v3493 = vld [vmem:[%s3486 + $0x30] sm:$0xff]
    %v3494 = vld [vmem:[%s3486 + $0x38] sm:$0xff]
    %v3495 = vld [vmem:[%s3486 + $0x40] sm:$0xff]
    %v3496 = vld [vmem:[%s3486 + $0x48] sm:$0xff]
    %v3497 = vld [vmem:[%s3486 + $0x50] sm:$0xff]
    %v3498 = vld [vmem:[%s3486 + $0x58] sm:$0xff]
    %v3499 = vld [vmem:[%s3486 + $0x60] sm:$0xff]
    %v3500 = vld [vmem:[%s3486 + $0x68] sm:$0xff]
    %v3501 = vld [vmem:[%s3486 + $0x70] sm:$0xff]
    %v3502 = vld [vmem:[%s3486 + $0x78] sm:$0xff]
    %v3503 = vld [vmem:[%s3486 + $0x80] sm:$0xff]
    %v3504 = vld [vmem:[%s3486 + $0x88] sm:$0xff]
    %v3505 = vld [vmem:[%s3486 + $0x90] sm:$0xff]
    %v3506 = vld [vmem:[%s3486 + $0x98] sm:$0xff]
    %v3507 = vld [vmem:[%s3486 + $0xa0] sm:$0xff]
    %v3508 = vld [vmem:[%s3486 + $0xa8] sm:$0xff]
    %v3509 = vld [vmem:[%s3486 + $0xb0] sm:$0xff]
    %v3510 = vld [vmem:[%s3486 + $0xb8] sm:$0xff]
    %v3511 = vld [vmem:[%s3486 + $0xc0] sm:$0xff]
    %v3512 = vld [vmem:[%s3486 + $0xc8] sm:$0xff]
    %v3513 = vld [vmem:[%s3486 + $0xd0] sm:$0xff]
    %v3514 = vld [vmem:[%s3486 + $0xd8] sm:$0xff]
    %v3515 = vld [vmem:[%s3486 + $0xe0] sm:$0xff]
    %v3516 = vld [vmem:[%s3486 + $0xe8] sm:$0xff]
    %v3517 = vld [vmem:[%s3486 + $0xf0] sm:$0xff]
    %v3518 = vld [vmem:[%s3486 + $0xf8] sm:$0xff]
    %v3519 = vld [vmem:[%s3486 + $0x100] sm:$0xff]
    %v3520 = vld [vmem:[%s3486 + $0x108] sm:$0xff]
    %v3521 = vld [vmem:[%s3486 + $0x110] sm:$0xff]
    %v3522 = vld [vmem:[%s3486 + $0x118] sm:$0xff]
    %v3523 = vld [vmem:[%s3486 + $0x120] sm:$0xff]
    %v3524 = vld [vmem:[%s3486 + $0x128] sm:$0xff]
    %v3525 = vld [vmem:[%s3486 + $0x130] sm:$0xff]
    %v3526 = vld [vmem:[%s3486 + $0x138] sm:$0xff]
    %v3527 = vld [vmem:[%s3486 + $0x140] sm:$0xff]
    %v3528 = vld [vmem:[%s3486 + $0x148] sm:$0xff]
    %v3529 = vld [vmem:[%s3486 + $0x150] sm:$0xff]
    %v3530 = vld [vmem:[%s3486 + $0x158] sm:$0xff]
    %v3531 = vld [vmem:[%s3486 + $0x160] sm:$0xff]
    %v3532 = vld [vmem:[%s3486 + $0x168] sm:$0xff]
    %v3533 = vld [vmem:[%s3486 + $0x170] sm:$0xff]
    %v3534 = vld [vmem:[%s3486 + $0x178] sm:$0xff]
    %v3535 = vld [vmem:[%s3486 + $0x180] sm:$0xff]
    %v3536 = vld [vmem:[%s3486 + $0x188] sm:$0xff]
    %v3537 = vld [vmem:[%s3486 + $0x190] sm:$0xff]
    %v3538 = vld [vmem:[%s3486 + $0x198] sm:$0xff]
    %v3539 = vld [vmem:[%s3486 + $0x1a0] sm:$0xff]
    %v3540 = vld [vmem:[%s3486 + $0x1a8] sm:$0xff]
    %v3541 = vld [vmem:[%s3486 + $0x1b0] sm:$0xff]
    %v3542 = vld [vmem:[%s3486 + $0x1b8] sm:$0xff]
    %v3543 = vld [vmem:[%s3486 + $0x1c0] sm:$0xff]
    %v3544 = vld [vmem:[%s3486 + $0x1c8] sm:$0xff]
    %v3545 = vld [vmem:[%s3486 + $0x1d0] sm:$0xff]
    %v3546 = vld [vmem:[%s3486 + $0x1d8] sm:$0xff]
    %v3547 = vld [vmem:[%s3486 + $0x1e0] sm:$0xff]
    %v3548 = vld [vmem:[%s3486 + $0x1e8] sm:$0xff]
    %v3549 = vld [vmem:[%s3486 + $0x1f0] sm:$0xff]
    %v3550 = vld [vmem:[%s3486 + $0x1f8] sm:$0xff]
    %v3551 = vld [vmem:[%s3486 + $0x200] sm:$0xff]
    %v3552 = vld [vmem:[%s3486 + $0x208] sm:$0xff]
    %v3553 = vld [vmem:[%s3486 + $0x210] sm:$0xff]
    %v3554 = vld [vmem:[%s3486 + $0x218] sm:$0xff]
    %v3555 = vld [vmem:[%s3486 + $0x220] sm:$0xff]
    %v3556 = vld [vmem:[%s3486 + $0x228] sm:$0xff]
    %v3557 = vld [vmem:[%s3486 + $0x230] sm:$0xff]
    %v3558 = vld [vmem:[%s3486 + $0x238] sm:$0xff]
    %v3559 = vld [vmem:[%s3486 + $0x240] sm:$0xff]
    %v3560 = vld [vmem:[%s3486 + $0x248] sm:$0xff]
    %v3561 = vld [vmem:[%s3486 + $0x250] sm:$0xff]
    %v3562 = vld [vmem:[%s3486 + $0x258] sm:$0xff]
    %v3563 = vld [vmem:[%s3486 + $0x260] sm:$0xff]
    %v3564 = vld [vmem:[%s3486 + $0x268] sm:$0xff]
    %v3565 = vld [vmem:[%s3486 + $0x270] sm:$0xff]
    %v3566 = vld [vmem:[%s3486 + $0x278] sm:$0xff]
    %v3567 = vld [vmem:[%s3486 + $0x280] sm:$0xff]
    %v3568 = vld [vmem:[%s3486 + $0x288] sm:$0xff]
    %v3569 = vld [vmem:[%s3486 + $0x290] sm:$0xff]
    %v3570 = vld [vmem:[%s3486 + $0x298] sm:$0xff]
    %v3571 = vld [vmem:[%s3486 + $0x2a0] sm:$0xff]
    %v3572 = vld [vmem:[%s3486 + $0x2a8] sm:$0xff]
    %v3573 = vld [vmem:[%s3486 + $0x2b0] sm:$0xff]
    %v3574 = vld [vmem:[%s3486 + $0x2b8] sm:$0xff]
    %v3575 = vld [vmem:[%s3486 + $0x2c0] sm:$0xff]
    %v3576 = vld [vmem:[%s3486 + $0x2c8] sm:$0xff]
    %v3577 = vld [vmem:[%s3486 + $0x2d0] sm:$0xff]
    %v3578 = vld [vmem:[%s3486 + $0x2d8] sm:$0xff]
    %v3579 = vld [vmem:[%s3486 + $0x2e0] sm:$0xff]
    %v3580 = vld [vmem:[%s3486 + $0x2e8] sm:$0xff]
    %v3581 = vld [vmem:[%s3486 + $0x2f0] sm:$0xff]
    %v3582 = vld [vmem:[%s3486 + $0x2f8] sm:$0xff]
    %vm3595 = vcmask 1043456
    %v3596 = vrot.slane %v3474, 4
    %v3597 = vrot.slane %v1811, 4
    %v3598 = vsel %vm3595, %v3596, %v3597
    %v3599 = vrot.slane %v3475, 4
    %v3600 = vrot.slane %v1812, 4
    %v3601 = vsel %vm3595, %v3599, %v3600
    %v3602 = vrot.slane %v3476, 4
    %v3603 = vrot.slane %v1813, 4
    %v3604 = vsel %vm3595, %v3602, %v3603
    %v3605 = vrot.slane %v3477, 4
    %v3606 = vrot.slane %v1814, 4
    %v3607 = vsel %vm3595, %v3605, %v3606
    %v3608 = vrot.slane %v3478, 4
    %v3609 = vrot.slane %v1815, 4
    %v3610 = vsel %vm3595, %v3608, %v3609
    %v3611 = vrot.slane %v3479, 4
    %v3612 = vrot.slane %v1816, 4
    %v3613 = vsel %vm3595, %v3611, %v3612
    %v3614 = vrot.slane %v1817, 4
    %v3615 = vsel %vm3595, %v3597, %v3614
    %v3616 = vrot.slane %v1818, 4
    %v3617 = vsel %vm3595, %v3600, %v3616
    %v3618 = vrot.slane %v1819, 4
    %v3619 = vsel %vm3595, %v3603, %v3618
    %v3620 = vrot.slane %v1820, 4
    %v3621 = vsel %vm3595, %v3606, %v3620
    %v3622 = vrot.slane %v1821, 4
    %v3623 = vsel %vm3595, %v3609, %v3622
    %v3624 = vrot.slane %v1822, 4
    %v3625 = vsel %vm3595, %v3612, %v3624
    %v3626 = vrot.slane %v1823, 4
    %v3627 = vsel %vm3595, %v3614, %v3626
    %v3628 = vrot.slane %v1824, 4
    %v3629 = vsel %vm3595, %v3616, %v3628
    %v3630 = vrot.slane %v1825, 4
    %v3631 = vsel %vm3595, %v3618, %v3630
    %v3632 = vrot.slane %v1826, 4
    %v3633 = vsel %vm3595, %v3620, %v3632
    %v3634 = vrot.slane %v1827, 4
    %v3635 = vsel %vm3595, %v3622, %v3634
    %v3636 = vrot.slane %v1828, 4
    %v3637 = vsel %vm3595, %v3624, %v3636
    %v3638 = vrot.slane %v1829, 4
    %v3639 = vsel %vm3595, %v3626, %v3638
    %v3640 = vrot.slane %v1830, 4
    %v3641 = vsel %vm3595, %v3628, %v3640
    %v3642 = vrot.slane %v1831, 4
    %v3643 = vsel %vm3595, %v3630, %v3642
    %v3644 = vrot.slane %v1832, 4
    %v3645 = vsel %vm3595, %v3632, %v3644
    %v3646 = vrot.slane %v1833, 4
    %v3647 = vsel %vm3595, %v3634, %v3646
    %v3648 = vrot.slane %v1834, 4
    %v3649 = vsel %vm3595, %v3636, %v3648
    %v3650 = vrot.slane %v1835, 4
    %v3651 = vsel %vm3595, %v3638, %v3650
    %v3652 = vrot.slane %v1836, 4
    %v3653 = vsel %vm3595, %v3640, %v3652
    %v3654 = vrot.slane %v1837, 4
    %v3655 = vsel %vm3595, %v3642, %v3654
    %v3656 = vrot.slane %v1838, 4
    %v3657 = vsel %vm3595, %v3644, %v3656
    %v3658 = vrot.slane %v1839, 4
    %v3659 = vsel %vm3595, %v3646, %v3658
    %v3660 = vrot.slane %v1840, 4
    %v3661 = vsel %vm3595, %v3648, %v3660
    %v3662 = vrot.slane %v3480, 4
    %v3663 = vsel %vm3595, %v3650, %v3662
    %v3664 = vrot.slane %v3481, 4
    %v3665 = vsel %vm3595, %v3652, %v3664
    %v3666 = vrot.slane %v3482, 4
    %v3667 = vsel %vm3595, %v3654, %v3666
    %v3668 = vrot.slane %v3483, 4
    %v3669 = vsel %vm3595, %v3656, %v3668
    %v3670 = vrot.slane %v3484, 4
    %v3671 = vsel %vm3595, %v3658, %v3670
    %v3672 = vrot.slane %v3485, 4
    %v3673 = vsel %vm3595, %v3660, %v3672
    %3710 = vmatpush.msra.mxu0 %v3502
    %3711 = vmatpush.msra.mxu0 %v3501
    %3712 = vmatpush.msra.mxu0 %v3500
    %3713 = vmatpush.msra.mxu0 %v3499
    %3714 = vmatpush.msra.mxu0 %v3498
    %3715 = vmatpush.msra.mxu0 %v3497
    %3716 = vmatpush.msra.mxu0 %v3496
    %3717 = vmatpush.msra.mxu0 %v3495
    %3718 = vmatpush.msra.mxu0 %v3494
    %3719 = vmatpush.msra.mxu0 %v3493
    %3720 = vmatpush.msra.mxu0 %v3492
    %3721 = vmatpush.msra.mxu0 %v3491
    %3722 = vmatpush.msra.mxu0 %v3490
    %3723 = vmatpush.msra.mxu0 %v3489
    %3724 = vmatpush.msra.mxu0 %v3488
    %3725 = vmatpush.msra.mxu0 %v3487
    %3726 = vmatmul.f32.gmra.mxu0 %v3598
    %v3727 = vpop.f32.mrf.mxu0
    %v3728 = vadd.f32 0.0, %v3727
    %3729 = vmatmul.f32.gmra.mxu0 %v3615
    %v3730 = vpop.f32.mrf.mxu0
    %v3731 = vadd.f32 0.0, %v3730
    %3732 = vmatmul.f32.gmra.mxu0 %v3627
    %v3733 = vpop.f32.mrf.mxu0
    %3734 = vmatmul.f32.gmra.mxu0 %v3639
    %v3735 = vpop.f32.mrf.mxu0
    %3736 = vmatmul.f32.gmra.mxu0 %v3651
    %v3737 = vpop.f32.mrf.mxu0
    %v3738 = vadd.f32 0.0, %v3737
    %3739 = vmatmul.f32.gmra.mxu0 %v3663
    %v3740 = vpop.f32.mrf.mxu0
    %v3741 = vadd.f32 0.0, %v3740
    %3742 = vdwg.mxu0
    %3743 = vmatpush.msra.mxu0 %v3518
    %3744 = vmatpush.msra.mxu0 %v3517
    %3745 = vmatpush.msra.mxu0 %v3516
    %3746 = vmatpush.msra.mxu0 %v3515
    %3747 = vmatpush.msra.mxu0 %v3514
    %3748 = vmatpush.msra.mxu0 %v3513
    %3749 = vmatpush.msra.mxu0 %v3512
    %3750 = vmatpush.msra.mxu0 %v3511
    %3751 = vmatpush.msra.mxu0 %v3510
    %3752 = vmatpush.msra.mxu0 %v3509
    %3753 = vmatpush.msra.mxu0 %v3508
    %3754 = vmatpush.msra.mxu0 %v3507
    %3755 = vmatpush.msra.mxu0 %v3506
    %3756 = vmatpush.msra.mxu0 %v3505
    %3757 = vmatpush.msra.mxu0 %v3504
    %3758 = vmatpush.msra.mxu0 %v3503
    %3759 = vmatmul.f32.gmra.mxu0 %v3601
    %v3760 = vpop.f32.mrf.mxu0
    %v3761 = vadd.f32 %v3728, %v3760
    %3762 = vmatmul.f32.gmra.mxu0 %v3617
    %v3763 = vpop.f32.mrf.mxu0
    %v3764 = vadd.f32 %v3731, %v3763
    %3765 = vmatmul.f32.gmra.mxu0 %v3629
    %v3766 = vpop.f32.mrf.mxu0
    %3767 = vmatmul.f32.gmra.mxu0 %v3641
    %v3768 = vpop.f32.mrf.mxu0
    %3769 = vmatmul.f32.gmra.mxu0 %v3653
    %v3770 = vpop.f32.mrf.mxu0
    %v3771 = vadd.f32 %v3738, %v3770
    %3772 = vmatmul.f32.gmra.mxu0 %v3665
    %v3773 = vpop.f32.mrf.mxu0
    %v3774 = vadd.f32 %v3741, %v3773
    %3775 = vdwg.mxu0
    %3776 = vmatpush.msra.mxu0 %v3534
    %3777 = vmatpush.msra.mxu0 %v3533
    %3778 = vmatpush.msra.mxu0 %v3532
    %3779 = vmatpush.msra.mxu0 %v3531
    %3780 = vmatpush.msra.mxu0 %v3530
    %3781 = vmatpush.msra.mxu0 %v3529
    %3782 = vmatpush.msra.mxu0 %v3528
    %3783 = vmatpush.msra.mxu0 %v3527
    %3784 = vmatpush.msra.mxu0 %v3526
    %3785 = vmatpush.msra.mxu0 %v3525
    %3786 = vmatpush.msra.mxu0 %v3524
    %3787 = vmatpush.msra.mxu0 %v3523
    %3788 = vmatpush.msra.mxu0 %v3522
    %3789 = vmatpush.msra.mxu0 %v3521
    %3790 = vmatpush.msra.mxu0 %v3520
    %3791 = vmatpush.msra.mxu0 %v3519
    %3792 = vmatmul.f32.gmra.mxu0 %v3604
    %v3793 = vpop.f32.mrf.mxu0
    %v3794 = vadd.f32 %v3761, %v3793
    %3795 = vmatmul.f32.gmra.mxu0 %v3619
    %v3796 = vpop.f32.mrf.mxu0
    %v3797 = vadd.f32 %v3764, %v3796
    %3798 = vmatmul.f32.gmra.mxu0 %v3631
    %v3799 = vpop.f32.mrf.mxu0
    %3800 = vmatmul.f32.gmra.mxu0 %v3643
    %v3801 = vpop.f32.mrf.mxu0
    %3802 = vmatmul.f32.gmra.mxu0 %v3655
    %v3803 = vpop.f32.mrf.mxu0
    %v3804 = vadd.f32 %v3771, %v3803
    %3805 = vmatmul.f32.gmra.mxu0 %v3667
    %v3806 = vpop.f32.mrf.mxu0
    %v3807 = vadd.f32 %v3774, %v3806
    %3808 = vdwg.mxu0
    %3809 = vmatpush.msra.mxu0 %v3550
    %3810 = vmatpush.msra.mxu0 %v3549
    %3811 = vmatpush.msra.mxu0 %v3548
    %3812 = vmatpush.msra.mxu0 %v3547
    %3813 = vmatpush.msra.mxu0 %v3546
    %3814 = vmatpush.msra.mxu0 %v3545
    %3815 = vmatpush.msra.mxu0 %v3544
    %3816 = vmatpush.msra.mxu0 %v3543
    %3817 = vmatpush.msra.mxu0 %v3542
    %3818 = vmatpush.msra.mxu0 %v3541
    %3819 = vmatpush.msra.mxu0 %v3540
    %3820 = vmatpush.msra.mxu0 %v3539
    %3821 = vmatpush.msra.mxu0 %v3538
    %3822 = vmatpush.msra.mxu0 %v3537
    %3823 = vmatpush.msra.mxu0 %v3536
    %3824 = vmatpush.msra.mxu0 %v3535
    %3825 = vmatmul.f32.gmra.mxu0 %v3607
    %v3826 = vpop.f32.mrf.mxu0
    %v3827 = vadd.f32 %v3794, %v3826
    %3828 = vmatmul.f32.gmra.mxu0 %v3621
    %v3829 = vpop.f32.mrf.mxu0
    %v3830 = vadd.f32 %v3797, %v3829
    %3831 = vmatmul.f32.gmra.mxu0 %v3633
    %v3832 = vpop.f32.mrf.mxu0
    %3833 = vmatmul.f32.gmra.mxu0 %v3645
    %v3834 = vpop.f32.mrf.mxu0
    %3835 = vmatmul.f32.gmra.mxu0 %v3657
    %v3836 = vpop.f32.mrf.mxu0
    %v3837 = vadd.f32 %v3804, %v3836
    %3838 = vmatmul.f32.gmra.mxu0 %v3669
    %v3839 = vpop.f32.mrf.mxu0
    %v3840 = vadd.f32 %v3807, %v3839
    %3841 = vdwg.mxu0
    %3842 = vmatpush.msra.mxu0 %v3566
    %3843 = vmatpush.msra.mxu0 %v3565
    %3844 = vmatpush.msra.mxu0 %v3564
    %3845 = vmatpush.msra.mxu0 %v3563
    %3846 = vmatpush.msra.mxu0 %v3562
    %3847 = vmatpush.msra.mxu0 %v3561
    %3848 = vmatpush.msra.mxu0 %v3560
    %3849 = vmatpush.msra.mxu0 %v3559
    %3850 = vmatpush.msra.mxu0 %v3558
    %3851 = vmatpush.msra.mxu0 %v3557
    %3852 = vmatpush.msra.mxu0 %v3556
    %3853 = vmatpush.msra.mxu0 %v3555
    %3854 = vmatpush.msra.mxu0 %v3554
    %3855 = vmatpush.msra.mxu0 %v3553
    %3856 = vmatpush.msra.mxu0 %v3552
    %3857 = vmatpush.msra.mxu0 %v3551
    %3858 = vmatmul.f32.gmra.mxu0 %v3610
    %v3859 = vpop.f32.mrf.mxu0
    %v3860 = vadd.f32 %v3827, %v3859
    %3861 = vmatmul.f32.gmra.mxu0 %v3623
    %v3862 = vpop.f32.mrf.mxu0
    %v3863 = vadd.f32 %v3830, %v3862
    %3864 = vmatmul.f32.gmra.mxu0 %v3635
    %v3865 = vpop.f32.mrf.mxu0
    %3866 = vmatmul.f32.gmra.mxu0 %v3647
    %v3867 = vpop.f32.mrf.mxu0
    %3868 = vmatmul.f32.gmra.mxu0 %v3659
    %v3869 = vpop.f32.mrf.mxu0
    %v3870 = vadd.f32 %v3837, %v3869
    %3871 = vmatmul.f32.gmra.mxu0 %v3671
    %v3872 = vpop.f32.mrf.mxu0
    %v3873 = vadd.f32 %v3840, %v3872
    %3874 = vdwg.mxu0
    %3875 = vmatpush.msra.mxu0 %v3582
    %3876 = vmatpush.msra.mxu0 %v3581
    %3877 = vmatpush.msra.mxu0 %v3580
    %3878 = vmatpush.msra.mxu0 %v3579
    %3879 = vmatpush.msra.mxu0 %v3578
    %3880 = vmatpush.msra.mxu0 %v3577
    %3881 = vmatpush.msra.mxu0 %v3576
    %3882 = vmatpush.msra.mxu0 %v3575
    %3883 = vmatpush.msra.mxu0 %v3574
    %3884 = vmatpush.msra.mxu0 %v3573
    %3885 = vmatpush.msra.mxu0 %v3572
    %3886 = vmatpush.msra.mxu0 %v3571
    %3887 = vmatpush.msra.mxu0 %v3570
    %3888 = vmatpush.msra.mxu0 %v3569
    %3889 = vmatpush.msra.mxu0 %v3568
    %3890 = vmatpush.msra.mxu0 %v3567
    %3891 = vmatmul.f32.gmra.mxu0 %v3613
    %v3892 = vpop.f32.mrf.mxu0
    %v3893 = vadd.f32 %v3860, %v3892
    %3894 = vmatmul.f32.gmra.mxu0 %v3625
    %v3895 = vpop.f32.mrf.mxu0
    %v3896 = vadd.f32 %v3863, %v3895
    %3897 = vmatmul.f32.gmra.mxu0 %v3637
    %v3898 = vpop.f32.mrf.mxu0
    %3899 = vmatmul.f32.gmra.mxu0 %v3649
    %v3900 = vpop.f32.mrf.mxu0
    %3901 = vmatmul.f32.gmra.mxu0 %v3661
    %v3902 = vpop.f32.mrf.mxu0
    %v3903 = vadd.f32 %v3870, %v3902
    %3904 = vmatmul.f32.gmra.mxu0 %v3673
    %v3905 = vpop.f32.mrf.mxu0
    %v3906 = vadd.f32 %v3873, %v3905
    %3907 = vdwg.mxu0
    %v3908 = vadd.f32 %v3470, %v3893
    %v3909 = vadd.f32 %v3471, %v3896
    %v3910 = vadd.f32 %v3472, %v3903
    %v3911 = vadd.f32 %v3473, %v3906
    %v3912 = vld [vmem:[#allocation2] sm:$0xe0]
    %v3913 = vld [vmem:[#allocation2 + $0x8] sm:$0xe0]
    %v3914 = vld [vmem:[#allocation2 + $0x10] sm:$0xe0]
    %v3915 = vld [vmem:[#allocation2 + $0x18] sm:$0xe0]
    %v3916 = vld [vmem:[#allocation2 + $0x20] sm:$0xe0]
    %v3917 = vld [vmem:[#allocation2 + $0x28] sm:$0xe0]
    %v3918 = vld [vmem:[#allocation2 + $0x120] sm:$0x1f]
    %v3919 = vld [vmem:[#allocation2 + $0x128] sm:$0x1f]
    %v3920 = vld [vmem:[#allocation2 + $0x130] sm:$0x1f]
    %v3921 = vld [vmem:[#allocation2 + $0x138] sm:$0x1f]
    %v3922 = vld [vmem:[#allocation2 + $0x140] sm:$0x1f]
    %v3923 = vld [vmem:[#allocation2 + $0x148] sm:$0x1f]
    %s3924 = scalar_lea.vmem [#allocation5], 3840
    %v3925 = vld [vmem:[%s3924] sm:$0xff]
    %v3926 = vld [vmem:[%s3924 + $0x8] sm:$0xff]
    %v3927 = vld [vmem:[%s3924 + $0x10] sm:$0xff]
    %v3928 = vld [vmem:[%s3924 + $0x18] sm:$0xff]
    %v3929 = vld [vmem:[%s3924 + $0x20] sm:$0xff]
    %v3930 = vld [vmem:[%s3924 + $0x28] sm:$0xff]
    %v3931 = vld [vmem:[%s3924 + $0x30] sm:$0xff]
    %v3932 = vld [vmem:[%s3924 + $0x38] sm:$0xff]
    %v3933 = vld [vmem:[%s3924 + $0x40] sm:$0xff]
    %v3934 = vld [vmem:[%s3924 + $0x48] sm:$0xff]
    %v3935 = vld [vmem:[%s3924 + $0x50] sm:$0xff]
    %v3936 = vld [vmem:[%s3924 + $0x58] sm:$0xff]
    %v3937 = vld [vmem:[%s3924 + $0x60] sm:$0xff]
    %v3938 = vld [vmem:[%s3924 + $0x68] sm:$0xff]
    %v3939 = vld [vmem:[%s3924 + $0x70] sm:$0xff]
    %v3940 = vld [vmem:[%s3924 + $0x78] sm:$0xff]
    %v3941 = vld [vmem:[%s3924 + $0x80] sm:$0xff]
    %v3942 = vld [vmem:[%s3924 + $0x88] sm:$0xff]
    %v3943 = vld [vmem:[%s3924 + $0x90] sm:$0xff]
    %v3944 = vld [vmem:[%s3924 + $0x98] sm:$0xff]
    %v3945 = vld [vmem:[%s3924 + $0xa0] sm:$0xff]
    %v3946 = vld [vmem:[%s3924 + $0xa8] sm:$0xff]
    %v3947 = vld [vmem:[%s3924 + $0xb0] sm:$0xff]
    %v3948 = vld [vmem:[%s3924 + $0xb8] sm:$0xff]
    %v3949 = vld [vmem:[%s3924 + $0xc0] sm:$0xff]
    %v3950 = vld [vmem:[%s3924 + $0xc8] sm:$0xff]
    %v3951 = vld [vmem:[%s3924 + $0xd0] sm:$0xff]
    %v3952 = vld [vmem:[%s3924 + $0xd8] sm:$0xff]
    %v3953 = vld [vmem:[%s3924 + $0xe0] sm:$0xff]
    %v3954 = vld [vmem:[%s3924 + $0xe8] sm:$0xff]
    %v3955 = vld [vmem:[%s3924 + $0xf0] sm:$0xff]
    %v3956 = vld [vmem:[%s3924 + $0xf8] sm:$0xff]
    %v3957 = vld [vmem:[%s3924 + $0x100] sm:$0xff]
    %v3958 = vld [vmem:[%s3924 + $0x108] sm:$0xff]
    %v3959 = vld [vmem:[%s3924 + $0x110] sm:$0xff]
    %v3960 = vld [vmem:[%s3924 + $0x118] sm:$0xff]
    %v3961 = vld [vmem:[%s3924 + $0x120] sm:$0xff]
    %v3962 = vld [vmem:[%s3924 + $0x128] sm:$0xff]
    %v3963 = vld [vmem:[%s3924 + $0x130] sm:$0xff]
    %v3964 = vld [vmem:[%s3924 + $0x138] sm:$0xff]
    %v3965 = vld [vmem:[%s3924 + $0x140] sm:$0xff]
    %v3966 = vld [vmem:[%s3924 + $0x148] sm:$0xff]
    %v3967 = vld [vmem:[%s3924 + $0x150] sm:$0xff]
    %v3968 = vld [vmem:[%s3924 + $0x158] sm:$0xff]
    %v3969 = vld [vmem:[%s3924 + $0x160] sm:$0xff]
    %v3970 = vld [vmem:[%s3924 + $0x168] sm:$0xff]
    %v3971 = vld [vmem:[%s3924 + $0x170] sm:$0xff]
    %v3972 = vld [vmem:[%s3924 + $0x178] sm:$0xff]
    %v3973 = vld [vmem:[%s3924 + $0x180] sm:$0xff]
    %v3974 = vld [vmem:[%s3924 + $0x188] sm:$0xff]
    %v3975 = vld [vmem:[%s3924 + $0x190] sm:$0xff]
    %v3976 = vld [vmem:[%s3924 + $0x198] sm:$0xff]
    %v3977 = vld [vmem:[%s3924 + $0x1a0] sm:$0xff]
    %v3978 = vld [vmem:[%s3924 + $0x1a8] sm:$0xff]
    %v3979 = vld [vmem:[%s3924 + $0x1b0] sm:$0xff]
    %v3980 = vld [vmem:[%s3924 + $0x1b8] sm:$0xff]
    %v3981 = vld [vmem:[%s3924 + $0x1c0] sm:$0xff]
    %v3982 = vld [vmem:[%s3924 + $0x1c8] sm:$0xff]
    %v3983 = vld [vmem:[%s3924 + $0x1d0] sm:$0xff]
    %v3984 = vld [vmem:[%s3924 + $0x1d8] sm:$0xff]
    %v3985 = vld [vmem:[%s3924 + $0x1e0] sm:$0xff]
    %v3986 = vld [vmem:[%s3924 + $0x1e8] sm:$0xff]
    %v3987 = vld [vmem:[%s3924 + $0x1f0] sm:$0xff]
    %v3988 = vld [vmem:[%s3924 + $0x1f8] sm:$0xff]
    %v3989 = vld [vmem:[%s3924 + $0x200] sm:$0xff]
    %v3990 = vld [vmem:[%s3924 + $0x208] sm:$0xff]
    %v3991 = vld [vmem:[%s3924 + $0x210] sm:$0xff]
    %v3992 = vld [vmem:[%s3924 + $0x218] sm:$0xff]
    %v3993 = vld [vmem:[%s3924 + $0x220] sm:$0xff]
    %v3994 = vld [vmem:[%s3924 + $0x228] sm:$0xff]
    %v3995 = vld [vmem:[%s3924 + $0x230] sm:$0xff]
    %v3996 = vld [vmem:[%s3924 + $0x238] sm:$0xff]
    %v3997 = vld [vmem:[%s3924 + $0x240] sm:$0xff]
    %v3998 = vld [vmem:[%s3924 + $0x248] sm:$0xff]
    %v3999 = vld [vmem:[%s3924 + $0x250] sm:$0xff]
    %v4000 = vld [vmem:[%s3924 + $0x258] sm:$0xff]
    %v4001 = vld [vmem:[%s3924 + $0x260] sm:$0xff]
    %v4002 = vld [vmem:[%s3924 + $0x268] sm:$0xff]
    %v4003 = vld [vmem:[%s3924 + $0x270] sm:$0xff]
    %v4004 = vld [vmem:[%s3924 + $0x278] sm:$0xff]
    %v4005 = vld [vmem:[%s3924 + $0x280] sm:$0xff]
    %v4006 = vld [vmem:[%s3924 + $0x288] sm:$0xff]
    %v4007 = vld [vmem:[%s3924 + $0x290] sm:$0xff]
    %v4008 = vld [vmem:[%s3924 + $0x298] sm:$0xff]
    %v4009 = vld [vmem:[%s3924 + $0x2a0] sm:$0xff]
    %v4010 = vld [vmem:[%s3924 + $0x2a8] sm:$0xff]
    %v4011 = vld [vmem:[%s3924 + $0x2b0] sm:$0xff]
    %v4012 = vld [vmem:[%s3924 + $0x2b8] sm:$0xff]
    %v4013 = vld [vmem:[%s3924 + $0x2c0] sm:$0xff]
    %v4014 = vld [vmem:[%s3924 + $0x2c8] sm:$0xff]
    %v4015 = vld [vmem:[%s3924 + $0x2d0] sm:$0xff]
    %v4016 = vld [vmem:[%s3924 + $0x2d8] sm:$0xff]
    %v4017 = vld [vmem:[%s3924 + $0x2e0] sm:$0xff]
    %v4018 = vld [vmem:[%s3924 + $0x2e8] sm:$0xff]
    %v4019 = vld [vmem:[%s3924 + $0x2f0] sm:$0xff]
    %v4020 = vld [vmem:[%s3924 + $0x2f8] sm:$0xff]
    %vm4033 = vcmask 1042432
    %v4034 = vrot.slane %v3912, 5
    %v4035 = vrot.slane %v1811, 5
    %v4036 = vsel %vm4033, %v4034, %v4035
    %v4037 = vrot.slane %v3913, 5
    %v4038 = vrot.slane %v1812, 5
    %v4039 = vsel %vm4033, %v4037, %v4038
    %v4040 = vrot.slane %v3914, 5
    %v4041 = vrot.slane %v1813, 5
    %v4042 = vsel %vm4033, %v4040, %v4041
    %v4043 = vrot.slane %v3915, 5
    %v4044 = vrot.slane %v1814, 5
    %v4045 = vsel %vm4033, %v4043, %v4044
    %v4046 = vrot.slane %v3916, 5
    %v4047 = vrot.slane %v1815, 5
    %v4048 = vsel %vm4033, %v4046, %v4047
    %v4049 = vrot.slane %v3917, 5
    %v4050 = vrot.slane %v1816, 5
    %v4051 = vsel %vm4033, %v4049, %v4050
    %v4052 = vrot.slane %v1817, 5
    %v4053 = vsel %vm4033, %v4035, %v4052
    %v4054 = vrot.slane %v1818, 5
    %v4055 = vsel %vm4033, %v4038, %v4054
    %v4056 = vrot.slane %v1819, 5
    %v4057 = vsel %vm4033, %v4041, %v4056
    %v4058 = vrot.slane %v1820, 5
    %v4059 = vsel %vm4033, %v4044, %v4058
    %v4060 = vrot.slane %v1821, 5
    %v4061 = vsel %vm4033, %v4047, %v4060
    %v4062 = vrot.slane %v1822, 5
    %v4063 = vsel %vm4033, %v4050, %v4062
    %v4064 = vrot.slane %v1823, 5
    %v4065 = vsel %vm4033, %v4052, %v4064
    %v4066 = vrot.slane %v1824, 5
    %v4067 = vsel %vm4033, %v4054, %v4066
    %v4068 = vrot.slane %v1825, 5
    %v4069 = vsel %vm4033, %v4056, %v4068
    %v4070 = vrot.slane %v1826, 5
    %v4071 = vsel %vm4033, %v4058, %v4070
    %v4072 = vrot.slane %v1827, 5
    %v4073 = vsel %vm4033, %v4060, %v4072
    %v4074 = vrot.slane %v1828, 5
    %v4075 = vsel %vm4033, %v4062, %v4074
    %v4076 = vrot.slane %v1829, 5
    %v4077 = vsel %vm4033, %v4064, %v4076
    %v4078 = vrot.slane %v1830, 5
    %v4079 = vsel %vm4033, %v4066, %v4078
    %v4080 = vrot.slane %v1831, 5
    %v4081 = vsel %vm4033, %v4068, %v4080
    %v4082 = vrot.slane %v1832, 5
    %v4083 = vsel %vm4033, %v4070, %v4082
    %v4084 = vrot.slane %v1833, 5
    %v4085 = vsel %vm4033, %v4072, %v4084
    %v4086 = vrot.slane %v1834, 5
    %v4087 = vsel %vm4033, %v4074, %v4086
    %v4088 = vrot.slane %v1835, 5
    %v4089 = vsel %vm4033, %v4076, %v4088
    %v4090 = vrot.slane %v1836, 5
    %v4091 = vsel %vm4033, %v4078, %v4090
    %v4092 = vrot.slane %v1837, 5
    %v4093 = vsel %vm4033, %v4080, %v4092
    %v4094 = vrot.slane %v1838, 5
    %v4095 = vsel %vm4033, %v4082, %v4094
    %v4096 = vrot.slane %v1839, 5
    %v4097 = vsel %vm4033, %v4084, %v4096
    %v4098 = vrot.slane %v1840, 5
    %v4099 = vsel %vm4033, %v4086, %v4098
    %v4100 = vrot.slane %v3918, 5
    %v4101 = vsel %vm4033, %v4088, %v4100
    %v4102 = vrot.slane %v3919, 5
    %v4103 = vsel %vm4033, %v4090, %v4102
    %v4104 = vrot.slane %v3920, 5
    %v4105 = vsel %vm4033, %v4092, %v4104
    %v4106 = vrot.slane %v3921, 5
    %v4107 = vsel %vm4033, %v4094, %v4106
    %v4108 = vrot.slane %v3922, 5
    %v4109 = vsel %vm4033, %v4096, %v4108
    %v4110 = vrot.slane %v3923, 5
    %v4111 = vsel %vm4033, %v4098, %v4110
    %4148 = vmatpush.msra.mxu0 %v3940
    %4149 = vmatpush.msra.mxu0 %v3939
    %4150 = vmatpush.msra.mxu0 %v3938
    %4151 = vmatpush.msra.mxu0 %v3937
    %4152 = vmatpush.msra.mxu0 %v3936
    %4153 = vmatpush.msra.mxu0 %v3935
    %4154 = vmatpush.msra.mxu0 %v3934
    %4155 = vmatpush.msra.mxu0 %v3933
    %4156 = vmatpush.msra.mxu0 %v3932
    %4157 = vmatpush.msra.mxu0 %v3931
    %4158 = vmatpush.msra.mxu0 %v3930
    %4159 = vmatpush.msra.mxu0 %v3929
    %4160 = vmatpush.msra.mxu0 %v3928
    %4161 = vmatpush.msra.mxu0 %v3927
    %4162 = vmatpush.msra.mxu0 %v3926
    %4163 = vmatpush.msra.mxu0 %v3925
    %4164 = vmatmul.f32.gmra.mxu0 %v4036
    %v4165 = vpop.f32.mrf.mxu0
    %v4166 = vadd.f32 0.0, %v4165
    %4167 = vmatmul.f32.gmra.mxu0 %v4053
    %v4168 = vpop.f32.mrf.mxu0
    %v4169 = vadd.f32 0.0, %v4168
    %4170 = vmatmul.f32.gmra.mxu0 %v4065
    %v4171 = vpop.f32.mrf.mxu0
    %4172 = vmatmul.f32.gmra.mxu0 %v4077
    %v4173 = vpop.f32.mrf.mxu0
    %4174 = vmatmul.f32.gmra.mxu0 %v4089
    %v4175 = vpop.f32.mrf.mxu0
    %v4176 = vadd.f32 0.0, %v4175
    %4177 = vmatmul.f32.gmra.mxu0 %v4101
    %v4178 = vpop.f32.mrf.mxu0
    %v4179 = vadd.f32 0.0, %v4178
    %4180 = vdwg.mxu0
    %4181 = vmatpush.msra.mxu0 %v3956
    %4182 = vmatpush.msra.mxu0 %v3955
    %4183 = vmatpush.msra.mxu0 %v3954
    %4184 = vmatpush.msra.mxu0 %v3953
    %4185 = vmatpush.msra.mxu0 %v3952
    %4186 = vmatpush.msra.mxu0 %v3951
    %4187 = vmatpush.msra.mxu0 %v3950
    %4188 = vmatpush.msra.mxu0 %v3949
    %4189 = vmatpush.msra.mxu0 %v3948
    %4190 = vmatpush.msra.mxu0 %v3947
    %4191 = vmatpush.msra.mxu0 %v3946
    %4192 = vmatpush.msra.mxu0 %v3945
    %4193 = vmatpush.msra.mxu0 %v3944
    %4194 = vmatpush.msra.mxu0 %v3943
    %4195 = vmatpush.msra.mxu0 %v3942
    %4196 = vmatpush.msra.mxu0 %v3941
    %4197 = vmatmul.f32.gmra.mxu0 %v4039
    %v4198 = vpop.f32.mrf.mxu0
    %v4199 = vadd.f32 %v4166, %v4198
    %4200 = vmatmul.f32.gmra.mxu0 %v4055
    %v4201 = vpop.f32.mrf.mxu0
    %v4202 = vadd.f32 %v4169, %v4201
    %4203 = vmatmul.f32.gmra.mxu0 %v4067
    %v4204 = vpop.f32.mrf.mxu0
    %4205 = vmatmul.f32.gmra.mxu0 %v4079
    %v4206 = vpop.f32.mrf.mxu0
    %4207 = vmatmul.f32.gmra.mxu0 %v4091
    %v4208 = vpop.f32.mrf.mxu0
    %v4209 = vadd.f32 %v4176, %v4208
    %4210 = vmatmul.f32.gmra.mxu0 %v4103
    %v4211 = vpop.f32.mrf.mxu0
    %v4212 = vadd.f32 %v4179, %v4211
    %4213 = vdwg.mxu0
    %4214 = vmatpush.msra.mxu0 %v3972
    %4215 = vmatpush.msra.mxu0 %v3971
    %4216 = vmatpush.msra.mxu0 %v3970
    %4217 = vmatpush.msra.mxu0 %v3969
    %4218 = vmatpush.msra.mxu0 %v3968
    %4219 = vmatpush.msra.mxu0 %v3967
    %4220 = vmatpush.msra.mxu0 %v3966
    %4221 = vmatpush.msra.mxu0 %v3965
    %4222 = vmatpush.msra.mxu0 %v3964
    %4223 = vmatpush.msra.mxu0 %v3963
    %4224 = vmatpush.msra.mxu0 %v3962
    %4225 = vmatpush.msra.mxu0 %v3961
    %4226 = vmatpush.msra.mxu0 %v3960
    %4227 = vmatpush.msra.mxu0 %v3959
    %4228 = vmatpush.msra.mxu0 %v3958
    %4229 = vmatpush.msra.mxu0 %v3957
    %4230 = vmatmul.f32.gmra.mxu0 %v4042
    %v4231 = vpop.f32.mrf.mxu0
    %v4232 = vadd.f32 %v4199, %v4231
    %4233 = vmatmul.f32.gmra.mxu0 %v4057
    %v4234 = vpop.f32.mrf.mxu0
    %v4235 = vadd.f32 %v4202, %v4234
    %4236 = vmatmul.f32.gmra.mxu0 %v4069
    %v4237 = vpop.f32.mrf.mxu0
    %4238 = vmatmul.f32.gmra.mxu0 %v4081
    %v4239 = vpop.f32.mrf.mxu0
    %4240 = vmatmul.f32.gmra.mxu0 %v4093
    %v4241 = vpop.f32.mrf.mxu0
    %v4242 = vadd.f32 %v4209, %v4241
    %4243 = vmatmul.f32.gmra.mxu0 %v4105
    %v4244 = vpop.f32.mrf.mxu0
    %v4245 = vadd.f32 %v4212, %v4244
    %4246 = vdwg.mxu0
    %4247 = vmatpush.msra.mxu0 %v3988
    %4248 = vmatpush.msra.mxu0 %v3987
    %4249 = vmatpush.msra.mxu0 %v3986
    %4250 = vmatpush.msra.mxu0 %v3985
    %4251 = vmatpush.msra.mxu0 %v3984
    %4252 = vmatpush.msra.mxu0 %v3983
    %4253 = vmatpush.msra.mxu0 %v3982
    %4254 = vmatpush.msra.mxu0 %v3981
    %4255 = vmatpush.msra.mxu0 %v3980
    %4256 = vmatpush.msra.mxu0 %v3979
    %4257 = vmatpush.msra.mxu0 %v3978
    %4258 = vmatpush.msra.mxu0 %v3977
    %4259 = vmatpush.msra.mxu0 %v3976
    %4260 = vmatpush.msra.mxu0 %v3975
    %4261 = vmatpush.msra.mxu0 %v3974
    %4262 = vmatpush.msra.mxu0 %v3973
    %4263 = vmatmul.f32.gmra.mxu0 %v4045
    %v4264 = vpop.f32.mrf.mxu0
    %v4265 = vadd.f32 %v4232, %v4264
    %4266 = vmatmul.f32.gmra.mxu0 %v4059
    %v4267 = vpop.f32.mrf.mxu0
    %v4268 = vadd.f32 %v4235, %v4267
    %4269 = vmatmul.f32.gmra.mxu0 %v4071
    %v4270 = vpop.f32.mrf.mxu0
    %4271 = vmatmul.f32.gmra.mxu0 %v4083
    %v4272 = vpop.f32.mrf.mxu0
    %4273 = vmatmul.f32.gmra.mxu0 %v4095
    %v4274 = vpop.f32.mrf.mxu0
    %v4275 = vadd.f32 %v4242, %v4274
    %4276 = vmatmul.f32.gmra.mxu0 %v4107
    %v4277 = vpop.f32.mrf.mxu0
    %v4278 = vadd.f32 %v4245, %v4277
    %4279 = vdwg.mxu0
    %4280 = vmatpush.msra.mxu0 %v4004
    %4281 = vmatpush.msra.mxu0 %v4003
    %4282 = vmatpush.msra.mxu0 %v4002
    %4283 = vmatpush.msra.mxu0 %v4001
    %4284 = vmatpush.msra.mxu0 %v4000
    %4285 = vmatpush.msra.mxu0 %v3999
    %4286 = vmatpush.msra.mxu0 %v3998
    %4287 = vmatpush.msra.mxu0 %v3997
    %4288 = vmatpush.msra.mxu0 %v3996
    %4289 = vmatpush.msra.mxu0 %v3995
    %4290 = vmatpush.msra.mxu0 %v3994
    %4291 = vmatpush.msra.mxu0 %v3993
    %4292 = vmatpush.msra.mxu0 %v3992
    %4293 = vmatpush.msra.mxu0 %v3991
    %4294 = vmatpush.msra.mxu0 %v3990
    %4295 = vmatpush.msra.mxu0 %v3989
    %4296 = vmatmul.f32.gmra.mxu0 %v4048
    %v4297 = vpop.f32.mrf.mxu0
    %v4298 = vadd.f32 %v4265, %v4297
    %4299 = vmatmul.f32.gmra.mxu0 %v4061
    %v4300 = vpop.f32.mrf.mxu0
    %v4301 = vadd.f32 %v4268, %v4300
    %4302 = vmatmul.f32.gmra.mxu0 %v4073
    %v4303 = vpop.f32.mrf.mxu0
    %4304 = vmatmul.f32.gmra.mxu0 %v4085
    %v4305 = vpop.f32.mrf.mxu0
    %4306 = vmatmul.f32.gmra.mxu0 %v4097
    %v4307 = vpop.f32.mrf.mxu0
    %v4308 = vadd.f32 %v4275, %v4307
    %4309 = vmatmul.f32.gmra.mxu0 %v4109
    %v4310 = vpop.f32.mrf.mxu0
    %v4311 = vadd.f32 %v4278, %v4310
    %4312 = vdwg.mxu0
    %4313 = vmatpush.msra.mxu0 %v4020
    %4314 = vmatpush.msra.mxu0 %v4019
    %4315 = vmatpush.msra.mxu0 %v4018
    %4316 = vmatpush.msra.mxu0 %v4017
    %4317 = vmatpush.msra.mxu0 %v4016
    %4318 = vmatpush.msra.mxu0 %v4015
    %4319 = vmatpush.msra.mxu0 %v4014
    %4320 = vmatpush.msra.mxu0 %v4013
    %4321 = vmatpush.msra.mxu0 %v4012
    %4322 = vmatpush.msra.mxu0 %v4011
    %4323 = vmatpush.msra.mxu0 %v4010
    %4324 = vmatpush.msra.mxu0 %v4009
    %4325 = vmatpush.msra.mxu0 %v4008
    %4326 = vmatpush.msra.mxu0 %v4007
    %4327 = vmatpush.msra.mxu0 %v4006
    %4328 = vmatpush.msra.mxu0 %v4005
    %4329 = vmatmul.f32.gmra.mxu0 %v4051
    %v4330 = vpop.f32.mrf.mxu0
    %v4331 = vadd.f32 %v4298, %v4330
    %4332 = vmatmul.f32.gmra.mxu0 %v4063
    %v4333 = vpop.f32.mrf.mxu0
    %v4334 = vadd.f32 %v4301, %v4333
    %4335 = vmatmul.f32.gmra.mxu0 %v4075
    %v4336 = vpop.f32.mrf.mxu0
    %4337 = vmatmul.f32.gmra.mxu0 %v4087
    %v4338 = vpop.f32.mrf.mxu0
    %4339 = vmatmul.f32.gmra.mxu0 %v4099
    %v4340 = vpop.f32.mrf.mxu0
    %v4341 = vadd.f32 %v4308, %v4340
    %4342 = vmatmul.f32.gmra.mxu0 %v4111
    %v4343 = vpop.f32.mrf.mxu0
    %v4344 = vadd.f32 %v4311, %v4343
    %4345 = vdwg.mxu0
    %v4346 = vadd.f32 %v3908, %v4331
    %v4347 = vadd.f32 %v3909, %v4334
    %v4348 = vadd.f32 %v3910, %v4341
    %v4349 = vadd.f32 %v3911, %v4344
    %v4350 = vld [vmem:[#allocation2] sm:$0xc0]
    %v4351 = vld [vmem:[#allocation2 + $0x8] sm:$0xc0]
    %v4352 = vld [vmem:[#allocation2 + $0x10] sm:$0xc0]
    %v4353 = vld [vmem:[#allocation2 + $0x18] sm:$0xc0]
    %v4354 = vld [vmem:[#allocation2 + $0x20] sm:$0xc0]
    %v4355 = vld [vmem:[#allocation2 + $0x28] sm:$0xc0]
    %v4356 = vld [vmem:[#allocation2 + $0x120] sm:$0x3f]
    %v4357 = vld [vmem:[#allocation2 + $0x128] sm:$0x3f]
    %v4358 = vld [vmem:[#allocation2 + $0x130] sm:$0x3f]
    %v4359 = vld [vmem:[#allocation2 + $0x138] sm:$0x3f]
    %v4360 = vld [vmem:[#allocation2 + $0x140] sm:$0x3f]
    %v4361 = vld [vmem:[#allocation2 + $0x148] sm:$0x3f]
    %s4362 = scalar_lea.vmem [#allocation5], 4608
    %v4363 = vld [vmem:[%s4362] sm:$0xff]
    %v4364 = vld [vmem:[%s4362 + $0x8] sm:$0xff]
    %v4365 = vld [vmem:[%s4362 + $0x10] sm:$0xff]
    %v4366 = vld [vmem:[%s4362 + $0x18] sm:$0xff]
    %v4367 = vld [vmem:[%s4362 + $0x20] sm:$0xff]
    %v4368 = vld [vmem:[%s4362 + $0x28] sm:$0xff]
    %v4369 = vld [vmem:[%s4362 + $0x30] sm:$0xff]
    %v4370 = vld [vmem:[%s4362 + $0x38] sm:$0xff]
    %v4371 = vld [vmem:[%s4362 + $0x40] sm:$0xff]
    %v4372 = vld [vmem:[%s4362 + $0x48] sm:$0xff]
    %v4373 = vld [vmem:[%s4362 + $0x50] sm:$0xff]
    %v4374 = vld [vmem:[%s4362 + $0x58] sm:$0xff]
    %v4375 = vld [vmem:[%s4362 + $0x60] sm:$0xff]
    %v4376 = vld [vmem:[%s4362 + $0x68] sm:$0xff]
    %v4377 = vld [vmem:[%s4362 + $0x70] sm:$0xff]
    %v4378 = vld [vmem:[%s4362 + $0x78] sm:$0xff]
    %v4379 = vld [vmem:[%s4362 + $0x80] sm:$0xff]
    %v4380 = vld [vmem:[%s4362 + $0x88] sm:$0xff]
    %v4381 = vld [vmem:[%s4362 + $0x90] sm:$0xff]
    %v4382 = vld [vmem:[%s4362 + $0x98] sm:$0xff]
    %v4383 = vld [vmem:[%s4362 + $0xa0] sm:$0xff]
    %v4384 = vld [vmem:[%s4362 + $0xa8] sm:$0xff]
    %v4385 = vld [vmem:[%s4362 + $0xb0] sm:$0xff]
    %v4386 = vld [vmem:[%s4362 + $0xb8] sm:$0xff]
    %v4387 = vld [vmem:[%s4362 + $0xc0] sm:$0xff]
    %v4388 = vld [vmem:[%s4362 + $0xc8] sm:$0xff]
    %v4389 = vld [vmem:[%s4362 + $0xd0] sm:$0xff]
    %v4390 = vld [vmem:[%s4362 + $0xd8] sm:$0xff]
    %v4391 = vld [vmem:[%s4362 + $0xe0] sm:$0xff]
    %v4392 = vld [vmem:[%s4362 + $0xe8] sm:$0xff]
    %v4393 = vld [vmem:[%s4362 + $0xf0] sm:$0xff]
    %v4394 = vld [vmem:[%s4362 + $0xf8] sm:$0xff]
    %v4395 = vld [vmem:[%s4362 + $0x100] sm:$0xff]
    %v4396 = vld [vmem:[%s4362 + $0x108] sm:$0xff]
    %v4397 = vld [vmem:[%s4362 + $0x110] sm:$0xff]
    %v4398 = vld [vmem:[%s4362 + $0x118] sm:$0xff]
    %v4399 = vld [vmem:[%s4362 + $0x120] sm:$0xff]
    %v4400 = vld [vmem:[%s4362 + $0x128] sm:$0xff]
    %v4401 = vld [vmem:[%s4362 + $0x130] sm:$0xff]
    %v4402 = vld [vmem:[%s4362 + $0x138] sm:$0xff]
    %v4403 = vld [vmem:[%s4362 + $0x140] sm:$0xff]
    %v4404 = vld [vmem:[%s4362 + $0x148] sm:$0xff]
    %v4405 = vld [vmem:[%s4362 + $0x150] sm:$0xff]
    %v4406 = vld [vmem:[%s4362 + $0x158] sm:$0xff]
    %v4407 = vld [vmem:[%s4362 + $0x160] sm:$0xff]
    %v4408 = vld [vmem:[%s4362 + $0x168] sm:$0xff]
    %v4409 = vld [vmem:[%s4362 + $0x170] sm:$0xff]
    %v4410 = vld [vmem:[%s4362 + $0x178] sm:$0xff]
    %v4411 = vld [vmem:[%s4362 + $0x180] sm:$0xff]
    %v4412 = vld [vmem:[%s4362 + $0x188] sm:$0xff]
    %v4413 = vld [vmem:[%s4362 + $0x190] sm:$0xff]
    %v4414 = vld [vmem:[%s4362 + $0x198] sm:$0xff]
    %v4415 = vld [vmem:[%s4362 + $0x1a0] sm:$0xff]
    %v4416 = vld [vmem:[%s4362 + $0x1a8] sm:$0xff]
    %v4417 = vld [vmem:[%s4362 + $0x1b0] sm:$0xff]
    %v4418 = vld [vmem:[%s4362 + $0x1b8] sm:$0xff]
    %v4419 = vld [vmem:[%s4362 + $0x1c0] sm:$0xff]
    %v4420 = vld [vmem:[%s4362 + $0x1c8] sm:$0xff]
    %v4421 = vld [vmem:[%s4362 + $0x1d0] sm:$0xff]
    %v4422 = vld [vmem:[%s4362 + $0x1d8] sm:$0xff]
    %v4423 = vld [vmem:[%s4362 + $0x1e0] sm:$0xff]
    %v4424 = vld [vmem:[%s4362 + $0x1e8] sm:$0xff]
    %v4425 = vld [vmem:[%s4362 + $0x1f0] sm:$0xff]
    %v4426 = vld [vmem:[%s4362 + $0x1f8] sm:$0xff]
    %v4427 = vld [vmem:[%s4362 + $0x200] sm:$0xff]
    %v4428 = vld [vmem:[%s4362 + $0x208] sm:$0xff]
    %v4429 = vld [vmem:[%s4362 + $0x210] sm:$0xff]
    %v4430 = vld [vmem:[%s4362 + $0x218] sm:$0xff]
    %v4431 = vld [vmem:[%s4362 + $0x220] sm:$0xff]
    %v4432 = vld [vmem:[%s4362 + $0x228] sm:$0xff]
    %v4433 = vld [vmem:[%s4362 + $0x230] sm:$0xff]
    %v4434 = vld [vmem:[%s4362 + $0x238] sm:$0xff]
    %v4435 = vld [vmem:[%s4362 + $0x240] sm:$0xff]
    %v4436 = vld [vmem:[%s4362 + $0x248] sm:$0xff]
    %v4437 = vld [vmem:[%s4362 + $0x250] sm:$0xff]
    %v4438 = vld [vmem:[%s4362 + $0x258] sm:$0xff]
    %v4439 = vld [vmem:[%s4362 + $0x260] sm:$0xff]
    %v4440 = vld [vmem:[%s4362 + $0x268] sm:$0xff]
    %v4441 = vld [vmem:[%s4362 + $0x270] sm:$0xff]
    %v4442 = vld [vmem:[%s4362 + $0x278] sm:$0xff]
    %v4443 = vld [vmem:[%s4362 + $0x280] sm:$0xff]
    %v4444 = vld [vmem:[%s4362 + $0x288] sm:$0xff]
    %v4445 = vld [vmem:[%s4362 + $0x290] sm:$0xff]
    %v4446 = vld [vmem:[%s4362 + $0x298] sm:$0xff]
    %v4447 = vld [vmem:[%s4362 + $0x2a0] sm:$0xff]
    %v4448 = vld [vmem:[%s4362 + $0x2a8] sm:$0xff]
    %v4449 = vld [vmem:[%s4362 + $0x2b0] sm:$0xff]
    %v4450 = vld [vmem:[%s4362 + $0x2b8] sm:$0xff]
    %v4451 = vld [vmem:[%s4362 + $0x2c0] sm:$0xff]
    %v4452 = vld [vmem:[%s4362 + $0x2c8] sm:$0xff]
    %v4453 = vld [vmem:[%s4362 + $0x2d0] sm:$0xff]
    %v4454 = vld [vmem:[%s4362 + $0x2d8] sm:$0xff]
    %v4455 = vld [vmem:[%s4362 + $0x2e0] sm:$0xff]
    %v4456 = vld [vmem:[%s4362 + $0x2e8] sm:$0xff]
    %v4457 = vld [vmem:[%s4362 + $0x2f0] sm:$0xff]
    %v4458 = vld [vmem:[%s4362 + $0x2f8] sm:$0xff]
    %vm4471 = vcmask 1041408
    %v4472 = vrot.slane %v4350, 6
    %v4473 = vrot.slane %v1811, 6
    %v4474 = vsel %vm4471, %v4472, %v4473
    %v4475 = vrot.slane %v4351, 6
    %v4476 = vrot.slane %v1812, 6
    %v4477 = vsel %vm4471, %v4475, %v4476
    %v4478 = vrot.slane %v4352, 6
    %v4479 = vrot.slane %v1813, 6
    %v4480 = vsel %vm4471, %v4478, %v4479
    %v4481 = vrot.slane %v4353, 6
    %v4482 = vrot.slane %v1814, 6
    %v4483 = vsel %vm4471, %v4481, %v4482
    %v4484 = vrot.slane %v4354, 6
    %v4485 = vrot.slane %v1815, 6
    %v4486 = vsel %vm4471, %v4484, %v4485
    %v4487 = vrot.slane %v4355, 6
    %v4488 = vrot.slane %v1816, 6
    %v4489 = vsel %vm4471, %v4487, %v4488
    %v4490 = vrot.slane %v1817, 6
    %v4491 = vsel %vm4471, %v4473, %v4490
    %v4492 = vrot.slane %v1818, 6
    %v4493 = vsel %vm4471, %v4476, %v4492
    %v4494 = vrot.slane %v1819, 6
    %v4495 = vsel %vm4471, %v4479, %v4494
    %v4496 = vrot.slane %v1820, 6
    %v4497 = vsel %vm4471, %v4482, %v4496
    %v4498 = vrot.slane %v1821, 6
    %v4499 = vsel %vm4471, %v4485, %v4498
    %v4500 = vrot.slane %v1822, 6
    %v4501 = vsel %vm4471, %v4488, %v4500
    %v4502 = vrot.slane %v1823, 6
    %v4503 = vsel %vm4471, %v4490, %v4502
    %v4504 = vrot.slane %v1824, 6
    %v4505 = vsel %vm4471, %v4492, %v4504
    %v4506 = vrot.slane %v1825, 6
    %v4507 = vsel %vm4471, %v4494, %v4506
    %v4508 = vrot.slane %v1826, 6
    %v4509 = vsel %vm4471, %v4496, %v4508
    %v4510 = vrot.slane %v1827, 6
    %v4511 = vsel %vm4471, %v4498, %v4510
    %v4512 = vrot.slane %v1828, 6
    %v4513 = vsel %vm4471, %v4500, %v4512
    %v4514 = vrot.slane %v1829, 6
    %v4515 = vsel %vm4471, %v4502, %v4514
    %v4516 = vrot.slane %v1830, 6
    %v4517 = vsel %vm4471, %v4504, %v4516
    %v4518 = vrot.slane %v1831, 6
    %v4519 = vsel %vm4471, %v4506, %v4518
    %v4520 = vrot.slane %v1832, 6
    %v4521 = vsel %vm4471, %v4508, %v4520
    %v4522 = vrot.slane %v1833, 6
    %v4523 = vsel %vm4471, %v4510, %v4522
    %v4524 = vrot.slane %v1834, 6
    %v4525 = vsel %vm4471, %v4512, %v4524
    %v4526 = vrot.slane %v1835, 6
    %v4527 = vsel %vm4471, %v4514, %v4526
    %v4528 = vrot.slane %v1836, 6
    %v4529 = vsel %vm4471, %v4516, %v4528
    %v4530 = vrot.slane %v1837, 6
    %v4531 = vsel %vm4471, %v4518, %v4530
    %v4532 = vrot.slane %v1838, 6
    %v4533 = vsel %vm4471, %v4520, %v4532
    %v4534 = vrot.slane %v1839, 6
    %v4535 = vsel %vm4471, %v4522, %v4534
    %v4536 = vrot.slane %v1840, 6
    %v4537 = vsel %vm4471, %v4524, %v4536
    %v4538 = vrot.slane %v4356, 6
    %v4539 = vsel %vm4471, %v4526, %v4538
    %v4540 = vrot.slane %v4357, 6
    %v4541 = vsel %vm4471, %v4528, %v4540
    %v4542 = vrot.slane %v4358, 6
    %v4543 = vsel %vm4471, %v4530, %v4542
    %v4544 = vrot.slane %v4359, 6
    %v4545 = vsel %vm4471, %v4532, %v4544
    %v4546 = vrot.slane %v4360, 6
    %v4547 = vsel %vm4471, %v4534, %v4546
    %v4548 = vrot.slane %v4361, 6
    %v4549 = vsel %vm4471, %v4536, %v4548
    %4586 = vmatpush.msra.mxu0 %v4378
    %4587 = vmatpush.msra.mxu0 %v4377
    %4588 = vmatpush.msra.mxu0 %v4376
    %4589 = vmatpush.msra.mxu0 %v4375
    %4590 = vmatpush.msra.mxu0 %v4374
    %4591 = vmatpush.msra.mxu0 %v4373
    %4592 = vmatpush.msra.mxu0 %v4372
    %4593 = vmatpush.msra.mxu0 %v4371
    %4594 = vmatpush.msra.mxu0 %v4370
    %4595 = vmatpush.msra.mxu0 %v4369
    %4596 = vmatpush.msra.mxu0 %v4368
    %4597 = vmatpush.msra.mxu0 %v4367
    %4598 = vmatpush.msra.mxu0 %v4366
    %4599 = vmatpush.msra.mxu0 %v4365
    %4600 = vmatpush.msra.mxu0 %v4364
    %4601 = vmatpush.msra.mxu0 %v4363
    %4602 = vmatmul.f32.gmra.mxu0 %v4474
    %v4603 = vpop.f32.mrf.mxu0
    %v4604 = vadd.f32 0.0, %v4603
    %4605 = vmatmul.f32.gmra.mxu0 %v4491
    %v4606 = vpop.f32.mrf.mxu0
    %v4607 = vadd.f32 0.0, %v4606
    %4608 = vmatmul.f32.gmra.mxu0 %v4503
    %v4609 = vpop.f32.mrf.mxu0
    %4610 = vmatmul.f32.gmra.mxu0 %v4515
    %v4611 = vpop.f32.mrf.mxu0
    %4612 = vmatmul.f32.gmra.mxu0 %v4527
    %v4613 = vpop.f32.mrf.mxu0
    %v4614 = vadd.f32 0.0, %v4613
    %4615 = vmatmul.f32.gmra.mxu0 %v4539
    %v4616 = vpop.f32.mrf.mxu0
    %v4617 = vadd.f32 0.0, %v4616
    %4618 = vdwg.mxu0
    %4619 = vmatpush.msra.mxu0 %v4394
    %4620 = vmatpush.msra.mxu0 %v4393
    %4621 = vmatpush.msra.mxu0 %v4392
    %4622 = vmatpush.msra.mxu0 %v4391
    %4623 = vmatpush.msra.mxu0 %v4390
    %4624 = vmatpush.msra.mxu0 %v4389
    %4625 = vmatpush.msra.mxu0 %v4388
    %4626 = vmatpush.msra.mxu0 %v4387
    %4627 = vmatpush.msra.mxu0 %v4386
    %4628 = vmatpush.msra.mxu0 %v4385
    %4629 = vmatpush.msra.mxu0 %v4384
    %4630 = vmatpush.msra.mxu0 %v4383
    %4631 = vmatpush.msra.mxu0 %v4382
    %4632 = vmatpush.msra.mxu0 %v4381
    %4633 = vmatpush.msra.mxu0 %v4380
    %4634 = vmatpush.msra.mxu0 %v4379
    %4635 = vmatmul.f32.gmra.mxu0 %v4477
    %v4636 = vpop.f32.mrf.mxu0
    %v4637 = vadd.f32 %v4604, %v4636
    %4638 = vmatmul.f32.gmra.mxu0 %v4493
    %v4639 = vpop.f32.mrf.mxu0
    %v4640 = vadd.f32 %v4607, %v4639
    %4641 = vmatmul.f32.gmra.mxu0 %v4505
    %v4642 = vpop.f32.mrf.mxu0
    %4643 = vmatmul.f32.gmra.mxu0 %v4517
    %v4644 = vpop.f32.mrf.mxu0
    %4645 = vmatmul.f32.gmra.mxu0 %v4529
    %v4646 = vpop.f32.mrf.mxu0
    %v4647 = vadd.f32 %v4614, %v4646
    %4648 = vmatmul.f32.gmra.mxu0 %v4541
    %v4649 = vpop.f32.mrf.mxu0
    %v4650 = vadd.f32 %v4617, %v4649
    %4651 = vdwg.mxu0
    %4652 = vmatpush.msra.mxu0 %v4410
    %4653 = vmatpush.msra.mxu0 %v4409
    %4654 = vmatpush.msra.mxu0 %v4408
    %4655 = vmatpush.msra.mxu0 %v4407
    %4656 = vmatpush.msra.mxu0 %v4406
    %4657 = vmatpush.msra.mxu0 %v4405
    %4658 = vmatpush.msra.mxu0 %v4404
    %4659 = vmatpush.msra.mxu0 %v4403
    %4660 = vmatpush.msra.mxu0 %v4402
    %4661 = vmatpush.msra.mxu0 %v4401
    %4662 = vmatpush.msra.mxu0 %v4400
    %4663 = vmatpush.msra.mxu0 %v4399
    %4664 = vmatpush.msra.mxu0 %v4398
    %4665 = vmatpush.msra.mxu0 %v4397
    %4666 = vmatpush.msra.mxu0 %v4396
    %4667 = vmatpush.msra.mxu0 %v4395
    %4668 = vmatmul.f32.gmra.mxu0 %v4480
    %v4669 = vpop.f32.mrf.mxu0
    %v4670 = vadd.f32 %v4637, %v4669
    %4671 = vmatmul.f32.gmra.mxu0 %v4495
    %v4672 = vpop.f32.mrf.mxu0
    %v4673 = vadd.f32 %v4640, %v4672
    %4674 = vmatmul.f32.gmra.mxu0 %v4507
    %v4675 = vpop.f32.mrf.mxu0
    %4676 = vmatmul.f32.gmra.mxu0 %v4519
    %v4677 = vpop.f32.mrf.mxu0
    %4678 = vmatmul.f32.gmra.mxu0 %v4531
    %v4679 = vpop.f32.mrf.mxu0
    %v4680 = vadd.f32 %v4647, %v4679
    %4681 = vmatmul.f32.gmra.mxu0 %v4543
    %v4682 = vpop.f32.mrf.mxu0
    %v4683 = vadd.f32 %v4650, %v4682
    %4684 = vdwg.mxu0
    %4685 = vmatpush.msra.mxu0 %v4426
    %4686 = vmatpush.msra.mxu0 %v4425
    %4687 = vmatpush.msra.mxu0 %v4424
    %4688 = vmatpush.msra.mxu0 %v4423
    %4689 = vmatpush.msra.mxu0 %v4422
    %4690 = vmatpush.msra.mxu0 %v4421
    %4691 = vmatpush.msra.mxu0 %v4420
    %4692 = vmatpush.msra.mxu0 %v4419
    %4693 = vmatpush.msra.mxu0 %v4418
    %4694 = vmatpush.msra.mxu0 %v4417
    %4695 = vmatpush.msra.mxu0 %v4416
    %4696 = vmatpush.msra.mxu0 %v4415
    %4697 = vmatpush.msra.mxu0 %v4414
    %4698 = vmatpush.msra.mxu0 %v4413
    %4699 = vmatpush.msra.mxu0 %v4412
    %4700 = vmatpush.msra.mxu0 %v4411
    %4701 = vmatmul.f32.gmra.mxu0 %v4483
    %v4702 = vpop.f32.mrf.mxu0
    %v4703 = vadd.f32 %v4670, %v4702
    %4704 = vmatmul.f32.gmra.mxu0 %v4497
    %v4705 = vpop.f32.mrf.mxu0
    %v4706 = vadd.f32 %v4673, %v4705
    %4707 = vmatmul.f32.gmra.mxu0 %v4509
    %v4708 = vpop.f32.mrf.mxu0
    %4709 = vmatmul.f32.gmra.mxu0 %v4521
    %v4710 = vpop.f32.mrf.mxu0
    %4711 = vmatmul.f32.gmra.mxu0 %v4533
    %v4712 = vpop.f32.mrf.mxu0
    %v4713 = vadd.f32 %v4680, %v4712
    %4714 = vmatmul.f32.gmra.mxu0 %v4545
    %v4715 = vpop.f32.mrf.mxu0
    %v4716 = vadd.f32 %v4683, %v4715
    %4717 = vdwg.mxu0
    %4718 = vmatpush.msra.mxu0 %v4442
    %4719 = vmatpush.msra.mxu0 %v4441
    %4720 = vmatpush.msra.mxu0 %v4440
    %4721 = vmatpush.msra.mxu0 %v4439
    %4722 = vmatpush.msra.mxu0 %v4438
    %4723 = vmatpush.msra.mxu0 %v4437
    %4724 = vmatpush.msra.mxu0 %v4436
    %4725 = vmatpush.msra.mxu0 %v4435
    %4726 = vmatpush.msra.mxu0 %v4434
    %4727 = vmatpush.msra.mxu0 %v4433
    %4728 = vmatpush.msra.mxu0 %v4432
    %4729 = vmatpush.msra.mxu0 %v4431
    %4730 = vmatpush.msra.mxu0 %v4430
    %4731 = vmatpush.msra.mxu0 %v4429
    %4732 = vmatpush.msra.mxu0 %v4428
    %4733 = vmatpush.msra.mxu0 %v4427
    %4734 = vmatmul.f32.gmra.mxu0 %v4486
    %v4735 = vpop.f32.mrf.mxu0
    %v4736 = vadd.f32 %v4703, %v4735
    %4737 = vmatmul.f32.gmra.mxu0 %v4499
    %v4738 = vpop.f32.mrf.mxu0
    %v4739 = vadd.f32 %v4706, %v4738
    %4740 = vmatmul.f32.gmra.mxu0 %v4511
    %v4741 = vpop.f32.mrf.mxu0
    %4742 = vmatmul.f32.gmra.mxu0 %v4523
    %v4743 = vpop.f32.mrf.mxu0
    %4744 = vmatmul.f32.gmra.mxu0 %v4535
    %v4745 = vpop.f32.mrf.mxu0
    %v4746 = vadd.f32 %v4713, %v4745
    %4747 = vmatmul.f32.gmra.mxu0 %v4547
    %v4748 = vpop.f32.mrf.mxu0
    %v4749 = vadd.f32 %v4716, %v4748
    %4750 = vdwg.mxu0
    %4751 = vmatpush.msra.mxu0 %v4458
    %4752 = vmatpush.msra.mxu0 %v4457
    %4753 = vmatpush.msra.mxu0 %v4456
    %4754 = vmatpush.msra.mxu0 %v4455
    %4755 = vmatpush.msra.mxu0 %v4454
    %4756 = vmatpush.msra.mxu0 %v4453
    %4757 = vmatpush.msra.mxu0 %v4452
    %4758 = vmatpush.msra.mxu0 %v4451
    %4759 = vmatpush.msra.mxu0 %v4450
    %4760 = vmatpush.msra.mxu0 %v4449
    %4761 = vmatpush.msra.mxu0 %v4448
    %4762 = vmatpush.msra.mxu0 %v4447
    %4763 = vmatpush.msra.mxu0 %v4446
    %4764 = vmatpush.msra.mxu0 %v4445
    %4765 = vmatpush.msra.mxu0 %v4444
    %4766 = vmatpush.msra.mxu0 %v4443
    %4767 = vmatmul.f32.gmra.mxu0 %v4489
    %v4768 = vpop.f32.mrf.mxu0
    %v4769 = vadd.f32 %v4736, %v4768
    %4770 = vmatmul.f32.gmra.mxu0 %v4501
    %v4771 = vpop.f32.mrf.mxu0
    %v4772 = vadd.f32 %v4739, %v4771
    %4773 = vmatmul.f32.gmra.mxu0 %v4513
    %v4774 = vpop.f32.mrf.mxu0
    %4775 = vmatmul.f32.gmra.mxu0 %v4525
    %v4776 = vpop.f32.mrf.mxu0
    %4777 = vmatmul.f32.gmra.mxu0 %v4537
    %v4778 = vpop.f32.mrf.mxu0
    %v4779 = vadd.f32 %v4746, %v4778
    %4780 = vmatmul.f32.gmra.mxu0 %v4549
    %v4781 = vpop.f32.mrf.mxu0
    %v4782 = vadd.f32 %v4749, %v4781
    %4783 = vdwg.mxu0
    %v4784 = vadd.f32 %v4346, %v4769
    %v4785 = vadd.f32 %v4347, %v4772
    %v4786 = vadd.f32 %v4348, %v4779
    %v4787 = vadd.f32 %v4349, %v4782
    %v4788 = vld [vmem:[#allocation2] sm:$0x80]
    %v4789 = vld [vmem:[#allocation2 + $0x8] sm:$0x80]
    %v4790 = vld [vmem:[#allocation2 + $0x10] sm:$0x80]
    %v4791 = vld [vmem:[#allocation2 + $0x18] sm:$0x80]
    %v4792 = vld [vmem:[#allocation2 + $0x20] sm:$0x80]
    %v4793 = vld [vmem:[#allocation2 + $0x28] sm:$0x80]
    %v4794 = vld [vmem:[#allocation2 + $0x120] sm:$0x7f]
    %v4795 = vld [vmem:[#allocation2 + $0x128] sm:$0x7f]
    %v4796 = vld [vmem:[#allocation2 + $0x130] sm:$0x7f]
    %v4797 = vld [vmem:[#allocation2 + $0x138] sm:$0x7f]
    %v4798 = vld [vmem:[#allocation2 + $0x140] sm:$0x7f]
    %v4799 = vld [vmem:[#allocation2 + $0x148] sm:$0x7f]
    %s4800 = scalar_lea.vmem [#allocation5], 5376
    %v4801 = vld [vmem:[%s4800] sm:$0xff]
    %v4802 = vld [vmem:[%s4800 + $0x8] sm:$0xff]
    %v4803 = vld [vmem:[%s4800 + $0x10] sm:$0xff]
    %v4804 = vld [vmem:[%s4800 + $0x18] sm:$0xff]
    %v4805 = vld [vmem:[%s4800 + $0x20] sm:$0xff]
    %v4806 = vld [vmem:[%s4800 + $0x28] sm:$0xff]
    %v4807 = vld [vmem:[%s4800 + $0x30] sm:$0xff]
    %v4808 = vld [vmem:[%s4800 + $0x38] sm:$0xff]
    %v4809 = vld [vmem:[%s4800 + $0x40] sm:$0xff]
    %v4810 = vld [vmem:[%s4800 + $0x48] sm:$0xff]
    %v4811 = vld [vmem:[%s4800 + $0x50] sm:$0xff]
    %v4812 = vld [vmem:[%s4800 + $0x58] sm:$0xff]
    %v4813 = vld [vmem:[%s4800 + $0x60] sm:$0xff]
    %v4814 = vld [vmem:[%s4800 + $0x68] sm:$0xff]
    %v4815 = vld [vmem:[%s4800 + $0x70] sm:$0xff]
    %v4816 = vld [vmem:[%s4800 + $0x78] sm:$0xff]
    %v4817 = vld [vmem:[%s4800 + $0x80] sm:$0xff]
    %v4818 = vld [vmem:[%s4800 + $0x88] sm:$0xff]
    %v4819 = vld [vmem:[%s4800 + $0x90] sm:$0xff]
    %v4820 = vld [vmem:[%s4800 + $0x98] sm:$0xff]
    %v4821 = vld [vmem:[%s4800 + $0xa0] sm:$0xff]
    %v4822 = vld [vmem:[%s4800 + $0xa8] sm:$0xff]
    %v4823 = vld [vmem:[%s4800 + $0xb0] sm:$0xff]
    %v4824 = vld [vmem:[%s4800 + $0xb8] sm:$0xff]
    %v4825 = vld [vmem:[%s4800 + $0xc0] sm:$0xff]
    %v4826 = vld [vmem:[%s4800 + $0xc8] sm:$0xff]
    %v4827 = vld [vmem:[%s4800 + $0xd0] sm:$0xff]
    %v4828 = vld [vmem:[%s4800 + $0xd8] sm:$0xff]
    %v4829 = vld [vmem:[%s4800 + $0xe0] sm:$0xff]
    %v4830 = vld [vmem:[%s4800 + $0xe8] sm:$0xff]
    %v4831 = vld [vmem:[%s4800 + $0xf0] sm:$0xff]
    %v4832 = vld [vmem:[%s4800 + $0xf8] sm:$0xff]
    %v4833 = vld [vmem:[%s4800 + $0x100] sm:$0xff]
    %v4834 = vld [vmem:[%s4800 + $0x108] sm:$0xff]
    %v4835 = vld [vmem:[%s4800 + $0x110] sm:$0xff]
    %v4836 = vld [vmem:[%s4800 + $0x118] sm:$0xff]
    %v4837 = vld [vmem:[%s4800 + $0x120] sm:$0xff]
    %v4838 = vld [vmem:[%s4800 + $0x128] sm:$0xff]
    %v4839 = vld [vmem:[%s4800 + $0x130] sm:$0xff]
    %v4840 = vld [vmem:[%s4800 + $0x138] sm:$0xff]
    %v4841 = vld [vmem:[%s4800 + $0x140] sm:$0xff]
    %v4842 = vld [vmem:[%s4800 + $0x148] sm:$0xff]
    %v4843 = vld [vmem:[%s4800 + $0x150] sm:$0xff]
    %v4844 = vld [vmem:[%s4800 + $0x158] sm:$0xff]
    %v4845 = vld [vmem:[%s4800 + $0x160] sm:$0xff]
    %v4846 = vld [vmem:[%s4800 + $0x168] sm:$0xff]
    %v4847 = vld [vmem:[%s4800 + $0x170] sm:$0xff]
    %v4848 = vld [vmem:[%s4800 + $0x178] sm:$0xff]
    %v4849 = vld [vmem:[%s4800 + $0x180] sm:$0xff]
    %v4850 = vld [vmem:[%s4800 + $0x188] sm:$0xff]
    %v4851 = vld [vmem:[%s4800 + $0x190] sm:$0xff]
    %v4852 = vld [vmem:[%s4800 + $0x198] sm:$0xff]
    %v4853 = vld [vmem:[%s4800 + $0x1a0] sm:$0xff]
    %v4854 = vld [vmem:[%s4800 + $0x1a8] sm:$0xff]
    %v4855 = vld [vmem:[%s4800 + $0x1b0] sm:$0xff]
    %v4856 = vld [vmem:[%s4800 + $0x1b8] sm:$0xff]
    %v4857 = vld [vmem:[%s4800 + $0x1c0] sm:$0xff]
    %v4858 = vld [vmem:[%s4800 + $0x1c8] sm:$0xff]
    %v4859 = vld [vmem:[%s4800 + $0x1d0] sm:$0xff]
    %v4860 = vld [vmem:[%s4800 + $0x1d8] sm:$0xff]
    %v4861 = vld [vmem:[%s4800 + $0x1e0] sm:$0xff]
    %v4862 = vld [vmem:[%s4800 + $0x1e8] sm:$0xff]
    %v4863 = vld [vmem:[%s4800 + $0x1f0] sm:$0xff]
    %v4864 = vld [vmem:[%s4800 + $0x1f8] sm:$0xff]
    %v4865 = vld [vmem:[%s4800 + $0x200] sm:$0xff]
    %v4866 = vld [vmem:[%s4800 + $0x208] sm:$0xff]
    %v4867 = vld [vmem:[%s4800 + $0x210] sm:$0xff]
    %v4868 = vld [vmem:[%s4800 + $0x218] sm:$0xff]
    %v4869 = vld [vmem:[%s4800 + $0x220] sm:$0xff]
    %v4870 = vld [vmem:[%s4800 + $0x228] sm:$0xff]
    %v4871 = vld [vmem:[%s4800 + $0x230] sm:$0xff]
    %v4872 = vld [vmem:[%s4800 + $0x238] sm:$0xff]
    %v4873 = vld [vmem:[%s4800 + $0x240] sm:$0xff]
    %v4874 = vld [vmem:[%s4800 + $0x248] sm:$0xff]
    %v4875 = vld [vmem:[%s4800 + $0x250] sm:$0xff]
    %v4876 = vld [vmem:[%s4800 + $0x258] sm:$0xff]
    %v4877 = vld [vmem:[%s4800 + $0x260] sm:$0xff]
    %v4878 = vld [vmem:[%s4800 + $0x268] sm:$0xff]
    %v4879 = vld [vmem:[%s4800 + $0x270] sm:$0xff]
    %v4880 = vld [vmem:[%s4800 + $0x278] sm:$0xff]
    %v4881 = vld [vmem:[%s4800 + $0x280] sm:$0xff]
    %v4882 = vld [vmem:[%s4800 + $0x288] sm:$0xff]
    %v4883 = vld [vmem:[%s4800 + $0x290] sm:$0xff]
    %v4884 = vld [vmem:[%s4800 + $0x298] sm:$0xff]
    %v4885 = vld [vmem:[%s4800 + $0x2a0] sm:$0xff]
    %v4886 = vld [vmem:[%s4800 + $0x2a8] sm:$0xff]
    %v4887 = vld [vmem:[%s4800 + $0x2b0] sm:$0xff]
    %v4888 = vld [vmem:[%s4800 + $0x2b8] sm:$0xff]
    %v4889 = vld [vmem:[%s4800 + $0x2c0] sm:$0xff]
    %v4890 = vld [vmem:[%s4800 + $0x2c8] sm:$0xff]
    %v4891 = vld [vmem:[%s4800 + $0x2d0] sm:$0xff]
    %v4892 = vld [vmem:[%s4800 + $0x2d8] sm:$0xff]
    %v4893 = vld [vmem:[%s4800 + $0x2e0] sm:$0xff]
    %v4894 = vld [vmem:[%s4800 + $0x2e8] sm:$0xff]
    %v4895 = vld [vmem:[%s4800 + $0x2f0] sm:$0xff]
    %v4896 = vld [vmem:[%s4800 + $0x2f8] sm:$0xff]
    %vm4909 = vcmask 1040384
    %v4910 = vrot.slane %v4788, 7
    %v4911 = vrot.slane %v1811, 7
    %v4912 = vsel %vm4909, %v4910, %v4911
    %v4913 = vrot.slane %v4789, 7
    %v4914 = vrot.slane %v1812, 7
    %v4915 = vsel %vm4909, %v4913, %v4914
    %v4916 = vrot.slane %v4790, 7
    %v4917 = vrot.slane %v1813, 7
    %v4918 = vsel %vm4909, %v4916, %v4917
    %v4919 = vrot.slane %v4791, 7
    %v4920 = vrot.slane %v1814, 7
    %v4921 = vsel %vm4909, %v4919, %v4920
    %v4922 = vrot.slane %v4792, 7
    %v4923 = vrot.slane %v1815, 7
    %v4924 = vsel %vm4909, %v4922, %v4923
    %v4925 = vrot.slane %v4793, 7
    %v4926 = vrot.slane %v1816, 7
    %v4927 = vsel %vm4909, %v4925, %v4926
    %v4928 = vrot.slane %v1817, 7
    %v4929 = vsel %vm4909, %v4911, %v4928
    %v4930 = vrot.slane %v1818, 7
    %v4931 = vsel %vm4909, %v4914, %v4930
    %v4932 = vrot.slane %v1819, 7
    %v4933 = vsel %vm4909, %v4917, %v4932
    %v4934 = vrot.slane %v1820, 7
    %v4935 = vsel %vm4909, %v4920, %v4934
    %v4936 = vrot.slane %v1821, 7
    %v4937 = vsel %vm4909, %v4923, %v4936
    %v4938 = vrot.slane %v1822, 7
    %v4939 = vsel %vm4909, %v4926, %v4938
    %v4940 = vrot.slane %v1823, 7
    %v4941 = vsel %vm4909, %v4928, %v4940
    %v4942 = vrot.slane %v1824, 7
    %v4943 = vsel %vm4909, %v4930, %v4942
    %v4944 = vrot.slane %v1825, 7
    %v4945 = vsel %vm4909, %v4932, %v4944
    %v4946 = vrot.slane %v1826, 7
    %v4947 = vsel %vm4909, %v4934, %v4946
    %v4948 = vrot.slane %v1827, 7
    %v4949 = vsel %vm4909, %v4936, %v4948
    %v4950 = vrot.slane %v1828, 7
    %v4951 = vsel %vm4909, %v4938, %v4950
    %v4952 = vrot.slane %v1829, 7
    %v4953 = vsel %vm4909, %v4940, %v4952
    %v4954 = vrot.slane %v1830, 7
    %v4955 = vsel %vm4909, %v4942, %v4954
    %v4956 = vrot.slane %v1831, 7
    %v4957 = vsel %vm4909, %v4944, %v4956
    %v4958 = vrot.slane %v1832, 7
    %v4959 = vsel %vm4909, %v4946, %v4958
    %v4960 = vrot.slane %v1833, 7
    %v4961 = vsel %vm4909, %v4948, %v4960
    %v4962 = vrot.slane %v1834, 7
    %v4963 = vsel %vm4909, %v4950, %v4962
    %v4964 = vrot.slane %v1835, 7
    %v4965 = vsel %vm4909, %v4952, %v4964
    %v4966 = vrot.slane %v1836, 7
    %v4967 = vsel %vm4909, %v4954, %v4966
    %v4968 = vrot.slane %v1837, 7
    %v4969 = vsel %vm4909, %v4956, %v4968
    %v4970 = vrot.slane %v1838, 7
    %v4971 = vsel %vm4909, %v4958, %v4970
    %v4972 = vrot.slane %v1839, 7
    %v4973 = vsel %vm4909, %v4960, %v4972
    %v4974 = vrot.slane %v1840, 7
    %v4975 = vsel %vm4909, %v4962, %v4974
    %v4976 = vrot.slane %v4794, 7
    %v4977 = vsel %vm4909, %v4964, %v4976
    %v4978 = vrot.slane %v4795, 7
    %v4979 = vsel %vm4909, %v4966, %v4978
    %v4980 = vrot.slane %v4796, 7
    %v4981 = vsel %vm4909, %v4968, %v4980
    %v4982 = vrot.slane %v4797, 7
    %v4983 = vsel %vm4909, %v4970, %v4982
    %v4984 = vrot.slane %v4798, 7
    %v4985 = vsel %vm4909, %v4972, %v4984
    %v4986 = vrot.slane %v4799, 7
    %v4987 = vsel %vm4909, %v4974, %v4986
    %5024 = vmatpush.msra.mxu0 %v4816
    %5025 = vmatpush.msra.mxu0 %v4815
    %5026 = vmatpush.msra.mxu0 %v4814
    %5027 = vmatpush.msra.mxu0 %v4813
    %5028 = vmatpush.msra.mxu0 %v4812
    %5029 = vmatpush.msra.mxu0 %v4811
    %5030 = vmatpush.msra.mxu0 %v4810
    %5031 = vmatpush.msra.mxu0 %v4809
    %5032 = vmatpush.msra.mxu0 %v4808
    %5033 = vmatpush.msra.mxu0 %v4807
    %5034 = vmatpush.msra.mxu0 %v4806
    %5035 = vmatpush.msra.mxu0 %v4805
    %5036 = vmatpush.msra.mxu0 %v4804
    %5037 = vmatpush.msra.mxu0 %v4803
    %5038 = vmatpush.msra.mxu0 %v4802
    %5039 = vmatpush.msra.mxu0 %v4801
    %5040 = vmatmul.f32.gmra.mxu0 %v4912
    %v5041 = vpop.f32.mrf.mxu0
    %v5042 = vadd.f32 0.0, %v5041
    %5043 = vmatmul.f32.gmra.mxu0 %v4929
    %v5044 = vpop.f32.mrf.mxu0
    %v5045 = vadd.f32 0.0, %v5044
    %5046 = vmatmul.f32.gmra.mxu0 %v4941
    %v5047 = vpop.f32.mrf.mxu0
    %5048 = vmatmul.f32.gmra.mxu0 %v4953
    %v5049 = vpop.f32.mrf.mxu0
    %5050 = vmatmul.f32.gmra.mxu0 %v4965
    %v5051 = vpop.f32.mrf.mxu0
    %v5052 = vadd.f32 0.0, %v5051
    %5053 = vmatmul.f32.gmra.mxu0 %v4977
    %v5054 = vpop.f32.mrf.mxu0
    %v5055 = vadd.f32 0.0, %v5054
    %5056 = vdwg.mxu0
    %5057 = vmatpush.msra.mxu0 %v4832
    %5058 = vmatpush.msra.mxu0 %v4831
    %5059 = vmatpush.msra.mxu0 %v4830
    %5060 = vmatpush.msra.mxu0 %v4829
    %5061 = vmatpush.msra.mxu0 %v4828
    %5062 = vmatpush.msra.mxu0 %v4827
    %5063 = vmatpush.msra.mxu0 %v4826
    %5064 = vmatpush.msra.mxu0 %v4825
    %5065 = vmatpush.msra.mxu0 %v4824
    %5066 = vmatpush.msra.mxu0 %v4823
    %5067 = vmatpush.msra.mxu0 %v4822
    %5068 = vmatpush.msra.mxu0 %v4821
    %5069 = vmatpush.msra.mxu0 %v4820
    %5070 = vmatpush.msra.mxu0 %v4819
    %5071 = vmatpush.msra.mxu0 %v4818
    %5072 = vmatpush.msra.mxu0 %v4817
    %5073 = vmatmul.f32.gmra.mxu0 %v4915
    %v5074 = vpop.f32.mrf.mxu0
    %v5075 = vadd.f32 %v5042, %v5074
    %5076 = vmatmul.f32.gmra.mxu0 %v4931
    %v5077 = vpop.f32.mrf.mxu0
    %v5078 = vadd.f32 %v5045, %v5077
    %5079 = vmatmul.f32.gmra.mxu0 %v4943
    %v5080 = vpop.f32.mrf.mxu0
    %5081 = vmatmul.f32.gmra.mxu0 %v4955
    %v5082 = vpop.f32.mrf.mxu0
    %5083 = vmatmul.f32.gmra.mxu0 %v4967
    %v5084 = vpop.f32.mrf.mxu0
    %v5085 = vadd.f32 %v5052, %v5084
    %5086 = vmatmul.f32.gmra.mxu0 %v4979
    %v5087 = vpop.f32.mrf.mxu0
    %v5088 = vadd.f32 %v5055, %v5087
    %5089 = vdwg.mxu0
    %5090 = vmatpush.msra.mxu0 %v4848
    %5091 = vmatpush.msra.mxu0 %v4847
    %5092 = vmatpush.msra.mxu0 %v4846
    %5093 = vmatpush.msra.mxu0 %v4845
    %5094 = vmatpush.msra.mxu0 %v4844
    %5095 = vmatpush.msra.mxu0 %v4843
    %5096 = vmatpush.msra.mxu0 %v4842
    %5097 = vmatpush.msra.mxu0 %v4841
    %5098 = vmatpush.msra.mxu0 %v4840
    %5099 = vmatpush.msra.mxu0 %v4839
    %5100 = vmatpush.msra.mxu0 %v4838
    %5101 = vmatpush.msra.mxu0 %v4837
    %5102 = vmatpush.msra.mxu0 %v4836
    %5103 = vmatpush.msra.mxu0 %v4835
    %5104 = vmatpush.msra.mxu0 %v4834
    %5105 = vmatpush.msra.mxu0 %v4833
    %5106 = vmatmul.f32.gmra.mxu0 %v4918
    %v5107 = vpop.f32.mrf.mxu0
    %v5108 = vadd.f32 %v5075, %v5107
    %5109 = vmatmul.f32.gmra.mxu0 %v4933
    %v5110 = vpop.f32.mrf.mxu0
    %v5111 = vadd.f32 %v5078, %v5110
    %5112 = vmatmul.f32.gmra.mxu0 %v4945
    %v5113 = vpop.f32.mrf.mxu0
    %5114 = vmatmul.f32.gmra.mxu0 %v4957
    %v5115 = vpop.f32.mrf.mxu0
    %5116 = vmatmul.f32.gmra.mxu0 %v4969
    %v5117 = vpop.f32.mrf.mxu0
    %v5118 = vadd.f32 %v5085, %v5117
    %5119 = vmatmul.f32.gmra.mxu0 %v4981
    %v5120 = vpop.f32.mrf.mxu0
    %v5121 = vadd.f32 %v5088, %v5120
    %5122 = vdwg.mxu0
    %5123 = vmatpush.msra.mxu0 %v4864
    %5124 = vmatpush.msra.mxu0 %v4863
    %5125 = vmatpush.msra.mxu0 %v4862
    %5126 = vmatpush.msra.mxu0 %v4861
    %5127 = vmatpush.msra.mxu0 %v4860
    %5128 = vmatpush.msra.mxu0 %v4859
    %5129 = vmatpush.msra.mxu0 %v4858
    %5130 = vmatpush.msra.mxu0 %v4857
    %5131 = vmatpush.msra.mxu0 %v4856
    %5132 = vmatpush.msra.mxu0 %v4855
    %5133 = vmatpush.msra.mxu0 %v4854
    %5134 = vmatpush.msra.mxu0 %v4853
    %5135 = vmatpush.msra.mxu0 %v4852
    %5136 = vmatpush.msra.mxu0 %v4851
    %5137 = vmatpush.msra.mxu0 %v4850
    %5138 = vmatpush.msra.mxu0 %v4849
    %5139 = vmatmul.f32.gmra.mxu0 %v4921
    %v5140 = vpop.f32.mrf.mxu0
    %v5141 = vadd.f32 %v5108, %v5140
    %5142 = vmatmul.f32.gmra.mxu0 %v4935
    %v5143 = vpop.f32.mrf.mxu0
    %v5144 = vadd.f32 %v5111, %v5143
    %5145 = vmatmul.f32.gmra.mxu0 %v4947
    %v5146 = vpop.f32.mrf.mxu0
    %5147 = vmatmul.f32.gmra.mxu0 %v4959
    %v5148 = vpop.f32.mrf.mxu0
    %5149 = vmatmul.f32.gmra.mxu0 %v4971
    %v5150 = vpop.f32.mrf.mxu0
    %v5151 = vadd.f32 %v5118, %v5150
    %5152 = vmatmul.f32.gmra.mxu0 %v4983
    %v5153 = vpop.f32.mrf.mxu0
    %v5154 = vadd.f32 %v5121, %v5153
    %5155 = vdwg.mxu0
    %5156 = vmatpush.msra.mxu0 %v4880
    %5157 = vmatpush.msra.mxu0 %v4879
    %5158 = vmatpush.msra.mxu0 %v4878
    %5159 = vmatpush.msra.mxu0 %v4877
    %5160 = vmatpush.msra.mxu0 %v4876
    %5161 = vmatpush.msra.mxu0 %v4875
    %5162 = vmatpush.msra.mxu0 %v4874
    %5163 = vmatpush.msra.mxu0 %v4873
    %5164 = vmatpush.msra.mxu0 %v4872
    %5165 = vmatpush.msra.mxu0 %v4871
    %5166 = vmatpush.msra.mxu0 %v4870
    %5167 = vmatpush.msra.mxu0 %v4869
    %5168 = vmatpush.msra.mxu0 %v4868
    %5169 = vmatpush.msra.mxu0 %v4867
    %5170 = vmatpush.msra.mxu0 %v4866
    %5171 = vmatpush.msra.mxu0 %v4865
    %5172 = vmatmul.f32.gmra.mxu0 %v4924
    %v5173 = vpop.f32.mrf.mxu0
    %v5174 = vadd.f32 %v5141, %v5173
    %5175 = vmatmul.f32.gmra.mxu0 %v4937
    %v5176 = vpop.f32.mrf.mxu0
    %v5177 = vadd.f32 %v5144, %v5176
    %5178 = vmatmul.f32.gmra.mxu0 %v4949
    %v5179 = vpop.f32.mrf.mxu0
    %5180 = vmatmul.f32.gmra.mxu0 %v4961
    %v5181 = vpop.f32.mrf.mxu0
    %5182 = vmatmul.f32.gmra.mxu0 %v4973
    %v5183 = vpop.f32.mrf.mxu0
    %v5184 = vadd.f32 %v5151, %v5183
    %5185 = vmatmul.f32.gmra.mxu0 %v4985
    %v5186 = vpop.f32.mrf.mxu0
    %v5187 = vadd.f32 %v5154, %v5186
    %5188 = vdwg.mxu0
    %5189 = vmatpush.msra.mxu0 %v4896
    %5190 = vmatpush.msra.mxu0 %v4895
    %5191 = vmatpush.msra.mxu0 %v4894
    %5192 = vmatpush.msra.mxu0 %v4893
    %5193 = vmatpush.msra.mxu0 %v4892
    %5194 = vmatpush.msra.mxu0 %v4891
    %5195 = vmatpush.msra.mxu0 %v4890
    %5196 = vmatpush.msra.mxu0 %v4889
    %5197 = vmatpush.msra.mxu0 %v4888
    %5198 = vmatpush.msra.mxu0 %v4887
    %5199 = vmatpush.msra.mxu0 %v4886
    %5200 = vmatpush.msra.mxu0 %v4885
    %5201 = vmatpush.msra.mxu0 %v4884
    %5202 = vmatpush.msra.mxu0 %v4883
    %5203 = vmatpush.msra.mxu0 %v4882
    %5204 = vmatpush.msra.mxu0 %v4881
    %5205 = vmatmul.f32.gmra.mxu0 %v4927
    %v5206 = vpop.f32.mrf.mxu0
    %v5207 = vadd.f32 %v5174, %v5206
    %5208 = vmatmul.f32.gmra.mxu0 %v4939
    %v5209 = vpop.f32.mrf.mxu0
    %v5210 = vadd.f32 %v5177, %v5209
    %5211 = vmatmul.f32.gmra.mxu0 %v4951
    %v5212 = vpop.f32.mrf.mxu0
    %5213 = vmatmul.f32.gmra.mxu0 %v4963
    %v5214 = vpop.f32.mrf.mxu0
    %5215 = vmatmul.f32.gmra.mxu0 %v4975
    %v5216 = vpop.f32.mrf.mxu0
    %v5217 = vadd.f32 %v5184, %v5216
    %5218 = vmatmul.f32.gmra.mxu0 %v4987
    %v5219 = vpop.f32.mrf.mxu0
    %v5220 = vadd.f32 %v5187, %v5219
    %5221 = vdwg.mxu0
    %v5222 = vadd.f32 %v4784, %v5207
    %v5223 = vadd.f32 %v4785, %v5210
    %v5224 = vadd.f32 %v4786, %v5217
    %v5225 = vadd.f32 %v4787, %v5220
    %v5226 = vld [vmem:[#allocation2 + $0x120] sm:$0xff]
    %v5227 = vld [vmem:[#allocation2 + $0x128] sm:$0xff]
    %v5228 = vld [vmem:[#allocation2 + $0x130] sm:$0xff]
    %v5229 = vld [vmem:[#allocation2 + $0x138] sm:$0xff]
    %v5230 = vld [vmem:[#allocation2 + $0x140] sm:$0xff]
    %v5231 = vld [vmem:[#allocation2 + $0x148] sm:$0xff]
    %s5232 = scalar_lea.vmem [#allocation5], 6144
    %v5233 = vld [vmem:[%s5232] sm:$0xff]
    %v5234 = vld [vmem:[%s5232 + $0x8] sm:$0xff]
    %v5235 = vld [vmem:[%s5232 + $0x10] sm:$0xff]
    %v5236 = vld [vmem:[%s5232 + $0x18] sm:$0xff]
    %v5237 = vld [vmem:[%s5232 + $0x20] sm:$0xff]
    %v5238 = vld [vmem:[%s5232 + $0x28] sm:$0xff]
    %v5239 = vld [vmem:[%s5232 + $0x30] sm:$0xff]
    %v5240 = vld [vmem:[%s5232 + $0x38] sm:$0xff]
    %v5241 = vld [vmem:[%s5232 + $0x40] sm:$0xff]
    %v5242 = vld [vmem:[%s5232 + $0x48] sm:$0xff]
    %v5243 = vld [vmem:[%s5232 + $0x50] sm:$0xff]
    %v5244 = vld [vmem:[%s5232 + $0x58] sm:$0xff]
    %v5245 = vld [vmem:[%s5232 + $0x60] sm:$0xff]
    %v5246 = vld [vmem:[%s5232 + $0x68] sm:$0xff]
    %v5247 = vld [vmem:[%s5232 + $0x70] sm:$0xff]
    %v5248 = vld [vmem:[%s5232 + $0x78] sm:$0xff]
    %v5249 = vld [vmem:[%s5232 + $0x80] sm:$0xff]
    %v5250 = vld [vmem:[%s5232 + $0x88] sm:$0xff]
    %v5251 = vld [vmem:[%s5232 + $0x90] sm:$0xff]
    %v5252 = vld [vmem:[%s5232 + $0x98] sm:$0xff]
    %v5253 = vld [vmem:[%s5232 + $0xa0] sm:$0xff]
    %v5254 = vld [vmem:[%s5232 + $0xa8] sm:$0xff]
    %v5255 = vld [vmem:[%s5232 + $0xb0] sm:$0xff]
    %v5256 = vld [vmem:[%s5232 + $0xb8] sm:$0xff]
    %v5257 = vld [vmem:[%s5232 + $0xc0] sm:$0xff]
    %v5258 = vld [vmem:[%s5232 + $0xc8] sm:$0xff]
    %v5259 = vld [vmem:[%s5232 + $0xd0] sm:$0xff]
    %v5260 = vld [vmem:[%s5232 + $0xd8] sm:$0xff]
    %v5261 = vld [vmem:[%s5232 + $0xe0] sm:$0xff]
    %v5262 = vld [vmem:[%s5232 + $0xe8] sm:$0xff]
    %v5263 = vld [vmem:[%s5232 + $0xf0] sm:$0xff]
    %v5264 = vld [vmem:[%s5232 + $0xf8] sm:$0xff]
    %v5265 = vld [vmem:[%s5232 + $0x100] sm:$0xff]
    %v5266 = vld [vmem:[%s5232 + $0x108] sm:$0xff]
    %v5267 = vld [vmem:[%s5232 + $0x110] sm:$0xff]
    %v5268 = vld [vmem:[%s5232 + $0x118] sm:$0xff]
    %v5269 = vld [vmem:[%s5232 + $0x120] sm:$0xff]
    %v5270 = vld [vmem:[%s5232 + $0x128] sm:$0xff]
    %v5271 = vld [vmem:[%s5232 + $0x130] sm:$0xff]
    %v5272 = vld [vmem:[%s5232 + $0x138] sm:$0xff]
    %v5273 = vld [vmem:[%s5232 + $0x140] sm:$0xff]
    %v5274 = vld [vmem:[%s5232 + $0x148] sm:$0xff]
    %v5275 = vld [vmem:[%s5232 + $0x150] sm:$0xff]
    %v5276 = vld [vmem:[%s5232 + $0x158] sm:$0xff]
    %v5277 = vld [vmem:[%s5232 + $0x160] sm:$0xff]
    %v5278 = vld [vmem:[%s5232 + $0x168] sm:$0xff]
    %v5279 = vld [vmem:[%s5232 + $0x170] sm:$0xff]
    %v5280 = vld [vmem:[%s5232 + $0x178] sm:$0xff]
    %v5281 = vld [vmem:[%s5232 + $0x180] sm:$0xff]
    %v5282 = vld [vmem:[%s5232 + $0x188] sm:$0xff]
    %v5283 = vld [vmem:[%s5232 + $0x190] sm:$0xff]
    %v5284 = vld [vmem:[%s5232 + $0x198] sm:$0xff]
    %v5285 = vld [vmem:[%s5232 + $0x1a0] sm:$0xff]
    %v5286 = vld [vmem:[%s5232 + $0x1a8] sm:$0xff]
    %v5287 = vld [vmem:[%s5232 + $0x1b0] sm:$0xff]
    %v5288 = vld [vmem:[%s5232 + $0x1b8] sm:$0xff]
    %v5289 = vld [vmem:[%s5232 + $0x1c0] sm:$0xff]
    %v5290 = vld [vmem:[%s5232 + $0x1c8] sm:$0xff]
    %v5291 = vld [vmem:[%s5232 + $0x1d0] sm:$0xff]
    %v5292 = vld [vmem:[%s5232 + $0x1d8] sm:$0xff]
    %v5293 = vld [vmem:[%s5232 + $0x1e0] sm:$0xff]
    %v5294 = vld [vmem:[%s5232 + $0x1e8] sm:$0xff]
    %v5295 = vld [vmem:[%s5232 + $0x1f0] sm:$0xff]
    %v5296 = vld [vmem:[%s5232 + $0x1f8] sm:$0xff]
    %v5297 = vld [vmem:[%s5232 + $0x200] sm:$0xff]
    %v5298 = vld [vmem:[%s5232 + $0x208] sm:$0xff]
    %v5299 = vld [vmem:[%s5232 + $0x210] sm:$0xff]
    %v5300 = vld [vmem:[%s5232 + $0x218] sm:$0xff]
    %v5301 = vld [vmem:[%s5232 + $0x220] sm:$0xff]
    %v5302 = vld [vmem:[%s5232 + $0x228] sm:$0xff]
    %v5303 = vld [vmem:[%s5232 + $0x230] sm:$0xff]
    %v5304 = vld [vmem:[%s5232 + $0x238] sm:$0xff]
    %v5305 = vld [vmem:[%s5232 + $0x240] sm:$0xff]
    %v5306 = vld [vmem:[%s5232 + $0x248] sm:$0xff]
    %v5307 = vld [vmem:[%s5232 + $0x250] sm:$0xff]
    %v5308 = vld [vmem:[%s5232 + $0x258] sm:$0xff]
    %v5309 = vld [vmem:[%s5232 + $0x260] sm:$0xff]
    %v5310 = vld [vmem:[%s5232 + $0x268] sm:$0xff]
    %v5311 = vld [vmem:[%s5232 + $0x270] sm:$0xff]
    %v5312 = vld [vmem:[%s5232 + $0x278] sm:$0xff]
    %v5313 = vld [vmem:[%s5232 + $0x280] sm:$0xff]
    %v5314 = vld [vmem:[%s5232 + $0x288] sm:$0xff]
    %v5315 = vld [vmem:[%s5232 + $0x290] sm:$0xff]
    %v5316 = vld [vmem:[%s5232 + $0x298] sm:$0xff]
    %v5317 = vld [vmem:[%s5232 + $0x2a0] sm:$0xff]
    %v5318 = vld [vmem:[%s5232 + $0x2a8] sm:$0xff]
    %v5319 = vld [vmem:[%s5232 + $0x2b0] sm:$0xff]
    %v5320 = vld [vmem:[%s5232 + $0x2b8] sm:$0xff]
    %v5321 = vld [vmem:[%s5232 + $0x2c0] sm:$0xff]
    %v5322 = vld [vmem:[%s5232 + $0x2c8] sm:$0xff]
    %v5323 = vld [vmem:[%s5232 + $0x2d0] sm:$0xff]
    %v5324 = vld [vmem:[%s5232 + $0x2d8] sm:$0xff]
    %v5325 = vld [vmem:[%s5232 + $0x2e0] sm:$0xff]
    %v5326 = vld [vmem:[%s5232 + $0x2e8] sm:$0xff]
    %v5327 = vld [vmem:[%s5232 + $0x2f0] sm:$0xff]
    %v5328 = vld [vmem:[%s5232 + $0x2f8] sm:$0xff]
    %5329 = vmatpush.msra.mxu0 %v5248
    %5330 = vmatpush.msra.mxu0 %v5247
    %5331 = vmatpush.msra.mxu0 %v5246
    %5332 = vmatpush.msra.mxu0 %v5245
    %5333 = vmatpush.msra.mxu0 %v5244
    %5334 = vmatpush.msra.mxu0 %v5243
    %5335 = vmatpush.msra.mxu0 %v5242
    %5336 = vmatpush.msra.mxu0 %v5241
    %5337 = vmatpush.msra.mxu0 %v5240
    %5338 = vmatpush.msra.mxu0 %v5239
    %5339 = vmatpush.msra.mxu0 %v5238
    %5340 = vmatpush.msra.mxu0 %v5237
    %5341 = vmatpush.msra.mxu0 %v5236
    %5342 = vmatpush.msra.mxu0 %v5235
    %5343 = vmatpush.msra.mxu0 %v5234
    %5344 = vmatpush.msra.mxu0 %v5233
    %5345 = vmatmul.f32.gmra.mxu0 %v1811
    %v5346 = vpop.f32.mrf.mxu0
    %v5347 = vadd.f32 0.0, %v5346
    %5348 = vmatmul.f32.gmra.mxu0 %v1817
    %v5349 = vpop.f32.mrf.mxu0
    %v5350 = vadd.f32 0.0, %v5349
    %5351 = vmatmul.f32.gmra.mxu0 %v1823
    %v5352 = vpop.f32.mrf.mxu0
    %5353 = vmatmul.f32.gmra.mxu0 %v1829
    %v5354 = vpop.f32.mrf.mxu0
    %5355 = vmatmul.f32.gmra.mxu0 %v1835
    %v5356 = vpop.f32.mrf.mxu0
    %v5357 = vadd.f32 0.0, %v5356
    %5358 = vmatmul.f32.gmra.mxu0 %v5226
    %v5359 = vpop.f32.mrf.mxu0
    %v5360 = vadd.f32 0.0, %v5359
    %5361 = vdwg.mxu0
    %5362 = vmatpush.msra.mxu0 %v5264
    %5363 = vmatpush.msra.mxu0 %v5263
    %5364 = vmatpush.msra.mxu0 %v5262
    %5365 = vmatpush.msra.mxu0 %v5261
    %5366 = vmatpush.msra.mxu0 %v5260
    %5367 = vmatpush.msra.mxu0 %v5259
    %5368 = vmatpush.msra.mxu0 %v5258
    %5369 = vmatpush.msra.mxu0 %v5257
    %5370 = vmatpush.msra.mxu0 %v5256
    %5371 = vmatpush.msra.mxu0 %v5255
    %5372 = vmatpush.msra.mxu0 %v5254
    %5373 = vmatpush.msra.mxu0 %v5253
    %5374 = vmatpush.msra.mxu0 %v5252
    %5375 = vmatpush.msra.mxu0 %v5251
    %5376 = vmatpush.msra.mxu0 %v5250
    %5377 = vmatpush.msra.mxu0 %v5249
    %5378 = vmatmul.f32.gmra.mxu0 %v1812
    %v5379 = vpop.f32.mrf.mxu0
    %v5380 = vadd.f32 %v5347, %v5379
    %5381 = vmatmul.f32.gmra.mxu0 %v1818
    %v5382 = vpop.f32.mrf.mxu0
    %v5383 = vadd.f32 %v5350, %v5382
    %5384 = vmatmul.f32.gmra.mxu0 %v1824
    %v5385 = vpop.f32.mrf.mxu0
    %5386 = vmatmul.f32.gmra.mxu0 %v1830
    %v5387 = vpop.f32.mrf.mxu0
    %5388 = vmatmul.f32.gmra.mxu0 %v1836
    %v5389 = vpop.f32.mrf.mxu0
    %v5390 = vadd.f32 %v5357, %v5389
    %5391 = vmatmul.f32.gmra.mxu0 %v5227
    %v5392 = vpop.f32.mrf.mxu0
    %v5393 = vadd.f32 %v5360, %v5392
    %5394 = vdwg.mxu0
    %5395 = vmatpush.msra.mxu0 %v5280
    %5396 = vmatpush.msra.mxu0 %v5279
    %5397 = vmatpush.msra.mxu0 %v5278
    %5398 = vmatpush.msra.mxu0 %v5277
    %5399 = vmatpush.msra.mxu0 %v5276
    %5400 = vmatpush.msra.mxu0 %v5275
    %5401 = vmatpush.msra.mxu0 %v5274
    %5402 = vmatpush.msra.mxu0 %v5273
    %5403 = vmatpush.msra.mxu0 %v5272
    %5404 = vmatpush.msra.mxu0 %v5271
    %5405 = vmatpush.msra.mxu0 %v5270
    %5406 = vmatpush.msra.mxu0 %v5269
    %5407 = vmatpush.msra.mxu0 %v5268
    %5408 = vmatpush.msra.mxu0 %v5267
    %5409 = vmatpush.msra.mxu0 %v5266
    %5410 = vmatpush.msra.mxu0 %v5265
    %5411 = vmatmul.f32.gmra.mxu0 %v1813
    %v5412 = vpop.f32.mrf.mxu0
    %v5413 = vadd.f32 %v5380, %v5412
    %5414 = vmatmul.f32.gmra.mxu0 %v1819
    %v5415 = vpop.f32.mrf.mxu0
    %v5416 = vadd.f32 %v5383, %v5415
    %5417 = vmatmul.f32.gmra.mxu0 %v1825
    %v5418 = vpop.f32.mrf.mxu0
    %5419 = vmatmul.f32.gmra.mxu0 %v1831
    %v5420 = vpop.f32.mrf.mxu0
    %5421 = vmatmul.f32.gmra.mxu0 %v1837
    %v5422 = vpop.f32.mrf.mxu0
    %v5423 = vadd.f32 %v5390, %v5422
    %5424 = vmatmul.f32.gmra.mxu0 %v5228
    %v5425 = vpop.f32.mrf.mxu0
    %v5426 = vadd.f32 %v5393, %v5425
    %5427 = vdwg.mxu0
    %5428 = vmatpush.msra.mxu0 %v5296
    %5429 = vmatpush.msra.mxu0 %v5295
    %5430 = vmatpush.msra.mxu0 %v5294
    %5431 = vmatpush.msra.mxu0 %v5293
    %5432 = vmatpush.msra.mxu0 %v5292
    %5433 = vmatpush.msra.mxu0 %v5291
    %5434 = vmatpush.msra.mxu0 %v5290
    %5435 = vmatpush.msra.mxu0 %v5289
    %5436 = vmatpush.msra.mxu0 %v5288
    %5437 = vmatpush.msra.mxu0 %v5287
    %5438 = vmatpush.msra.mxu0 %v5286
    %5439 = vmatpush.msra.mxu0 %v5285
    %5440 = vmatpush.msra.mxu0 %v5284
    %5441 = vmatpush.msra.mxu0 %v5283
    %5442 = vmatpush.msra.mxu0 %v5282
    %5443 = vmatpush.msra.mxu0 %v5281
    %5444 = vmatmul.f32.gmra.mxu0 %v1814
    %v5445 = vpop.f32.mrf.mxu0
    %v5446 = vadd.f32 %v5413, %v5445
    %5447 = vmatmul.f32.gmra.mxu0 %v1820
    %v5448 = vpop.f32.mrf.mxu0
    %v5449 = vadd.f32 %v5416, %v5448
    %5450 = vmatmul.f32.gmra.mxu0 %v1826
    %v5451 = vpop.f32.mrf.mxu0
    %5452 = vmatmul.f32.gmra.mxu0 %v1832
    %v5453 = vpop.f32.mrf.mxu0
    %5454 = vmatmul.f32.gmra.mxu0 %v1838
    %v5455 = vpop.f32.mrf.mxu0
    %v5456 = vadd.f32 %v5423, %v5455
    %5457 = vmatmul.f32.gmra.mxu0 %v5229
    %v5458 = vpop.f32.mrf.mxu0
    %v5459 = vadd.f32 %v5426, %v5458
    %5460 = vdwg.mxu0
    %5461 = vmatpush.msra.mxu0 %v5312
    %5462 = vmatpush.msra.mxu0 %v5311
    %5463 = vmatpush.msra.mxu0 %v5310
    %5464 = vmatpush.msra.mxu0 %v5309
    %5465 = vmatpush.msra.mxu0 %v5308
    %5466 = vmatpush.msra.mxu0 %v5307
    %5467 = vmatpush.msra.mxu0 %v5306
    %5468 = vmatpush.msra.mxu0 %v5305
    %5469 = vmatpush.msra.mxu0 %v5304
    %5470 = vmatpush.msra.mxu0 %v5303
    %5471 = vmatpush.msra.mxu0 %v5302
    %5472 = vmatpush.msra.mxu0 %v5301
    %5473 = vmatpush.msra.mxu0 %v5300
    %5474 = vmatpush.msra.mxu0 %v5299
    %5475 = vmatpush.msra.mxu0 %v5298
    %5476 = vmatpush.msra.mxu0 %v5297
    %5477 = vmatmul.f32.gmra.mxu0 %v1815
    %v5478 = vpop.f32.mrf.mxu0
    %v5479 = vadd.f32 %v5446, %v5478
    %5480 = vmatmul.f32.gmra.mxu0 %v1821
    %v5481 = vpop.f32.mrf.mxu0
    %v5482 = vadd.f32 %v5449, %v5481
    %5483 = vmatmul.f32.gmra.mxu0 %v1827
    %v5484 = vpop.f32.mrf.mxu0
    %5485 = vmatmul.f32.gmra.mxu0 %v1833
    %v5486 = vpop.f32.mrf.mxu0
    %5487 = vmatmul.f32.gmra.mxu0 %v1839
    %v5488 = vpop.f32.mrf.mxu0
    %v5489 = vadd.f32 %v5456, %v5488
    %5490 = vmatmul.f32.gmra.mxu0 %v5230
    %v5491 = vpop.f32.mrf.mxu0
    %v5492 = vadd.f32 %v5459, %v5491
    %5493 = vdwg.mxu0
    %5494 = vmatpush.msra.mxu0 %v5328
    %5495 = vmatpush.msra.mxu0 %v5327
    %5496 = vmatpush.msra.mxu0 %v5326
    %5497 = vmatpush.msra.mxu0 %v5325
    %5498 = vmatpush.msra.mxu0 %v5324
    %5499 = vmatpush.msra.mxu0 %v5323
    %5500 = vmatpush.msra.mxu0 %v5322
    %5501 = vmatpush.msra.mxu0 %v5321
    %5502 = vmatpush.msra.mxu0 %v5320
    %5503 = vmatpush.msra.mxu0 %v5319
    %5504 = vmatpush.msra.mxu0 %v5318
    %5505 = vmatpush.msra.mxu0 %v5317
    %5506 = vmatpush.msra.mxu0 %v5316
    %5507 = vmatpush.msra.mxu0 %v5315
    %5508 = vmatpush.msra.mxu0 %v5314
    %5509 = vmatpush.msra.mxu0 %v5313
    %5510 = vmatmul.f32.gmra.mxu0 %v1816
    %v5511 = vpop.f32.mrf.mxu0
    %v5512 = vadd.f32 %v5479, %v5511
    %5513 = vmatmul.f32.gmra.mxu0 %v1822
    %v5514 = vpop.f32.mrf.mxu0
    %v5515 = vadd.f32 %v5482, %v5514
    %5516 = vmatmul.f32.gmra.mxu0 %v1828
    %v5517 = vpop.f32.mrf.mxu0
    %5518 = vmatmul.f32.gmra.mxu0 %v1834
    %v5519 = vpop.f32.mrf.mxu0
    %5520 = vmatmul.f32.gmra.mxu0 %v1840
    %v5521 = vpop.f32.mrf.mxu0
    %v5522 = vadd.f32 %v5489, %v5521
    %5523 = vmatmul.f32.gmra.mxu0 %v5231
    %v5524 = vpop.f32.mrf.mxu0
    %v5525 = vadd.f32 %v5492, %v5524
    %5526 = vdwg.mxu0
    %v5527 = vadd.f32 %v5222, %v5512
    %v5528 = vadd.f32 %v5223, %v5515
    %v5529 = vadd.f32 %v5224, %v5522
    %v5530 = vadd.f32 %v5225, %v5525
    %v5531 = vld [vmem:[#allocation2 + $0x30] sm:$0xfe]
    %v5532 = vld [vmem:[#allocation2 + $0x38] sm:$0xfe]
    %v5533 = vld [vmem:[#allocation2 + $0x40] sm:$0xfe]
    %v5534 = vld [vmem:[#allocation2 + $0x48] sm:$0xfe]
    %v5535 = vld [vmem:[#allocation2 + $0x50] sm:$0xfe]
    %v5536 = vld [vmem:[#allocation2 + $0x58] sm:$0xfe]
    %v5537 = vld [vmem:[#allocation2 + $0x60] sm:$0xff]
    %v5538 = vld [vmem:[#allocation2 + $0x68] sm:$0xff]
    %v5539 = vld [vmem:[#allocation2 + $0x70] sm:$0xff]
    %v5540 = vld [vmem:[#allocation2 + $0x78] sm:$0xff]
    %v5541 = vld [vmem:[#allocation2 + $0x80] sm:$0xff]
    %v5542 = vld [vmem:[#allocation2 + $0x88] sm:$0xff]
    %v5543 = vld [vmem:[#allocation2 + $0x90] sm:$0xff]
    %v5544 = vld [vmem:[#allocation2 + $0x98] sm:$0xff]
    %v5545 = vld [vmem:[#allocation2 + $0xa0] sm:$0xff]
    %v5546 = vld [vmem:[#allocation2 + $0xa8] sm:$0xff]
    %v5547 = vld [vmem:[#allocation2 + $0xb0] sm:$0xff]
    %v5548 = vld [vmem:[#allocation2 + $0xb8] sm:$0xff]
    %v5549 = vld [vmem:[#allocation2 + $0xc0] sm:$0xff]
    %v5550 = vld [vmem:[#allocation2 + $0xc8] sm:$0xff]
    %v5551 = vld [vmem:[#allocation2 + $0xd0] sm:$0xff]
    %v5552 = vld [vmem:[#allocation2 + $0xd8] sm:$0xff]
    %v5553 = vld [vmem:[#allocation2 + $0xe0] sm:$0xff]
    %v5554 = vld [vmem:[#allocation2 + $0xe8] sm:$0xff]
    %v5555 = vld [vmem:[#allocation2 + $0xf0] sm:$0xff]
    %v5556 = vld [vmem:[#allocation2 + $0xf8] sm:$0xff]
    %v5557 = vld [vmem:[#allocation2 + $0x100] sm:$0xff]
    %v5558 = vld [vmem:[#allocation2 + $0x108] sm:$0xff]
    %v5559 = vld [vmem:[#allocation2 + $0x110] sm:$0xff]
    %v5560 = vld [vmem:[#allocation2 + $0x118] sm:$0xff]
    %v5561 = vld [vmem:[#allocation2 + $0x120] sm:$0xff]
    %v5562 = vld [vmem:[#allocation2 + $0x128] sm:$0xff]
    %v5563 = vld [vmem:[#allocation2 + $0x130] sm:$0xff]
    %v5564 = vld [vmem:[#allocation2 + $0x138] sm:$0xff]
    %v5565 = vld [vmem:[#allocation2 + $0x140] sm:$0xff]
    %v5566 = vld [vmem:[#allocation2 + $0x148] sm:$0xff]
    %v5567 = vld [vmem:[#allocation2 + $0x150] sm:$0x1]
    %v5568 = vld [vmem:[#allocation2 + $0x158] sm:$0x1]
    %v5569 = vld [vmem:[#allocation2 + $0x160] sm:$0x1]
    %v5570 = vld [vmem:[#allocation2 + $0x168] sm:$0x1]
    %v5571 = vld [vmem:[#allocation2 + $0x170] sm:$0x1]
    %v5572 = vld [vmem:[#allocation2 + $0x178] sm:$0x1]
    %s5573 = scalar_lea.vmem [#allocation5], 6912
    %v5574 = vld [vmem:[%s5573] sm:$0xff]
    %v5575 = vld [vmem:[%s5573 + $0x8] sm:$0xff]
    %v5576 = vld [vmem:[%s5573 + $0x10] sm:$0xff]
    %v5577 = vld [vmem:[%s5573 + $0x18] sm:$0xff]
    %v5578 = vld [vmem:[%s5573 + $0x20] sm:$0xff]
    %v5579 = vld [vmem:[%s5573 + $0x28] sm:$0xff]
    %v5580 = vld [vmem:[%s5573 + $0x30] sm:$0xff]
    %v5581 = vld [vmem:[%s5573 + $0x38] sm:$0xff]
    %v5582 = vld [vmem:[%s5573 + $0x40] sm:$0xff]
    %v5583 = vld [vmem:[%s5573 + $0x48] sm:$0xff]
    %v5584 = vld [vmem:[%s5573 + $0x50] sm:$0xff]
    %v5585 = vld [vmem:[%s5573 + $0x58] sm:$0xff]
    %v5586 = vld [vmem:[%s5573 + $0x60] sm:$0xff]
    %v5587 = vld [vmem:[%s5573 + $0x68] sm:$0xff]
    %v5588 = vld [vmem:[%s5573 + $0x70] sm:$0xff]
    %v5589 = vld [vmem:[%s5573 + $0x78] sm:$0xff]
    %v5590 = vld [vmem:[%s5573 + $0x80] sm:$0xff]
    %v5591 = vld [vmem:[%s5573 + $0x88] sm:$0xff]
    %v5592 = vld [vmem:[%s5573 + $0x90] sm:$0xff]
    %v5593 = vld [vmem:[%s5573 + $0x98] sm:$0xff]
    %v5594 = vld [vmem:[%s5573 + $0xa0] sm:$0xff]
    %v5595 = vld [vmem:[%s5573 + $0xa8] sm:$0xff]
    %v5596 = vld [vmem:[%s5573 + $0xb0] sm:$0xff]
    %v5597 = vld [vmem:[%s5573 + $0xb8] sm:$0xff]
    %v5598 = vld [vmem:[%s5573 + $0xc0] sm:$0xff]
    %v5599 = vld [vmem:[%s5573 + $0xc8] sm:$0xff]
    %v5600 = vld [vmem:[%s5573 + $0xd0] sm:$0xff]
    %v5601 = vld [vmem:[%s5573 + $0xd8] sm:$0xff]
    %v5602 = vld [vmem:[%s5573 + $0xe0] sm:$0xff]
    %v5603 = vld [vmem:[%s5573 + $0xe8] sm:$0xff]
    %v5604 = vld [vmem:[%s5573 + $0xf0] sm:$0xff]
    %v5605 = vld [vmem:[%s5573 + $0xf8] sm:$0xff]
    %v5606 = vld [vmem:[%s5573 + $0x100] sm:$0xff]
    %v5607 = vld [vmem:[%s5573 + $0x108] sm:$0xff]
    %v5608 = vld [vmem:[%s5573 + $0x110] sm:$0xff]
    %v5609 = vld [vmem:[%s5573 + $0x118] sm:$0xff]
    %v5610 = vld [vmem:[%s5573 + $0x120] sm:$0xff]
    %v5611 = vld [vmem:[%s5573 + $0x128] sm:$0xff]
    %v5612 = vld [vmem:[%s5573 + $0x130] sm:$0xff]
    %v5613 = vld [vmem:[%s5573 + $0x138] sm:$0xff]
    %v5614 = vld [vmem:[%s5573 + $0x140] sm:$0xff]
    %v5615 = vld [vmem:[%s5573 + $0x148] sm:$0xff]
    %v5616 = vld [vmem:[%s5573 + $0x150] sm:$0xff]
    %v5617 = vld [vmem:[%s5573 + $0x158] sm:$0xff]
    %v5618 = vld [vmem:[%s5573 + $0x160] sm:$0xff]
    %v5619 = vld [vmem:[%s5573 + $0x168] sm:$0xff]
    %v5620 = vld [vmem:[%s5573 + $0x170] sm:$0xff]
    %v5621 = vld [vmem:[%s5573 + $0x178] sm:$0xff]
    %v5622 = vld [vmem:[%s5573 + $0x180] sm:$0xff]
    %v5623 = vld [vmem:[%s5573 + $0x188] sm:$0xff]
    %v5624 = vld [vmem:[%s5573 + $0x190] sm:$0xff]
    %v5625 = vld [vmem:[%s5573 + $0x198] sm:$0xff]
    %v5626 = vld [vmem:[%s5573 + $0x1a0] sm:$0xff]
    %v5627 = vld [vmem:[%s5573 + $0x1a8] sm:$0xff]
    %v5628 = vld [vmem:[%s5573 + $0x1b0] sm:$0xff]
    %v5629 = vld [vmem:[%s5573 + $0x1b8] sm:$0xff]
    %v5630 = vld [vmem:[%s5573 + $0x1c0] sm:$0xff]
    %v5631 = vld [vmem:[%s5573 + $0x1c8] sm:$0xff]
    %v5632 = vld [vmem:[%s5573 + $0x1d0] sm:$0xff]
    %v5633 = vld [vmem:[%s5573 + $0x1d8] sm:$0xff]
    %v5634 = vld [vmem:[%s5573 + $0x1e0] sm:$0xff]
    %v5635 = vld [vmem:[%s5573 + $0x1e8] sm:$0xff]
    %v5636 = vld [vmem:[%s5573 + $0x1f0] sm:$0xff]
    %v5637 = vld [vmem:[%s5573 + $0x1f8] sm:$0xff]
    %v5638 = vld [vmem:[%s5573 + $0x200] sm:$0xff]
    %v5639 = vld [vmem:[%s5573 + $0x208] sm:$0xff]
    %v5640 = vld [vmem:[%s5573 + $0x210] sm:$0xff]
    %v5641 = vld [vmem:[%s5573 + $0x218] sm:$0xff]
    %v5642 = vld [vmem:[%s5573 + $0x220] sm:$0xff]
    %v5643 = vld [vmem:[%s5573 + $0x228] sm:$0xff]
    %v5644 = vld [vmem:[%s5573 + $0x230] sm:$0xff]
    %v5645 = vld [vmem:[%s5573 + $0x238] sm:$0xff]
    %v5646 = vld [vmem:[%s5573 + $0x240] sm:$0xff]
    %v5647 = vld [vmem:[%s5573 + $0x248] sm:$0xff]
    %v5648 = vld [vmem:[%s5573 + $0x250] sm:$0xff]
    %v5649 = vld [vmem:[%s5573 + $0x258] sm:$0xff]
    %v5650 = vld [vmem:[%s5573 + $0x260] sm:$0xff]
    %v5651 = vld [vmem:[%s5573 + $0x268] sm:$0xff]
    %v5652 = vld [vmem:[%s5573 + $0x270] sm:$0xff]
    %v5653 = vld [vmem:[%s5573 + $0x278] sm:$0xff]
    %v5654 = vld [vmem:[%s5573 + $0x280] sm:$0xff]
    %v5655 = vld [vmem:[%s5573 + $0x288] sm:$0xff]
    %v5656 = vld [vmem:[%s5573 + $0x290] sm:$0xff]
    %v5657 = vld [vmem:[%s5573 + $0x298] sm:$0xff]
    %v5658 = vld [vmem:[%s5573 + $0x2a0] sm:$0xff]
    %v5659 = vld [vmem:[%s5573 + $0x2a8] sm:$0xff]
    %v5660 = vld [vmem:[%s5573 + $0x2b0] sm:$0xff]
    %v5661 = vld [vmem:[%s5573 + $0x2b8] sm:$0xff]
    %v5662 = vld [vmem:[%s5573 + $0x2c0] sm:$0xff]
    %v5663 = vld [vmem:[%s5573 + $0x2c8] sm:$0xff]
    %v5664 = vld [vmem:[%s5573 + $0x2d0] sm:$0xff]
    %v5665 = vld [vmem:[%s5573 + $0x2d8] sm:$0xff]
    %v5666 = vld [vmem:[%s5573 + $0x2e0] sm:$0xff]
    %v5667 = vld [vmem:[%s5573 + $0x2e8] sm:$0xff]
    %v5668 = vld [vmem:[%s5573 + $0x2f0] sm:$0xff]
    %v5669 = vld [vmem:[%s5573 + $0x2f8] sm:$0xff]
    %v5712 = vrot.slane %v5531, 1
    %v5713 = vrot.slane %v5537, 1
    %v5714 = vsel %vm2088, %v5712, %v5713
    %v5715 = vrot.slane %v5532, 1
    %v5716 = vrot.slane %v5538, 1
    %v5717 = vsel %vm2088, %v5715, %v5716
    %v5718 = vrot.slane %v5533, 1
    %v5719 = vrot.slane %v5539, 1
    %v5720 = vsel %vm2088, %v5718, %v5719
    %v5721 = vrot.slane %v5534, 1
    %v5722 = vrot.slane %v5540, 1
    %v5723 = vsel %vm2088, %v5721, %v5722
    %v5724 = vrot.slane %v5535, 1
    %v5725 = vrot.slane %v5541, 1
    %v5726 = vsel %vm2088, %v5724, %v5725
    %v5727 = vrot.slane %v5536, 1
    %v5728 = vrot.slane %v5542, 1
    %v5729 = vsel %vm2088, %v5727, %v5728
    %v5730 = vrot.slane %v5543, 1
    %v5731 = vsel %vm2088, %v5713, %v5730
    %v5732 = vrot.slane %v5544, 1
    %v5733 = vsel %vm2088, %v5716, %v5732
    %v5734 = vrot.slane %v5545, 1
    %v5735 = vsel %vm2088, %v5719, %v5734
    %v5736 = vrot.slane %v5546, 1
    %v5737 = vsel %vm2088, %v5722, %v5736
    %v5738 = vrot.slane %v5547, 1
    %v5739 = vsel %vm2088, %v5725, %v5738
    %v5740 = vrot.slane %v5548, 1
    %v5741 = vsel %vm2088, %v5728, %v5740
    %v5742 = vrot.slane %v5549, 1
    %v5743 = vsel %vm2088, %v5730, %v5742
    %v5744 = vrot.slane %v5550, 1
    %v5745 = vsel %vm2088, %v5732, %v5744
    %v5746 = vrot.slane %v5551, 1
    %v5747 = vsel %vm2088, %v5734, %v5746
    %v5748 = vrot.slane %v5552, 1
    %v5749 = vsel %vm2088, %v5736, %v5748
    %v5750 = vrot.slane %v5553, 1
    %v5751 = vsel %vm2088, %v5738, %v5750
    %v5752 = vrot.slane %v5554, 1
    %v5753 = vsel %vm2088, %v5740, %v5752
    %v5754 = vrot.slane %v5555, 1
    %v5755 = vsel %vm2088, %v5742, %v5754
    %v5756 = vrot.slane %v5556, 1
    %v5757 = vsel %vm2088, %v5744, %v5756
    %v5758 = vrot.slane %v5557, 1
    %v5759 = vsel %vm2088, %v5746, %v5758
    %v5760 = vrot.slane %v5558, 1
    %v5761 = vsel %vm2088, %v5748, %v5760
    %v5762 = vrot.slane %v5559, 1
    %v5763 = vsel %vm2088, %v5750, %v5762
    %v5764 = vrot.slane %v5560, 1
    %v5765 = vsel %vm2088, %v5752, %v5764
    %v5766 = vrot.slane %v5561, 1
    %v5767 = vsel %vm2088, %v5754, %v5766
    %v5768 = vrot.slane %v5562, 1
    %v5769 = vsel %vm2088, %v5756, %v5768
    %v5770 = vrot.slane %v5563, 1
    %v5771 = vsel %vm2088, %v5758, %v5770
    %v5772 = vrot.slane %v5564, 1
    %v5773 = vsel %vm2088, %v5760, %v5772
    %v5774 = vrot.slane %v5565, 1
    %v5775 = vsel %vm2088, %v5762, %v5774
    %v5776 = vrot.slane %v5566, 1
    %v5777 = vsel %vm2088, %v5764, %v5776
    %v5778 = vrot.slane %v5567, 1
    %v5779 = vsel %vm2088, %v5766, %v5778
    %v5780 = vrot.slane %v5568, 1
    %v5781 = vsel %vm2088, %v5768, %v5780
    %v5782 = vrot.slane %v5569, 1
    %v5783 = vsel %vm2088, %v5770, %v5782
    %v5784 = vrot.slane %v5570, 1
    %v5785 = vsel %vm2088, %v5772, %v5784
    %v5786 = vrot.slane %v5571, 1
    %v5787 = vsel %vm2088, %v5774, %v5786
    %v5788 = vrot.slane %v5572, 1
    %v5789 = vsel %vm2088, %v5776, %v5788
    %5826 = vmatpush.msra.mxu0 %v5589
    %5827 = vmatpush.msra.mxu0 %v5588
    %5828 = vmatpush.msra.mxu0 %v5587
    %5829 = vmatpush.msra.mxu0 %v5586
    %5830 = vmatpush.msra.mxu0 %v5585
    %5831 = vmatpush.msra.mxu0 %v5584
    %5832 = vmatpush.msra.mxu0 %v5583
    %5833 = vmatpush.msra.mxu0 %v5582
    %5834 = vmatpush.msra.mxu0 %v5581
    %5835 = vmatpush.msra.mxu0 %v5580
    %5836 = vmatpush.msra.mxu0 %v5579
    %5837 = vmatpush.msra.mxu0 %v5578
    %5838 = vmatpush.msra.mxu0 %v5577
    %5839 = vmatpush.msra.mxu0 %v5576
    %5840 = vmatpush.msra.mxu0 %v5575
    %5841 = vmatpush.msra.mxu0 %v5574
    %5842 = vmatmul.f32.gmra.mxu0 %v5714
    %v5843 = vpop.f32.mrf.mxu0
    %v5844 = vadd.f32 0.0, %v5843
    %5845 = vmatmul.f32.gmra.mxu0 %v5731
    %v5846 = vpop.f32.mrf.mxu0
    %v5847 = vadd.f32 0.0, %v5846
    %5848 = vmatmul.f32.gmra.mxu0 %v5743
    %v5849 = vpop.f32.mrf.mxu0
    %5850 = vmatmul.f32.gmra.mxu0 %v5755
    %v5851 = vpop.f32.mrf.mxu0
    %5852 = vmatmul.f32.gmra.mxu0 %v5767
    %v5853 = vpop.f32.mrf.mxu0
    %v5854 = vadd.f32 0.0, %v5853
    %5855 = vmatmul.f32.gmra.mxu0 %v5779
    %v5856 = vpop.f32.mrf.mxu0
    %v5857 = vadd.f32 0.0, %v5856
    %5858 = vdwg.mxu0
    %5859 = vmatpush.msra.mxu0 %v5605
    %5860 = vmatpush.msra.mxu0 %v5604
    %5861 = vmatpush.msra.mxu0 %v5603
    %5862 = vmatpush.msra.mxu0 %v5602
    %5863 = vmatpush.msra.mxu0 %v5601
    %5864 = vmatpush.msra.mxu0 %v5600
    %5865 = vmatpush.msra.mxu0 %v5599
    %5866 = vmatpush.msra.mxu0 %v5598
    %5867 = vmatpush.msra.mxu0 %v5597
    %5868 = vmatpush.msra.mxu0 %v5596
    %5869 = vmatpush.msra.mxu0 %v5595
    %5870 = vmatpush.msra.mxu0 %v5594
    %5871 = vmatpush.msra.mxu0 %v5593
    %5872 = vmatpush.msra.mxu0 %v5592
    %5873 = vmatpush.msra.mxu0 %v5591
    %5874 = vmatpush.msra.mxu0 %v5590
    %5875 = vmatmul.f32.gmra.mxu0 %v5717
    %v5876 = vpop.f32.mrf.mxu0
    %v5877 = vadd.f32 %v5844, %v5876
    %5878 = vmatmul.f32.gmra.mxu0 %v5733
    %v5879 = vpop.f32.mrf.mxu0
    %v5880 = vadd.f32 %v5847, %v5879
    %5881 = vmatmul.f32.gmra.mxu0 %v5745
    %v5882 = vpop.f32.mrf.mxu0
    %5883 = vmatmul.f32.gmra.mxu0 %v5757
    %v5884 = vpop.f32.mrf.mxu0
    %5885 = vmatmul.f32.gmra.mxu0 %v5769
    %v5886 = vpop.f32.mrf.mxu0
    %v5887 = vadd.f32 %v5854, %v5886
    %5888 = vmatmul.f32.gmra.mxu0 %v5781
    %v5889 = vpop.f32.mrf.mxu0
    %v5890 = vadd.f32 %v5857, %v5889
    %5891 = vdwg.mxu0
    %5892 = vmatpush.msra.mxu0 %v5621
    %5893 = vmatpush.msra.mxu0 %v5620
    %5894 = vmatpush.msra.mxu0 %v5619
    %5895 = vmatpush.msra.mxu0 %v5618
    %5896 = vmatpush.msra.mxu0 %v5617
    %5897 = vmatpush.msra.mxu0 %v5616
    %5898 = vmatpush.msra.mxu0 %v5615
    %5899 = vmatpush.msra.mxu0 %v5614
    %5900 = vmatpush.msra.mxu0 %v5613
    %5901 = vmatpush.msra.mxu0 %v5612
    %5902 = vmatpush.msra.mxu0 %v5611
    %5903 = vmatpush.msra.mxu0 %v5610
    %5904 = vmatpush.msra.mxu0 %v5609
    %5905 = vmatpush.msra.mxu0 %v5608
    %5906 = vmatpush.msra.mxu0 %v5607
    %5907 = vmatpush.msra.mxu0 %v5606
    %5908 = vmatmul.f32.gmra.mxu0 %v5720
    %v5909 = vpop.f32.mrf.mxu0
    %v5910 = vadd.f32 %v5877, %v5909
    %5911 = vmatmul.f32.gmra.mxu0 %v5735
    %v5912 = vpop.f32.mrf.mxu0
    %v5913 = vadd.f32 %v5880, %v5912
    %5914 = vmatmul.f32.gmra.mxu0 %v5747
    %v5915 = vpop.f32.mrf.mxu0
    %5916 = vmatmul.f32.gmra.mxu0 %v5759
    %v5917 = vpop.f32.mrf.mxu0
    %5918 = vmatmul.f32.gmra.mxu0 %v5771
    %v5919 = vpop.f32.mrf.mxu0
    %v5920 = vadd.f32 %v5887, %v5919
    %5921 = vmatmul.f32.gmra.mxu0 %v5783
    %v5922 = vpop.f32.mrf.mxu0
    %v5923 = vadd.f32 %v5890, %v5922
    %5924 = vdwg.mxu0
    %5925 = vmatpush.msra.mxu0 %v5637
    %5926 = vmatpush.msra.mxu0 %v5636
    %5927 = vmatpush.msra.mxu0 %v5635
    %5928 = vmatpush.msra.mxu0 %v5634
    %5929 = vmatpush.msra.mxu0 %v5633
    %5930 = vmatpush.msra.mxu0 %v5632
    %5931 = vmatpush.msra.mxu0 %v5631
    %5932 = vmatpush.msra.mxu0 %v5630
    %5933 = vmatpush.msra.mxu0 %v5629
    %5934 = vmatpush.msra.mxu0 %v5628
    %5935 = vmatpush.msra.mxu0 %v5627
    %5936 = vmatpush.msra.mxu0 %v5626
    %5937 = vmatpush.msra.mxu0 %v5625
    %5938 = vmatpush.msra.mxu0 %v5624
    %5939 = vmatpush.msra.mxu0 %v5623
    %5940 = vmatpush.msra.mxu0 %v5622
    %5941 = vmatmul.f32.gmra.mxu0 %v5723
    %v5942 = vpop.f32.mrf.mxu0
    %v5943 = vadd.f32 %v5910, %v5942
    %5944 = vmatmul.f32.gmra.mxu0 %v5737
    %v5945 = vpop.f32.mrf.mxu0
    %v5946 = vadd.f32 %v5913, %v5945
    %5947 = vmatmul.f32.gmra.mxu0 %v5749
    %v5948 = vpop.f32.mrf.mxu0
    %5949 = vmatmul.f32.gmra.mxu0 %v5761
    %v5950 = vpop.f32.mrf.mxu0
    %5951 = vmatmul.f32.gmra.mxu0 %v5773
    %v5952 = vpop.f32.mrf.mxu0
    %v5953 = vadd.f32 %v5920, %v5952
    %5954 = vmatmul.f32.gmra.mxu0 %v5785
    %v5955 = vpop.f32.mrf.mxu0
    %v5956 = vadd.f32 %v5923, %v5955
    %5957 = vdwg.mxu0
    %5958 = vmatpush.msra.mxu0 %v5653
    %5959 = vmatpush.msra.mxu0 %v5652
    %5960 = vmatpush.msra.mxu0 %v5651
    %5961 = vmatpush.msra.mxu0 %v5650
    %5962 = vmatpush.msra.mxu0 %v5649
    %5963 = vmatpush.msra.mxu0 %v5648
    %5964 = vmatpush.msra.mxu0 %v5647
    %5965 = vmatpush.msra.mxu0 %v5646
    %5966 = vmatpush.msra.mxu0 %v5645
    %5967 = vmatpush.msra.mxu0 %v5644
    %5968 = vmatpush.msra.mxu0 %v5643
    %5969 = vmatpush.msra.mxu0 %v5642
    %5970 = vmatpush.msra.mxu0 %v5641
    %5971 = vmatpush.msra.mxu0 %v5640
    %5972 = vmatpush.msra.mxu0 %v5639
    %5973 = vmatpush.msra.mxu0 %v5638
    %5974 = vmatmul.f32.gmra.mxu0 %v5726
    %v5975 = vpop.f32.mrf.mxu0
    %v5976 = vadd.f32 %v5943, %v5975
    %5977 = vmatmul.f32.gmra.mxu0 %v5739
    %v5978 = vpop.f32.mrf.mxu0
    %v5979 = vadd.f32 %v5946, %v5978
    %5980 = vmatmul.f32.gmra.mxu0 %v5751
    %v5981 = vpop.f32.mrf.mxu0
    %5982 = vmatmul.f32.gmra.mxu0 %v5763
    %v5983 = vpop.f32.mrf.mxu0
    %5984 = vmatmul.f32.gmra.mxu0 %v5775
    %v5985 = vpop.f32.mrf.mxu0
    %v5986 = vadd.f32 %v5953, %v5985
    %5987 = vmatmul.f32.gmra.mxu0 %v5787
    %v5988 = vpop.f32.mrf.mxu0
    %v5989 = vadd.f32 %v5956, %v5988
    %5990 = vdwg.mxu0
    %5991 = vmatpush.msra.mxu0 %v5669
    %5992 = vmatpush.msra.mxu0 %v5668
    %5993 = vmatpush.msra.mxu0 %v5667
    %5994 = vmatpush.msra.mxu0 %v5666
    %5995 = vmatpush.msra.mxu0 %v5665
    %5996 = vmatpush.msra.mxu0 %v5664
    %5997 = vmatpush.msra.mxu0 %v5663
    %5998 = vmatpush.msra.mxu0 %v5662
    %5999 = vmatpush.msra.mxu0 %v5661
    %6000 = vmatpush.msra.mxu0 %v5660
    %6001 = vmatpush.msra.mxu0 %v5659
    %6002 = vmatpush.msra.mxu0 %v5658
    %6003 = vmatpush.msra.mxu0 %v5657
    %6004 = vmatpush.msra.mxu0 %v5656
    %6005 = vmatpush.msra.mxu0 %v5655
    %6006 = vmatpush.msra.mxu0 %v5654
    %6007 = vmatmul.f32.gmra.mxu0 %v5729
    %v6008 = vpop.f32.mrf.mxu0
    %v6009 = vadd.f32 %v5976, %v6008
    %6010 = vmatmul.f32.gmra.mxu0 %v5741
    %v6011 = vpop.f32.mrf.mxu0
    %v6012 = vadd.f32 %v5979, %v6011
    %6013 = vmatmul.f32.gmra.mxu0 %v5753
    %v6014 = vpop.f32.mrf.mxu0
    %6015 = vmatmul.f32.gmra.mxu0 %v5765
    %v6016 = vpop.f32.mrf.mxu0
    %6017 = vmatmul.f32.gmra.mxu0 %v5777
    %v6018 = vpop.f32.mrf.mxu0
    %v6019 = vadd.f32 %v5986, %v6018
    %6020 = vmatmul.f32.gmra.mxu0 %v5789
    %v6021 = vpop.f32.mrf.mxu0
    %v6022 = vadd.f32 %v5989, %v6021
    %6023 = vdwg.mxu0
    %v6024 = vadd.f32 %v5527, %v6009
    %v6025 = vadd.f32 %v5528, %v6012
    %v6026 = vadd.f32 %v5529, %v6019
    %v6027 = vadd.f32 %v5530, %v6022
    %v6028 = vld [vmem:[#allocation2 + $0x30] sm:$0xfc]
    %v6029 = vld [vmem:[#allocation2 + $0x38] sm:$0xfc]
    %v6030 = vld [vmem:[#allocation2 + $0x40] sm:$0xfc]
    %v6031 = vld [vmem:[#allocation2 + $0x48] sm:$0xfc]
    %v6032 = vld [vmem:[#allocation2 + $0x50] sm:$0xfc]
    %v6033 = vld [vmem:[#allocation2 + $0x58] sm:$0xfc]
    %v6034 = vld [vmem:[#allocation2 + $0x150] sm:$0x3]
    %v6035 = vld [vmem:[#allocation2 + $0x158] sm:$0x3]
    %v6036 = vld [vmem:[#allocation2 + $0x160] sm:$0x3]
    %v6037 = vld [vmem:[#allocation2 + $0x168] sm:$0x3]
    %v6038 = vld [vmem:[#allocation2 + $0x170] sm:$0x3]
    %v6039 = vld [vmem:[#allocation2 + $0x178] sm:$0x3]
    %s6040 = scalar_lea.vmem [#allocation5], 7680
    %v6041 = vld [vmem:[%s6040] sm:$0xff]
    %v6042 = vld [vmem:[%s6040 + $0x8] sm:$0xff]
    %v6043 = vld [vmem:[%s6040 + $0x10] sm:$0xff]
    %v6044 = vld [vmem:[%s6040 + $0x18] sm:$0xff]
    %v6045 = vld [vmem:[%s6040 + $0x20] sm:$0xff]
    %v6046 = vld [vmem:[%s6040 + $0x28] sm:$0xff]
    %v6047 = vld [vmem:[%s6040 + $0x30] sm:$0xff]
    %v6048 = vld [vmem:[%s6040 + $0x38] sm:$0xff]
    %v6049 = vld [vmem:[%s6040 + $0x40] sm:$0xff]
    %v6050 = vld [vmem:[%s6040 + $0x48] sm:$0xff]
    %v6051 = vld [vmem:[%s6040 + $0x50] sm:$0xff]
    %v6052 = vld [vmem:[%s6040 + $0x58] sm:$0xff]
    %v6053 = vld [vmem:[%s6040 + $0x60] sm:$0xff]
    %v6054 = vld [vmem:[%s6040 + $0x68] sm:$0xff]
    %v6055 = vld [vmem:[%s6040 + $0x70] sm:$0xff]
    %v6056 = vld [vmem:[%s6040 + $0x78] sm:$0xff]
    %v6057 = vld [vmem:[%s6040 + $0x80] sm:$0xff]
    %v6058 = vld [vmem:[%s6040 + $0x88] sm:$0xff]
    %v6059 = vld [vmem:[%s6040 + $0x90] sm:$0xff]
    %v6060 = vld [vmem:[%s6040 + $0x98] sm:$0xff]
    %v6061 = vld [vmem:[%s6040 + $0xa0] sm:$0xff]
    %v6062 = vld [vmem:[%s6040 + $0xa8] sm:$0xff]
    %v6063 = vld [vmem:[%s6040 + $0xb0] sm:$0xff]
    %v6064 = vld [vmem:[%s6040 + $0xb8] sm:$0xff]
    %v6065 = vld [vmem:[%s6040 + $0xc0] sm:$0xff]
    %v6066 = vld [vmem:[%s6040 + $0xc8] sm:$0xff]
    %v6067 = vld [vmem:[%s6040 + $0xd0] sm:$0xff]
    %v6068 = vld [vmem:[%s6040 + $0xd8] sm:$0xff]
    %v6069 = vld [vmem:[%s6040 + $0xe0] sm:$0xff]
    %v6070 = vld [vmem:[%s6040 + $0xe8] sm:$0xff]
    %v6071 = vld [vmem:[%s6040 + $0xf0] sm:$0xff]
    %v6072 = vld [vmem:[%s6040 + $0xf8] sm:$0xff]
    %v6073 = vld [vmem:[%s6040 + $0x100] sm:$0xff]
    %v6074 = vld [vmem:[%s6040 + $0x108] sm:$0xff]
    %v6075 = vld [vmem:[%s6040 + $0x110] sm:$0xff]
    %v6076 = vld [vmem:[%s6040 + $0x118] sm:$0xff]
    %v6077 = vld [vmem:[%s6040 + $0x120] sm:$0xff]
    %v6078 = vld [vmem:[%s6040 + $0x128] sm:$0xff]
    %v6079 = vld [vmem:[%s6040 + $0x130] sm:$0xff]
    %v6080 = vld [vmem:[%s6040 + $0x138] sm:$0xff]
    %v6081 = vld [vmem:[%s6040 + $0x140] sm:$0xff]
    %v6082 = vld [vmem:[%s6040 + $0x148] sm:$0xff]
    %v6083 = vld [vmem:[%s6040 + $0x150] sm:$0xff]
    %v6084 = vld [vmem:[%s6040 + $0x158] sm:$0xff]
    %v6085 = vld [vmem:[%s6040 + $0x160] sm:$0xff]
    %v6086 = vld [vmem:[%s6040 + $0x168] sm:$0xff]
    %v6087 = vld [vmem:[%s6040 + $0x170] sm:$0xff]
    %v6088 = vld [vmem:[%s6040 + $0x178] sm:$0xff]
    %v6089 = vld [vmem:[%s6040 + $0x180] sm:$0xff]
    %v6090 = vld [vmem:[%s6040 + $0x188] sm:$0xff]
    %v6091 = vld [vmem:[%s6040 + $0x190] sm:$0xff]
    %v6092 = vld [vmem:[%s6040 + $0x198] sm:$0xff]
    %v6093 = vld [vmem:[%s6040 + $0x1a0] sm:$0xff]
    %v6094 = vld [vmem:[%s6040 + $0x1a8] sm:$0xff]
    %v6095 = vld [vmem:[%s6040 + $0x1b0] sm:$0xff]
    %v6096 = vld [vmem:[%s6040 + $0x1b8] sm:$0xff]
    %v6097 = vld [vmem:[%s6040 + $0x1c0] sm:$0xff]
    %v6098 = vld [vmem:[%s6040 + $0x1c8] sm:$0xff]
    %v6099 = vld [vmem:[%s6040 + $0x1d0] sm:$0xff]
    %v6100 = vld [vmem:[%s6040 + $0x1d8] sm:$0xff]
    %v6101 = vld [vmem:[%s6040 + $0x1e0] sm:$0xff]
    %v6102 = vld [vmem:[%s6040 + $0x1e8] sm:$0xff]
    %v6103 = vld [vmem:[%s6040 + $0x1f0] sm:$0xff]
    %v6104 = vld [vmem:[%s6040 + $0x1f8] sm:$0xff]
    %v6105 = vld [vmem:[%s6040 + $0x200] sm:$0xff]
    %v6106 = vld [vmem:[%s6040 + $0x208] sm:$0xff]
    %v6107 = vld [vmem:[%s6040 + $0x210] sm:$0xff]
    %v6108 = vld [vmem:[%s6040 + $0x218] sm:$0xff]
    %v6109 = vld [vmem:[%s6040 + $0x220] sm:$0xff]
    %v6110 = vld [vmem:[%s6040 + $0x228] sm:$0xff]
    %v6111 = vld [vmem:[%s6040 + $0x230] sm:$0xff]
    %v6112 = vld [vmem:[%s6040 + $0x238] sm:$0xff]
    %v6113 = vld [vmem:[%s6040 + $0x240] sm:$0xff]
    %v6114 = vld [vmem:[%s6040 + $0x248] sm:$0xff]
    %v6115 = vld [vmem:[%s6040 + $0x250] sm:$0xff]
    %v6116 = vld [vmem:[%s6040 + $0x258] sm:$0xff]
    %v6117 = vld [vmem:[%s6040 + $0x260] sm:$0xff]
    %v6118 = vld [vmem:[%s6040 + $0x268] sm:$0xff]
    %v6119 = vld [vmem:[%s6040 + $0x270] sm:$0xff]
    %v6120 = vld [vmem:[%s6040 + $0x278] sm:$0xff]
    %v6121 = vld [vmem:[%s6040 + $0x280] sm:$0xff]
    %v6122 = vld [vmem:[%s6040 + $0x288] sm:$0xff]
    %v6123 = vld [vmem:[%s6040 + $0x290] sm:$0xff]
    %v6124 = vld [vmem:[%s6040 + $0x298] sm:$0xff]
    %v6125 = vld [vmem:[%s6040 + $0x2a0] sm:$0xff]
    %v6126 = vld [vmem:[%s6040 + $0x2a8] sm:$0xff]
    %v6127 = vld [vmem:[%s6040 + $0x2b0] sm:$0xff]
    %v6128 = vld [vmem:[%s6040 + $0x2b8] sm:$0xff]
    %v6129 = vld [vmem:[%s6040 + $0x2c0] sm:$0xff]
    %v6130 = vld [vmem:[%s6040 + $0x2c8] sm:$0xff]
    %v6131 = vld [vmem:[%s6040 + $0x2d0] sm:$0xff]
    %v6132 = vld [vmem:[%s6040 + $0x2d8] sm:$0xff]
    %v6133 = vld [vmem:[%s6040 + $0x2e0] sm:$0xff]
    %v6134 = vld [vmem:[%s6040 + $0x2e8] sm:$0xff]
    %v6135 = vld [vmem:[%s6040 + $0x2f0] sm:$0xff]
    %v6136 = vld [vmem:[%s6040 + $0x2f8] sm:$0xff]
    %v6149 = vrot.slane %v6028, 2
    %v6150 = vrot.slane %v5537, 2
    %v6151 = vsel %vm1213, %v6149, %v6150
    %v6152 = vrot.slane %v6029, 2
    %v6153 = vrot.slane %v5538, 2
    %v6154 = vsel %vm1213, %v6152, %v6153
    %v6155 = vrot.slane %v6030, 2
    %v6156 = vrot.slane %v5539, 2
    %v6157 = vsel %vm1213, %v6155, %v6156
    %v6158 = vrot.slane %v6031, 2
    %v6159 = vrot.slane %v5540, 2
    %v6160 = vsel %vm1213, %v6158, %v6159
    %v6161 = vrot.slane %v6032, 2
    %v6162 = vrot.slane %v5541, 2
    %v6163 = vsel %vm1213, %v6161, %v6162
    %v6164 = vrot.slane %v6033, 2
    %v6165 = vrot.slane %v5542, 2
    %v6166 = vsel %vm1213, %v6164, %v6165
    %v6167 = vrot.slane %v5543, 2
    %v6168 = vsel %vm1213, %v6150, %v6167
    %v6169 = vrot.slane %v5544, 2
    %v6170 = vsel %vm1213, %v6153, %v6169
    %v6171 = vrot.slane %v5545, 2
    %v6172 = vsel %vm1213, %v6156, %v6171
    %v6173 = vrot.slane %v5546, 2
    %v6174 = vsel %vm1213, %v6159, %v6173
    %v6175 = vrot.slane %v5547, 2
    %v6176 = vsel %vm1213, %v6162, %v6175
    %v6177 = vrot.slane %v5548, 2
    %v6178 = vsel %vm1213, %v6165, %v6177
    %v6179 = vrot.slane %v5549, 2
    %v6180 = vsel %vm1213, %v6167, %v6179
    %v6181 = vrot.slane %v5550, 2
    %v6182 = vsel %vm1213, %v6169, %v6181
    %v6183 = vrot.slane %v5551, 2
    %v6184 = vsel %vm1213, %v6171, %v6183
    %v6185 = vrot.slane %v5552, 2
    %v6186 = vsel %vm1213, %v6173, %v6185
    %v6187 = vrot.slane %v5553, 2
    %v6188 = vsel %vm1213, %v6175, %v6187
    %v6189 = vrot.slane %v5554, 2
    %v6190 = vsel %vm1213, %v6177, %v6189
    %v6191 = vrot.slane %v5555, 2
    %v6192 = vsel %vm1213, %v6179, %v6191
    %v6193 = vrot.slane %v5556, 2
    %v6194 = vsel %vm1213, %v6181, %v6193
    %v6195 = vrot.slane %v5557, 2
    %v6196 = vsel %vm1213, %v6183, %v6195
    %v6197 = vrot.slane %v5558, 2
    %v6198 = vsel %vm1213, %v6185, %v6197
    %v6199 = vrot.slane %v5559, 2
    %v6200 = vsel %vm1213, %v6187, %v6199
    %v6201 = vrot.slane %v5560, 2
    %v6202 = vsel %vm1213, %v6189, %v6201
    %v6203 = vrot.slane %v5561, 2
    %v6204 = vsel %vm1213, %v6191, %v6203
    %v6205 = vrot.slane %v5562, 2
    %v6206 = vsel %vm1213, %v6193, %v6205
    %v6207 = vrot.slane %v5563, 2
    %v6208 = vsel %vm1213, %v6195, %v6207
    %v6209 = vrot.slane %v5564, 2
    %v6210 = vsel %vm1213, %v6197, %v6209
    %v6211 = vrot.slane %v5565, 2
    %v6212 = vsel %vm1213, %v6199, %v6211
    %v6213 = vrot.slane %v5566, 2
    %v6214 = vsel %vm1213, %v6201, %v6213
    %v6215 = vrot.slane %v6034, 2
    %v6216 = vsel %vm1213, %v6203, %v6215
    %v6217 = vrot.slane %v6035, 2
    %v6218 = vsel %vm1213, %v6205, %v6217
    %v6219 = vrot.slane %v6036, 2
    %v6220 = vsel %vm1213, %v6207, %v6219
    %v6221 = vrot.slane %v6037, 2
    %v6222 = vsel %vm1213, %v6209, %v6221
    %v6223 = vrot.slane %v6038, 2
    %v6224 = vsel %vm1213, %v6211, %v6223
    %v6225 = vrot.slane %v6039, 2
    %v6226 = vsel %vm1213, %v6213, %v6225
    %6263 = vmatpush.msra.mxu0 %v6056
    %6264 = vmatpush.msra.mxu0 %v6055
    %6265 = vmatpush.msra.mxu0 %v6054
    %6266 = vmatpush.msra.mxu0 %v6053
    %6267 = vmatpush.msra.mxu0 %v6052
    %6268 = vmatpush.msra.mxu0 %v6051
    %6269 = vmatpush.msra.mxu0 %v6050
    %6270 = vmatpush.msra.mxu0 %v6049
    %6271 = vmatpush.msra.mxu0 %v6048
    %6272 = vmatpush.msra.mxu0 %v6047
    %6273 = vmatpush.msra.mxu0 %v6046
    %6274 = vmatpush.msra.mxu0 %v6045
    %6275 = vmatpush.msra.mxu0 %v6044
    %6276 = vmatpush.msra.mxu0 %v6043
    %6277 = vmatpush.msra.mxu0 %v6042
    %6278 = vmatpush.msra.mxu0 %v6041
    %6279 = vmatmul.f32.gmra.mxu0 %v6151
    %v6280 = vpop.f32.mrf.mxu0
    %v6281 = vadd.f32 0.0, %v6280
    %6282 = vmatmul.f32.gmra.mxu0 %v6168
    %v6283 = vpop.f32.mrf.mxu0
    %v6284 = vadd.f32 0.0, %v6283
    %6285 = vmatmul.f32.gmra.mxu0 %v6180
    %v6286 = vpop.f32.mrf.mxu0
    %6287 = vmatmul.f32.gmra.mxu0 %v6192
    %v6288 = vpop.f32.mrf.mxu0
    %6289 = vmatmul.f32.gmra.mxu0 %v6204
    %v6290 = vpop.f32.mrf.mxu0
    %v6291 = vadd.f32 0.0, %v6290
    %6292 = vmatmul.f32.gmra.mxu0 %v6216
    %v6293 = vpop.f32.mrf.mxu0
    %v6294 = vadd.f32 0.0, %v6293
    %6295 = vdwg.mxu0
    %6296 = vmatpush.msra.mxu0 %v6072
    %6297 = vmatpush.msra.mxu0 %v6071
    %6298 = vmatpush.msra.mxu0 %v6070
    %6299 = vmatpush.msra.mxu0 %v6069
    %6300 = vmatpush.msra.mxu0 %v6068
    %6301 = vmatpush.msra.mxu0 %v6067
    %6302 = vmatpush.msra.mxu0 %v6066
    %6303 = vmatpush.msra.mxu0 %v6065
    %6304 = vmatpush.msra.mxu0 %v6064
    %6305 = vmatpush.msra.mxu0 %v6063
    %6306 = vmatpush.msra.mxu0 %v6062
    %6307 = vmatpush.msra.mxu0 %v6061
    %6308 = vmatpush.msra.mxu0 %v6060
    %6309 = vmatpush.msra.mxu0 %v6059
    %6310 = vmatpush.msra.mxu0 %v6058
    %6311 = vmatpush.msra.mxu0 %v6057
    %6312 = vmatmul.f32.gmra.mxu0 %v6154
    %v6313 = vpop.f32.mrf.mxu0
    %v6314 = vadd.f32 %v6281, %v6313
    %6315 = vmatmul.f32.gmra.mxu0 %v6170
    %v6316 = vpop.f32.mrf.mxu0
    %v6317 = vadd.f32 %v6284, %v6316
    %6318 = vmatmul.f32.gmra.mxu0 %v6182
    %v6319 = vpop.f32.mrf.mxu0
    %6320 = vmatmul.f32.gmra.mxu0 %v6194
    %v6321 = vpop.f32.mrf.mxu0
    %6322 = vmatmul.f32.gmra.mxu0 %v6206
    %v6323 = vpop.f32.mrf.mxu0
    %v6324 = vadd.f32 %v6291, %v6323
    %6325 = vmatmul.f32.gmra.mxu0 %v6218
    %v6326 = vpop.f32.mrf.mxu0
    %v6327 = vadd.f32 %v6294, %v6326
    %6328 = vdwg.mxu0
    %6329 = vmatpush.msra.mxu0 %v6088
    %6330 = vmatpush.msra.mxu0 %v6087
    %6331 = vmatpush.msra.mxu0 %v6086
    %6332 = vmatpush.msra.mxu0 %v6085
    %6333 = vmatpush.msra.mxu0 %v6084
    %6334 = vmatpush.msra.mxu0 %v6083
    %6335 = vmatpush.msra.mxu0 %v6082
    %6336 = vmatpush.msra.mxu0 %v6081
    %6337 = vmatpush.msra.mxu0 %v6080
    %6338 = vmatpush.msra.mxu0 %v6079
    %6339 = vmatpush.msra.mxu0 %v6078
    %6340 = vmatpush.msra.mxu0 %v6077
    %6341 = vmatpush.msra.mxu0 %v6076
    %6342 = vmatpush.msra.mxu0 %v6075
    %6343 = vmatpush.msra.mxu0 %v6074
    %6344 = vmatpush.msra.mxu0 %v6073
    %6345 = vmatmul.f32.gmra.mxu0 %v6157
    %v6346 = vpop.f32.mrf.mxu0
    %v6347 = vadd.f32 %v6314, %v6346
    %6348 = vmatmul.f32.gmra.mxu0 %v6172
    %v6349 = vpop.f32.mrf.mxu0
    %v6350 = vadd.f32 %v6317, %v6349
    %6351 = vmatmul.f32.gmra.mxu0 %v6184
    %v6352 = vpop.f32.mrf.mxu0
    %6353 = vmatmul.f32.gmra.mxu0 %v6196
    %v6354 = vpop.f32.mrf.mxu0
    %6355 = vmatmul.f32.gmra.mxu0 %v6208
    %v6356 = vpop.f32.mrf.mxu0
    %v6357 = vadd.f32 %v6324, %v6356
    %6358 = vmatmul.f32.gmra.mxu0 %v6220
    %v6359 = vpop.f32.mrf.mxu0
    %v6360 = vadd.f32 %v6327, %v6359
    %6361 = vdwg.mxu0
    %6362 = vmatpush.msra.mxu0 %v6104
    %6363 = vmatpush.msra.mxu0 %v6103
    %6364 = vmatpush.msra.mxu0 %v6102
    %6365 = vmatpush.msra.mxu0 %v6101
    %6366 = vmatpush.msra.mxu0 %v6100
    %6367 = vmatpush.msra.mxu0 %v6099
    %6368 = vmatpush.msra.mxu0 %v6098
    %6369 = vmatpush.msra.mxu0 %v6097
    %6370 = vmatpush.msra.mxu0 %v6096
    %6371 = vmatpush.msra.mxu0 %v6095
    %6372 = vmatpush.msra.mxu0 %v6094
    %6373 = vmatpush.msra.mxu0 %v6093
    %6374 = vmatpush.msra.mxu0 %v6092
    %6375 = vmatpush.msra.mxu0 %v6091
    %6376 = vmatpush.msra.mxu0 %v6090
    %6377 = vmatpush.msra.mxu0 %v6089
    %6378 = vmatmul.f32.gmra.mxu0 %v6160
    %v6379 = vpop.f32.mrf.mxu0
    %v6380 = vadd.f32 %v6347, %v6379
    %6381 = vmatmul.f32.gmra.mxu0 %v6174
    %v6382 = vpop.f32.mrf.mxu0
    %v6383 = vadd.f32 %v6350, %v6382
    %6384 = vmatmul.f32.gmra.mxu0 %v6186
    %v6385 = vpop.f32.mrf.mxu0
    %6386 = vmatmul.f32.gmra.mxu0 %v6198
    %v6387 = vpop.f32.mrf.mxu0
    %6388 = vmatmul.f32.gmra.mxu0 %v6210
    %v6389 = vpop.f32.mrf.mxu0
    %v6390 = vadd.f32 %v6357, %v6389
    %6391 = vmatmul.f32.gmra.mxu0 %v6222
    %v6392 = vpop.f32.mrf.mxu0
    %v6393 = vadd.f32 %v6360, %v6392
    %6394 = vdwg.mxu0
    %6395 = vmatpush.msra.mxu0 %v6120
    %6396 = vmatpush.msra.mxu0 %v6119
    %6397 = vmatpush.msra.mxu0 %v6118
    %6398 = vmatpush.msra.mxu0 %v6117
    %6399 = vmatpush.msra.mxu0 %v6116
    %6400 = vmatpush.msra.mxu0 %v6115
    %6401 = vmatpush.msra.mxu0 %v6114
    %6402 = vmatpush.msra.mxu0 %v6113
    %6403 = vmatpush.msra.mxu0 %v6112
    %6404 = vmatpush.msra.mxu0 %v6111
    %6405 = vmatpush.msra.mxu0 %v6110
    %6406 = vmatpush.msra.mxu0 %v6109
    %6407 = vmatpush.msra.mxu0 %v6108
    %6408 = vmatpush.msra.mxu0 %v6107
    %6409 = vmatpush.msra.mxu0 %v6106
    %6410 = vmatpush.msra.mxu0 %v6105
    %6411 = vmatmul.f32.gmra.mxu0 %v6163
    %v6412 = vpop.f32.mrf.mxu0
    %v6413 = vadd.f32 %v6380, %v6412
    %6414 = vmatmul.f32.gmra.mxu0 %v6176
    %v6415 = vpop.f32.mrf.mxu0
    %v6416 = vadd.f32 %v6383, %v6415
    %6417 = vmatmul.f32.gmra.mxu0 %v6188
    %v6418 = vpop.f32.mrf.mxu0
    %6419 = vmatmul.f32.gmra.mxu0 %v6200
    %v6420 = vpop.f32.mrf.mxu0
    %6421 = vmatmul.f32.gmra.mxu0 %v6212
    %v6422 = vpop.f32.mrf.mxu0
    %v6423 = vadd.f32 %v6390, %v6422
    %6424 = vmatmul.f32.gmra.mxu0 %v6224
    %v6425 = vpop.f32.mrf.mxu0
    %v6426 = vadd.f32 %v6393, %v6425
    %6427 = vdwg.mxu0
    %6428 = vmatpush.msra.mxu0 %v6136
    %6429 = vmatpush.msra.mxu0 %v6135
    %6430 = vmatpush.msra.mxu0 %v6134
    %6431 = vmatpush.msra.mxu0 %v6133
    %6432 = vmatpush.msra.mxu0 %v6132
    %6433 = vmatpush.msra.mxu0 %v6131
    %6434 = vmatpush.msra.mxu0 %v6130
    %6435 = vmatpush.msra.mxu0 %v6129
    %6436 = vmatpush.msra.mxu0 %v6128
    %6437 = vmatpush.msra.mxu0 %v6127
    %6438 = vmatpush.msra.mxu0 %v6126
    %6439 = vmatpush.msra.mxu0 %v6125
    %6440 = vmatpush.msra.mxu0 %v6124
    %6441 = vmatpush.msra.mxu0 %v6123
    %6442 = vmatpush.msra.mxu0 %v6122
    %6443 = vmatpush.msra.mxu0 %v6121
    %6444 = vmatmul.f32.gmra.mxu0 %v6166
    %v6445 = vpop.f32.mrf.mxu0
    %v6446 = vadd.f32 %v6413, %v6445
    %6447 = vmatmul.f32.gmra.mxu0 %v6178
    %v6448 = vpop.f32.mrf.mxu0
    %v6449 = vadd.f32 %v6416, %v6448
    %6450 = vmatmul.f32.gmra.mxu0 %v6190
    %v6451 = vpop.f32.mrf.mxu0
    %6452 = vmatmul.f32.gmra.mxu0 %v6202
    %v6453 = vpop.f32.mrf.mxu0
    %6454 = vmatmul.f32.gmra.mxu0 %v6214
    %v6455 = vpop.f32.mrf.mxu0
    %v6456 = vadd.f32 %v6423, %v6455
    %6457 = vmatmul.f32.gmra.mxu0 %v6226
    %v6458 = vpop.f32.mrf.mxu0
    %v6459 = vadd.f32 %v6426, %v6458
    %6460 = vdwg.mxu0
    %v6461 = vadd.f32 %v6024, %v6446
    %v6462 = vadd.f32 %v6025, %v6449
    %v6463 = vadd.f32 %v6026, %v6456
    %v6464 = vadd.f32 %v6027, %v6459
    %v6465 = vld [vmem:[#allocation2 + $0x30] sm:$0xf8]
    %v6466 = vld [vmem:[#allocation2 + $0x38] sm:$0xf8]
    %v6467 = vld [vmem:[#allocation2 + $0x40] sm:$0xf8]
    %v6468 = vld [vmem:[#allocation2 + $0x48] sm:$0xf8]
    %v6469 = vld [vmem:[#allocation2 + $0x50] sm:$0xf8]
    %v6470 = vld [vmem:[#allocation2 + $0x58] sm:$0xf8]
    %v6471 = vld [vmem:[#allocation2 + $0x150] sm:$0x7]
    %v6472 = vld [vmem:[#allocation2 + $0x158] sm:$0x7]
    %v6473 = vld [vmem:[#allocation2 + $0x160] sm:$0x7]
    %v6474 = vld [vmem:[#allocation2 + $0x168] sm:$0x7]
    %v6475 = vld [vmem:[#allocation2 + $0x170] sm:$0x7]
    %v6476 = vld [vmem:[#allocation2 + $0x178] sm:$0x7]
    %s6477 = scalar_lea.vmem [#allocation5], 8448
    %v6478 = vld [vmem:[%s6477] sm:$0xff]
    %v6479 = vld [vmem:[%s6477 + $0x8] sm:$0xff]
    %v6480 = vld [vmem:[%s6477 + $0x10] sm:$0xff]
    %v6481 = vld [vmem:[%s6477 + $0x18] sm:$0xff]
    %v6482 = vld [vmem:[%s6477 + $0x20] sm:$0xff]
    %v6483 = vld [vmem:[%s6477 + $0x28] sm:$0xff]
    %v6484 = vld [vmem:[%s6477 + $0x30] sm:$0xff]
    %v6485 = vld [vmem:[%s6477 + $0x38] sm:$0xff]
    %v6486 = vld [vmem:[%s6477 + $0x40] sm:$0xff]
    %v6487 = vld [vmem:[%s6477 + $0x48] sm:$0xff]
    %v6488 = vld [vmem:[%s6477 + $0x50] sm:$0xff]
    %v6489 = vld [vmem:[%s6477 + $0x58] sm:$0xff]
    %v6490 = vld [vmem:[%s6477 + $0x60] sm:$0xff]
    %v6491 = vld [vmem:[%s6477 + $0x68] sm:$0xff]
    %v6492 = vld [vmem:[%s6477 + $0x70] sm:$0xff]
    %v6493 = vld [vmem:[%s6477 + $0x78] sm:$0xff]
    %v6494 = vld [vmem:[%s6477 + $0x80] sm:$0xff]
    %v6495 = vld [vmem:[%s6477 + $0x88] sm:$0xff]
    %v6496 = vld [vmem:[%s6477 + $0x90] sm:$0xff]
    %v6497 = vld [vmem:[%s6477 + $0x98] sm:$0xff]
    %v6498 = vld [vmem:[%s6477 + $0xa0] sm:$0xff]
    %v6499 = vld [vmem:[%s6477 + $0xa8] sm:$0xff]
    %v6500 = vld [vmem:[%s6477 + $0xb0] sm:$0xff]
    %v6501 = vld [vmem:[%s6477 + $0xb8] sm:$0xff]
    %v6502 = vld [vmem:[%s6477 + $0xc0] sm:$0xff]
    %v6503 = vld [vmem:[%s6477 + $0xc8] sm:$0xff]
    %v6504 = vld [vmem:[%s6477 + $0xd0] sm:$0xff]
    %v6505 = vld [vmem:[%s6477 + $0xd8] sm:$0xff]
    %v6506 = vld [vmem:[%s6477 + $0xe0] sm:$0xff]
    %v6507 = vld [vmem:[%s6477 + $0xe8] sm:$0xff]
    %v6508 = vld [vmem:[%s6477 + $0xf0] sm:$0xff]
    %v6509 = vld [vmem:[%s6477 + $0xf8] sm:$0xff]
    %v6510 = vld [vmem:[%s6477 + $0x100] sm:$0xff]
    %v6511 = vld [vmem:[%s6477 + $0x108] sm:$0xff]
    %v6512 = vld [vmem:[%s6477 + $0x110] sm:$0xff]
    %v6513 = vld [vmem:[%s6477 + $0x118] sm:$0xff]
    %v6514 = vld [vmem:[%s6477 + $0x120] sm:$0xff]
    %v6515 = vld [vmem:[%s6477 + $0x128] sm:$0xff]
    %v6516 = vld [vmem:[%s6477 + $0x130] sm:$0xff]
    %v6517 = vld [vmem:[%s6477 + $0x138] sm:$0xff]
    %v6518 = vld [vmem:[%s6477 + $0x140] sm:$0xff]
    %v6519 = vld [vmem:[%s6477 + $0x148] sm:$0xff]
    %v6520 = vld [vmem:[%s6477 + $0x150] sm:$0xff]
    %v6521 = vld [vmem:[%s6477 + $0x158] sm:$0xff]
    %v6522 = vld [vmem:[%s6477 + $0x160] sm:$0xff]
    %v6523 = vld [vmem:[%s6477 + $0x168] sm:$0xff]
    %v6524 = vld [vmem:[%s6477 + $0x170] sm:$0xff]
    %v6525 = vld [vmem:[%s6477 + $0x178] sm:$0xff]
    %v6526 = vld [vmem:[%s6477 + $0x180] sm:$0xff]
    %v6527 = vld [vmem:[%s6477 + $0x188] sm:$0xff]
    %v6528 = vld [vmem:[%s6477 + $0x190] sm:$0xff]
    %v6529 = vld [vmem:[%s6477 + $0x198] sm:$0xff]
    %v6530 = vld [vmem:[%s6477 + $0x1a0] sm:$0xff]
    %v6531 = vld [vmem:[%s6477 + $0x1a8] sm:$0xff]
    %v6532 = vld [vmem:[%s6477 + $0x1b0] sm:$0xff]
    %v6533 = vld [vmem:[%s6477 + $0x1b8] sm:$0xff]
    %v6534 = vld [vmem:[%s6477 + $0x1c0] sm:$0xff]
    %v6535 = vld [vmem:[%s6477 + $0x1c8] sm:$0xff]
    %v6536 = vld [vmem:[%s6477 + $0x1d0] sm:$0xff]
    %v6537 = vld [vmem:[%s6477 + $0x1d8] sm:$0xff]
    %v6538 = vld [vmem:[%s6477 + $0x1e0] sm:$0xff]
    %v6539 = vld [vmem:[%s6477 + $0x1e8] sm:$0xff]
    %v6540 = vld [vmem:[%s6477 + $0x1f0] sm:$0xff]
    %v6541 = vld [vmem:[%s6477 + $0x1f8] sm:$0xff]
    %v6542 = vld [vmem:[%s6477 + $0x200] sm:$0xff]
    %v6543 = vld [vmem:[%s6477 + $0x208] sm:$0xff]
    %v6544 = vld [vmem:[%s6477 + $0x210] sm:$0xff]
    %v6545 = vld [vmem:[%s6477 + $0x218] sm:$0xff]
    %v6546 = vld [vmem:[%s6477 + $0x220] sm:$0xff]
    %v6547 = vld [vmem:[%s6477 + $0x228] sm:$0xff]
    %v6548 = vld [vmem:[%s6477 + $0x230] sm:$0xff]
    %v6549 = vld [vmem:[%s6477 + $0x238] sm:$0xff]
    %v6550 = vld [vmem:[%s6477 + $0x240] sm:$0xff]
    %v6551 = vld [vmem:[%s6477 + $0x248] sm:$0xff]
    %v6552 = vld [vmem:[%s6477 + $0x250] sm:$0xff]
    %v6553 = vld [vmem:[%s6477 + $0x258] sm:$0xff]
    %v6554 = vld [vmem:[%s6477 + $0x260] sm:$0xff]
    %v6555 = vld [vmem:[%s6477 + $0x268] sm:$0xff]
    %v6556 = vld [vmem:[%s6477 + $0x270] sm:$0xff]
    %v6557 = vld [vmem:[%s6477 + $0x278] sm:$0xff]
    %v6558 = vld [vmem:[%s6477 + $0x280] sm:$0xff]
    %v6559 = vld [vmem:[%s6477 + $0x288] sm:$0xff]
    %v6560 = vld [vmem:[%s6477 + $0x290] sm:$0xff]
    %v6561 = vld [vmem:[%s6477 + $0x298] sm:$0xff]
    %v6562 = vld [vmem:[%s6477 + $0x2a0] sm:$0xff]
    %v6563 = vld [vmem:[%s6477 + $0x2a8] sm:$0xff]
    %v6564 = vld [vmem:[%s6477 + $0x2b0] sm:$0xff]
    %v6565 = vld [vmem:[%s6477 + $0x2b8] sm:$0xff]
    %v6566 = vld [vmem:[%s6477 + $0x2c0] sm:$0xff]
    %v6567 = vld [vmem:[%s6477 + $0x2c8] sm:$0xff]
    %v6568 = vld [vmem:[%s6477 + $0x2d0] sm:$0xff]
    %v6569 = vld [vmem:[%s6477 + $0x2d8] sm:$0xff]
    %v6570 = vld [vmem:[%s6477 + $0x2e0] sm:$0xff]
    %v6571 = vld [vmem:[%s6477 + $0x2e8] sm:$0xff]
    %v6572 = vld [vmem:[%s6477 + $0x2f0] sm:$0xff]
    %v6573 = vld [vmem:[%s6477 + $0x2f8] sm:$0xff]
    %v6586 = vrot.slane %v6465, 3
    %v6587 = vrot.slane %v5537, 3
    %v6588 = vsel %vm3157, %v6586, %v6587
    %v6589 = vrot.slane %v6466, 3
    %v6590 = vrot.slane %v5538, 3
    %v6591 = vsel %vm3157, %v6589, %v6590
    %v6592 = vrot.slane %v6467, 3
    %v6593 = vrot.slane %v5539, 3
    %v6594 = vsel %vm3157, %v6592, %v6593
    %v6595 = vrot.slane %v6468, 3
    %v6596 = vrot.slane %v5540, 3
    %v6597 = vsel %vm3157, %v6595, %v6596
    %v6598 = vrot.slane %v6469, 3
    %v6599 = vrot.slane %v5541, 3
    %v6600 = vsel %vm3157, %v6598, %v6599
    %v6601 = vrot.slane %v6470, 3
    %v6602 = vrot.slane %v5542, 3
    %v6603 = vsel %vm3157, %v6601, %v6602
    %v6604 = vrot.slane %v5543, 3
    %v6605 = vsel %vm3157, %v6587, %v6604
    %v6606 = vrot.slane %v5544, 3
    %v6607 = vsel %vm3157, %v6590, %v6606
    %v6608 = vrot.slane %v5545, 3
    %v6609 = vsel %vm3157, %v6593, %v6608
    %v6610 = vrot.slane %v5546, 3
    %v6611 = vsel %vm3157, %v6596, %v6610
    %v6612 = vrot.slane %v5547, 3
    %v6613 = vsel %vm3157, %v6599, %v6612
    %v6614 = vrot.slane %v5548, 3
    %v6615 = vsel %vm3157, %v6602, %v6614
    %v6616 = vrot.slane %v5549, 3
    %v6617 = vsel %vm3157, %v6604, %v6616
    %v6618 = vrot.slane %v5550, 3
    %v6619 = vsel %vm3157, %v6606, %v6618
    %v6620 = vrot.slane %v5551, 3
    %v6621 = vsel %vm3157, %v6608, %v6620
    %v6622 = vrot.slane %v5552, 3
    %v6623 = vsel %vm3157, %v6610, %v6622
    %v6624 = vrot.slane %v5553, 3
    %v6625 = vsel %vm3157, %v6612, %v6624
    %v6626 = vrot.slane %v5554, 3
    %v6627 = vsel %vm3157, %v6614, %v6626
    %v6628 = vrot.slane %v5555, 3
    %v6629 = vsel %vm3157, %v6616, %v6628
    %v6630 = vrot.slane %v5556, 3
    %v6631 = vsel %vm3157, %v6618, %v6630
    %v6632 = vrot.slane %v5557, 3
    %v6633 = vsel %vm3157, %v6620, %v6632
    %v6634 = vrot.slane %v5558, 3
    %v6635 = vsel %vm3157, %v6622, %v6634
    %v6636 = vrot.slane %v5559, 3
    %v6637 = vsel %vm3157, %v6624, %v6636
    %v6638 = vrot.slane %v5560, 3
    %v6639 = vsel %vm3157, %v6626, %v6638
    %v6640 = vrot.slane %v5561, 3
    %v6641 = vsel %vm3157, %v6628, %v6640
    %v6642 = vrot.slane %v5562, 3
    %v6643 = vsel %vm3157, %v6630, %v6642
    %v6644 = vrot.slane %v5563, 3
    %v6645 = vsel %vm3157, %v6632, %v6644
    %v6646 = vrot.slane %v5564, 3
    %v6647 = vsel %vm3157, %v6634, %v6646
    %v6648 = vrot.slane %v5565, 3
    %v6649 = vsel %vm3157, %v6636, %v6648
    %v6650 = vrot.slane %v5566, 3
    %v6651 = vsel %vm3157, %v6638, %v6650
    %v6652 = vrot.slane %v6471, 3
    %v6653 = vsel %vm3157, %v6640, %v6652
    %v6654 = vrot.slane %v6472, 3
    %v6655 = vsel %vm3157, %v6642, %v6654
    %v6656 = vrot.slane %v6473, 3
    %v6657 = vsel %vm3157, %v6644, %v6656
    %v6658 = vrot.slane %v6474, 3
    %v6659 = vsel %vm3157, %v6646, %v6658
    %v6660 = vrot.slane %v6475, 3
    %v6661 = vsel %vm3157, %v6648, %v6660
    %v6662 = vrot.slane %v6476, 3
    %v6663 = vsel %vm3157, %v6650, %v6662
    %6700 = vmatpush.msra.mxu0 %v6493
    %6701 = vmatpush.msra.mxu0 %v6492
    %6702 = vmatpush.msra.mxu0 %v6491
    %6703 = vmatpush.msra.mxu0 %v6490
    %6704 = vmatpush.msra.mxu0 %v6489
    %6705 = vmatpush.msra.mxu0 %v6488
    %6706 = vmatpush.msra.mxu0 %v6487
    %6707 = vmatpush.msra.mxu0 %v6486
    %6708 = vmatpush.msra.mxu0 %v6485
    %6709 = vmatpush.msra.mxu0 %v6484
    %6710 = vmatpush.msra.mxu0 %v6483
    %6711 = vmatpush.msra.mxu0 %v6482
    %6712 = vmatpush.msra.mxu0 %v6481
    %6713 = vmatpush.msra.mxu0 %v6480
    %6714 = vmatpush.msra.mxu0 %v6479
    %6715 = vmatpush.msra.mxu0 %v6478
    %6716 = vmatmul.f32.gmra.mxu0 %v6588
    %v6717 = vpop.f32.mrf.mxu0
    %v6718 = vadd.f32 0.0, %v6717
    %6719 = vmatmul.f32.gmra.mxu0 %v6605
    %v6720 = vpop.f32.mrf.mxu0
    %v6721 = vadd.f32 0.0, %v6720
    %6722 = vmatmul.f32.gmra.mxu0 %v6617
    %v6723 = vpop.f32.mrf.mxu0
    %6724 = vmatmul.f32.gmra.mxu0 %v6629
    %v6725 = vpop.f32.mrf.mxu0
    %6726 = vmatmul.f32.gmra.mxu0 %v6641
    %v6727 = vpop.f32.mrf.mxu0
    %v6728 = vadd.f32 0.0, %v6727
    %6729 = vmatmul.f32.gmra.mxu0 %v6653
    %v6730 = vpop.f32.mrf.mxu0
    %v6731 = vadd.f32 0.0, %v6730
    %6732 = vdwg.mxu0
    %6733 = vmatpush.msra.mxu0 %v6509
    %6734 = vmatpush.msra.mxu0 %v6508
    %6735 = vmatpush.msra.mxu0 %v6507
    %6736 = vmatpush.msra.mxu0 %v6506
    %6737 = vmatpush.msra.mxu0 %v6505
    %6738 = vmatpush.msra.mxu0 %v6504
    %6739 = vmatpush.msra.mxu0 %v6503
    %6740 = vmatpush.msra.mxu0 %v6502
    %6741 = vmatpush.msra.mxu0 %v6501
    %6742 = vmatpush.msra.mxu0 %v6500
    %6743 = vmatpush.msra.mxu0 %v6499
    %6744 = vmatpush.msra.mxu0 %v6498
    %6745 = vmatpush.msra.mxu0 %v6497
    %6746 = vmatpush.msra.mxu0 %v6496
    %6747 = vmatpush.msra.mxu0 %v6495
    %6748 = vmatpush.msra.mxu0 %v6494
    %6749 = vmatmul.f32.gmra.mxu0 %v6591
    %v6750 = vpop.f32.mrf.mxu0
    %v6751 = vadd.f32 %v6718, %v6750
    %6752 = vmatmul.f32.gmra.mxu0 %v6607
    %v6753 = vpop.f32.mrf.mxu0
    %v6754 = vadd.f32 %v6721, %v6753
    %6755 = vmatmul.f32.gmra.mxu0 %v6619
    %v6756 = vpop.f32.mrf.mxu0
    %6757 = vmatmul.f32.gmra.mxu0 %v6631
    %v6758 = vpop.f32.mrf.mxu0
    %6759 = vmatmul.f32.gmra.mxu0 %v6643
    %v6760 = vpop.f32.mrf.mxu0
    %v6761 = vadd.f32 %v6728, %v6760
    %6762 = vmatmul.f32.gmra.mxu0 %v6655
    %v6763 = vpop.f32.mrf.mxu0
    %v6764 = vadd.f32 %v6731, %v6763
    %6765 = vdwg.mxu0
    %6766 = vmatpush.msra.mxu0 %v6525
    %6767 = vmatpush.msra.mxu0 %v6524
    %6768 = vmatpush.msra.mxu0 %v6523
    %6769 = vmatpush.msra.mxu0 %v6522
    %6770 = vmatpush.msra.mxu0 %v6521
    %6771 = vmatpush.msra.mxu0 %v6520
    %6772 = vmatpush.msra.mxu0 %v6519
    %6773 = vmatpush.msra.mxu0 %v6518
    %6774 = vmatpush.msra.mxu0 %v6517
    %6775 = vmatpush.msra.mxu0 %v6516
    %6776 = vmatpush.msra.mxu0 %v6515
    %6777 = vmatpush.msra.mxu0 %v6514
    %6778 = vmatpush.msra.mxu0 %v6513
    %6779 = vmatpush.msra.mxu0 %v6512
    %6780 = vmatpush.msra.mxu0 %v6511
    %6781 = vmatpush.msra.mxu0 %v6510
    %6782 = vmatmul.f32.gmra.mxu0 %v6594
    %v6783 = vpop.f32.mrf.mxu0
    %v6784 = vadd.f32 %v6751, %v6783
    %6785 = vmatmul.f32.gmra.mxu0 %v6609
    %v6786 = vpop.f32.mrf.mxu0
    %v6787 = vadd.f32 %v6754, %v6786
    %6788 = vmatmul.f32.gmra.mxu0 %v6621
    %v6789 = vpop.f32.mrf.mxu0
    %6790 = vmatmul.f32.gmra.mxu0 %v6633
    %v6791 = vpop.f32.mrf.mxu0
    %6792 = vmatmul.f32.gmra.mxu0 %v6645
    %v6793 = vpop.f32.mrf.mxu0
    %v6794 = vadd.f32 %v6761, %v6793
    %6795 = vmatmul.f32.gmra.mxu0 %v6657
    %v6796 = vpop.f32.mrf.mxu0
    %v6797 = vadd.f32 %v6764, %v6796
    %6798 = vdwg.mxu0
    %6799 = vmatpush.msra.mxu0 %v6541
    %6800 = vmatpush.msra.mxu0 %v6540
    %6801 = vmatpush.msra.mxu0 %v6539
    %6802 = vmatpush.msra.mxu0 %v6538
    %6803 = vmatpush.msra.mxu0 %v6537
    %6804 = vmatpush.msra.mxu0 %v6536
    %6805 = vmatpush.msra.mxu0 %v6535
    %6806 = vmatpush.msra.mxu0 %v6534
    %6807 = vmatpush.msra.mxu0 %v6533
    %6808 = vmatpush.msra.mxu0 %v6532
    %6809 = vmatpush.msra.mxu0 %v6531
    %6810 = vmatpush.msra.mxu0 %v6530
    %6811 = vmatpush.msra.mxu0 %v6529
    %6812 = vmatpush.msra.mxu0 %v6528
    %6813 = vmatpush.msra.mxu0 %v6527
    %6814 = vmatpush.msra.mxu0 %v6526
    %6815 = vmatmul.f32.gmra.mxu0 %v6597
    %v6816 = vpop.f32.mrf.mxu0
    %v6817 = vadd.f32 %v6784, %v6816
    %6818 = vmatmul.f32.gmra.mxu0 %v6611
    %v6819 = vpop.f32.mrf.mxu0
    %v6820 = vadd.f32 %v6787, %v6819
    %6821 = vmatmul.f32.gmra.mxu0 %v6623
    %v6822 = vpop.f32.mrf.mxu0
    %6823 = vmatmul.f32.gmra.mxu0 %v6635
    %v6824 = vpop.f32.mrf.mxu0
    %6825 = vmatmul.f32.gmra.mxu0 %v6647
    %v6826 = vpop.f32.mrf.mxu0
    %v6827 = vadd.f32 %v6794, %v6826
    %6828 = vmatmul.f32.gmra.mxu0 %v6659
    %v6829 = vpop.f32.mrf.mxu0
    %v6830 = vadd.f32 %v6797, %v6829
    %6831 = vdwg.mxu0
    %6832 = vmatpush.msra.mxu0 %v6557
    %6833 = vmatpush.msra.mxu0 %v6556
    %6834 = vmatpush.msra.mxu0 %v6555
    %6835 = vmatpush.msra.mxu0 %v6554
    %6836 = vmatpush.msra.mxu0 %v6553
    %6837 = vmatpush.msra.mxu0 %v6552
    %6838 = vmatpush.msra.mxu0 %v6551
    %6839 = vmatpush.msra.mxu0 %v6550
    %6840 = vmatpush.msra.mxu0 %v6549
    %6841 = vmatpush.msra.mxu0 %v6548
    %6842 = vmatpush.msra.mxu0 %v6547
    %6843 = vmatpush.msra.mxu0 %v6546
    %6844 = vmatpush.msra.mxu0 %v6545
    %6845 = vmatpush.msra.mxu0 %v6544
    %6846 = vmatpush.msra.mxu0 %v6543
    %6847 = vmatpush.msra.mxu0 %v6542
    %6848 = vmatmul.f32.gmra.mxu0 %v6600
    %v6849 = vpop.f32.mrf.mxu0
    %v6850 = vadd.f32 %v6817, %v6849
    %6851 = vmatmul.f32.gmra.mxu0 %v6613
    %v6852 = vpop.f32.mrf.mxu0
    %v6853 = vadd.f32 %v6820, %v6852
    %6854 = vmatmul.f32.gmra.mxu0 %v6625
    %v6855 = vpop.f32.mrf.mxu0
    %6856 = vmatmul.f32.gmra.mxu0 %v6637
    %v6857 = vpop.f32.mrf.mxu0
    %6858 = vmatmul.f32.gmra.mxu0 %v6649
    %v6859 = vpop.f32.mrf.mxu0
    %v6860 = vadd.f32 %v6827, %v6859
    %6861 = vmatmul.f32.gmra.mxu0 %v6661
    %v6862 = vpop.f32.mrf.mxu0
    %v6863 = vadd.f32 %v6830, %v6862
    %6864 = vdwg.mxu0
    %6865 = vmatpush.msra.mxu0 %v6573
    %6866 = vmatpush.msra.mxu0 %v6572
    %6867 = vmatpush.msra.mxu0 %v6571
    %6868 = vmatpush.msra.mxu0 %v6570
    %6869 = vmatpush.msra.mxu0 %v6569
    %6870 = vmatpush.msra.mxu0 %v6568
    %6871 = vmatpush.msra.mxu0 %v6567
    %6872 = vmatpush.msra.mxu0 %v6566
    %6873 = vmatpush.msra.mxu0 %v6565
    %6874 = vmatpush.msra.mxu0 %v6564
    %6875 = vmatpush.msra.mxu0 %v6563
    %6876 = vmatpush.msra.mxu0 %v6562
    %6877 = vmatpush.msra.mxu0 %v6561
    %6878 = vmatpush.msra.mxu0 %v6560
    %6879 = vmatpush.msra.mxu0 %v6559
    %6880 = vmatpush.msra.mxu0 %v6558
    %6881 = vmatmul.f32.gmra.mxu0 %v6603
    %v6882 = vpop.f32.mrf.mxu0
    %v6883 = vadd.f32 %v6850, %v6882
    %6884 = vmatmul.f32.gmra.mxu0 %v6615
    %v6885 = vpop.f32.mrf.mxu0
    %v6886 = vadd.f32 %v6853, %v6885
    %6887 = vmatmul.f32.gmra.mxu0 %v6627
    %v6888 = vpop.f32.mrf.mxu0
    %6889 = vmatmul.f32.gmra.mxu0 %v6639
    %v6890 = vpop.f32.mrf.mxu0
    %6891 = vmatmul.f32.gmra.mxu0 %v6651
    %v6892 = vpop.f32.mrf.mxu0
    %v6893 = vadd.f32 %v6860, %v6892
    %6894 = vmatmul.f32.gmra.mxu0 %v6663
    %v6895 = vpop.f32.mrf.mxu0
    %v6896 = vadd.f32 %v6863, %v6895
    %6897 = vdwg.mxu0
    %v6898 = vadd.f32 %v6461, %v6883
    %v6899 = vadd.f32 %v6462, %v6886
    %v6900 = vadd.f32 %v6463, %v6893
    %v6901 = vadd.f32 %v6464, %v6896
    %v6902 = vld [vmem:[#allocation2 + $0x30] sm:$0xf0]
    %v6903 = vld [vmem:[#allocation2 + $0x38] sm:$0xf0]
    %v6904 = vld [vmem:[#allocation2 + $0x40] sm:$0xf0]
    %v6905 = vld [vmem:[#allocation2 + $0x48] sm:$0xf0]
    %v6906 = vld [vmem:[#allocation2 + $0x50] sm:$0xf0]
    %v6907 = vld [vmem:[#allocation2 + $0x58] sm:$0xf0]
    %v6908 = vld [vmem:[#allocation2 + $0x150] sm:$0xf]
    %v6909 = vld [vmem:[#allocation2 + $0x158] sm:$0xf]
    %v6910 = vld [vmem:[#allocation2 + $0x160] sm:$0xf]
    %v6911 = vld [vmem:[#allocation2 + $0x168] sm:$0xf]
    %v6912 = vld [vmem:[#allocation2 + $0x170] sm:$0xf]
    %v6913 = vld [vmem:[#allocation2 + $0x178] sm:$0xf]
    %s6914 = scalar_lea.vmem [#allocation5], 9216
    %v6915 = vld [vmem:[%s6914] sm:$0xff]
    %v6916 = vld [vmem:[%s6914 + $0x8] sm:$0xff]
    %v6917 = vld [vmem:[%s6914 + $0x10] sm:$0xff]
    %v6918 = vld [vmem:[%s6914 + $0x18] sm:$0xff]
    %v6919 = vld [vmem:[%s6914 + $0x20] sm:$0xff]
    %v6920 = vld [vmem:[%s6914 + $0x28] sm:$0xff]
    %v6921 = vld [vmem:[%s6914 + $0x30] sm:$0xff]
    %v6922 = vld [vmem:[%s6914 + $0x38] sm:$0xff]
    %v6923 = vld [vmem:[%s6914 + $0x40] sm:$0xff]
    %v6924 = vld [vmem:[%s6914 + $0x48] sm:$0xff]
    %v6925 = vld [vmem:[%s6914 + $0x50] sm:$0xff]
    %v6926 = vld [vmem:[%s6914 + $0x58] sm:$0xff]
    %v6927 = vld [vmem:[%s6914 + $0x60] sm:$0xff]
    %v6928 = vld [vmem:[%s6914 + $0x68] sm:$0xff]
    %v6929 = vld [vmem:[%s6914 + $0x70] sm:$0xff]
    %v6930 = vld [vmem:[%s6914 + $0x78] sm:$0xff]
    %v6931 = vld [vmem:[%s6914 + $0x80] sm:$0xff]
    %v6932 = vld [vmem:[%s6914 + $0x88] sm:$0xff]
    %v6933 = vld [vmem:[%s6914 + $0x90] sm:$0xff]
    %v6934 = vld [vmem:[%s6914 + $0x98] sm:$0xff]
    %v6935 = vld [vmem:[%s6914 + $0xa0] sm:$0xff]
    %v6936 = vld [vmem:[%s6914 + $0xa8] sm:$0xff]
    %v6937 = vld [vmem:[%s6914 + $0xb0] sm:$0xff]
    %v6938 = vld [vmem:[%s6914 + $0xb8] sm:$0xff]
    %v6939 = vld [vmem:[%s6914 + $0xc0] sm:$0xff]
    %v6940 = vld [vmem:[%s6914 + $0xc8] sm:$0xff]
    %v6941 = vld [vmem:[%s6914 + $0xd0] sm:$0xff]
    %v6942 = vld [vmem:[%s6914 + $0xd8] sm:$0xff]
    %v6943 = vld [vmem:[%s6914 + $0xe0] sm:$0xff]
    %v6944 = vld [vmem:[%s6914 + $0xe8] sm:$0xff]
    %v6945 = vld [vmem:[%s6914 + $0xf0] sm:$0xff]
    %v6946 = vld [vmem:[%s6914 + $0xf8] sm:$0xff]
    %v6947 = vld [vmem:[%s6914 + $0x100] sm:$0xff]
    %v6948 = vld [vmem:[%s6914 + $0x108] sm:$0xff]
    %v6949 = vld [vmem:[%s6914 + $0x110] sm:$0xff]
    %v6950 = vld [vmem:[%s6914 + $0x118] sm:$0xff]
    %v6951 = vld [vmem:[%s6914 + $0x120] sm:$0xff]
    %v6952 = vld [vmem:[%s6914 + $0x128] sm:$0xff]
    %v6953 = vld [vmem:[%s6914 + $0x130] sm:$0xff]
    %v6954 = vld [vmem:[%s6914 + $0x138] sm:$0xff]
    %v6955 = vld [vmem:[%s6914 + $0x140] sm:$0xff]
    %v6956 = vld [vmem:[%s6914 + $0x148] sm:$0xff]
    %v6957 = vld [vmem:[%s6914 + $0x150] sm:$0xff]
    %v6958 = vld [vmem:[%s6914 + $0x158] sm:$0xff]
    %v6959 = vld [vmem:[%s6914 + $0x160] sm:$0xff]
    %v6960 = vld [vmem:[%s6914 + $0x168] sm:$0xff]
    %v6961 = vld [vmem:[%s6914 + $0x170] sm:$0xff]
    %v6962 = vld [vmem:[%s6914 + $0x178] sm:$0xff]
    %v6963 = vld [vmem:[%s6914 + $0x180] sm:$0xff]
    %v6964 = vld [vmem:[%s6914 + $0x188] sm:$0xff]
    %v6965 = vld [vmem:[%s6914 + $0x190] sm:$0xff]
    %v6966 = vld [vmem:[%s6914 + $0x198] sm:$0xff]
    %v6967 = vld [vmem:[%s6914 + $0x1a0] sm:$0xff]
    %v6968 = vld [vmem:[%s6914 + $0x1a8] sm:$0xff]
    %v6969 = vld [vmem:[%s6914 + $0x1b0] sm:$0xff]
    %v6970 = vld [vmem:[%s6914 + $0x1b8] sm:$0xff]
    %v6971 = vld [vmem:[%s6914 + $0x1c0] sm:$0xff]
    %v6972 = vld [vmem:[%s6914 + $0x1c8] sm:$0xff]
    %v6973 = vld [vmem:[%s6914 + $0x1d0] sm:$0xff]
    %v6974 = vld [vmem:[%s6914 + $0x1d8] sm:$0xff]
    %v6975 = vld [vmem:[%s6914 + $0x1e0] sm:$0xff]
    %v6976 = vld [vmem:[%s6914 + $0x1e8] sm:$0xff]
    %v6977 = vld [vmem:[%s6914 + $0x1f0] sm:$0xff]
    %v6978 = vld [vmem:[%s6914 + $0x1f8] sm:$0xff]
    %v6979 = vld [vmem:[%s6914 + $0x200] sm:$0xff]
    %v6980 = vld [vmem:[%s6914 + $0x208] sm:$0xff]
    %v6981 = vld [vmem:[%s6914 + $0x210] sm:$0xff]
    %v6982 = vld [vmem:[%s6914 + $0x218] sm:$0xff]
    %v6983 = vld [vmem:[%s6914 + $0x220] sm:$0xff]
    %v6984 = vld [vmem:[%s6914 + $0x228] sm:$0xff]
    %v6985 = vld [vmem:[%s6914 + $0x230] sm:$0xff]
    %v6986 = vld [vmem:[%s6914 + $0x238] sm:$0xff]
    %v6987 = vld [vmem:[%s6914 + $0x240] sm:$0xff]
    %v6988 = vld [vmem:[%s6914 + $0x248] sm:$0xff]
    %v6989 = vld [vmem:[%s6914 + $0x250] sm:$0xff]
    %v6990 = vld [vmem:[%s6914 + $0x258] sm:$0xff]
    %v6991 = vld [vmem:[%s6914 + $0x260] sm:$0xff]
    %v6992 = vld [vmem:[%s6914 + $0x268] sm:$0xff]
    %v6993 = vld [vmem:[%s6914 + $0x270] sm:$0xff]
    %v6994 = vld [vmem:[%s6914 + $0x278] sm:$0xff]
    %v6995 = vld [vmem:[%s6914 + $0x280] sm:$0xff]
    %v6996 = vld [vmem:[%s6914 + $0x288] sm:$0xff]
    %v6997 = vld [vmem:[%s6914 + $0x290] sm:$0xff]
    %v6998 = vld [vmem:[%s6914 + $0x298] sm:$0xff]
    %v6999 = vld [vmem:[%s6914 + $0x2a0] sm:$0xff]
    %v7000 = vld [vmem:[%s6914 + $0x2a8] sm:$0xff]
    %v7001 = vld [vmem:[%s6914 + $0x2b0] sm:$0xff]
    %v7002 = vld [vmem:[%s6914 + $0x2b8] sm:$0xff]
    %v7003 = vld [vmem:[%s6914 + $0x2c0] sm:$0xff]
    %v7004 = vld [vmem:[%s6914 + $0x2c8] sm:$0xff]
    %v7005 = vld [vmem:[%s6914 + $0x2d0] sm:$0xff]
    %v7006 = vld [vmem:[%s6914 + $0x2d8] sm:$0xff]
    %v7007 = vld [vmem:[%s6914 + $0x2e0] sm:$0xff]
    %v7008 = vld [vmem:[%s6914 + $0x2e8] sm:$0xff]
    %v7009 = vld [vmem:[%s6914 + $0x2f0] sm:$0xff]
    %v7010 = vld [vmem:[%s6914 + $0x2f8] sm:$0xff]
    %v7023 = vrot.slane %v6902, 4
    %v7024 = vrot.slane %v5537, 4
    %v7025 = vsel %vm3595, %v7023, %v7024
    %v7026 = vrot.slane %v6903, 4
    %v7027 = vrot.slane %v5538, 4
    %v7028 = vsel %vm3595, %v7026, %v7027
    %v7029 = vrot.slane %v6904, 4
    %v7030 = vrot.slane %v5539, 4
    %v7031 = vsel %vm3595, %v7029, %v7030
    %v7032 = vrot.slane %v6905, 4
    %v7033 = vrot.slane %v5540, 4
    %v7034 = vsel %vm3595, %v7032, %v7033
    %v7035 = vrot.slane %v6906, 4
    %v7036 = vrot.slane %v5541, 4
    %v7037 = vsel %vm3595, %v7035, %v7036
    %v7038 = vrot.slane %v6907, 4
    %v7039 = vrot.slane %v5542, 4
    %v7040 = vsel %vm3595, %v7038, %v7039
    %v7041 = vrot.slane %v5543, 4
    %v7042 = vsel %vm3595, %v7024, %v7041
    %v7043 = vrot.slane %v5544, 4
    %v7044 = vsel %vm3595, %v7027, %v7043
    %v7045 = vrot.slane %v5545, 4
    %v7046 = vsel %vm3595, %v7030, %v7045
    %v7047 = vrot.slane %v5546, 4
    %v7048 = vsel %vm3595, %v7033, %v7047
    %v7049 = vrot.slane %v5547, 4
    %v7050 = vsel %vm3595, %v7036, %v7049
    %v7051 = vrot.slane %v5548, 4
    %v7052 = vsel %vm3595, %v7039, %v7051
    %v7053 = vrot.slane %v5549, 4
    %v7054 = vsel %vm3595, %v7041, %v7053
    %v7055 = vrot.slane %v5550, 4
    %v7056 = vsel %vm3595, %v7043, %v7055
    %v7057 = vrot.slane %v5551, 4
    %v7058 = vsel %vm3595, %v7045, %v7057
    %v7059 = vrot.slane %v5552, 4
    %v7060 = vsel %vm3595, %v7047, %v7059
    %v7061 = vrot.slane %v5553, 4
    %v7062 = vsel %vm3595, %v7049, %v7061
    %v7063 = vrot.slane %v5554, 4
    %v7064 = vsel %vm3595, %v7051, %v7063
    %v7065 = vrot.slane %v5555, 4
    %v7066 = vsel %vm3595, %v7053, %v7065
    %v7067 = vrot.slane %v5556, 4
    %v7068 = vsel %vm3595, %v7055, %v7067
    %v7069 = vrot.slane %v5557, 4
    %v7070 = vsel %vm3595, %v7057, %v7069
    %v7071 = vrot.slane %v5558, 4
    %v7072 = vsel %vm3595, %v7059, %v7071
    %v7073 = vrot.slane %v5559, 4
    %v7074 = vsel %vm3595, %v7061, %v7073
    %v7075 = vrot.slane %v5560, 4
    %v7076 = vsel %vm3595, %v7063, %v7075
    %v7077 = vrot.slane %v5561, 4
    %v7078 = vsel %vm3595, %v7065, %v7077
    %v7079 = vrot.slane %v5562, 4
    %v7080 = vsel %vm3595, %v7067, %v7079
    %v7081 = vrot.slane %v5563, 4
    %v7082 = vsel %vm3595, %v7069, %v7081
    %v7083 = vrot.slane %v5564, 4
    %v7084 = vsel %vm3595, %v7071, %v7083
    %v7085 = vrot.slane %v5565, 4
    %v7086 = vsel %vm3595, %v7073, %v7085
    %v7087 = vrot.slane %v5566, 4
    %v7088 = vsel %vm3595, %v7075, %v7087
    %v7089 = vrot.slane %v6908, 4
    %v7090 = vsel %vm3595, %v7077, %v7089
    %v7091 = vrot.slane %v6909, 4
    %v7092 = vsel %vm3595, %v7079, %v7091
    %v7093 = vrot.slane %v6910, 4
    %v7094 = vsel %vm3595, %v7081, %v7093
    %v7095 = vrot.slane %v6911, 4
    %v7096 = vsel %vm3595, %v7083, %v7095
    %v7097 = vrot.slane %v6912, 4
    %v7098 = vsel %vm3595, %v7085, %v7097
    %v7099 = vrot.slane %v6913, 4
    %v7100 = vsel %vm3595, %v7087, %v7099
    %7137 = vmatpush.msra.mxu0 %v6930
    %7138 = vmatpush.msra.mxu0 %v6929
    %7139 = vmatpush.msra.mxu0 %v6928
    %7140 = vmatpush.msra.mxu0 %v6927
    %7141 = vmatpush.msra.mxu0 %v6926
    %7142 = vmatpush.msra.mxu0 %v6925
    %7143 = vmatpush.msra.mxu0 %v6924
    %7144 = vmatpush.msra.mxu0 %v6923
    %7145 = vmatpush.msra.mxu0 %v6922
    %7146 = vmatpush.msra.mxu0 %v6921
    %7147 = vmatpush.msra.mxu0 %v6920
    %7148 = vmatpush.msra.mxu0 %v6919
    %7149 = vmatpush.msra.mxu0 %v6918
    %7150 = vmatpush.msra.mxu0 %v6917
    %7151 = vmatpush.msra.mxu0 %v6916
    %7152 = vmatpush.msra.mxu0 %v6915
    %7153 = vmatmul.f32.gmra.mxu0 %v7025
    %v7154 = vpop.f32.mrf.mxu0
    %v7155 = vadd.f32 0.0, %v7154
    %7156 = vmatmul.f32.gmra.mxu0 %v7042
    %v7157 = vpop.f32.mrf.mxu0
    %v7158 = vadd.f32 0.0, %v7157
    %7159 = vmatmul.f32.gmra.mxu0 %v7054
    %v7160 = vpop.f32.mrf.mxu0
    %7161 = vmatmul.f32.gmra.mxu0 %v7066
    %v7162 = vpop.f32.mrf.mxu0
    %7163 = vmatmul.f32.gmra.mxu0 %v7078
    %v7164 = vpop.f32.mrf.mxu0
    %v7165 = vadd.f32 0.0, %v7164
    %7166 = vmatmul.f32.gmra.mxu0 %v7090
    %v7167 = vpop.f32.mrf.mxu0
    %v7168 = vadd.f32 0.0, %v7167
    %7169 = vdwg.mxu0
    %7170 = vmatpush.msra.mxu0 %v6946
    %7171 = vmatpush.msra.mxu0 %v6945
    %7172 = vmatpush.msra.mxu0 %v6944
    %7173 = vmatpush.msra.mxu0 %v6943
    %7174 = vmatpush.msra.mxu0 %v6942
    %7175 = vmatpush.msra.mxu0 %v6941
    %7176 = vmatpush.msra.mxu0 %v6940
    %7177 = vmatpush.msra.mxu0 %v6939
    %7178 = vmatpush.msra.mxu0 %v6938
    %7179 = vmatpush.msra.mxu0 %v6937
    %7180 = vmatpush.msra.mxu0 %v6936
    %7181 = vmatpush.msra.mxu0 %v6935
    %7182 = vmatpush.msra.mxu0 %v6934
    %7183 = vmatpush.msra.mxu0 %v6933
    %7184 = vmatpush.msra.mxu0 %v6932
    %7185 = vmatpush.msra.mxu0 %v6931
    %7186 = vmatmul.f32.gmra.mxu0 %v7028
    %v7187 = vpop.f32.mrf.mxu0
    %v7188 = vadd.f32 %v7155, %v7187
    %7189 = vmatmul.f32.gmra.mxu0 %v7044
    %v7190 = vpop.f32.mrf.mxu0
    %v7191 = vadd.f32 %v7158, %v7190
    %7192 = vmatmul.f32.gmra.mxu0 %v7056
    %v7193 = vpop.f32.mrf.mxu0
    %7194 = vmatmul.f32.gmra.mxu0 %v7068
    %v7195 = vpop.f32.mrf.mxu0
    %7196 = vmatmul.f32.gmra.mxu0 %v7080
    %v7197 = vpop.f32.mrf.mxu0
    %v7198 = vadd.f32 %v7165, %v7197
    %7199 = vmatmul.f32.gmra.mxu0 %v7092
    %v7200 = vpop.f32.mrf.mxu0
    %v7201 = vadd.f32 %v7168, %v7200
    %7202 = vdwg.mxu0
    %7203 = vmatpush.msra.mxu0 %v6962
    %7204 = vmatpush.msra.mxu0 %v6961
    %7205 = vmatpush.msra.mxu0 %v6960
    %7206 = vmatpush.msra.mxu0 %v6959
    %7207 = vmatpush.msra.mxu0 %v6958
    %7208 = vmatpush.msra.mxu0 %v6957
    %7209 = vmatpush.msra.mxu0 %v6956
    %7210 = vmatpush.msra.mxu0 %v6955
    %7211 = vmatpush.msra.mxu0 %v6954
    %7212 = vmatpush.msra.mxu0 %v6953
    %7213 = vmatpush.msra.mxu0 %v6952
    %7214 = vmatpush.msra.mxu0 %v6951
    %7215 = vmatpush.msra.mxu0 %v6950
    %7216 = vmatpush.msra.mxu0 %v6949
    %7217 = vmatpush.msra.mxu0 %v6948
    %7218 = vmatpush.msra.mxu0 %v6947
    %7219 = vmatmul.f32.gmra.mxu0 %v7031
    %v7220 = vpop.f32.mrf.mxu0
    %v7221 = vadd.f32 %v7188, %v7220
    %7222 = vmatmul.f32.gmra.mxu0 %v7046
    %v7223 = vpop.f32.mrf.mxu0
    %v7224 = vadd.f32 %v7191, %v7223
    %7225 = vmatmul.f32.gmra.mxu0 %v7058
    %v7226 = vpop.f32.mrf.mxu0
    %7227 = vmatmul.f32.gmra.mxu0 %v7070
    %v7228 = vpop.f32.mrf.mxu0
    %7229 = vmatmul.f32.gmra.mxu0 %v7082
    %v7230 = vpop.f32.mrf.mxu0
    %v7231 = vadd.f32 %v7198, %v7230
    %7232 = vmatmul.f32.gmra.mxu0 %v7094
    %v7233 = vpop.f32.mrf.mxu0
    %v7234 = vadd.f32 %v7201, %v7233
    %7235 = vdwg.mxu0
    %7236 = vmatpush.msra.mxu0 %v6978
    %7237 = vmatpush.msra.mxu0 %v6977
    %7238 = vmatpush.msra.mxu0 %v6976
    %7239 = vmatpush.msra.mxu0 %v6975
    %7240 = vmatpush.msra.mxu0 %v6974
    %7241 = vmatpush.msra.mxu0 %v6973
    %7242 = vmatpush.msra.mxu0 %v6972
    %7243 = vmatpush.msra.mxu0 %v6971
    %7244 = vmatpush.msra.mxu0 %v6970
    %7245 = vmatpush.msra.mxu0 %v6969
    %7246 = vmatpush.msra.mxu0 %v6968
    %7247 = vmatpush.msra.mxu0 %v6967
    %7248 = vmatpush.msra.mxu0 %v6966
    %7249 = vmatpush.msra.mxu0 %v6965
    %7250 = vmatpush.msra.mxu0 %v6964
    %7251 = vmatpush.msra.mxu0 %v6963
    %7252 = vmatmul.f32.gmra.mxu0 %v7034
    %v7253 = vpop.f32.mrf.mxu0
    %v7254 = vadd.f32 %v7221, %v7253
    %7255 = vmatmul.f32.gmra.mxu0 %v7048
    %v7256 = vpop.f32.mrf.mxu0
    %v7257 = vadd.f32 %v7224, %v7256
    %7258 = vmatmul.f32.gmra.mxu0 %v7060
    %v7259 = vpop.f32.mrf.mxu0
    %7260 = vmatmul.f32.gmra.mxu0 %v7072
    %v7261 = vpop.f32.mrf.mxu0
    %7262 = vmatmul.f32.gmra.mxu0 %v7084
    %v7263 = vpop.f32.mrf.mxu0
    %v7264 = vadd.f32 %v7231, %v7263
    %7265 = vmatmul.f32.gmra.mxu0 %v7096
    %v7266 = vpop.f32.mrf.mxu0
    %v7267 = vadd.f32 %v7234, %v7266
    %7268 = vdwg.mxu0
    %7269 = vmatpush.msra.mxu0 %v6994
    %7270 = vmatpush.msra.mxu0 %v6993
    %7271 = vmatpush.msra.mxu0 %v6992
    %7272 = vmatpush.msra.mxu0 %v6991
    %7273 = vmatpush.msra.mxu0 %v6990
    %7274 = vmatpush.msra.mxu0 %v6989
    %7275 = vmatpush.msra.mxu0 %v6988
    %7276 = vmatpush.msra.mxu0 %v6987
    %7277 = vmatpush.msra.mxu0 %v6986
    %7278 = vmatpush.msra.mxu0 %v6985
    %7279 = vmatpush.msra.mxu0 %v6984
    %7280 = vmatpush.msra.mxu0 %v6983
    %7281 = vmatpush.msra.mxu0 %v6982
    %7282 = vmatpush.msra.mxu0 %v6981
    %7283 = vmatpush.msra.mxu0 %v6980
    %7284 = vmatpush.msra.mxu0 %v6979
    %7285 = vmatmul.f32.gmra.mxu0 %v7037
    %v7286 = vpop.f32.mrf.mxu0
    %v7287 = vadd.f32 %v7254, %v7286
    %7288 = vmatmul.f32.gmra.mxu0 %v7050
    %v7289 = vpop.f32.mrf.mxu0
    %v7290 = vadd.f32 %v7257, %v7289
    %7291 = vmatmul.f32.gmra.mxu0 %v7062
    %v7292 = vpop.f32.mrf.mxu0
    %7293 = vmatmul.f32.gmra.mxu0 %v7074
    %v7294 = vpop.f32.mrf.mxu0
    %7295 = vmatmul.f32.gmra.mxu0 %v7086
    %v7296 = vpop.f32.mrf.mxu0
    %v7297 = vadd.f32 %v7264, %v7296
    %7298 = vmatmul.f32.gmra.mxu0 %v7098
    %v7299 = vpop.f32.mrf.mxu0
    %v7300 = vadd.f32 %v7267, %v7299
    %7301 = vdwg.mxu0
    %7302 = vmatpush.msra.mxu0 %v7010
    %7303 = vmatpush.msra.mxu0 %v7009
    %7304 = vmatpush.msra.mxu0 %v7008
    %7305 = vmatpush.msra.mxu0 %v7007
    %7306 = vmatpush.msra.mxu0 %v7006
    %7307 = vmatpush.msra.mxu0 %v7005
    %7308 = vmatpush.msra.mxu0 %v7004
    %7309 = vmatpush.msra.mxu0 %v7003
    %7310 = vmatpush.msra.mxu0 %v7002
    %7311 = vmatpush.msra.mxu0 %v7001
    %7312 = vmatpush.msra.mxu0 %v7000
    %7313 = vmatpush.msra.mxu0 %v6999
    %7314 = vmatpush.msra.mxu0 %v6998
    %7315 = vmatpush.msra.mxu0 %v6997
    %7316 = vmatpush.msra.mxu0 %v6996
    %7317 = vmatpush.msra.mxu0 %v6995
    %7318 = vmatmul.f32.gmra.mxu0 %v7040
    %v7319 = vpop.f32.mrf.mxu0
    %v7320 = vadd.f32 %v7287, %v7319
    %7321 = vmatmul.f32.gmra.mxu0 %v7052
    %v7322 = vpop.f32.mrf.mxu0
    %v7323 = vadd.f32 %v7290, %v7322
    %7324 = vmatmul.f32.gmra.mxu0 %v7064
    %v7325 = vpop.f32.mrf.mxu0
    %7326 = vmatmul.f32.gmra.mxu0 %v7076
    %v7327 = vpop.f32.mrf.mxu0
    %7328 = vmatmul.f32.gmra.mxu0 %v7088
    %v7329 = vpop.f32.mrf.mxu0
    %v7330 = vadd.f32 %v7297, %v7329
    %7331 = vmatmul.f32.gmra.mxu0 %v7100
    %v7332 = vpop.f32.mrf.mxu0
    %v7333 = vadd.f32 %v7300, %v7332
    %7334 = vdwg.mxu0
    %v7335 = vadd.f32 %v6898, %v7320
    %v7336 = vadd.f32 %v6899, %v7323
    %v7337 = vadd.f32 %v6900, %v7330
    %v7338 = vadd.f32 %v6901, %v7333
    %v7339 = vld [vmem:[%s2] sm:$0x1]
    %v7341 = vperm.slane %v7339, 0
    %v7343 = vadd.f32 %v7335, %v7341
    %v7344 = vadd.f32 %v7336, %v7341
    %v7345 = vadd.f32 %v7337, %v7341
    %v7346 = vadd.f32 %v7338, %v7341
    %v7347 = vxor.u32 %v7343, 2147483648
    %v7348 = vxor.u32 %v7344, 2147483648
    %v7349 = vxor.u32 %v7345, 2147483648
    %v7350 = vxor.u32 %v7346, 2147483648
    %v7351 = vmul.f32 %v7347, 1.442695
    %v7352 = vpow.pop %v7351
    %v7353 = vmul.f32 %v7348, 1.442695
    %v7354 = vpow.pop %v7353
    %v7355 = vmul.f32 %v7349, 1.442695
    %v7356 = vpow.pop %v7355
    %v7357 = vmul.f32 %v7350, 1.442695
    %v7358 = vpow.pop %v7357
    %v7359 = vadd.f32 %v7352, 1.0
    %v7360 = vadd.f32 %v7354, 1.0
    %v7361 = vadd.f32 %v7356, 1.0
    %v7362 = vadd.f32 %v7358, 1.0
    %v7363 = vrcp.pop %v7359
    %v7364 = vmul.f32 %v7359, %v7363
    %v7365 = vsub.f32 1.0, %v7364
    %v7366 = vmul.f32 %v7363, %v7365
    %v7367 = vadd.f32 %v7363, %v7366
    %vm7368 = vweird.f32 %v7359
    %vm7369 = vweird.f32 %v7363
    %vm7370 = vmor %vm7368, %vm7369
    %v7371 = vsel %vm7370, %v7363, %v7367
    %v7372 = vand.u32 2147483647, %v7359
    %vm7373 = vcmp.eq.f32.partialorder %v7372, 8.507059e+37
    %v7374 = vand.u32 %v7359, 2147483648
    %v7375 = vor.u32 1.1754944e-38, %v7374
    %v7376 = vsel %vm7373, %v7375, %v7371
    %v7377 = vmul.f32 1.0, %v7376
    %v7378 = vrcp.pop %v7360
    %v7379 = vmul.f32 %v7360, %v7378
    %v7380 = vsub.f32 1.0, %v7379
    %v7381 = vmul.f32 %v7378, %v7380
    %v7382 = vadd.f32 %v7378, %v7381
    %vm7383 = vweird.f32 %v7360
    %vm7384 = vweird.f32 %v7378
    %vm7385 = vmor %vm7383, %vm7384
    %v7386 = vsel %vm7385, %v7378, %v7382
    %v7387 = vand.u32 2147483647, %v7360
    %vm7388 = vcmp.eq.f32.partialorder %v7387, 8.507059e+37
    %v7389 = vand.u32 %v7360, 2147483648
    %v7390 = vor.u32 1.1754944e-38, %v7389
    %v7391 = vsel %vm7388, %v7390, %v7386
    %v7392 = vmul.f32 1.0, %v7391
    %v7393 = vrcp.pop %v7361
    %v7394 = vmul.f32 %v7361, %v7393
    %v7395 = vsub.f32 1.0, %v7394
    %v7396 = vmul.f32 %v7393, %v7395
    %v7397 = vadd.f32 %v7393, %v7396
    %vm7398 = vweird.f32 %v7361
    %vm7399 = vweird.f32 %v7393
    %vm7400 = vmor %vm7398, %vm7399
    %v7401 = vsel %vm7400, %v7393, %v7397
    %v7402 = vand.u32 2147483647, %v7361
    %vm7403 = vcmp.eq.f32.partialorder %v7402, 8.507059e+37
    %v7404 = vand.u32 %v7361, 2147483648
    %v7405 = vor.u32 1.1754944e-38, %v7404
    %v7406 = vsel %vm7403, %v7405, %v7401
    %v7407 = vmul.f32 1.0, %v7406
    %v7408 = vrcp.pop %v7362
    %v7409 = vmul.f32 %v7362, %v7408
    %v7410 = vsub.f32 1.0, %v7409
    %v7411 = vmul.f32 %v7408, %v7410
    %v7412 = vadd.f32 %v7408, %v7411
    %vm7413 = vweird.f32 %v7362
    %vm7414 = vweird.f32 %v7408
    %vm7415 = vmor %vm7413, %vm7414
    %v7416 = vsel %vm7415, %v7408, %v7412
    %v7417 = vand.u32 2147483647, %v7362
    %vm7418 = vcmp.eq.f32.partialorder %v7417, 8.507059e+37
    %v7419 = vand.u32 %v7362, 2147483648
    %v7420 = vor.u32 1.1754944e-38, %v7419
    %v7421 = vsel %vm7418, %v7420, %v7416
    %v7422 = vmul.f32 1.0, %v7421
    %v7425 = vrot.slane %v7377, 1
    %v7426 = vrot.slane %v7377, 2
    %v7427 = vrot.slane %v7377, 3
    %v7428 = vrot.slane %v7377, 4
    %v7429 = vrot.slane %v7377, 5
    %v7430 = vrot.slane %v7377, 6
    %v7431 = vrot.slane %v7377, 7
    %v7432 = vrot.slane %v7392, 1
    %v7433 = vrot.slane %v7392, 2
    %v7434 = vrot.slane %v7392, 3
    %v7435 = vrot.slane %v7392, 4
    %v7436 = vrot.slane %v7392, 5
    %v7437 = vrot.slane %v7392, 6
    %v7438 = vrot.slane %v7392, 7
    %v7439 = vperm.slane %v7377, 0
    %v7440 = vperm.slane %v7425, 0
    %v7441 = vperm.slane %v7426, 0
    %v7442 = vperm.slane %v7427, 0
    %v7443 = vperm.slane %v7428, 0
    %v7444 = vperm.slane %v7429, 0
    %v7445 = vperm.slane %v7430, 0
    %v7446 = vperm.slane %v7431, 0
    %v7447 = vperm.slane %v7392, 0
    %v7448 = vperm.slane %v7432, 0
    %v7449 = vperm.slane %v7433, 0
    %v7450 = vperm.slane %v7434, 0
    %v7451 = vperm.slane %v7435, 0
    %v7452 = vperm.slane %v7436, 0
    %v7453 = vperm.slane %v7437, 0
    %v7454 = vperm.slane %v7438, 0
    %7455 = vrot.lane.b32.xlu0 %v7439, 112
    %v7456 = vpop.permute.xlu0 %7455
    %7457 = vrot.lane.b32.xlu0 %v7440, 112
    %v7458 = vpop.permute.xlu0 %7457
    %7459 = vrot.lane.b32.xlu0 %v7441, 112
    %v7460 = vpop.permute.xlu0 %7459
    %7461 = vrot.lane.b32.xlu0 %v7442, 112
    %v7462 = vpop.permute.xlu0 %7461
    %7463 = vrot.lane.b32.xlu0 %v7443, 112
    %v7464 = vpop.permute.xlu0 %7463
    %7465 = vrot.lane.b32.xlu0 %v7444, 112
    %v7466 = vpop.permute.xlu0 %7465
    %7467 = vrot.lane.b32.xlu0 %v7445, 112
    %v7468 = vpop.permute.xlu0 %7467
    %7469 = vrot.lane.b32.xlu0 %v7446, 112
    %v7470 = vpop.permute.xlu0 %7469
    %7471 = vrot.lane.b32.xlu0 %v7447, 112
    %v7472 = vpop.permute.xlu0 %7471
    %7473 = vrot.lane.b32.xlu0 %v7448, 112
    %v7474 = vpop.permute.xlu0 %7473
    %7475 = vrot.lane.b32.xlu0 %v7449, 112
    %v7476 = vpop.permute.xlu0 %7475
    %7477 = vrot.lane.b32.xlu0 %v7450, 112
    %v7478 = vpop.permute.xlu0 %7477
    %7479 = vrot.lane.b32.xlu0 %v7451, 112
    %v7480 = vpop.permute.xlu0 %7479
    %7481 = vrot.lane.b32.xlu0 %v7452, 112
    %v7482 = vpop.permute.xlu0 %7481
    %7483 = vrot.lane.b32.xlu0 %v7453, 112
    %v7484 = vpop.permute.xlu0 %7483
    %7485 = vrot.lane.b32.xlu0 %v7454, 112
    %v7486 = vpop.permute.xlu0 %7485
    %v7503 = vadd.f32 %v7377, %v7456
    %v7504 = vadd.f32 %v7392, %v7456
    %v7505 = vadd.f32 %v7377, %v7458
    %v7506 = vadd.f32 %v7392, %v7458
    %v7507 = vadd.f32 %v7377, %v7460
    %v7508 = vadd.f32 %v7392, %v7460
    %v7509 = vadd.f32 %v7377, %v7462
    %v7510 = vadd.f32 %v7392, %v7462
    %v7511 = vadd.f32 %v7377, %v7464
    %v7512 = vadd.f32 %v7392, %v7464
    %v7513 = vadd.f32 %v7377, %v7466
    %v7514 = vadd.f32 %v7392, %v7466
    %v7515 = vadd.f32 %v7377, %v7468
    %v7516 = vadd.f32 %v7392, %v7468
    %v7517 = vadd.f32 %v7377, %v7470
    %v7518 = vadd.f32 %v7392, %v7470
    %v7519 = vadd.f32 %v7377, %v7472
    %v7520 = vadd.f32 %v7392, %v7472
    %v7521 = vadd.f32 %v7377, %v7474
    %v7522 = vadd.f32 %v7392, %v7474
    %v7523 = vadd.f32 %v7377, %v7476
    %v7524 = vadd.f32 %v7392, %v7476
    %v7525 = vadd.f32 %v7377, %v7478
    %v7526 = vadd.f32 %v7392, %v7478
    %v7527 = vadd.f32 %v7377, %v7480
    %v7528 = vadd.f32 %v7392, %v7480
    %v7529 = vadd.f32 %v7377, %v7482
    %v7530 = vadd.f32 %v7392, %v7482
    %v7531 = vadd.f32 %v7377, %v7484
    %v7532 = vadd.f32 %v7392, %v7484
    %v7533 = vadd.f32 %v7377, %v7486
    %v7534 = vadd.f32 %v7392, %v7486
    %v7535 = vperm.slane %v7377, 0
    %v7536 = vlaneseq
    %v7537 = vshrl.u32 %v7536, 7
    %v7538 = vadd.s32 %v7537, 32
    %7539 = vset.pattern.permute.xlu0 %v7538
    %7540 = vperm.xlu0 %7539, %v7535
    %v7541 = vpop.permute.xlu0 %7540
    %v7542 = vlaneseq
    %v7543 = vshrl.u32 %v7542, 7
    %v7544 = vadd.s32 %v7543, 40
    %7545 = vset.pattern.permute.xlu0 %v7544
    %7546 = vperm.xlu0 %7545, %v7535
    %v7547 = vpop.permute.xlu0 %7546
    %v7548 = vperm.slane %v7377, 1
    %v7549 = vlaneseq
    %v7550 = vshrl.u32 %v7549, 7
    %v7551 = vadd.s32 %v7550, 32
    %7552 = vset.pattern.permute.xlu0 %v7551
    %7553 = vperm.xlu0 %7552, %v7548
    %v7554 = vpop.permute.xlu0 %7553
    %v7555 = vlaneseq
    %v7556 = vshrl.u32 %v7555, 7
    %v7557 = vadd.s32 %v7556, 40
    %7558 = vset.pattern.permute.xlu0 %v7557
    %7559 = vperm.xlu0 %7558, %v7548
    %v7560 = vpop.permute.xlu0 %7559
    %v7561 = vperm.slane %v7377, 2
    %v7562 = vlaneseq
    %v7563 = vshrl.u32 %v7562, 7
    %v7564 = vadd.s32 %v7563, 32
    %7565 = vset.pattern.permute.xlu0 %v7564
    %7566 = vperm.xlu0 %7565, %v7561
    %v7567 = vpop.permute.xlu0 %7566
    %v7568 = vlaneseq
    %v7569 = vshrl.u32 %v7568, 7
    %v7570 = vadd.s32 %v7569, 40
    %7571 = vset.pattern.permute.xlu0 %v7570
    %7572 = vperm.xlu0 %7571, %v7561
    %v7573 = vpop.permute.xlu0 %7572
    %v7574 = vperm.slane %v7377, 3
    %v7575 = vlaneseq
    %v7576 = vshrl.u32 %v7575, 7
    %v7577 = vadd.s32 %v7576, 32
    %7578 = vset.pattern.permute.xlu0 %v7577
    %7579 = vperm.xlu0 %7578, %v7574
    %v7580 = vpop.permute.xlu0 %7579
    %v7581 = vlaneseq
    %v7582 = vshrl.u32 %v7581, 7
    %v7583 = vadd.s32 %v7582, 40
    %7584 = vset.pattern.permute.xlu0 %v7583
    %7585 = vperm.xlu0 %7584, %v7574
    %v7586 = vpop.permute.xlu0 %7585
    %v7587 = vperm.slane %v7377, 4
    %v7588 = vlaneseq
    %v7589 = vshrl.u32 %v7588, 7
    %v7590 = vadd.s32 %v7589, 32
    %7591 = vset.pattern.permute.xlu0 %v7590
    %7592 = vperm.xlu0 %7591, %v7587
    %v7593 = vpop.permute.xlu0 %7592
    %v7594 = vlaneseq
    %v7595 = vshrl.u32 %v7594, 7
    %v7596 = vadd.s32 %v7595, 40
    %7597 = vset.pattern.permute.xlu0 %v7596
    %7598 = vperm.xlu0 %7597, %v7587
    %v7599 = vpop.permute.xlu0 %7598
    %v7600 = vperm.slane %v7377, 5
    %v7601 = vlaneseq
    %v7602 = vshrl.u32 %v7601, 7
    %v7603 = vadd.s32 %v7602, 32
    %7604 = vset.pattern.permute.xlu0 %v7603
    %7605 = vperm.xlu0 %7604, %v7600
    %v7606 = vpop.permute.xlu0 %7605
    %v7607 = vlaneseq
    %v7608 = vshrl.u32 %v7607, 7
    %v7609 = vadd.s32 %v7608, 40
    %7610 = vset.pattern.permute.xlu0 %v7609
    %7611 = vperm.xlu0 %7610, %v7600
    %v7612 = vpop.permute.xlu0 %7611
    %v7613 = vperm.slane %v7377, 6
    %v7614 = vlaneseq
    %v7615 = vshrl.u32 %v7614, 7
    %v7616 = vadd.s32 %v7615, 32
    %7617 = vset.pattern.permute.xlu0 %v7616
    %7618 = vperm.xlu0 %7617, %v7613
    %v7619 = vpop.permute.xlu0 %7618
    %v7620 = vlaneseq
    %v7621 = vshrl.u32 %v7620, 7
    %v7622 = vadd.s32 %v7621, 40
    %7623 = vset.pattern.permute.xlu0 %v7622
    %7624 = vperm.xlu0 %7623, %v7613
    %v7625 = vpop.permute.xlu0 %7624
    %v7626 = vperm.slane %v7377, 7
    %v7627 = vlaneseq
    %v7628 = vshrl.u32 %v7627, 7
    %v7629 = vadd.s32 %v7628, 32
    %7630 = vset.pattern.permute.xlu0 %v7629
    %7631 = vperm.xlu0 %7630, %v7626
    %v7632 = vpop.permute.xlu0 %7631
    %v7633 = vlaneseq
    %v7634 = vshrl.u32 %v7633, 7
    %v7635 = vadd.s32 %v7634, 40
    %7636 = vset.pattern.permute.xlu0 %v7635
    %7637 = vperm.xlu0 %7636, %v7626
    %v7638 = vpop.permute.xlu0 %7637
    %v7639 = vperm.slane %v7392, 0
    %v7640 = vlaneseq
    %v7641 = vshrl.u32 %v7640, 7
    %v7642 = vadd.s32 %v7641, 32
    %7643 = vset.pattern.permute.xlu0 %v7642
    %7644 = vperm.xlu0 %7643, %v7639
    %v7645 = vpop.permute.xlu0 %7644
    %v7646 = vlaneseq
    %v7647 = vshrl.u32 %v7646, 7
    %v7648 = vadd.s32 %v7647, 40
    %7649 = vset.pattern.permute.xlu0 %v7648
    %7650 = vperm.xlu0 %7649, %v7639
    %v7651 = vpop.permute.xlu0 %7650
    %v7652 = vperm.slane %v7392, 1
    %v7653 = vlaneseq
    %v7654 = vshrl.u32 %v7653, 7
    %v7655 = vadd.s32 %v7654, 32
    %7656 = vset.pattern.permute.xlu0 %v7655
    %7657 = vperm.xlu0 %7656, %v7652
    %v7658 = vpop.permute.xlu0 %7657
    %v7659 = vlaneseq
    %v7660 = vshrl.u32 %v7659, 7
    %v7661 = vadd.s32 %v7660, 40
    %7662 = vset.pattern.permute.xlu0 %v7661
    %7663 = vperm.xlu0 %7662, %v7652
    %v7664 = vpop.permute.xlu0 %7663
    %v7665 = vperm.slane %v7392, 2
    %v7666 = vlaneseq
    %v7667 = vshrl.u32 %v7666, 7
    %v7668 = vadd.s32 %v7667, 32
    %7669 = vset.pattern.permute.xlu0 %v7668
    %7670 = vperm.xlu0 %7669, %v7665
    %v7671 = vpop.permute.xlu0 %7670
    %v7672 = vlaneseq
    %v7673 = vshrl.u32 %v7672, 7
    %v7674 = vadd.s32 %v7673, 40
    %7675 = vset.pattern.permute.xlu0 %v7674
    %7676 = vperm.xlu0 %7675, %v7665
    %v7677 = vpop.permute.xlu0 %7676
    %v7678 = vperm.slane %v7392, 3
    %v7679 = vlaneseq
    %v7680 = vshrl.u32 %v7679, 7
    %v7681 = vadd.s32 %v7680, 32
    %7682 = vset.pattern.permute.xlu0 %v7681
    %7683 = vperm.xlu0 %7682, %v7678
    %v7684 = vpop.permute.xlu0 %7683
    %v7685 = vlaneseq
    %v7686 = vshrl.u32 %v7685, 7
    %v7687 = vadd.s32 %v7686, 40
    %7688 = vset.pattern.permute.xlu0 %v7687
    %7689 = vperm.xlu0 %7688, %v7678
    %v7690 = vpop.permute.xlu0 %7689
    %v7691 = vperm.slane %v7392, 4
    %v7692 = vlaneseq
    %v7693 = vshrl.u32 %v7692, 7
    %v7694 = vadd.s32 %v7693, 32
    %7695 = vset.pattern.permute.xlu0 %v7694
    %7696 = vperm.xlu0 %7695, %v7691
    %v7697 = vpop.permute.xlu0 %7696
    %v7698 = vlaneseq
    %v7699 = vshrl.u32 %v7698, 7
    %v7700 = vadd.s32 %v7699, 40
    %7701 = vset.pattern.permute.xlu0 %v7700
    %7702 = vperm.xlu0 %7701, %v7691
    %v7703 = vpop.permute.xlu0 %7702
    %v7704 = vperm.slane %v7392, 5
    %v7705 = vlaneseq
    %v7706 = vshrl.u32 %v7705, 7
    %v7707 = vadd.s32 %v7706, 32
    %7708 = vset.pattern.permute.xlu0 %v7707
    %7709 = vperm.xlu0 %7708, %v7704
    %v7710 = vpop.permute.xlu0 %7709
    %v7711 = vlaneseq
    %v7712 = vshrl.u32 %v7711, 7
    %v7713 = vadd.s32 %v7712, 40
    %7714 = vset.pattern.permute.xlu0 %v7713
    %7715 = vperm.xlu0 %7714, %v7704
    %v7716 = vpop.permute.xlu0 %7715
    %v7717 = vperm.slane %v7392, 6
    %v7718 = vlaneseq
    %v7719 = vshrl.u32 %v7718, 7
    %v7720 = vadd.s32 %v7719, 32
    %7721 = vset.pattern.permute.xlu0 %v7720
    %7722 = vperm.xlu0 %7721, %v7717
    %v7723 = vpop.permute.xlu0 %7722
    %v7724 = vlaneseq
    %v7725 = vshrl.u32 %v7724, 7
    %v7726 = vadd.s32 %v7725, 40
    %7727 = vset.pattern.permute.xlu0 %v7726
    %7728 = vperm.xlu0 %7727, %v7717
    %v7729 = vpop.permute.xlu0 %7728
    %v7730 = vperm.slane %v7392, 7
    %v7731 = vlaneseq
    %v7732 = vshrl.u32 %v7731, 7
    %v7733 = vadd.s32 %v7732, 32
    %7734 = vset.pattern.permute.xlu0 %v7733
    %7735 = vperm.xlu0 %7734, %v7730
    %v7736 = vpop.permute.xlu0 %7735
    %v7737 = vlaneseq
    %v7738 = vshrl.u32 %v7737, 7
    %v7739 = vadd.s32 %v7738, 40
    %7740 = vset.pattern.permute.xlu0 %v7739
    %7741 = vperm.xlu0 %7740, %v7730
    %v7742 = vpop.permute.xlu0 %7741
    %v7743 = vadd.f32 %v7503, %v7541
    %v7744 = vadd.f32 %v7504, %v7547
    %v7745 = vadd.f32 %v7505, %v7554
    %v7746 = vadd.f32 %v7506, %v7560
    %v7747 = vadd.f32 %v7507, %v7567
    %v7748 = vadd.f32 %v7508, %v7573
    %v7749 = vadd.f32 %v7509, %v7580
    %v7750 = vadd.f32 %v7510, %v7586
    %v7751 = vadd.f32 %v7511, %v7593
    %v7752 = vadd.f32 %v7512, %v7599
    %v7753 = vadd.f32 %v7513, %v7606
    %v7754 = vadd.f32 %v7514, %v7612
    %v7755 = vadd.f32 %v7515, %v7619
    %v7756 = vadd.f32 %v7516, %v7625
    %v7757 = vadd.f32 %v7517, %v7632
    %v7758 = vadd.f32 %v7518, %v7638
    %v7759 = vadd.f32 %v7519, %v7645
    %v7760 = vadd.f32 %v7520, %v7651
    %v7761 = vadd.f32 %v7521, %v7658
    %v7762 = vadd.f32 %v7522, %v7664
    %v7763 = vadd.f32 %v7523, %v7671
    %v7764 = vadd.f32 %v7524, %v7677
    %v7765 = vadd.f32 %v7525, %v7684
    %v7766 = vadd.f32 %v7526, %v7690
    %v7767 = vadd.f32 %v7527, %v7697
    %v7768 = vadd.f32 %v7528, %v7703
    %v7769 = vadd.f32 %v7529, %v7710
    %v7770 = vadd.f32 %v7530, %v7716
    %v7771 = vadd.f32 %v7531, %v7723
    %v7772 = vadd.f32 %v7532, %v7729
    %v7773 = vadd.f32 %v7533, %v7736
    %v7774 = vadd.f32 %v7534, %v7742
    %v7775 = vmul.f32 %v7743, 0.33333334
    %v7776 = vmul.f32 %v7744, 0.33333334
    %v7777 = vmul.f32 %v7745, 0.33333334
    %v7778 = vmul.f32 %v7746, 0.33333334
    %v7779 = vmul.f32 %v7747, 0.33333334
    %v7780 = vmul.f32 %v7748, 0.33333334
    %v7781 = vmul.f32 %v7749, 0.33333334
    %v7782 = vmul.f32 %v7750, 0.33333334
    %v7783 = vmul.f32 %v7751, 0.33333334
    %v7784 = vmul.f32 %v7752, 0.33333334
    %v7785 = vmul.f32 %v7753, 0.33333334
    %v7786 = vmul.f32 %v7754, 0.33333334
    %v7787 = vmul.f32 %v7755, 0.33333334
    %v7788 = vmul.f32 %v7756, 0.33333334
    %v7789 = vmul.f32 %v7757, 0.33333334
    %v7790 = vmul.f32 %v7758, 0.33333334
    %v7791 = vmul.f32 %v7759, 0.33333334
    %v7792 = vmul.f32 %v7760, 0.33333334
    %v7793 = vmul.f32 %v7761, 0.33333334
    %v7794 = vmul.f32 %v7762, 0.33333334
    %v7795 = vmul.f32 %v7763, 0.33333334
    %v7796 = vmul.f32 %v7764, 0.33333334
    %v7797 = vmul.f32 %v7765, 0.33333334
    %v7798 = vmul.f32 %v7766, 0.33333334
    %v7799 = vmul.f32 %v7767, 0.33333334
    %v7800 = vmul.f32 %v7768, 0.33333334
    %v7801 = vmul.f32 %v7769, 0.33333334
    %v7802 = vmul.f32 %v7770, 0.33333334
    %v7803 = vmul.f32 %v7771, 0.33333334
    %v7804 = vmul.f32 %v7772, 0.33333334
    %v7805 = vmul.f32 %v7773, 0.33333334
    %v7806 = vmul.f32 %v7774, 0.33333334
    %v7807 = vld [vmem:[#allocation3] sm:$0xff]
    %v7808 = vld [vmem:[#allocation3 + $0x8] sm:$0xff]
    %v7809 = vld [vmem:[#allocation3 + $0x10] sm:$0xff]
    %v7810 = vld [vmem:[#allocation3 + $0x18] sm:$0xff]
    %v7811 = vld [vmem:[#allocation3 + $0x20] sm:$0xff]
    %v7812 = vld [vmem:[#allocation3 + $0x28] sm:$0xff]
    %v7813 = vld [vmem:[#allocation3 + $0x30] sm:$0xff]
    %v7814 = vld [vmem:[#allocation3 + $0x38] sm:$0xff]
    %v7815 = vld [vmem:[#allocation3 + $0x40] sm:$0xff]
    %v7816 = vld [vmem:[#allocation3 + $0x48] sm:$0xff]
    %v7817 = vld [vmem:[#allocation3 + $0x50] sm:$0xff]
    %v7818 = vld [vmem:[#allocation3 + $0x58] sm:$0xff]
    %v7819 = vld [vmem:[#allocation3 + $0x60] sm:$0xff]
    %v7820 = vld [vmem:[#allocation3 + $0x68] sm:$0xff]
    %v7821 = vld [vmem:[#allocation3 + $0x70] sm:$0xff]
    %v7822 = vld [vmem:[#allocation3 + $0x78] sm:$0xff]
    %v7823 = vld [vmem:[#allocation3 + $0x80] sm:$0xff]
    %v7824 = vld [vmem:[#allocation3 + $0x88] sm:$0xff]
    %v7825 = vld [vmem:[#allocation3 + $0x90] sm:$0xff]
    %v7826 = vld [vmem:[#allocation3 + $0x98] sm:$0xff]
    %v7827 = vld [vmem:[#allocation3 + $0xa0] sm:$0xff]
    %v7828 = vld [vmem:[#allocation3 + $0xa8] sm:$0xff]
    %v7829 = vld [vmem:[#allocation3 + $0xb0] sm:$0xff]
    %v7830 = vld [vmem:[#allocation3 + $0xb8] sm:$0xff]
    %v7831 = vld [vmem:[#allocation3 + $0xc0] sm:$0xff]
    %v7832 = vld [vmem:[#allocation3 + $0xc8] sm:$0xff]
    %v7833 = vld [vmem:[#allocation3 + $0xd0] sm:$0xff]
    %v7834 = vld [vmem:[#allocation3 + $0xd8] sm:$0xff]
    %v7835 = vld [vmem:[#allocation3 + $0xe0] sm:$0xff]
    %v7836 = vld [vmem:[#allocation3 + $0xe8] sm:$0xff]
    %v7837 = vld [vmem:[#allocation3 + $0xf0] sm:$0xff]
    %v7838 = vld [vmem:[#allocation3 + $0xf8] sm:$0xff]
    %v7839 = vmul.f32 %v7807, %v7775
    %v7840 = vmul.f32 %v7808, %v7776
    %v7841 = vmul.f32 %v7809, %v7777
    %v7842 = vmul.f32 %v7810, %v7778
    %v7843 = vmul.f32 %v7811, %v7779
    %v7844 = vmul.f32 %v7812, %v7780
    %v7845 = vmul.f32 %v7813, %v7781
    %v7846 = vmul.f32 %v7814, %v7782
    %v7847 = vmul.f32 %v7815, %v7783
    %v7848 = vmul.f32 %v7816, %v7784
    %v7849 = vmul.f32 %v7817, %v7785
    %v7850 = vmul.f32 %v7818, %v7786
    %v7851 = vmul.f32 %v7819, %v7787
    %v7852 = vmul.f32 %v7820, %v7788
    %v7853 = vmul.f32 %v7821, %v7789
    %v7854 = vmul.f32 %v7822, %v7790
    %v7855 = vmul.f32 %v7823, %v7791
    %v7856 = vmul.f32 %v7824, %v7792
    %v7857 = vmul.f32 %v7825, %v7793
    %v7858 = vmul.f32 %v7826, %v7794
    %v7859 = vmul.f32 %v7827, %v7795
    %v7860 = vmul.f32 %v7828, %v7796
    %v7861 = vmul.f32 %v7829, %v7797
    %v7862 = vmul.f32 %v7830, %v7798
    %v7863 = vmul.f32 %v7831, %v7799
    %v7864 = vmul.f32 %v7832, %v7800
    %v7865 = vmul.f32 %v7833, %v7801
    %v7866 = vmul.f32 %v7834, %v7802
    %v7867 = vmul.f32 %v7835, %v7803
    %v7868 = vmul.f32 %v7836, %v7804
    %v7869 = vmul.f32 %v7837, %v7805
    %v7870 = vmul.f32 %v7838, %v7806
    %v7871 = vmax.f32 %v7839, 1e-06
    %v7872 = vmax.f32 %v7840, 1e-06
    %v7873 = vmax.f32 %v7841, 1e-06
    %v7874 = vmax.f32 %v7842, 1e-06
    %v7875 = vmax.f32 %v7843, 1e-06
    %v7876 = vmax.f32 %v7844, 1e-06
    %v7877 = vmax.f32 %v7845, 1e-06
    %v7878 = vmax.f32 %v7846, 1e-06
    %v7879 = vmax.f32 %v7847, 1e-06
    %v7880 = vmax.f32 %v7848, 1e-06
    %v7881 = vmax.f32 %v7849, 1e-06
    %v7882 = vmax.f32 %v7850, 1e-06
    %v7883 = vmax.f32 %v7851, 1e-06
    %v7884 = vmax.f32 %v7852, 1e-06
    %v7885 = vmax.f32 %v7853, 1e-06
    %v7886 = vmax.f32 %v7854, 1e-06
    %v7887 = vmax.f32 %v7855, 1e-06
    %v7888 = vmax.f32 %v7856, 1e-06
    %v7889 = vmax.f32 %v7857, 1e-06
    %v7890 = vmax.f32 %v7858, 1e-06
    %v7891 = vmax.f32 %v7859, 1e-06
    %v7892 = vmax.f32 %v7860, 1e-06
    %v7893 = vmax.f32 %v7861, 1e-06
    %v7894 = vmax.f32 %v7862, 1e-06
    %v7895 = vmax.f32 %v7863, 1e-06
    %v7896 = vmax.f32 %v7864, 1e-06
    %v7897 = vmax.f32 %v7865, 1e-06
    %v7898 = vmax.f32 %v7866, 1e-06
    %v7899 = vmax.f32 %v7867, 1e-06
    %v7900 = vmax.f32 %v7868, 1e-06
    %v7901 = vmax.f32 %v7869, 1e-06
    %v7902 = vmax.f32 %v7870, 1e-06
    %v7903 = vmul.f32 %v7871, %v7871
    %v7904 = vmul.f32 %v7872, %v7872
    %v7905 = vmul.f32 %v7873, %v7873
    %v7906 = vmul.f32 %v7874, %v7874
    %v7907 = vmul.f32 %v7875, %v7875
    %v7908 = vmul.f32 %v7876, %v7876
    %v7909 = vmul.f32 %v7877, %v7877
    %v7910 = vmul.f32 %v7878, %v7878
    %v7911 = vmul.f32 %v7879, %v7879
    %v7912 = vmul.f32 %v7880, %v7880
    %v7913 = vmul.f32 %v7881, %v7881
    %v7914 = vmul.f32 %v7882, %v7882
    %v7915 = vmul.f32 %v7883, %v7883
    %v7916 = vmul.f32 %v7884, %v7884
    %v7917 = vmul.f32 %v7885, %v7885
    %v7918 = vmul.f32 %v7886, %v7886
    %v7919 = vmul.f32 %v7887, %v7887
    %v7920 = vmul.f32 %v7888, %v7888
    %v7921 = vmul.f32 %v7889, %v7889
    %v7922 = vmul.f32 %v7890, %v7890
    %v7923 = vmul.f32 %v7891, %v7891
    %v7924 = vmul.f32 %v7892, %v7892
    %v7925 = vmul.f32 %v7893, %v7893
    %v7926 = vmul.f32 %v7894, %v7894
    %v7927 = vmul.f32 %v7895, %v7895
    %v7928 = vmul.f32 %v7896, %v7896
    %v7929 = vmul.f32 %v7897, %v7897
    %v7930 = vmul.f32 %v7898, %v7898
    %v7931 = vmul.f32 %v7899, %v7899
    %v7932 = vmul.f32 %v7900, %v7900
    %v7933 = vmul.f32 %v7901, %v7901
    %v7934 = vmul.f32 %v7902, %v7902
    %v7935 = vmul.f32 %v7903, %v7903
    %v7936 = vmul.f32 %v7904, %v7904
    %v7937 = vmul.f32 %v7905, %v7905
    %v7938 = vmul.f32 %v7906, %v7906
    %v7939 = vmul.f32 %v7907, %v7907
    %v7940 = vmul.f32 %v7908, %v7908
    %v7941 = vmul.f32 %v7909, %v7909
    %v7942 = vmul.f32 %v7910, %v7910
    %v7943 = vmul.f32 %v7911, %v7911
    %v7944 = vmul.f32 %v7912, %v7912
    %v7945 = vmul.f32 %v7913, %v7913
    %v7946 = vmul.f32 %v7914, %v7914
    %v7947 = vmul.f32 %v7915, %v7915
    %v7948 = vmul.f32 %v7916, %v7916
    %v7949 = vmul.f32 %v7917, %v7917
    %v7950 = vmul.f32 %v7918, %v7918
    %v7951 = vmul.f32 %v7919, %v7919
    %v7952 = vmul.f32 %v7920, %v7920
    %v7953 = vmul.f32 %v7921, %v7921
    %v7954 = vmul.f32 %v7922, %v7922
    %v7955 = vmul.f32 %v7923, %v7923
    %v7956 = vmul.f32 %v7924, %v7924
    %v7957 = vmul.f32 %v7925, %v7925
    %v7958 = vmul.f32 %v7926, %v7926
    %v7959 = vmul.f32 %v7927, %v7927
    %v7960 = vmul.f32 %v7928, %v7928
    %v7961 = vmul.f32 %v7929, %v7929
    %v7962 = vmul.f32 %v7930, %v7930
    %v7963 = vmul.f32 %v7931, %v7931
    %v7964 = vmul.f32 %v7932, %v7932
    %v7965 = vmul.f32 %v7933, %v7933
    %v7966 = vmul.f32 %v7934, %v7934
    %v7967 = vsel %vm110, %v7935, 0.0
    %7968 = vadd.xlane.f32.xlu0 %v7967
    %v7969 = vpop.xlane.xlu0 %7968
    %v7970 = vsel %vm110, %v7936, 0.0
    %7971 = vadd.xlane.f32.xlu0 %v7970
    %v7972 = vpop.xlane.xlu0 %7971
    %v7973 = vsel %vm110, %v7937, 0.0
    %7974 = vadd.xlane.f32.xlu0 %v7973
    %v7975 = vpop.xlane.xlu0 %7974
    %v7976 = vsel %vm110, %v7938, 0.0
    %7977 = vadd.xlane.f32.xlu0 %v7976
    %v7978 = vpop.xlane.xlu0 %7977
    %v7979 = vsel %vm110, %v7939, 0.0
    %7980 = vadd.xlane.f32.xlu0 %v7979
    %v7981 = vpop.xlane.xlu0 %7980
    %v7982 = vsel %vm110, %v7940, 0.0
    %7983 = vadd.xlane.f32.xlu0 %v7982
    %v7984 = vpop.xlane.xlu0 %7983
    %v7985 = vsel %vm110, %v7941, 0.0
    %7986 = vadd.xlane.f32.xlu0 %v7985
    %v7987 = vpop.xlane.xlu0 %7986
    %v7988 = vsel %vm110, %v7942, 0.0
    %7989 = vadd.xlane.f32.xlu0 %v7988
    %v7990 = vpop.xlane.xlu0 %7989
    %v7991 = vsel %vm110, %v7943, 0.0
    %7992 = vadd.xlane.f32.xlu0 %v7991
    %v7993 = vpop.xlane.xlu0 %7992
    %v7994 = vsel %vm110, %v7944, 0.0
    %7995 = vadd.xlane.f32.xlu0 %v7994
    %v7996 = vpop.xlane.xlu0 %7995
    %v7997 = vsel %vm110, %v7945, 0.0
    %7998 = vadd.xlane.f32.xlu0 %v7997
    %v7999 = vpop.xlane.xlu0 %7998
    %v8000 = vsel %vm110, %v7946, 0.0
    %8001 = vadd.xlane.f32.xlu0 %v8000
    %v8002 = vpop.xlane.xlu0 %8001
    %v8003 = vsel %vm110, %v7947, 0.0
    %8004 = vadd.xlane.f32.xlu0 %v8003
    %v8005 = vpop.xlane.xlu0 %8004
    %v8006 = vsel %vm110, %v7948, 0.0
    %8007 = vadd.xlane.f32.xlu0 %v8006
    %v8008 = vpop.xlane.xlu0 %8007
    %v8009 = vsel %vm110, %v7949, 0.0
    %8010 = vadd.xlane.f32.xlu0 %v8009
    %v8011 = vpop.xlane.xlu0 %8010
    %v8012 = vsel %vm110, %v7950, 0.0
    %8013 = vadd.xlane.f32.xlu0 %v8012
    %v8014 = vpop.xlane.xlu0 %8013
    %v8015 = vsel %vm110, %v7951, 0.0
    %8016 = vadd.xlane.f32.xlu0 %v8015
    %v8017 = vpop.xlane.xlu0 %8016
    %v8018 = vsel %vm110, %v7952, 0.0
    %8019 = vadd.xlane.f32.xlu0 %v8018
    %v8020 = vpop.xlane.xlu0 %8019
    %v8021 = vsel %vm110, %v7953, 0.0
    %8022 = vadd.xlane.f32.xlu0 %v8021
    %v8023 = vpop.xlane.xlu0 %8022
    %v8024 = vsel %vm110, %v7954, 0.0
    %8025 = vadd.xlane.f32.xlu0 %v8024
    %v8026 = vpop.xlane.xlu0 %8025
    %v8027 = vsel %vm110, %v7955, 0.0
    %8028 = vadd.xlane.f32.xlu0 %v8027
    %v8029 = vpop.xlane.xlu0 %8028
    %v8030 = vsel %vm110, %v7956, 0.0
    %8031 = vadd.xlane.f32.xlu0 %v8030
    %v8032 = vpop.xlane.xlu0 %8031
    %v8033 = vsel %vm110, %v7957, 0.0
    %8034 = vadd.xlane.f32.xlu0 %v8033
    %v8035 = vpop.xlane.xlu0 %8034
    %v8036 = vsel %vm110, %v7958, 0.0
    %8037 = vadd.xlane.f32.xlu0 %v8036
    %v8038 = vpop.xlane.xlu0 %8037
    %v8039 = vsel %vm110, %v7959, 0.0
    %8040 = vadd.xlane.f32.xlu0 %v8039
    %v8041 = vpop.xlane.xlu0 %8040
    %v8042 = vsel %vm110, %v7960, 0.0
    %8043 = vadd.xlane.f32.xlu0 %v8042
    %v8044 = vpop.xlane.xlu0 %8043
    %v8045 = vsel %vm110, %v7961, 0.0
    %8046 = vadd.xlane.f32.xlu0 %v8045
    %v8047 = vpop.xlane.xlu0 %8046
    %v8048 = vsel %vm110, %v7962, 0.0
    %8049 = vadd.xlane.f32.xlu0 %v8048
    %v8050 = vpop.xlane.xlu0 %8049
    %v8051 = vsel %vm110, %v7963, 0.0
    %8052 = vadd.xlane.f32.xlu0 %v8051
    %v8053 = vpop.xlane.xlu0 %8052
    %v8054 = vsel %vm110, %v7964, 0.0
    %8055 = vadd.xlane.f32.xlu0 %v8054
    %v8056 = vpop.xlane.xlu0 %8055
    %v8057 = vsel %vm110, %v7965, 0.0
    %8058 = vadd.xlane.f32.xlu0 %v8057
    %v8059 = vpop.xlane.xlu0 %8058
    %v8060 = vsel %vm110, %v7966, 0.0
    %8061 = vadd.xlane.f32.xlu0 %v8060
    %v8062 = vpop.xlane.xlu0 %8061
    %v8095 = vperm.slane %v7969, %v1346
    %v8096 = vperm.slane %v7972, %v1348
    %v8097 = vsel %vm1350, %v8096, %v8095
    %v8098 = vperm.slane %v7975, %v1346
    %v8099 = vperm.slane %v7978, %v1348
    %v8100 = vsel %vm1350, %v8099, %v8098
    %v8101 = vperm.slane %v7981, %v1346
    %v8102 = vperm.slane %v7984, %v1348
    %v8103 = vsel %vm1350, %v8102, %v8101
    %v8104 = vperm.slane %v7987, %v1346
    %v8105 = vperm.slane %v7990, %v1348
    %v8106 = vsel %vm1350, %v8105, %v8104
    %v8107 = vperm.slane %v7993, %v1346
    %v8108 = vperm.slane %v7996, %v1348
    %v8109 = vsel %vm1350, %v8108, %v8107
    %v8110 = vperm.slane %v7999, %v1346
    %v8111 = vperm.slane %v8002, %v1348
    %v8112 = vsel %vm1350, %v8111, %v8110
    %v8113 = vperm.slane %v8005, %v1346
    %v8114 = vperm.slane %v8008, %v1348
    %v8115 = vsel %vm1350, %v8114, %v8113
    %v8116 = vperm.slane %v8011, %v1346
    %v8117 = vperm.slane %v8014, %v1348
    %v8118 = vsel %vm1350, %v8117, %v8116
    %v8119 = vperm.slane %v8017, %v1346
    %v8120 = vperm.slane %v8020, %v1348
    %v8121 = vsel %vm1350, %v8120, %v8119
    %v8122 = vperm.slane %v8023, %v1346
    %v8123 = vperm.slane %v8026, %v1348
    %v8124 = vsel %vm1350, %v8123, %v8122
    %v8125 = vperm.slane %v8029, %v1346
    %v8126 = vperm.slane %v8032, %v1348
    %v8127 = vsel %vm1350, %v8126, %v8125
    %v8128 = vperm.slane %v8035, %v1346
    %v8129 = vperm.slane %v8038, %v1348
    %v8130 = vsel %vm1350, %v8129, %v8128
    %v8131 = vperm.slane %v8041, %v1346
    %v8132 = vperm.slane %v8044, %v1348
    %v8133 = vsel %vm1350, %v8132, %v8131
    %v8134 = vperm.slane %v8047, %v1346
    %v8135 = vperm.slane %v8050, %v1348
    %v8136 = vsel %vm1350, %v8135, %v8134
    %v8137 = vperm.slane %v8053, %v1346
    %v8138 = vperm.slane %v8056, %v1348
    %v8139 = vsel %vm1350, %v8138, %v8137
    %v8140 = vperm.slane %v8059, %v1346
    %v8141 = vperm.slane %v8062, %v1348
    %v8142 = vsel %vm1350, %v8141, %v8140
    %v8143 = vsel %vm1254, %v8100, %v8097
    %v8144 = vsel %vm1256, %v8103, %v8143
    %v8145 = vsel %vm1258, %v8106, %v8144
    %v8146 = vsel %vm1260, %v8109, %v8145
    %v8147 = vsel %vm1262, %v8112, %v8146
    %v8148 = vsel %vm1264, %v8115, %v8147
    %v8149 = vsel %vm1252, %v8118, %v8148
    %v8150 = vsel %vm1254, %v8124, %v8121
    %v8151 = vsel %vm1256, %v8127, %v8150
    %v8152 = vsel %vm1258, %v8130, %v8151
    %v8153 = vsel %vm1260, %v8133, %v8152
    %v8154 = vsel %vm1262, %v8136, %v8153
    %v8155 = vsel %vm1264, %v8139, %v8154
    %v8156 = vsel %vm1252, %v8142, %v8155
    %v8159 = vsel %vm110, %v8149, 0.0
    %8160 = vadd.xlane.f32.xlu0 %v8159
    %v8161 = vpop.xlane.xlu0 %8160
    %v8162 = vsel %vm110, %v8156, 0.0
    %8163 = vadd.xlane.f32.xlu0 %v8162
    %v8164 = vpop.xlane.xlu0 %8163
    %v8165 = vmul.f32 %v8161, 0.00390625
    %v8166 = vmul.f32 %v8164, 0.00390625
    %v8167 = vrsqrt.pop %v8165
    %v8168 = vmul.f32 %v8167, %v8165
    %v8169 = vmul.f32 %v8168, %v8167
    %v8170 = vmul.f32 0.5, %v8169
    %v8171 = vsub.f32 1.5, %v8170
    %v8172 = vmul.f32 %v8167, %v8171
    %v8173 = vmul.f32 %v8165, %v8172
    %vm8174 = vcmp.eq.f32.partialorder %v8165, inf
    %v8175 = vsel %vm8174, %v8165, %v8173
    %vm8176 = vcmp.eq.f32.partialorder %v8165, 0.0
    %v8177 = vand.u32 %v8165, 2147483648
    %v8178 = vsel %vm8176, %v8177, %v8175
    %v8179 = vrsqrt.pop %v8166
    %v8180 = vmul.f32 %v8179, %v8166
    %v8181 = vmul.f32 %v8180, %v8179
    %v8182 = vmul.f32 0.5, %v8181
    %v8183 = vsub.f32 1.5, %v8182
    %v8184 = vmul.f32 %v8179, %v8183
    %v8185 = vmul.f32 %v8166, %v8184
    %vm8186 = vcmp.eq.f32.partialorder %v8166, inf
    %v8187 = vsel %vm8186, %v8166, %v8185
    %vm8188 = vcmp.eq.f32.partialorder %v8166, 0.0
    %v8189 = vand.u32 %v8166, 2147483648
    %v8190 = vsel %vm8188, %v8189, %v8187
    %v8191 = vrsqrt.pop %v8178
    %v8192 = vmul.f32 %v8191, %v8178
    %v8193 = vmul.f32 %v8192, %v8191
    %v8194 = vmul.f32 0.5, %v8193
    %v8195 = vsub.f32 1.5, %v8194
    %v8196 = vmul.f32 %v8191, %v8195
    %v8197 = vmul.f32 %v8178, %v8196
    %vm8198 = vcmp.eq.f32.partialorder %v8178, inf
    %v8199 = vsel %vm8198, %v8178, %v8197
    %vm8200 = vcmp.eq.f32.partialorder %v8178, 0.0
    %v8201 = vand.u32 %v8178, 2147483648
    %v8202 = vsel %vm8200, %v8201, %v8199
    %v8203 = vrsqrt.pop %v8190
    %v8204 = vmul.f32 %v8203, %v8190
    %v8205 = vmul.f32 %v8204, %v8203
    %v8206 = vmul.f32 0.5, %v8205
    %v8207 = vsub.f32 1.5, %v8206
    %v8208 = vmul.f32 %v8203, %v8207
    %v8209 = vmul.f32 %v8190, %v8208
    %vm8210 = vcmp.eq.f32.partialorder %v8190, inf
    %v8211 = vsel %vm8210, %v8190, %v8209
    %vm8212 = vcmp.eq.f32.partialorder %v8190, 0.0
    %v8213 = vand.u32 %v8190, 2147483648
    %v8214 = vsel %vm8212, %v8213, %v8211
    %v8217 = vperm.slane %v8202, %v1346
    %v8218 = vperm.slane %v8214, %v1348
    %v8219 = vsel %vm1350, %v8218, %v8217
    %vm8221 = vcmask 122880
    %8222 = vst.msk [vmem:[%s3] sm:$0x1] %vm8221, %v8219
    %v8225 = vrot.slane %v7407, 1
    %v8226 = vrot.slane %v7407, 2
    %v8227 = vrot.slane %v7407, 3
    %v8228 = vrot.slane %v7407, 4
    %v8229 = vrot.slane %v7407, 5
    %v8230 = vrot.slane %v7407, 6
    %v8231 = vrot.slane %v7407, 7
    %v8232 = vrot.slane %v7422, 1
    %v8233 = vrot.slane %v7422, 2
    %v8234 = vrot.slane %v7422, 3
    %v8235 = vrot.slane %v7422, 4
    %v8236 = vrot.slane %v7422, 5
    %v8237 = vrot.slane %v7422, 6
    %v8238 = vrot.slane %v7422, 7
    %v8239 = vperm.slane %v7407, 0
    %v8240 = vperm.slane %v8225, 0
    %v8241 = vperm.slane %v8226, 0
    %v8242 = vperm.slane %v8227, 0
    %v8243 = vperm.slane %v8228, 0
    %v8244 = vperm.slane %v8229, 0
    %v8245 = vperm.slane %v8230, 0
    %v8246 = vperm.slane %v8231, 0
    %v8247 = vperm.slane %v7422, 0
    %v8248 = vperm.slane %v8232, 0
    %v8249 = vperm.slane %v8233, 0
    %v8250 = vperm.slane %v8234, 0
    %v8251 = vperm.slane %v8235, 0
    %v8252 = vperm.slane %v8236, 0
    %v8253 = vperm.slane %v8237, 0
    %v8254 = vperm.slane %v8238, 0
    %8255 = vrot.lane.b32.xlu0 %v8239, 112
    %v8256 = vpop.permute.xlu0 %8255
    %8257 = vrot.lane.b32.xlu0 %v8240, 112
    %v8258 = vpop.permute.xlu0 %8257
    %8259 = vrot.lane.b32.xlu0 %v8241, 112
    %v8260 = vpop.permute.xlu0 %8259
    %8261 = vrot.lane.b32.xlu0 %v8242, 112
    %v8262 = vpop.permute.xlu0 %8261
    %8263 = vrot.lane.b32.xlu0 %v8243, 112
    %v8264 = vpop.permute.xlu0 %8263
    %8265 = vrot.lane.b32.xlu0 %v8244, 112
    %v8266 = vpop.permute.xlu0 %8265
    %8267 = vrot.lane.b32.xlu0 %v8245, 112
    %v8268 = vpop.permute.xlu0 %8267
    %8269 = vrot.lane.b32.xlu0 %v8246, 112
    %v8270 = vpop.permute.xlu0 %8269
    %8271 = vrot.lane.b32.xlu0 %v8247, 112
    %v8272 = vpop.permute.xlu0 %8271
    %8273 = vrot.lane.b32.xlu0 %v8248, 112
    %v8274 = vpop.permute.xlu0 %8273
    %8275 = vrot.lane.b32.xlu0 %v8249, 112
    %v8276 = vpop.permute.xlu0 %8275
    %8277 = vrot.lane.b32.xlu0 %v8250, 112
    %v8278 = vpop.permute.xlu0 %8277
    %8279 = vrot.lane.b32.xlu0 %v8251, 112
    %v8280 = vpop.permute.xlu0 %8279
    %8281 = vrot.lane.b32.xlu0 %v8252, 112
    %v8282 = vpop.permute.xlu0 %8281
    %8283 = vrot.lane.b32.xlu0 %v8253, 112
    %v8284 = vpop.permute.xlu0 %8283
    %8285 = vrot.lane.b32.xlu0 %v8254, 112
    %v8286 = vpop.permute.xlu0 %8285
    %v8303 = vadd.f32 %v7407, %v8256
    %v8304 = vadd.f32 %v7422, %v8256
    %v8305 = vadd.f32 %v7407, %v8258
    %v8306 = vadd.f32 %v7422, %v8258
    %v8307 = vadd.f32 %v7407, %v8260
    %v8308 = vadd.f32 %v7422, %v8260
    %v8309 = vadd.f32 %v7407, %v8262
    %v8310 = vadd.f32 %v7422, %v8262
    %v8311 = vadd.f32 %v7407, %v8264
    %v8312 = vadd.f32 %v7422, %v8264
    %v8313 = vadd.f32 %v7407, %v8266
    %v8314 = vadd.f32 %v7422, %v8266
    %v8315 = vadd.f32 %v7407, %v8268
    %v8316 = vadd.f32 %v7422, %v8268
    %v8317 = vadd.f32 %v7407, %v8270
    %v8318 = vadd.f32 %v7422, %v8270
    %v8319 = vadd.f32 %v7407, %v8272
    %v8320 = vadd.f32 %v7422, %v8272
    %v8321 = vadd.f32 %v7407, %v8274
    %v8322 = vadd.f32 %v7422, %v8274
    %v8323 = vadd.f32 %v7407, %v8276
    %v8324 = vadd.f32 %v7422, %v8276
    %v8325 = vadd.f32 %v7407, %v8278
    %v8326 = vadd.f32 %v7422, %v8278
    %v8327 = vadd.f32 %v7407, %v8280
    %v8328 = vadd.f32 %v7422, %v8280
    %v8329 = vadd.f32 %v7407, %v8282
    %v8330 = vadd.f32 %v7422, %v8282
    %v8331 = vadd.f32 %v7407, %v8284
    %v8332 = vadd.f32 %v7422, %v8284
    %v8333 = vadd.f32 %v7407, %v8286
    %v8334 = vadd.f32 %v7422, %v8286
    %v8335 = vperm.slane %v7407, 0
    %v8336 = vlaneseq
    %v8337 = vshrl.u32 %v8336, 7
    %v8338 = vadd.s32 %v8337, 32
    %8339 = vset.pattern.permute.xlu0 %v8338
    %8340 = vperm.xlu0 %8339, %v8335
    %v8341 = vpop.permute.xlu0 %8340
    %v8342 = vlaneseq
    %v8343 = vshrl.u32 %v8342, 7
    %v8344 = vadd.s32 %v8343, 40
    %8345 = vset.pattern.permute.xlu0 %v8344
    %8346 = vperm.xlu0 %8345, %v8335
    %v8347 = vpop.permute.xlu0 %8346
    %v8348 = vperm.slane %v7407, 1
    %v8349 = vlaneseq
    %v8350 = vshrl.u32 %v8349, 7
    %v8351 = vadd.s32 %v8350, 32
    %8352 = vset.pattern.permute.xlu0 %v8351
    %8353 = vperm.xlu0 %8352, %v8348
    %v8354 = vpop.permute.xlu0 %8353
    %v8355 = vlaneseq
    %v8356 = vshrl.u32 %v8355, 7
    %v8357 = vadd.s32 %v8356, 40
    %8358 = vset.pattern.permute.xlu0 %v8357
    %8359 = vperm.xlu0 %8358, %v8348
    %v8360 = vpop.permute.xlu0 %8359
    %v8361 = vperm.slane %v7407, 2
    %v8362 = vlaneseq
    %v8363 = vshrl.u32 %v8362, 7
    %v8364 = vadd.s32 %v8363, 32
    %8365 = vset.pattern.permute.xlu0 %v8364
    %8366 = vperm.xlu0 %8365, %v8361
    %v8367 = vpop.permute.xlu0 %8366
    %v8368 = vlaneseq
    %v8369 = vshrl.u32 %v8368, 7
    %v8370 = vadd.s32 %v8369, 40
    %8371 = vset.pattern.permute.xlu0 %v8370
    %8372 = vperm.xlu0 %8371, %v8361
    %v8373 = vpop.permute.xlu0 %8372
    %v8374 = vperm.slane %v7407, 3
    %v8375 = vlaneseq
    %v8376 = vshrl.u32 %v8375, 7
    %v8377 = vadd.s32 %v8376, 32
    %8378 = vset.pattern.permute.xlu0 %v8377
    %8379 = vperm.xlu0 %8378, %v8374
    %v8380 = vpop.permute.xlu0 %8379
    %v8381 = vlaneseq
    %v8382 = vshrl.u32 %v8381, 7
    %v8383 = vadd.s32 %v8382, 40
    %8384 = vset.pattern.permute.xlu0 %v8383
    %8385 = vperm.xlu0 %8384, %v8374
    %v8386 = vpop.permute.xlu0 %8385
    %v8387 = vperm.slane %v7407, 4
    %v8388 = vlaneseq
    %v8389 = vshrl.u32 %v8388, 7
    %v8390 = vadd.s32 %v8389, 32
    %8391 = vset.pattern.permute.xlu0 %v8390
    %8392 = vperm.xlu0 %8391, %v8387
    %v8393 = vpop.permute.xlu0 %8392
    %v8394 = vlaneseq
    %v8395 = vshrl.u32 %v8394, 7
    %v8396 = vadd.s32 %v8395, 40
    %8397 = vset.pattern.permute.xlu0 %v8396
    %8398 = vperm.xlu0 %8397, %v8387
    %v8399 = vpop.permute.xlu0 %8398
    %v8400 = vperm.slane %v7407, 5
    %v8401 = vlaneseq
    %v8402 = vshrl.u32 %v8401, 7
    %v8403 = vadd.s32 %v8402, 32
    %8404 = vset.pattern.permute.xlu0 %v8403
    %8405 = vperm.xlu0 %8404, %v8400
    %v8406 = vpop.permute.xlu0 %8405
    %v8407 = vlaneseq
    %v8408 = vshrl.u32 %v8407, 7
    %v8409 = vadd.s32 %v8408, 40
    %8410 = vset.pattern.permute.xlu0 %v8409
    %8411 = vperm.xlu0 %8410, %v8400
    %v8412 = vpop.permute.xlu0 %8411
    %v8413 = vperm.slane %v7407, 6
    %v8414 = vlaneseq
    %v8415 = vshrl.u32 %v8414, 7
    %v8416 = vadd.s32 %v8415, 32
    %8417 = vset.pattern.permute.xlu0 %v8416
    %8418 = vperm.xlu0 %8417, %v8413
    %v8419 = vpop.permute.xlu0 %8418
    %v8420 = vlaneseq
    %v8421 = vshrl.u32 %v8420, 7
    %v8422 = vadd.s32 %v8421, 40
    %8423 = vset.pattern.permute.xlu0 %v8422
    %8424 = vperm.xlu0 %8423, %v8413
    %v8425 = vpop.permute.xlu0 %8424
    %v8426 = vperm.slane %v7407, 7
    %v8427 = vlaneseq
    %v8428 = vshrl.u32 %v8427, 7
    %v8429 = vadd.s32 %v8428, 32
    %8430 = vset.pattern.permute.xlu0 %v8429
    %8431 = vperm.xlu0 %8430, %v8426
    %v8432 = vpop.permute.xlu0 %8431
    %v8433 = vlaneseq
    %v8434 = vshrl.u32 %v8433, 7
    %v8435 = vadd.s32 %v8434, 40
    %8436 = vset.pattern.permute.xlu0 %v8435
    %8437 = vperm.xlu0 %8436, %v8426
    %v8438 = vpop.permute.xlu0 %8437
    %v8439 = vperm.slane %v7422, 0
    %v8440 = vlaneseq
    %v8441 = vshrl.u32 %v8440, 7
    %v8442 = vadd.s32 %v8441, 32
    %8443 = vset.pattern.permute.xlu0 %v8442
    %8444 = vperm.xlu0 %8443, %v8439
    %v8445 = vpop.permute.xlu0 %8444
    %v8446 = vlaneseq
    %v8447 = vshrl.u32 %v8446, 7
    %v8448 = vadd.s32 %v8447, 40
    %8449 = vset.pattern.permute.xlu0 %v8448
    %8450 = vperm.xlu0 %8449, %v8439
    %v8451 = vpop.permute.xlu0 %8450
    %v8452 = vperm.slane %v7422, 1
    %v8453 = vlaneseq
    %v8454 = vshrl.u32 %v8453, 7
    %v8455 = vadd.s32 %v8454, 32
    %8456 = vset.pattern.permute.xlu0 %v8455
    %8457 = vperm.xlu0 %8456, %v8452
    %v8458 = vpop.permute.xlu0 %8457
    %v8459 = vlaneseq
    %v8460 = vshrl.u32 %v8459, 7
    %v8461 = vadd.s32 %v8460, 40
    %8462 = vset.pattern.permute.xlu0 %v8461
    %8463 = vperm.xlu0 %8462, %v8452
    %v8464 = vpop.permute.xlu0 %8463
    %v8465 = vperm.slane %v7422, 2
    %v8466 = vlaneseq
    %v8467 = vshrl.u32 %v8466, 7
    %v8468 = vadd.s32 %v8467, 32
    %8469 = vset.pattern.permute.xlu0 %v8468
    %8470 = vperm.xlu0 %8469, %v8465
    %v8471 = vpop.permute.xlu0 %8470
    %v8472 = vlaneseq
    %v8473 = vshrl.u32 %v8472, 7
    %v8474 = vadd.s32 %v8473, 40
    %8475 = vset.pattern.permute.xlu0 %v8474
    %8476 = vperm.xlu0 %8475, %v8465
    %v8477 = vpop.permute.xlu0 %8476
    %v8478 = vperm.slane %v7422, 3
    %v8479 = vlaneseq
    %v8480 = vshrl.u32 %v8479, 7
    %v8481 = vadd.s32 %v8480, 32
    %8482 = vset.pattern.permute.xlu0 %v8481
    %8483 = vperm.xlu0 %8482, %v8478
    %v8484 = vpop.permute.xlu0 %8483
    %v8485 = vlaneseq
    %v8486 = vshrl.u32 %v8485, 7
    %v8487 = vadd.s32 %v8486, 40
    %8488 = vset.pattern.permute.xlu0 %v8487
    %8489 = vperm.xlu0 %8488, %v8478
    %v8490 = vpop.permute.xlu0 %8489
    %v8491 = vperm.slane %v7422, 4
    %v8492 = vlaneseq
    %v8493 = vshrl.u32 %v8492, 7
    %v8494 = vadd.s32 %v8493, 32
    %8495 = vset.pattern.permute.xlu0 %v8494
    %8496 = vperm.xlu0 %8495, %v8491
    %v8497 = vpop.permute.xlu0 %8496
    %v8498 = vlaneseq
    %v8499 = vshrl.u32 %v8498, 7
    %v8500 = vadd.s32 %v8499, 40
    %8501 = vset.pattern.permute.xlu0 %v8500
    %8502 = vperm.xlu0 %8501, %v8491
    %v8503 = vpop.permute.xlu0 %8502
    %v8504 = vperm.slane %v7422, 5
    %v8505 = vlaneseq
    %v8506 = vshrl.u32 %v8505, 7
    %v8507 = vadd.s32 %v8506, 32
    %8508 = vset.pattern.permute.xlu0 %v8507
    %8509 = vperm.xlu0 %8508, %v8504
    %v8510 = vpop.permute.xlu0 %8509
    %v8511 = vlaneseq
    %v8512 = vshrl.u32 %v8511, 7
    %v8513 = vadd.s32 %v8512, 40
    %8514 = vset.pattern.permute.xlu0 %v8513
    %8515 = vperm.xlu0 %8514, %v8504
    %v8516 = vpop.permute.xlu0 %8515
    %v8517 = vperm.slane %v7422, 6
    %v8518 = vlaneseq
    %v8519 = vshrl.u32 %v8518, 7
    %v8520 = vadd.s32 %v8519, 32
    %8521 = vset.pattern.permute.xlu0 %v8520
    %8522 = vperm.xlu0 %8521, %v8517
    %v8523 = vpop.permute.xlu0 %8522
    %v8524 = vlaneseq
    %v8525 = vshrl.u32 %v8524, 7
    %v8526 = vadd.s32 %v8525, 40
    %8527 = vset.pattern.permute.xlu0 %v8526
    %8528 = vperm.xlu0 %8527, %v8517
    %v8529 = vpop.permute.xlu0 %8528
    %v8530 = vperm.slane %v7422, 7
    %v8531 = vlaneseq
    %v8532 = vshrl.u32 %v8531, 7
    %v8533 = vadd.s32 %v8532, 32
    %8534 = vset.pattern.permute.xlu0 %v8533
    %8535 = vperm.xlu0 %8534, %v8530
    %v8536 = vpop.permute.xlu0 %8535
    %v8537 = vlaneseq
    %v8538 = vshrl.u32 %v8537, 7
    %v8539 = vadd.s32 %v8538, 40
    %8540 = vset.pattern.permute.xlu0 %v8539
    %8541 = vperm.xlu0 %8540, %v8530
    %v8542 = vpop.permute.xlu0 %8541
    %v8543 = vadd.f32 %v8303, %v8341
    %v8544 = vadd.f32 %v8304, %v8347
    %v8545 = vadd.f32 %v8305, %v8354
    %v8546 = vadd.f32 %v8306, %v8360
    %v8547 = vadd.f32 %v8307, %v8367
    %v8548 = vadd.f32 %v8308, %v8373
    %v8549 = vadd.f32 %v8309, %v8380
    %v8550 = vadd.f32 %v8310, %v8386
    %v8551 = vadd.f32 %v8311, %v8393
    %v8552 = vadd.f32 %v8312, %v8399
    %v8553 = vadd.f32 %v8313, %v8406
    %v8554 = vadd.f32 %v8314, %v8412
    %v8555 = vadd.f32 %v8315, %v8419
    %v8556 = vadd.f32 %v8316, %v8425
    %v8557 = vadd.f32 %v8317, %v8432
    %v8558 = vadd.f32 %v8318, %v8438
    %v8559 = vadd.f32 %v8319, %v8445
    %v8560 = vadd.f32 %v8320, %v8451
    %v8561 = vadd.f32 %v8321, %v8458
    %v8562 = vadd.f32 %v8322, %v8464
    %v8563 = vadd.f32 %v8323, %v8471
    %v8564 = vadd.f32 %v8324, %v8477
    %v8565 = vadd.f32 %v8325, %v8484
    %v8566 = vadd.f32 %v8326, %v8490
    %v8567 = vadd.f32 %v8327, %v8497
    %v8568 = vadd.f32 %v8328, %v8503
    %v8569 = vadd.f32 %v8329, %v8510
    %v8570 = vadd.f32 %v8330, %v8516
    %v8571 = vadd.f32 %v8331, %v8523
    %v8572 = vadd.f32 %v8332, %v8529
    %v8573 = vadd.f32 %v8333, %v8536
    %v8574 = vadd.f32 %v8334, %v8542
    %v8575 = vmul.f32 %v8543, 0.33333334
    %v8576 = vmul.f32 %v8544, 0.33333334
    %v8577 = vmul.f32 %v8545, 0.33333334
    %v8578 = vmul.f32 %v8546, 0.33333334
    %v8579 = vmul.f32 %v8547, 0.33333334
    %v8580 = vmul.f32 %v8548, 0.33333334
    %v8581 = vmul.f32 %v8549, 0.33333334
    %v8582 = vmul.f32 %v8550, 0.33333334
    %v8583 = vmul.f32 %v8551, 0.33333334
    %v8584 = vmul.f32 %v8552, 0.33333334
    %v8585 = vmul.f32 %v8553, 0.33333334
    %v8586 = vmul.f32 %v8554, 0.33333334
    %v8587 = vmul.f32 %v8555, 0.33333334
    %v8588 = vmul.f32 %v8556, 0.33333334
    %v8589 = vmul.f32 %v8557, 0.33333334
    %v8590 = vmul.f32 %v8558, 0.33333334
    %v8591 = vmul.f32 %v8559, 0.33333334
    %v8592 = vmul.f32 %v8560, 0.33333334
    %v8593 = vmul.f32 %v8561, 0.33333334
    %v8594 = vmul.f32 %v8562, 0.33333334
    %v8595 = vmul.f32 %v8563, 0.33333334
    %v8596 = vmul.f32 %v8564, 0.33333334
    %v8597 = vmul.f32 %v8565, 0.33333334
    %v8598 = vmul.f32 %v8566, 0.33333334
    %v8599 = vmul.f32 %v8567, 0.33333334
    %v8600 = vmul.f32 %v8568, 0.33333334
    %v8601 = vmul.f32 %v8569, 0.33333334
    %v8602 = vmul.f32 %v8570, 0.33333334
    %v8603 = vmul.f32 %v8571, 0.33333334
    %v8604 = vmul.f32 %v8572, 0.33333334
    %v8605 = vmul.f32 %v8573, 0.33333334
    %v8606 = vmul.f32 %v8574, 0.33333334
    %s8607 = scalar_lea.vmem [#allocation3], 256
    %v8608 = vld [vmem:[%s8607] sm:$0xff]
    %v8609 = vld [vmem:[%s8607 + $0x8] sm:$0xff]
    %v8610 = vld [vmem:[%s8607 + $0x10] sm:$0xff]
    %v8611 = vld [vmem:[%s8607 + $0x18] sm:$0xff]
    %v8612 = vld [vmem:[%s8607 + $0x20] sm:$0xff]
    %v8613 = vld [vmem:[%s8607 + $0x28] sm:$0xff]
    %v8614 = vld [vmem:[%s8607 + $0x30] sm:$0xff]
    %v8615 = vld [vmem:[%s8607 + $0x38] sm:$0xff]
    %v8616 = vld [vmem:[%s8607 + $0x40] sm:$0xff]
    %v8617 = vld [vmem:[%s8607 + $0x48] sm:$0xff]
    %v8618 = vld [vmem:[%s8607 + $0x50] sm:$0xff]
    %v8619 = vld [vmem:[%s8607 + $0x58] sm:$0xff]
    %v8620 = vld [vmem:[%s8607 + $0x60] sm:$0xff]
    %v8621 = vld [vmem:[%s8607 + $0x68] sm:$0xff]
    %v8622 = vld [vmem:[%s8607 + $0x70] sm:$0xff]
    %v8623 = vld [vmem:[%s8607 + $0x78] sm:$0xff]
    %v8624 = vld [vmem:[%s8607 + $0x80] sm:$0xff]
    %v8625 = vld [vmem:[%s8607 + $0x88] sm:$0xff]
    %v8626 = vld [vmem:[%s8607 + $0x90] sm:$0xff]
    %v8627 = vld [vmem:[%s8607 + $0x98] sm:$0xff]
    %v8628 = vld [vmem:[%s8607 + $0xa0] sm:$0xff]
    %v8629 = vld [vmem:[%s8607 + $0xa8] sm:$0xff]
    %v8630 = vld [vmem:[%s8607 + $0xb0] sm:$0xff]
    %v8631 = vld [vmem:[%s8607 + $0xb8] sm:$0xff]
    %v8632 = vld [vmem:[%s8607 + $0xc0] sm:$0xff]
    %v8633 = vld [vmem:[%s8607 + $0xc8] sm:$0xff]
    %v8634 = vld [vmem:[%s8607 + $0xd0] sm:$0xff]
    %v8635 = vld [vmem:[%s8607 + $0xd8] sm:$0xff]
    %v8636 = vld [vmem:[%s8607 + $0xe0] sm:$0xff]
    %v8637 = vld [vmem:[%s8607 + $0xe8] sm:$0xff]
    %v8638 = vld [vmem:[%s8607 + $0xf0] sm:$0xff]
    %v8639 = vld [vmem:[%s8607 + $0xf8] sm:$0xff]
    %v8640 = vmul.f32 %v8608, %v8575
    %v8641 = vmul.f32 %v8609, %v8576
    %v8642 = vmul.f32 %v8610, %v8577
    %v8643 = vmul.f32 %v8611, %v8578
    %v8644 = vmul.f32 %v8612, %v8579
    %v8645 = vmul.f32 %v8613, %v8580
    %v8646 = vmul.f32 %v8614, %v8581
    %v8647 = vmul.f32 %v8615, %v8582
    %v8648 = vmul.f32 %v8616, %v8583
    %v8649 = vmul.f32 %v8617, %v8584
    %v8650 = vmul.f32 %v8618, %v8585
    %v8651 = vmul.f32 %v8619, %v8586
    %v8652 = vmul.f32 %v8620, %v8587
    %v8653 = vmul.f32 %v8621, %v8588
    %v8654 = vmul.f32 %v8622, %v8589
    %v8655 = vmul.f32 %v8623, %v8590
    %v8656 = vmul.f32 %v8624, %v8591
    %v8657 = vmul.f32 %v8625, %v8592
    %v8658 = vmul.f32 %v8626, %v8593
    %v8659 = vmul.f32 %v8627, %v8594
    %v8660 = vmul.f32 %v8628, %v8595
    %v8661 = vmul.f32 %v8629, %v8596
    %v8662 = vmul.f32 %v8630, %v8597
    %v8663 = vmul.f32 %v8631, %v8598
    %v8664 = vmul.f32 %v8632, %v8599
    %v8665 = vmul.f32 %v8633, %v8600
    %v8666 = vmul.f32 %v8634, %v8601
    %v8667 = vmul.f32 %v8635, %v8602
    %v8668 = vmul.f32 %v8636, %v8603
    %v8669 = vmul.f32 %v8637, %v8604
    %v8670 = vmul.f32 %v8638, %v8605
    %v8671 = vmul.f32 %v8639, %v8606
    %v8672 = vmax.f32 %v8640, 1e-06
    %v8673 = vmax.f32 %v8641, 1e-06
    %v8674 = vmax.f32 %v8642, 1e-06
    %v8675 = vmax.f32 %v8643, 1e-06
    %v8676 = vmax.f32 %v8644, 1e-06
    %v8677 = vmax.f32 %v8645, 1e-06
    %v8678 = vmax.f32 %v8646, 1e-06
    %v8679 = vmax.f32 %v8647, 1e-06
    %v8680 = vmax.f32 %v8648, 1e-06
    %v8681 = vmax.f32 %v8649, 1e-06
    %v8682 = vmax.f32 %v8650, 1e-06
    %v8683 = vmax.f32 %v8651, 1e-06
    %v8684 = vmax.f32 %v8652, 1e-06
    %v8685 = vmax.f32 %v8653, 1e-06
    %v8686 = vmax.f32 %v8654, 1e-06
    %v8687 = vmax.f32 %v8655, 1e-06
    %v8688 = vmax.f32 %v8656, 1e-06
    %v8689 = vmax.f32 %v8657, 1e-06
    %v8690 = vmax.f32 %v8658, 1e-06
    %v8691 = vmax.f32 %v8659, 1e-06
    %v8692 = vmax.f32 %v8660, 1e-06
    %v8693 = vmax.f32 %v8661, 1e-06
    %v8694 = vmax.f32 %v8662, 1e-06
    %v8695 = vmax.f32 %v8663, 1e-06
    %v8696 = vmax.f32 %v8664, 1e-06
    %v8697 = vmax.f32 %v8665, 1e-06
    %v8698 = vmax.f32 %v8666, 1e-06
    %v8699 = vmax.f32 %v8667, 1e-06
    %v8700 = vmax.f32 %v8668, 1e-06
    %v8701 = vmax.f32 %v8669, 1e-06
    %v8702 = vmax.f32 %v8670, 1e-06
    %v8703 = vmax.f32 %v8671, 1e-06
    %v8704 = vmul.f32 %v8672, %v8672
    %v8705 = vmul.f32 %v8673, %v8673
    %v8706 = vmul.f32 %v8674, %v8674
    %v8707 = vmul.f32 %v8675, %v8675
    %v8708 = vmul.f32 %v8676, %v8676
    %v8709 = vmul.f32 %v8677, %v8677
    %v8710 = vmul.f32 %v8678, %v8678
    %v8711 = vmul.f32 %v8679, %v8679
    %v8712 = vmul.f32 %v8680, %v8680
    %v8713 = vmul.f32 %v8681, %v8681
    %v8714 = vmul.f32 %v8682, %v8682
    %v8715 = vmul.f32 %v8683, %v8683
    %v8716 = vmul.f32 %v8684, %v8684
    %v8717 = vmul.f32 %v8685, %v8685
    %v8718 = vmul.f32 %v8686, %v8686
    %v8719 = vmul.f32 %v8687, %v8687
    %v8720 = vmul.f32 %v8688, %v8688
    %v8721 = vmul.f32 %v8689, %v8689
    %v8722 = vmul.f32 %v8690, %v8690
    %v8723 = vmul.f32 %v8691, %v8691
    %v8724 = vmul.f32 %v8692, %v8692
    %v8725 = vmul.f32 %v8693, %v8693
    %v8726 = vmul.f32 %v8694, %v8694
    %v8727 = vmul.f32 %v8695, %v8695
    %v8728 = vmul.f32 %v8696, %v8696
    %v8729 = vmul.f32 %v8697, %v8697
    %v8730 = vmul.f32 %v8698, %v8698
    %v8731 = vmul.f32 %v8699, %v8699
    %v8732 = vmul.f32 %v8700, %v8700
    %v8733 = vmul.f32 %v8701, %v8701
    %v8734 = vmul.f32 %v8702, %v8702
    %v8735 = vmul.f32 %v8703, %v8703
    %v8736 = vmul.f32 %v8704, %v8704
    %v8737 = vmul.f32 %v8705, %v8705
    %v8738 = vmul.f32 %v8706, %v8706
    %v8739 = vmul.f32 %v8707, %v8707
    %v8740 = vmul.f32 %v8708, %v8708
    %v8741 = vmul.f32 %v8709, %v8709
    %v8742 = vmul.f32 %v8710, %v8710
    %v8743 = vmul.f32 %v8711, %v8711
    %v8744 = vmul.f32 %v8712, %v8712
    %v8745 = vmul.f32 %v8713, %v8713
    %v8746 = vmul.f32 %v8714, %v8714
    %v8747 = vmul.f32 %v8715, %v8715
    %v8748 = vmul.f32 %v8716, %v8716
    %v8749 = vmul.f32 %v8717, %v8717
    %v8750 = vmul.f32 %v8718, %v8718
    %v8751 = vmul.f32 %v8719, %v8719
    %v8752 = vmul.f32 %v8720, %v8720
    %v8753 = vmul.f32 %v8721, %v8721
    %v8754 = vmul.f32 %v8722, %v8722
    %v8755 = vmul.f32 %v8723, %v8723
    %v8756 = vmul.f32 %v8724, %v8724
    %v8757 = vmul.f32 %v8725, %v8725
    %v8758 = vmul.f32 %v8726, %v8726
    %v8759 = vmul.f32 %v8727, %v8727
    %v8760 = vmul.f32 %v8728, %v8728
    %v8761 = vmul.f32 %v8729, %v8729
    %v8762 = vmul.f32 %v8730, %v8730
    %v8763 = vmul.f32 %v8731, %v8731
    %v8764 = vmul.f32 %v8732, %v8732
    %v8765 = vmul.f32 %v8733, %v8733
    %v8766 = vmul.f32 %v8734, %v8734
    %v8767 = vmul.f32 %v8735, %v8735
    %v8768 = vsel %vm110, %v8736, 0.0
    %8769 = vadd.xlane.f32.xlu0 %v8768
    %v8770 = vpop.xlane.xlu0 %8769
    %v8771 = vsel %vm110, %v8737, 0.0
    %8772 = vadd.xlane.f32.xlu0 %v8771
    %v8773 = vpop.xlane.xlu0 %8772
    %v8774 = vsel %vm110, %v8738, 0.0
    %8775 = vadd.xlane.f32.xlu0 %v8774
    %v8776 = vpop.xlane.xlu0 %8775
    %v8777 = vsel %vm110, %v8739, 0.0
    %8778 = vadd.xlane.f32.xlu0 %v8777
    %v8779 = vpop.xlane.xlu0 %8778
    %v8780 = vsel %vm110, %v8740, 0.0
    %8781 = vadd.xlane.f32.xlu0 %v8780
    %v8782 = vpop.xlane.xlu0 %8781
    %v8783 = vsel %vm110, %v8741, 0.0
    %8784 = vadd.xlane.f32.xlu0 %v8783
    %v8785 = vpop.xlane.xlu0 %8784
    %v8786 = vsel %vm110, %v8742, 0.0
    %8787 = vadd.xlane.f32.xlu0 %v8786
    %v8788 = vpop.xlane.xlu0 %8787
    %v8789 = vsel %vm110, %v8743, 0.0
    %8790 = vadd.xlane.f32.xlu0 %v8789
    %v8791 = vpop.xlane.xlu0 %8790
    %v8792 = vsel %vm110, %v8744, 0.0
    %8793 = vadd.xlane.f32.xlu0 %v8792
    %v8794 = vpop.xlane.xlu0 %8793
    %v8795 = vsel %vm110, %v8745, 0.0
    %8796 = vadd.xlane.f32.xlu0 %v8795
    %v8797 = vpop.xlane.xlu0 %8796
    %v8798 = vsel %vm110, %v8746, 0.0
    %8799 = vadd.xlane.f32.xlu0 %v8798
    %v8800 = vpop.xlane.xlu0 %8799
    %v8801 = vsel %vm110, %v8747, 0.0
    %8802 = vadd.xlane.f32.xlu0 %v8801
    %v8803 = vpop.xlane.xlu0 %8802
    %v8804 = vsel %vm110, %v8748, 0.0
    %8805 = vadd.xlane.f32.xlu0 %v8804
    %v8806 = vpop.xlane.xlu0 %8805
    %v8807 = vsel %vm110, %v8749, 0.0
    %8808 = vadd.xlane.f32.xlu0 %v8807
    %v8809 = vpop.xlane.xlu0 %8808
    %v8810 = vsel %vm110, %v8750, 0.0
    %8811 = vadd.xlane.f32.xlu0 %v8810
    %v8812 = vpop.xlane.xlu0 %8811
    %v8813 = vsel %vm110, %v8751, 0.0
    %8814 = vadd.xlane.f32.xlu0 %v8813
    %v8815 = vpop.xlane.xlu0 %8814
    %v8816 = vsel %vm110, %v8752, 0.0
    %8817 = vadd.xlane.f32.xlu0 %v8816
    %v8818 = vpop.xlane.xlu0 %8817
    %v8819 = vsel %vm110, %v8753, 0.0
    %8820 = vadd.xlane.f32.xlu0 %v8819
    %v8821 = vpop.xlane.xlu0 %8820
    %v8822 = vsel %vm110, %v8754, 0.0
    %8823 = vadd.xlane.f32.xlu0 %v8822
    %v8824 = vpop.xlane.xlu0 %8823
    %v8825 = vsel %vm110, %v8755, 0.0
    %8826 = vadd.xlane.f32.xlu0 %v8825
    %v8827 = vpop.xlane.xlu0 %8826
    %v8828 = vsel %vm110, %v8756, 0.0
    %8829 = vadd.xlane.f32.xlu0 %v8828
    %v8830 = vpop.xlane.xlu0 %8829
    %v8831 = vsel %vm110, %v8757, 0.0
    %8832 = vadd.xlane.f32.xlu0 %v8831
    %v8833 = vpop.xlane.xlu0 %8832
    %v8834 = vsel %vm110, %v8758, 0.0
    %8835 = vadd.xlane.f32.xlu0 %v8834
    %v8836 = vpop.xlane.xlu0 %8835
    %v8837 = vsel %vm110, %v8759, 0.0
    %8838 = vadd.xlane.f32.xlu0 %v8837
    %v8839 = vpop.xlane.xlu0 %8838
    %v8840 = vsel %vm110, %v8760, 0.0
    %8841 = vadd.xlane.f32.xlu0 %v8840
    %v8842 = vpop.xlane.xlu0 %8841
    %v8843 = vsel %vm110, %v8761, 0.0
    %8844 = vadd.xlane.f32.xlu0 %v8843
    %v8845 = vpop.xlane.xlu0 %8844
    %v8846 = vsel %vm110, %v8762, 0.0
    %8847 = vadd.xlane.f32.xlu0 %v8846
    %v8848 = vpop.xlane.xlu0 %8847
    %v8849 = vsel %vm110, %v8763, 0.0
    %8850 = vadd.xlane.f32.xlu0 %v8849
    %v8851 = vpop.xlane.xlu0 %8850
    %v8852 = vsel %vm110, %v8764, 0.0
    %8853 = vadd.xlane.f32.xlu0 %v8852
    %v8854 = vpop.xlane.xlu0 %8853
    %v8855 = vsel %vm110, %v8765, 0.0
    %8856 = vadd.xlane.f32.xlu0 %v8855
    %v8857 = vpop.xlane.xlu0 %8856
    %v8858 = vsel %vm110, %v8766, 0.0
    %8859 = vadd.xlane.f32.xlu0 %v8858
    %v8860 = vpop.xlane.xlu0 %8859
    %v8861 = vsel %vm110, %v8767, 0.0
    %8862 = vadd.xlane.f32.xlu0 %v8861
    %v8863 = vpop.xlane.xlu0 %8862
    %v8896 = vperm.slane %v8770, %v1346
    %v8897 = vperm.slane %v8773, %v1348
    %v8898 = vsel %vm1350, %v8897, %v8896
    %v8899 = vperm.slane %v8776, %v1346
    %v8900 = vperm.slane %v8779, %v1348
    %v8901 = vsel %vm1350, %v8900, %v8899
    %v8902 = vperm.slane %v8782, %v1346
    %v8903 = vperm.slane %v8785, %v1348
    %v8904 = vsel %vm1350, %v8903, %v8902
    %v8905 = vperm.slane %v8788, %v1346
    %v8906 = vperm.slane %v8791, %v1348
    %v8907 = vsel %vm1350, %v8906, %v8905
    %v8908 = vperm.slane %v8794, %v1346
    %v8909 = vperm.slane %v8797, %v1348
    %v8910 = vsel %vm1350, %v8909, %v8908
    %v8911 = vperm.slane %v8800, %v1346
    %v8912 = vperm.slane %v8803, %v1348
    %v8913 = vsel %vm1350, %v8912, %v8911
    %v8914 = vperm.slane %v8806, %v1346
    %v8915 = vperm.slane %v8809, %v1348
    %v8916 = vsel %vm1350, %v8915, %v8914
    %v8917 = vperm.slane %v8812, %v1346
    %v8918 = vperm.slane %v8815, %v1348
    %v8919 = vsel %vm1350, %v8918, %v8917
    %v8920 = vperm.slane %v8818, %v1346
    %v8921 = vperm.slane %v8821, %v1348
    %v8922 = vsel %vm1350, %v8921, %v8920
    %v8923 = vperm.slane %v8824, %v1346
    %v8924 = vperm.slane %v8827, %v1348
    %v8925 = vsel %vm1350, %v8924, %v8923
    %v8926 = vperm.slane %v8830, %v1346
    %v8927 = vperm.slane %v8833, %v1348
    %v8928 = vsel %vm1350, %v8927, %v8926
    %v8929 = vperm.slane %v8836, %v1346
    %v8930 = vperm.slane %v8839, %v1348
    %v8931 = vsel %vm1350, %v8930, %v8929
    %v8932 = vperm.slane %v8842, %v1346
    %v8933 = vperm.slane %v8845, %v1348
    %v8934 = vsel %vm1350, %v8933, %v8932
    %v8935 = vperm.slane %v8848, %v1346
    %v8936 = vperm.slane %v8851, %v1348
    %v8937 = vsel %vm1350, %v8936, %v8935
    %v8938 = vperm.slane %v8854, %v1346
    %v8939 = vperm.slane %v8857, %v1348
    %v8940 = vsel %vm1350, %v8939, %v8938
    %v8941 = vperm.slane %v8860, %v1346
    %v8942 = vperm.slane %v8863, %v1348
    %v8943 = vsel %vm1350, %v8942, %v8941
    %v8944 = vsel %vm1254, %v8901, %v8898
    %v8945 = vsel %vm1256, %v8904, %v8944
    %v8946 = vsel %vm1258, %v8907, %v8945
    %v8947 = vsel %vm1260, %v8910, %v8946
    %v8948 = vsel %vm1262, %v8913, %v8947
    %v8949 = vsel %vm1264, %v8916, %v8948
    %v8950 = vsel %vm1252, %v8919, %v8949
    %v8951 = vsel %vm1254, %v8925, %v8922
    %v8952 = vsel %vm1256, %v8928, %v8951
    %v8953 = vsel %vm1258, %v8931, %v8952
    %v8954 = vsel %vm1260, %v8934, %v8953
    %v8955 = vsel %vm1262, %v8937, %v8954
    %v8956 = vsel %vm1264, %v8940, %v8955
    %v8957 = vsel %vm1252, %v8943, %v8956
    %v8960 = vsel %vm110, %v8950, 0.0
    %8961 = vadd.xlane.f32.xlu0 %v8960
    %v8962 = vpop.xlane.xlu0 %8961
    %v8963 = vsel %vm110, %v8957, 0.0
    %8964 = vadd.xlane.f32.xlu0 %v8963
    %v8965 = vpop.xlane.xlu0 %8964
    %v8966 = vmul.f32 %v8962, 0.00390625
    %v8967 = vmul.f32 %v8965, 0.00390625
    %v8968 = vrsqrt.pop %v8966
    %v8969 = vmul.f32 %v8968, %v8966
    %v8970 = vmul.f32 %v8969, %v8968
    %v8971 = vmul.f32 0.5, %v8970
    %v8972 = vsub.f32 1.5, %v8971
    %v8973 = vmul.f32 %v8968, %v8972
    %v8974 = vmul.f32 %v8966, %v8973
    %vm8975 = vcmp.eq.f32.partialorder %v8966, inf
    %v8976 = vsel %vm8975, %v8966, %v8974
    %vm8977 = vcmp.eq.f32.partialorder %v8966, 0.0
    %v8978 = vand.u32 %v8966, 2147483648
    %v8979 = vsel %vm8977, %v8978, %v8976
    %v8980 = vrsqrt.pop %v8967
    %v8981 = vmul.f32 %v8980, %v8967
    %v8982 = vmul.f32 %v8981, %v8980
    %v8983 = vmul.f32 0.5, %v8982
    %v8984 = vsub.f32 1.5, %v8983
    %v8985 = vmul.f32 %v8980, %v8984
    %v8986 = vmul.f32 %v8967, %v8985
    %vm8987 = vcmp.eq.f32.partialorder %v8967, inf
    %v8988 = vsel %vm8987, %v8967, %v8986
    %vm8989 = vcmp.eq.f32.partialorder %v8967, 0.0
    %v8990 = vand.u32 %v8967, 2147483648
    %v8991 = vsel %vm8989, %v8990, %v8988
    %v8992 = vrsqrt.pop %v8979
    %v8993 = vmul.f32 %v8992, %v8979
    %v8994 = vmul.f32 %v8993, %v8992
    %v8995 = vmul.f32 0.5, %v8994
    %v8996 = vsub.f32 1.5, %v8995
    %v8997 = vmul.f32 %v8992, %v8996
    %v8998 = vmul.f32 %v8979, %v8997
    %vm8999 = vcmp.eq.f32.partialorder %v8979, inf
    %v9000 = vsel %vm8999, %v8979, %v8998
    %vm9001 = vcmp.eq.f32.partialorder %v8979, 0.0
    %v9002 = vand.u32 %v8979, 2147483648
    %v9003 = vsel %vm9001, %v9002, %v9000
    %v9004 = vrsqrt.pop %v8991
    %v9005 = vmul.f32 %v9004, %v8991
    %v9006 = vmul.f32 %v9005, %v9004
    %v9007 = vmul.f32 0.5, %v9006
    %v9008 = vsub.f32 1.5, %v9007
    %v9009 = vmul.f32 %v9004, %v9008
    %v9010 = vmul.f32 %v8991, %v9009
    %vm9011 = vcmp.eq.f32.partialorder %v8991, inf
    %v9012 = vsel %vm9011, %v8991, %v9010
    %vm9013 = vcmp.eq.f32.partialorder %v8991, 0.0
    %v9014 = vand.u32 %v8991, 2147483648
    %v9015 = vsel %vm9013, %v9014, %v9012
    %v9018 = vperm.slane %v9003, %v1346
    %v9019 = vperm.slane %v9015, %v1348
    %v9020 = vsel %vm1350, %v9019, %v9018
    %s9022 = scalar_lea.vmem %s3, 1
    %9023 = vst.msk [vmem:[%s9022] sm:$0x1] %vm8221, %v9020
    // Predicated region
    $region22: #{_lambda_.2} parent=1 // pred_check
      _
    $region23: #{_lambda_.2} parent=1 // pred_check_branch
      %9025 = sbr.rel (0) target = $region25
    $region24: #{_lambda_.2} parent=1 // pred_region
      _
    $region25: #{_lambda_.2} parent=1 // pred_fallthru
      _
    // Predicated region
    $region26: #{_lambda_.2} parent=1 // pred_check
      _
    $region27: #{_lambda_.2} parent=1 // pred_check_branch
      %9027 = sbr.rel (0) target = $region29
    $region28: #{_lambda_.2} parent=1 // pred_region
      _
    $region29: #{_lambda_.2} parent=1 // pred_fallthru
      _
    %9028 = vsyncpa [#allocation4], 1
    %9029 = vsyncpa [#allocation6], 1

</llo_original>
